<compile_context>
chip_gen: v7x
topology: tpu7x:2x2x1
jax: 0.10.0
libtpu: 0.0.40
codegen_flags: <defaults>
</compile_context>

<pallas_src>
import functools

import jax
import jax.numpy as jnp
from jax.experimental import pallas as pl
from jax.experimental.pallas import tpu as pltpu

_VMEM = functools.partial(pl.BlockSpec, memory_space=pltpu.MemorySpace.VMEM)


# ----------------------------- in-kernel helpers ---------------------------- #

def _ln_rows(x, g, b, eps=1e-5):
    """Row-wise LayerNorm over the last dim (f32 math, eps=1e-5)."""
    mu = jnp.mean(x, axis=-1, keepdims=True)
    var = jnp.mean(jnp.square(x - mu), axis=-1, keepdims=True)
    return (x - mu) * jax.lax.rsqrt(var + eps) * g + b


def _softmax_lastdim(s):
    s = s - jnp.max(s, axis=-1, keepdims=True)
    p = jnp.exp(s)
    # divide -> EUP reciprocal + VPU multiply (frees VALU slots)
    return p * pl.reciprocal(jnp.sum(p, axis=-1, keepdims=True), approx=True)


# ------------------------------- fused kernel ------------------------------- #

def _fused_vit_kernel(*refs, layers, B, Tp, Np, E, nh):
    L = Np + 1
    dh = E // nh
    BT = B * Tp

    it = iter(refs[:-1])
    out_ref = refs[-1]
    nxt = lambda: next(it)[...]

    patches = nxt()                 # (BT*Np, K)
    conv_w = nxt()                  # (K, E)
    cls_row = nxt()                 # (1, E)
    pos = nxt()                     # (L, E)
    ln_pre_g = nxt(); ln_pre_b = nxt()

    blocks = []
    for _ in range(layers):
        blocks.append(dict(
            ln1_g=nxt(), ln1_b=nxt(), in_w=nxt(), in_b=nxt(),
            out_w=nxt(), out_b=nxt(), ln2_g=nxt(), ln2_b=nxt(),
            fc_w=nxt(), fc_b=nxt(), proj_w=nxt(), proj_b=nxt()))
    head_ln_g = nxt(); head_ln_b = nxt(); head_w = nxt(); head_b = nxt()

    # ---- patch embedding (Conv3d with stride==kernel, bias=False) ----
    emb = jnp.dot(patches, conv_w, preferred_element_type=jnp.float32)  # (BT*Np, E)

    # ---- class token + positional embedding, per frame ----
    frames = []
    for f in range(BT):
        emb_f = emb[f * Np:(f + 1) * Np, :]
        frames.append(jnp.concatenate([cls_row, emb_f], axis=0) + pos)   # (L, E)
    x2 = jnp.concatenate(frames, axis=0)                                 # (BT*L, E)

    # ---- ln_pre ----
    x2 = _ln_rows(x2, ln_pre_g, ln_pre_b)

    # ---- transformer blocks ----
    for p in blocks:
        # attention branch: x + out_proj(attn(ln_1(x)))
        h = _ln_rows(x2, p['ln1_g'], p['ln1_b'])
        qkv = jnp.dot(h, p['in_w'], preferred_element_type=jnp.float32) + p['in_b']

        attn_frames = []
        for f in range(BT):                      # attention is frame-local
            qkv_f = qkv[f * L:(f + 1) * L, :]    # (L, 3E)
            heads = []
            for hh in range(nh):                 # static lane slices per head
                q = qkv_f[:, hh * dh:(hh + 1) * dh]               # pre-scaled
                k = qkv_f[:, E + hh * dh:E + (hh + 1) * dh]
                v = qkv_f[:, 2 * E + hh * dh:2 * E + (hh + 1) * dh]
                s = jnp.einsum('ld,md->lm', q, k,
                               preferred_element_type=jnp.float32)  # (L, L)
                pr = _softmax_lastdim(s)
                heads.append(jnp.dot(pr, v,
                                     preferred_element_type=jnp.float32))
            attn_frames.append(jnp.concatenate(heads, axis=-1))     # (L, E)
        attn = jnp.concatenate(attn_frames, axis=0)                 # (BT*L, E)
        attn = jnp.dot(attn, p['out_w'],
                       preferred_element_type=jnp.float32) + p['out_b']
        x2 = x2 + attn

        # MLP branch: x + c_proj(quickgelu(c_fc(ln_2(x))))
        h = _ln_rows(x2, p['ln2_g'], p['ln2_b'])
        h = jnp.dot(h, p['fc_w'], preferred_element_type=jnp.float32) + p['fc_b']
        h = h * jax.nn.sigmoid(1.702 * h)                           # QuickGELU
        h = jnp.dot(h, p['proj_w'], preferred_element_type=jnp.float32) + p['proj_b']
        x2 = x2 + h

    # ---- class-token pooling over frames (mean over Tp) ----
    pooled_rows = []
    for b in range(B):
        acc = x2[(b * Tp) * L:(b * Tp) * L + 1, :]
        for t in range(1, Tp):
            acc = acc + x2[(b * Tp + t) * L:(b * Tp + t) * L + 1, :]
        pooled_rows.append(acc * (1.0 / Tp))
    pooled = jnp.concatenate(pooled_rows, axis=0)                   # (B, E)

    # ---- classifier head: LayerNorm -> Dropout(identity) -> Linear ----
    hp = _ln_rows(pooled, head_ln_g, head_ln_b)
    logits = jnp.dot(hp, head_w, preferred_element_type=jnp.float32) + head_b
    out_ref[...] = logits.astype(out_ref.dtype)


# --------------------------- model forward (wrapper) ------------------------ #

def vision_transformer_forward(x, params, cfg):
    B, Cin, T, H, W = x.shape
    kt, ps = cfg['kernel_size'], cfg['patch_size']
    E, nh = cfg['width'], cfg['heads']
    layers, ncls = cfg['layers'], cfg['num_classes']
    Tp, Hp, Wp = T // kt, H // ps, W // ps
    Np = Hp * Wp
    BT = B * Tp
    dh = E // nh
    K = Cin * kt * ps * ps

    # Patchify: Conv3d(stride==kernel) == non-overlapping patch extraction.
    patches = x.reshape(B, Cin, Tp, kt, Hp, ps, Wp, ps)
    patches = patches.transpose(0, 2, 4, 6, 1, 3, 5, 7).reshape(BT * Np, K)

    # Parameter prep: conv filter as matmul weight, attention scale folded
    # into the Q columns of the in-projection, 1-D params as (1, N) rows.
    conv_w = params['conv_w'].reshape(E, K).T                       # (K, E)
    scale = 1.0 / (dh ** 0.5)
    qscale = jnp.concatenate(
        [jnp.full((E,), scale, jnp.float32), jnp.ones((2 * E,), jnp.float32)])

    def row(v):
        return v.reshape(1, -1)

    inputs = [patches, conv_w,
              row(params['class_embedding']),
              params['positional_embedding'],
              row(params['ln_pre_g']), row(params['ln_pre_b'])]
    for p in params['blocks']:
        in_w = p['in_w'] * qscale[None, :]
        in_b = p['in_b'] * qscale
        inputs += [row(p['ln1_g']), row(p['ln1_b']), in_w, row(in_b),
                   p['out_w'], row(p['out_b']),
                   row(p['ln2_g']), row(p['ln2_b']),
                   p['fc_w'], row(p['fc_b']), p['proj_w'], row(p['proj_b'])]
    inputs += [row(params['head_ln_g']), row(params['head_ln_b']),
               params['head_w'], row(params['head_b'])]

    kernel = functools.partial(_fused_vit_kernel, layers=layers, B=B, Tp=Tp,
                               Np=Np, E=E, nh=nh)
    # Single whole-array pallas_call; everything fits trivially in VMEM on
    # v5e/v6e/v7x.  (At real CLIP sizes this would switch to a row-tiled grid
    # with a "parallel" axis for megacore — not needed at these shapes.)
    return pl.pallas_call(
        kernel,
        out_shape=jax.ShapeDtypeStruct((B, ncls), jnp.float32),
        in_specs=[_VMEM()] * len(inputs),
        out_specs=_VMEM(),
    )(*inputs)


# ------------------------------- parameters --------------------------------- #

def init_params(key, *, input_resolution, patch_size, width, layers, heads,
                kernel_size, num_classes):
    del heads  # head count is a forward-time config, no params of its own
    scale = width ** -0.5
    n_keys = 4 + 4 * layers
    keys = iter(jax.random.split(key, n_keys))

    def nrm(shape, s=0.02):
        return (s * jax.random.normal(next(keys), shape)).astype(jnp.float32)

    n_pos = (input_resolution // patch_size) ** 2 + 1
    params = {
        'conv_w': nrm((width, 3, kernel_size, patch_size, patch_size)),
        'class_embedding': nrm((width,), scale),
        'positional_embedding': nrm((n_pos, width), scale),
        'ln_pre_g': jnp.ones((width,), jnp.float32),
        'ln_pre_b': jnp.zeros((width,), jnp.float32),
        'head_ln_g': jnp.ones((width,), jnp.float32),
        'head_ln_b': jnp.zeros((width,), jnp.float32),
        'head_w': nrm((width, num_classes)),
        'head_b': jnp.zeros((num_classes,), jnp.float32),
        'blocks': [],
    }
    for _ in range(layers):
        params['blocks'].append({
            'ln1_g': jnp.ones((width,), jnp.float32),
            'ln1_b': jnp.zeros((width,), jnp.float32),
            'in_w': nrm((width, 3 * width)),          # = in_proj_weight.T
            'in_b': jnp.zeros((3 * width,), jnp.float32),
            'out_w': nrm((width, width)),             # = out_proj.weight.T
            'out_b': jnp.zeros((width,), jnp.float32),
            'ln2_g': jnp.ones((width,), jnp.float32),
            'ln2_b': jnp.zeros((width,), jnp.float32),
            'fc_w': nrm((width, 4 * width)),
            'fc_b': jnp.zeros((4 * width,), jnp.float32),
            'proj_w': nrm((4 * width, width)),
            'proj_b': jnp.zeros((width,), jnp.float32),
        })
    return params


# ---------------------------------- main ------------------------------------ #

if __name__ == "__main__":
    cfg = dict(input_resolution=16, patch_size=8, width=32, layers=2, heads=4,
               kernel_size=1, num_classes=16)
    key = jax.random.PRNGKey(0)
    kp, kx = jax.random.split(key)
    params = init_params(kp, **cfg)

    B, T = 2, 2
    x = jax.random.normal(
        kx, (B, 3, T, cfg['input_resolution'], cfg['input_resolution']),
        dtype=jnp.float32)

    fwd = jax.jit(functools.partial(vision_transformer_forward, cfg=cfg))
    out = fwd(x, params)
    out = jax.block_until_ready(out)
    assert out.shape == (B, cfg['num_classes']), out.shape
    print("KERNEL_OK")
</pallas_src>

<mosaic_0001>
module attributes {stable_mosaic.version = 11 : i64} {
  func.func @_fused_vit_kernel(%arg0: memref<16x192xf32, #tpu.memory_space<vmem>>, %arg1: memref<192x32xf32, #tpu.memory_space<vmem>>, %arg2: memref<1x32xf32, #tpu.memory_space<vmem>>, %arg3: memref<5x32xf32, #tpu.memory_space<vmem>>, %arg4: memref<1x32xf32, #tpu.memory_space<vmem>>, %arg5: memref<1x32xf32, #tpu.memory_space<vmem>>, %arg6: memref<1x32xf32, #tpu.memory_space<vmem>>, %arg7: memref<1x32xf32, #tpu.memory_space<vmem>>, %arg8: memref<32x96xf32, #tpu.memory_space<vmem>>, %arg9: memref<1x96xf32, #tpu.memory_space<vmem>>, %arg10: memref<32x32xf32, #tpu.memory_space<vmem>>, %arg11: memref<1x32xf32, #tpu.memory_space<vmem>>, %arg12: memref<1x32xf32, #tpu.memory_space<vmem>>, %arg13: memref<1x32xf32, #tpu.memory_space<vmem>>, %arg14: memref<32x128xf32, #tpu.memory_space<vmem>>, %arg15: memref<1x128xf32, #tpu.memory_space<vmem>>, %arg16: memref<128x32xf32, #tpu.memory_space<vmem>>, %arg17: memref<1x32xf32, #tpu.memory_space<vmem>>, %arg18: memref<1x32xf32, #tpu.memory_space<vmem>>, %arg19: memref<1x32xf32, #tpu.memory_space<vmem>>, %arg20: memref<32x96xf32, #tpu.memory_space<vmem>>, %arg21: memref<1x96xf32, #tpu.memory_space<vmem>>, %arg22: memref<32x32xf32, #tpu.memory_space<vmem>>, %arg23: memref<1x32xf32, #tpu.memory_space<vmem>>, %arg24: memref<1x32xf32, #tpu.memory_space<vmem>>, %arg25: memref<1x32xf32, #tpu.memory_space<vmem>>, %arg26: memref<32x128xf32, #tpu.memory_space<vmem>>, %arg27: memref<1x128xf32, #tpu.memory_space<vmem>>, %arg28: memref<128x32xf32, #tpu.memory_space<vmem>>, %arg29: memref<1x32xf32, #tpu.memory_space<vmem>>, %arg30: memref<1x32xf32, #tpu.memory_space<vmem>>, %arg31: memref<1x32xf32, #tpu.memory_space<vmem>>, %arg32: memref<32x16xf32, #tpu.memory_space<vmem>>, %arg33: memref<1x16xf32, #tpu.memory_space<vmem>>, %arg34: memref<2x16xf32, #tpu.memory_space<vmem>>) attributes {dimension_semantics = [], scalar_prefetch = 0 : i64, scratch_operands = 0 : i64, tpu.core_type = #tpu.core_type<tc>} {
    %c0 = arith.constant 0 : index
    %c0_0 = arith.constant 0 : index
    %0 = vector.load %arg0[%c0, %c0_0] : memref<16x192xf32, #tpu.memory_space<vmem>>, vector<16x192xf32>
    %c0_1 = arith.constant 0 : index
    %c0_2 = arith.constant 0 : index
    %1 = vector.load %arg1[%c0_1, %c0_2] : memref<192x32xf32, #tpu.memory_space<vmem>>, vector<192x32xf32>
    %c0_3 = arith.constant 0 : index
    %c0_4 = arith.constant 0 : index
    %2 = vector.load %arg2[%c0_3, %c0_4] : memref<1x32xf32, #tpu.memory_space<vmem>>, vector<1x32xf32>
    %c0_5 = arith.constant 0 : index
    %c0_6 = arith.constant 0 : index
    %3 = vector.load %arg3[%c0_5, %c0_6] : memref<5x32xf32, #tpu.memory_space<vmem>>, vector<5x32xf32>
    %c0_7 = arith.constant 0 : index
    %c0_8 = arith.constant 0 : index
    %4 = vector.load %arg4[%c0_7, %c0_8] : memref<1x32xf32, #tpu.memory_space<vmem>>, vector<1x32xf32>
    %c0_9 = arith.constant 0 : index
    %c0_10 = arith.constant 0 : index
    %5 = vector.load %arg5[%c0_9, %c0_10] : memref<1x32xf32, #tpu.memory_space<vmem>>, vector<1x32xf32>
    %c0_11 = arith.constant 0 : index
    %c0_12 = arith.constant 0 : index
    %6 = vector.load %arg6[%c0_11, %c0_12] : memref<1x32xf32, #tpu.memory_space<vmem>>, vector<1x32xf32>
    %c0_13 = arith.constant 0 : index
    %c0_14 = arith.constant 0 : index
    %7 = vector.load %arg7[%c0_13, %c0_14] : memref<1x32xf32, #tpu.memory_space<vmem>>, vector<1x32xf32>
    %c0_15 = arith.constant 0 : index
    %c0_16 = arith.constant 0 : index
    %8 = vector.load %arg8[%c0_15, %c0_16] : memref<32x96xf32, #tpu.memory_space<vmem>>, vector<32x96xf32>
    %c0_17 = arith.constant 0 : index
    %c0_18 = arith.constant 0 : index
    %9 = vector.load %arg9[%c0_17, %c0_18] : memref<1x96xf32, #tpu.memory_space<vmem>>, vector<1x96xf32>
    %c0_19 = arith.constant 0 : index
    %c0_20 = arith.constant 0 : index
    %10 = vector.load %arg10[%c0_19, %c0_20] : memref<32x32xf32, #tpu.memory_space<vmem>>, vector<32x32xf32>
    %c0_21 = arith.constant 0 : index
    %c0_22 = arith.constant 0 : index
    %11 = vector.load %arg11[%c0_21, %c0_22] : memref<1x32xf32, #tpu.memory_space<vmem>>, vector<1x32xf32>
    %c0_23 = arith.constant 0 : index
    %c0_24 = arith.constant 0 : index
    %12 = vector.load %arg12[%c0_23, %c0_24] : memref<1x32xf32, #tpu.memory_space<vmem>>, vector<1x32xf32>
    %c0_25 = arith.constant 0 : index
    %c0_26 = arith.constant 0 : index
    %13 = vector.load %arg13[%c0_25, %c0_26] : memref<1x32xf32, #tpu.memory_space<vmem>>, vector<1x32xf32>
    %c0_27 = arith.constant 0 : index
    %c0_28 = arith.constant 0 : index
    %14 = vector.load %arg14[%c0_27, %c0_28] : memref<32x128xf32, #tpu.memory_space<vmem>>, vector<32x128xf32>
    %c0_29 = arith.constant 0 : index
    %c0_30 = arith.constant 0 : index
    %15 = vector.load %arg15[%c0_29, %c0_30] : memref<1x128xf32, #tpu.memory_space<vmem>>, vector<1x128xf32>
    %c0_31 = arith.constant 0 : index
    %c0_32 = arith.constant 0 : index
    %16 = vector.load %arg16[%c0_31, %c0_32] : memref<128x32xf32, #tpu.memory_space<vmem>>, vector<128x32xf32>
    %c0_33 = arith.constant 0 : index
    %c0_34 = arith.constant 0 : index
    %17 = vector.load %arg17[%c0_33, %c0_34] : memref<1x32xf32, #tpu.memory_space<vmem>>, vector<1x32xf32>
    %c0_35 = arith.constant 0 : index
    %c0_36 = arith.constant 0 : index
    %18 = vector.load %arg18[%c0_35, %c0_36] : memref<1x32xf32, #tpu.memory_space<vmem>>, vector<1x32xf32>
    %c0_37 = arith.constant 0 : index
    %c0_38 = arith.constant 0 : index
    %19 = vector.load %arg19[%c0_37, %c0_38] : memref<1x32xf32, #tpu.memory_space<vmem>>, vector<1x32xf32>
    %c0_39 = arith.constant 0 : index
    %c0_40 = arith.constant 0 : index
    %20 = vector.load %arg20[%c0_39, %c0_40] : memref<32x96xf32, #tpu.memory_space<vmem>>, vector<32x96xf32>
    %c0_41 = arith.constant 0 : index
    %c0_42 = arith.constant 0 : index
    %21 = vector.load %arg21[%c0_41, %c0_42] : memref<1x96xf32, #tpu.memory_space<vmem>>, vector<1x96xf32>
    %c0_43 = arith.constant 0 : index
    %c0_44 = arith.constant 0 : index
    %22 = vector.load %arg22[%c0_43, %c0_44] : memref<32x32xf32, #tpu.memory_space<vmem>>, vector<32x32xf32>
    %c0_45 = arith.constant 0 : index
    %c0_46 = arith.constant 0 : index
    %23 = vector.load %arg23[%c0_45, %c0_46] : memref<1x32xf32, #tpu.memory_space<vmem>>, vector<1x32xf32>
    %c0_47 = arith.constant 0 : index
    %c0_48 = arith.constant 0 : index
    %24 = vector.load %arg24[%c0_47, %c0_48] : memref<1x32xf32, #tpu.memory_space<vmem>>, vector<1x32xf32>
    %c0_49 = arith.constant 0 : index
    %c0_50 = arith.constant 0 : index
    %25 = vector.load %arg25[%c0_49, %c0_50] : memref<1x32xf32, #tpu.memory_space<vmem>>, vector<1x32xf32>
    %c0_51 = arith.constant 0 : index
    %c0_52 = arith.constant 0 : index
    %26 = vector.load %arg26[%c0_51, %c0_52] : memref<32x128xf32, #tpu.memory_space<vmem>>, vector<32x128xf32>
    %c0_53 = arith.constant 0 : index
    %c0_54 = arith.constant 0 : index
    %27 = vector.load %arg27[%c0_53, %c0_54] : memref<1x128xf32, #tpu.memory_space<vmem>>, vector<1x128xf32>
    %c0_55 = arith.constant 0 : index
    %c0_56 = arith.constant 0 : index
    %28 = vector.load %arg28[%c0_55, %c0_56] : memref<128x32xf32, #tpu.memory_space<vmem>>, vector<128x32xf32>
    %c0_57 = arith.constant 0 : index
    %c0_58 = arith.constant 0 : index
    %29 = vector.load %arg29[%c0_57, %c0_58] : memref<1x32xf32, #tpu.memory_space<vmem>>, vector<1x32xf32>
    %c0_59 = arith.constant 0 : index
    %c0_60 = arith.constant 0 : index
    %30 = vector.load %arg30[%c0_59, %c0_60] : memref<1x32xf32, #tpu.memory_space<vmem>>, vector<1x32xf32>
    %c0_61 = arith.constant 0 : index
    %c0_62 = arith.constant 0 : index
    %31 = vector.load %arg31[%c0_61, %c0_62] : memref<1x32xf32, #tpu.memory_space<vmem>>, vector<1x32xf32>
    %c0_63 = arith.constant 0 : index
    %c0_64 = arith.constant 0 : index
    %32 = vector.load %arg32[%c0_63, %c0_64] : memref<32x16xf32, #tpu.memory_space<vmem>>, vector<32x16xf32>
    %c0_65 = arith.constant 0 : index
    %c0_66 = arith.constant 0 : index
    %33 = vector.load %arg33[%c0_65, %c0_66] : memref<1x16xf32, #tpu.memory_space<vmem>>, vector<1x16xf32>
    %cst = arith.constant dense<0.000000e+00> : vector<16x32xf32>
    %34 = tpu.matmul %0, %1, %cst {dimension_numbers = #tpu.dot_dimension_numbers<[1], [0], [0], [1], [0, 0, 1, 1], [], []>} : vector<16x192xf32>, vector<192x32xf32>, vector<16x32xf32> -> vector<16x32xf32>
    %35 = vector.extract_strided_slice %34 {offsets = [0, 0], sizes = [4, 32], strides = [1, 1]} : vector<16x32xf32> to vector<4x32xf32>
    %36 = tpu.concatenate %2, %35 in 0 : vector<1x32xf32>, vector<4x32xf32> -> vector<5x32xf32>
    %37 = arith.addf %36, %3 : vector<5x32xf32>
    %38 = vector.extract_strided_slice %34 {offsets = [4, 0], sizes = [4, 32], strides = [1, 1]} : vector<16x32xf32> to vector<4x32xf32>
    %39 = tpu.concatenate %2, %38 in 0 : vector<1x32xf32>, vector<4x32xf32> -> vector<5x32xf32>
    %40 = arith.addf %39, %3 : vector<5x32xf32>
    %41 = vector.extract_strided_slice %34 {offsets = [8, 0], sizes = [4, 32], strides = [1, 1]} : vector<16x32xf32> to vector<4x32xf32>
    %42 = tpu.concatenate %2, %41 in 0 : vector<1x32xf32>, vector<4x32xf32> -> vector<5x32xf32>
    %43 = arith.addf %42, %3 : vector<5x32xf32>
    %44 = vector.extract_strided_slice %34 {offsets = [12, 0], sizes = [4, 32], strides = [1, 1]} : vector<16x32xf32> to vector<4x32xf32>
    %45 = tpu.concatenate %2, %44 in 0 : vector<1x32xf32>, vector<4x32xf32> -> vector<5x32xf32>
    %46 = arith.addf %45, %3 : vector<5x32xf32>
    %47 = tpu.concatenate %37, %40, %43, %46 in 0 : vector<5x32xf32>, vector<5x32xf32>, vector<5x32xf32>, vector<5x32xf32> -> vector<20x32xf32>
    %cst_67 = arith.constant dense<0.000000e+00> : vector<20xf32>
    %48 = vector.multi_reduction <add>, %47, %cst_67 [1] : vector<20x32xf32> to vector<20xf32>
    %49 = vector.shape_cast %48 : vector<20xf32> to vector<20x1xf32>
    %cst_68 = arith.constant 3.200000e+01 : f32
    %50 = vector.broadcast %cst_68 : f32 to vector<20x1xf32>
    %51 = arith.divf %49, %50 : vector<20x1xf32>
    %52 = vector.broadcast %51 : vector<20x1xf32> to vector<20x32xf32>
    %53 = arith.subf %47, %52 : vector<20x32xf32>
    %54 = arith.mulf %53, %53 : vector<20x32xf32>
    %cst_69 = arith.constant dense<0.000000e+00> : vector<20xf32>
    %55 = vector.multi_reduction <add>, %54, %cst_69 [1] : vector<20x32xf32> to vector<20xf32>
    %56 = vector.shape_cast %55 : vector<20xf32> to vector<20x1xf32>
    %cst_70 = arith.constant 3.200000e+01 : f32
    %57 = vector.broadcast %cst_70 : f32 to vector<20x1xf32>
    %58 = arith.divf %56, %57 : vector<20x1xf32>
    %59 = vector.broadcast %51 : vector<20x1xf32> to vector<20x32xf32>
    %60 = arith.subf %47, %59 : vector<20x32xf32>
    %cst_71 = arith.constant 9.99999974E-6 : f32
    %61 = vector.broadcast %cst_71 : f32 to vector<20x1xf32>
    %62 = arith.addf %58, %61 : vector<20x1xf32>
    %63 = math.rsqrt %62 : vector<20x1xf32>
    %64 = vector.broadcast %63 : vector<20x1xf32> to vector<20x32xf32>
    %65 = arith.mulf %60, %64 : vector<20x32xf32>
    %66 = vector.broadcast %4 : vector<1x32xf32> to vector<20x32xf32>
    %67 = arith.mulf %65, %66 : vector<20x32xf32>
    %68 = vector.broadcast %5 : vector<1x32xf32> to vector<20x32xf32>
    %69 = arith.addf %67, %68 : vector<20x32xf32>
    %cst_72 = arith.constant dense<0.000000e+00> : vector<20xf32>
    %70 = vector.multi_reduction <add>, %69, %cst_72 [1] : vector<20x32xf32> to vector<20xf32>
    %71 = vector.shape_cast %70 : vector<20xf32> to vector<20x1xf32>
    %cst_73 = arith.constant 3.200000e+01 : f32
    %72 = vector.broadcast %cst_73 : f32 to vector<20x1xf32>
    %73 = arith.divf %71, %72 : vector<20x1xf32>
    %74 = vector.broadcast %73 : vector<20x1xf32> to vector<20x32xf32>
    %75 = arith.subf %69, %74 : vector<20x32xf32>
    %76 = arith.mulf %75, %75 : vector<20x32xf32>
    %cst_74 = arith.constant dense<0.000000e+00> : vector<20xf32>
    %77 = vector.multi_reduction <add>, %76, %cst_74 [1] : vector<20x32xf32> to vector<20xf32>
    %78 = vector.shape_cast %77 : vector<20xf32> to vector<20x1xf32>
    %cst_75 = arith.constant 3.200000e+01 : f32
    %79 = vector.broadcast %cst_75 : f32 to vector<20x1xf32>
    %80 = arith.divf %78, %79 : vector<20x1xf32>
    %81 = vector.broadcast %73 : vector<20x1xf32> to vector<20x32xf32>
    %82 = arith.subf %69, %81 : vector<20x32xf32>
    %cst_76 = arith.constant 9.99999974E-6 : f32
    %83 = vector.broadcast %cst_76 : f32 to vector<20x1xf32>
    %84 = arith.addf %80, %83 : vector<20x1xf32>
    %85 = math.rsqrt %84 : vector<20x1xf32>
    %86 = vector.broadcast %85 : vector<20x1xf32> to vector<20x32xf32>
    %87 = arith.mulf %82, %86 : vector<20x32xf32>
    %88 = vector.broadcast %6 : vector<1x32xf32> to vector<20x32xf32>
    %89 = arith.mulf %87, %88 : vector<20x32xf32>
    %90 = vector.broadcast %7 : vector<1x32xf32> to vector<20x32xf32>
    %91 = arith.addf %89, %90 : vector<20x32xf32>
    %cst_77 = arith.constant dense<0.000000e+00> : vector<20x96xf32>
    %92 = tpu.matmul %91, %8, %cst_77 {dimension_numbers = #tpu.dot_dimension_numbers<[1], [0], [0], [1], [0, 0, 1, 1], [], []>} : vector<20x32xf32>, vector<32x96xf32>, vector<20x96xf32> -> vector<20x96xf32>
    %93 = vector.broadcast %9 : vector<1x96xf32> to vector<20x96xf32>
    %94 = arith.addf %92, %93 : vector<20x96xf32>
    %95 = vector.extract_strided_slice %94 {offsets = [0, 0], sizes = [5, 96], strides = [1, 1]} : vector<20x96xf32> to vector<5x96xf32>
    %96 = vector.extract_strided_slice %95 {offsets = [0, 0], sizes = [5, 8], strides = [1, 1]} : vector<5x96xf32> to vector<5x8xf32>
    %97 = vector.extract_strided_slice %95 {offsets = [0, 32], sizes = [5, 8], strides = [1, 1]} : vector<5x96xf32> to vector<5x8xf32>
    %98 = vector.extract_strided_slice %95 {offsets = [0, 64], sizes = [5, 8], strides = [1, 1]} : vector<5x96xf32> to vector<5x8xf32>
    "tpu.trace_start"() <{level = 10 : i32, message = "ld,md->lm"}> : () -> ()
    %cst_78 = arith.constant dense<0.000000e+00> : vector<5x5xf32>
    %99 = tpu.matmul %96, %97, %cst_78 {dimension_numbers = #tpu.dot_dimension_numbers<[1], [1], [0], [0], [0, 0, 1, 0], [], []>} : vector<5x8xf32>, vector<5x8xf32>, vector<5x5xf32> -> vector<5x5xf32>
    "tpu.trace_stop"() : () -> ()
    %cst_79 = arith.constant dense<0xFF800000> : vector<5xf32>
    %100 = vector.multi_reduction <maximumf>, %99, %cst_79 [1] : vector<5x5xf32> to vector<5xf32>
    %101 = vector.shape_cast %100 : vector<5xf32> to vector<5x1xf32>
    %102 = vector.broadcast %101 : vector<5x1xf32> to vector<5x5xf32>
    %103 = arith.subf %99, %102 : vector<5x5xf32>
    %104 = math.exp %103 : vector<5x5xf32>
    %cst_80 = arith.constant dense<0.000000e+00> : vector<5xf32>
    %105 = vector.multi_reduction <add>, %104, %cst_80 [1] : vector<5x5xf32> to vector<5xf32>
    %106 = vector.shape_cast %105 : vector<5xf32> to vector<5x1xf32>
    %107 = tpu.reciprocal %106 {approx = true} : vector<5x1xf32> -> vector<5x1xf32>
    %108 = vector.broadcast %107 : vector<5x1xf32> to vector<5x5xf32>
    %109 = arith.mulf %104, %108 : vector<5x5xf32>
    %cst_81 = arith.constant dense<0.000000e+00> : vector<5x8xf32>
    %110 = tpu.matmul %109, %98, %cst_81 {dimension_numbers = #tpu.dot_dimension_numbers<[1], [0], [0], [1], [0, 0, 1, 1], [], []>} : vector<5x5xf32>, vector<5x8xf32>, vector<5x8xf32> -> vector<5x8xf32>
    %111 = vector.extract_strided_slice %95 {offsets = [0, 8], sizes = [5, 8], strides = [1, 1]} : vector<5x96xf32> to vector<5x8xf32>
    %112 = vector.extract_strided_slice %95 {offsets = [0, 40], sizes = [5, 8], strides = [1, 1]} : vector<5x96xf32> to vector<5x8xf32>
    %113 = vector.extract_strided_slice %95 {offsets = [0, 72], sizes = [5, 8], strides = [1, 1]} : vector<5x96xf32> to vector<5x8xf32>
    "tpu.trace_start"() <{level = 10 : i32, message = "ld,md->lm"}> : () -> ()
    %cst_82 = arith.constant dense<0.000000e+00> : vector<5x5xf32>
    %114 = tpu.matmul %111, %112, %cst_82 {dimension_numbers = #tpu.dot_dimension_numbers<[1], [1], [0], [0], [0, 0, 1, 0], [], []>} : vector<5x8xf32>, vector<5x8xf32>, vector<5x5xf32> -> vector<5x5xf32>
    "tpu.trace_stop"() : () -> ()
    %cst_83 = arith.constant dense<0xFF800000> : vector<5xf32>
    %115 = vector.multi_reduction <maximumf>, %114, %cst_83 [1] : vector<5x5xf32> to vector<5xf32>
    %116 = vector.shape_cast %115 : vector<5xf32> to vector<5x1xf32>
    %117 = vector.broadcast %116 : vector<5x1xf32> to vector<5x5xf32>
    %118 = arith.subf %114, %117 : vector<5x5xf32>
    %119 = math.exp %118 : vector<5x5xf32>
    %cst_84 = arith.constant dense<0.000000e+00> : vector<5xf32>
    %120 = vector.multi_reduction <add>, %119, %cst_84 [1] : vector<5x5xf32> to vector<5xf32>
    %121 = vector.shape_cast %120 : vector<5xf32> to vector<5x1xf32>
    %122 = tpu.reciprocal %121 {approx = true} : vector<5x1xf32> -> vector<5x1xf32>
    %123 = vector.broadcast %122 : vector<5x1xf32> to vector<5x5xf32>
    %124 = arith.mulf %119, %123 : vector<5x5xf32>
    %cst_85 = arith.constant dense<0.000000e+00> : vector<5x8xf32>
    %125 = tpu.matmul %124, %113, %cst_85 {dimension_numbers = #tpu.dot_dimension_numbers<[1], [0], [0], [1], [0, 0, 1, 1], [], []>} : vector<5x5xf32>, vector<5x8xf32>, vector<5x8xf32> -> vector<5x8xf32>
    %126 = vector.extract_strided_slice %95 {offsets = [0, 16], sizes = [5, 8], strides = [1, 1]} : vector<5x96xf32> to vector<5x8xf32>
    %127 = vector.extract_strided_slice %95 {offsets = [0, 48], sizes = [5, 8], strides = [1, 1]} : vector<5x96xf32> to vector<5x8xf32>
    %128 = vector.extract_strided_slice %95 {offsets = [0, 80], sizes = [5, 8], strides = [1, 1]} : vector<5x96xf32> to vector<5x8xf32>
    "tpu.trace_start"() <{level = 10 : i32, message = "ld,md->lm"}> : () -> ()
    %cst_86 = arith.constant dense<0.000000e+00> : vector<5x5xf32>
    %129 = tpu.matmul %126, %127, %cst_86 {dimension_numbers = #tpu.dot_dimension_numbers<[1], [1], [0], [0], [0, 0, 1, 0], [], []>} : vector<5x8xf32>, vector<5x8xf32>, vector<5x5xf32> -> vector<5x5xf32>
    "tpu.trace_stop"() : () -> ()
    %cst_87 = arith.constant dense<0xFF800000> : vector<5xf32>
    %130 = vector.multi_reduction <maximumf>, %129, %cst_87 [1] : vector<5x5xf32> to vector<5xf32>
    %131 = vector.shape_cast %130 : vector<5xf32> to vector<5x1xf32>
    %132 = vector.broadcast %131 : vector<5x1xf32> to vector<5x5xf32>
    %133 = arith.subf %129, %132 : vector<5x5xf32>
    %134 = math.exp %133 : vector<5x5xf32>
    %cst_88 = arith.constant dense<0.000000e+00> : vector<5xf32>
    %135 = vector.multi_reduction <add>, %134, %cst_88 [1] : vector<5x5xf32> to vector<5xf32>
    %136 = vector.shape_cast %135 : vector<5xf32> to vector<5x1xf32>
    %137 = tpu.reciprocal %136 {approx = true} : vector<5x1xf32> -> vector<5x1xf32>
    %138 = vector.broadcast %137 : vector<5x1xf32> to vector<5x5xf32>
    %139 = arith.mulf %134, %138 : vector<5x5xf32>
    %cst_89 = arith.constant dense<0.000000e+00> : vector<5x8xf32>
    %140 = tpu.matmul %139, %128, %cst_89 {dimension_numbers = #tpu.dot_dimension_numbers<[1], [0], [0], [1], [0, 0, 1, 1], [], []>} : vector<5x5xf32>, vector<5x8xf32>, vector<5x8xf32> -> vector<5x8xf32>
    %141 = vector.extract_strided_slice %95 {offsets = [0, 24], sizes = [5, 8], strides = [1, 1]} : vector<5x96xf32> to vector<5x8xf32>
    %142 = vector.extract_strided_slice %95 {offsets = [0, 56], sizes = [5, 8], strides = [1, 1]} : vector<5x96xf32> to vector<5x8xf32>
    %143 = vector.extract_strided_slice %95 {offsets = [0, 88], sizes = [5, 8], strides = [1, 1]} : vector<5x96xf32> to vector<5x8xf32>
    "tpu.trace_start"() <{level = 10 : i32, message = "ld,md->lm"}> : () -> ()
    %cst_90 = arith.constant dense<0.000000e+00> : vector<5x5xf32>
    %144 = tpu.matmul %141, %142, %cst_90 {dimension_numbers = #tpu.dot_dimension_numbers<[1], [1], [0], [0], [0, 0, 1, 0], [], []>} : vector<5x8xf32>, vector<5x8xf32>, vector<5x5xf32> -> vector<5x5xf32>
    "tpu.trace_stop"() : () -> ()
    %cst_91 = arith.constant dense<0xFF800000> : vector<5xf32>
    %145 = vector.multi_reduction <maximumf>, %144, %cst_91 [1] : vector<5x5xf32> to vector<5xf32>
    %146 = vector.shape_cast %145 : vector<5xf32> to vector<5x1xf32>
    %147 = vector.broadcast %146 : vector<5x1xf32> to vector<5x5xf32>
    %148 = arith.subf %144, %147 : vector<5x5xf32>
    %149 = math.exp %148 : vector<5x5xf32>
    %cst_92 = arith.constant dense<0.000000e+00> : vector<5xf32>
    %150 = vector.multi_reduction <add>, %149, %cst_92 [1] : vector<5x5xf32> to vector<5xf32>
    %151 = vector.shape_cast %150 : vector<5xf32> to vector<5x1xf32>
    %152 = tpu.reciprocal %151 {approx = true} : vector<5x1xf32> -> vector<5x1xf32>
    %153 = vector.broadcast %152 : vector<5x1xf32> to vector<5x5xf32>
    %154 = arith.mulf %149, %153 : vector<5x5xf32>
    %cst_93 = arith.constant dense<0.000000e+00> : vector<5x8xf32>
    %155 = tpu.matmul %154, %143, %cst_93 {dimension_numbers = #tpu.dot_dimension_numbers<[1], [0], [0], [1], [0, 0, 1, 1], [], []>} : vector<5x5xf32>, vector<5x8xf32>, vector<5x8xf32> -> vector<5x8xf32>
    %156 = tpu.concatenate %110, %125, %140, %155 in 1 : vector<5x8xf32>, vector<5x8xf32>, vector<5x8xf32>, vector<5x8xf32> -> vector<5x32xf32>
    %157 = vector.extract_strided_slice %94 {offsets = [5, 0], sizes = [5, 96], strides = [1, 1]} : vector<20x96xf32> to vector<5x96xf32>
    %158 = vector.extract_strided_slice %157 {offsets = [0, 0], sizes = [5, 8], strides = [1, 1]} : vector<5x96xf32> to vector<5x8xf32>
    %159 = vector.extract_strided_slice %157 {offsets = [0, 32], sizes = [5, 8], strides = [1, 1]} : vector<5x96xf32> to vector<5x8xf32>
    %160 = vector.extract_strided_slice %157 {offsets = [0, 64], sizes = [5, 8], strides = [1, 1]} : vector<5x96xf32> to vector<5x8xf32>
    "tpu.trace_start"() <{level = 10 : i32, message = "ld,md->lm"}> : () -> ()
    %cst_94 = arith.constant dense<0.000000e+00> : vector<5x5xf32>
    %161 = tpu.matmul %158, %159, %cst_94 {dimension_numbers = #tpu.dot_dimension_numbers<[1], [1], [0], [0], [0, 0, 1, 0], [], []>} : vector<5x8xf32>, vector<5x8xf32>, vector<5x5xf32> -> vector<5x5xf32>
    "tpu.trace_stop"() : () -> ()
    %cst_95 = arith.constant dense<0xFF800000> : vector<5xf32>
    %162 = vector.multi_reduction <maximumf>, %161, %cst_95 [1] : vector<5x5xf32> to vector<5xf32>
    %163 = vector.shape_cast %162 : vector<5xf32> to vector<5x1xf32>
    %164 = vector.broadcast %163 : vector<5x1xf32> to vector<5x5xf32>
    %165 = arith.subf %161, %164 : vector<5x5xf32>
    %166 = math.exp %165 : vector<5x5xf32>
    %cst_96 = arith.constant dense<0.000000e+00> : vector<5xf32>
    %167 = vector.multi_reduction <add>, %166, %cst_96 [1] : vector<5x5xf32> to vector<5xf32>
    %168 = vector.shape_cast %167 : vector<5xf32> to vector<5x1xf32>
    %169 = tpu.reciprocal %168 {approx = true} : vector<5x1xf32> -> vector<5x1xf32>
    %170 = vector.broadcast %169 : vector<5x1xf32> to vector<5x5xf32>
    %171 = arith.mulf %166, %170 : vector<5x5xf32>
    %cst_97 = arith.constant dense<0.000000e+00> : vector<5x8xf32>
    %172 = tpu.matmul %171, %160, %cst_97 {dimension_numbers = #tpu.dot_dimension_numbers<[1], [0], [0], [1], [0, 0, 1, 1], [], []>} : vector<5x5xf32>, vector<5x8xf32>, vector<5x8xf32> -> vector<5x8xf32>
    %173 = vector.extract_strided_slice %157 {offsets = [0, 8], sizes = [5, 8], strides = [1, 1]} : vector<5x96xf32> to vector<5x8xf32>
    %174 = vector.extract_strided_slice %157 {offsets = [0, 40], sizes = [5, 8], strides = [1, 1]} : vector<5x96xf32> to vector<5x8xf32>
    %175 = vector.extract_strided_slice %157 {offsets = [0, 72], sizes = [5, 8], strides = [1, 1]} : vector<5x96xf32> to vector<5x8xf32>
    "tpu.trace_start"() <{level = 10 : i32, message = "ld,md->lm"}> : () -> ()
    %cst_98 = arith.constant dense<0.000000e+00> : vector<5x5xf32>
    %176 = tpu.matmul %173, %174, %cst_98 {dimension_numbers = #tpu.dot_dimension_numbers<[1], [1], [0], [0], [0, 0, 1, 0], [], []>} : vector<5x8xf32>, vector<5x8xf32>, vector<5x5xf32> -> vector<5x5xf32>
    "tpu.trace_stop"() : () -> ()
    %cst_99 = arith.constant dense<0xFF800000> : vector<5xf32>
    %177 = vector.multi_reduction <maximumf>, %176, %cst_99 [1] : vector<5x5xf32> to vector<5xf32>
    %178 = vector.shape_cast %177 : vector<5xf32> to vector<5x1xf32>
    %179 = vector.broadcast %178 : vector<5x1xf32> to vector<5x5xf32>
    %180 = arith.subf %176, %179 : vector<5x5xf32>
    %181 = math.exp %180 : vector<5x5xf32>
    %cst_100 = arith.constant dense<0.000000e+00> : vector<5xf32>
    %182 = vector.multi_reduction <add>, %181, %cst_100 [1] : vector<5x5xf32> to vector<5xf32>
    %183 = vector.shape_cast %182 : vector<5xf32> to vector<5x1xf32>
    %184 = tpu.reciprocal %183 {approx = true} : vector<5x1xf32> -> vector<5x1xf32>
    %185 = vector.broadcast %184 : vector<5x1xf32> to vector<5x5xf32>
    %186 = arith.mulf %181, %185 : vector<5x5xf32>
    %cst_101 = arith.constant dense<0.000000e+00> : vector<5x8xf32>
    %187 = tpu.matmul %186, %175, %cst_101 {dimension_numbers = #tpu.dot_dimension_numbers<[1], [0], [0], [1], [0, 0, 1, 1], [], []>} : vector<5x5xf32>, vector<5x8xf32>, vector<5x8xf32> -> vector<5x8xf32>
    %188 = vector.extract_strided_slice %157 {offsets = [0, 16], sizes = [5, 8], strides = [1, 1]} : vector<5x96xf32> to vector<5x8xf32>
    %189 = vector.extract_strided_slice %157 {offsets = [0, 48], sizes = [5, 8], strides = [1, 1]} : vector<5x96xf32> to vector<5x8xf32>
    %190 = vector.extract_strided_slice %157 {offsets = [0, 80], sizes = [5, 8], strides = [1, 1]} : vector<5x96xf32> to vector<5x8xf32>
    "tpu.trace_start"() <{level = 10 : i32, message = "ld,md->lm"}> : () -> ()
    %cst_102 = arith.constant dense<0.000000e+00> : vector<5x5xf32>
    %191 = tpu.matmul %188, %189, %cst_102 {dimension_numbers = #tpu.dot_dimension_numbers<[1], [1], [0], [0], [0, 0, 1, 0], [], []>} : vector<5x8xf32>, vector<5x8xf32>, vector<5x5xf32> -> vector<5x5xf32>
    "tpu.trace_stop"() : () -> ()
    %cst_103 = arith.constant dense<0xFF800000> : vector<5xf32>
    %192 = vector.multi_reduction <maximumf>, %191, %cst_103 [1] : vector<5x5xf32> to vector<5xf32>
    %193 = vector.shape_cast %192 : vector<5xf32> to vector<5x1xf32>
    %194 = vector.broadcast %193 : vector<5x1xf32> to vector<5x5xf32>
    %195 = arith.subf %191, %194 : vector<5x5xf32>
    %196 = math.exp %195 : vector<5x5xf32>
    %cst_104 = arith.constant dense<0.000000e+00> : vector<5xf32>
    %197 = vector.multi_reduction <add>, %196, %cst_104 [1] : vector<5x5xf32> to vector<5xf32>
    %198 = vector.shape_cast %197 : vector<5xf32> to vector<5x1xf32>
    %199 = tpu.reciprocal %198 {approx = true} : vector<5x1xf32> -> vector<5x1xf32>
    %200 = vector.broadcast %199 : vector<5x1xf32> to vector<5x5xf32>
    %201 = arith.mulf %196, %200 : vector<5x5xf32>
    %cst_105 = arith.constant dense<0.000000e+00> : vector<5x8xf32>
    %202 = tpu.matmul %201, %190, %cst_105 {dimension_numbers = #tpu.dot_dimension_numbers<[1], [0], [0], [1], [0, 0, 1, 1], [], []>} : vector<5x5xf32>, vector<5x8xf32>, vector<5x8xf32> -> vector<5x8xf32>
    %203 = vector.extract_strided_slice %157 {offsets = [0, 24], sizes = [5, 8], strides = [1, 1]} : vector<5x96xf32> to vector<5x8xf32>
    %204 = vector.extract_strided_slice %157 {offsets = [0, 56], sizes = [5, 8], strides = [1, 1]} : vector<5x96xf32> to vector<5x8xf32>
    %205 = vector.extract_strided_slice %157 {offsets = [0, 88], sizes = [5, 8], strides = [1, 1]} : vector<5x96xf32> to vector<5x8xf32>
    "tpu.trace_start"() <{level = 10 : i32, message = "ld,md->lm"}> : () -> ()
    %cst_106 = arith.constant dense<0.000000e+00> : vector<5x5xf32>
    %206 = tpu.matmul %203, %204, %cst_106 {dimension_numbers = #tpu.dot_dimension_numbers<[1], [1], [0], [0], [0, 0, 1, 0], [], []>} : vector<5x8xf32>, vector<5x8xf32>, vector<5x5xf32> -> vector<5x5xf32>
    "tpu.trace_stop"() : () -> ()
    %cst_107 = arith.constant dense<0xFF800000> : vector<5xf32>
    %207 = vector.multi_reduction <maximumf>, %206, %cst_107 [1] : vector<5x5xf32> to vector<5xf32>
    %208 = vector.shape_cast %207 : vector<5xf32> to vector<5x1xf32>
    %209 = vector.broadcast %208 : vector<5x1xf32> to vector<5x5xf32>
    %210 = arith.subf %206, %209 : vector<5x5xf32>
    %211 = math.exp %210 : vector<5x5xf32>
    %cst_108 = arith.constant dense<0.000000e+00> : vector<5xf32>
    %212 = vector.multi_reduction <add>, %211, %cst_108 [1] : vector<5x5xf32> to vector<5xf32>
    %213 = vector.shape_cast %212 : vector<5xf32> to vector<5x1xf32>
    %214 = tpu.reciprocal %213 {approx = true} : vector<5x1xf32> -> vector<5x1xf32>
    %215 = vector.broadcast %214 : vector<5x1xf32> to vector<5x5xf32>
    %216 = arith.mulf %211, %215 : vector<5x5xf32>
    %cst_109 = arith.constant dense<0.000000e+00> : vector<5x8xf32>
    %217 = tpu.matmul %216, %205, %cst_109 {dimension_numbers = #tpu.dot_dimension_numbers<[1], [0], [0], [1], [0, 0, 1, 1], [], []>} : vector<5x5xf32>, vector<5x8xf32>, vector<5x8xf32> -> vector<5x8xf32>
    %218 = tpu.concatenate %172, %187, %202, %217 in 1 : vector<5x8xf32>, vector<5x8xf32>, vector<5x8xf32>, vector<5x8xf32> -> vector<5x32xf32>
    %219 = vector.extract_strided_slice %94 {offsets = [10, 0], sizes = [5, 96], strides = [1, 1]} : vector<20x96xf32> to vector<5x96xf32>
    %220 = vector.extract_strided_slice %219 {offsets = [0, 0], sizes = [5, 8], strides = [1, 1]} : vector<5x96xf32> to vector<5x8xf32>
    %221 = vector.extract_strided_slice %219 {offsets = [0, 32], sizes = [5, 8], strides = [1, 1]} : vector<5x96xf32> to vector<5x8xf32>
    %222 = vector.extract_strided_slice %219 {offsets = [0, 64], sizes = [5, 8], strides = [1, 1]} : vector<5x96xf32> to vector<5x8xf32>
    "tpu.trace_start"() <{level = 10 : i32, message = "ld,md->lm"}> : () -> ()
    %cst_110 = arith.constant dense<0.000000e+00> : vector<5x5xf32>
    %223 = tpu.matmul %220, %221, %cst_110 {dimension_numbers = #tpu.dot_dimension_numbers<[1], [1], [0], [0], [0, 0, 1, 0], [], []>} : vector<5x8xf32>, vector<5x8xf32>, vector<5x5xf32> -> vector<5x5xf32>
    "tpu.trace_stop"() : () -> ()
    %cst_111 = arith.constant dense<0xFF800000> : vector<5xf32>
    %224 = vector.multi_reduction <maximumf>, %223, %cst_111 [1] : vector<5x5xf32> to vector<5xf32>
    %225 = vector.shape_cast %224 : vector<5xf32> to vector<5x1xf32>
    %226 = vector.broadcast %225 : vector<5x1xf32> to vector<5x5xf32>
    %227 = arith.subf %223, %226 : vector<5x5xf32>
    %228 = math.exp %227 : vector<5x5xf32>
    %cst_112 = arith.constant dense<0.000000e+00> : vector<5xf32>
    %229 = vector.multi_reduction <add>, %228, %cst_112 [1] : vector<5x5xf32> to vector<5xf32>
    %230 = vector.shape_cast %229 : vector<5xf32> to vector<5x1xf32>
    %231 = tpu.reciprocal %230 {approx = true} : vector<5x1xf32> -> vector<5x1xf32>
    %232 = vector.broadcast %231 : vector<5x1xf32> to vector<5x5xf32>
    %233 = arith.mulf %228, %232 : vector<5x5xf32>
    %cst_113 = arith.constant dense<0.000000e+00> : vector<5x8xf32>
    %234 = tpu.matmul %233, %222, %cst_113 {dimension_numbers = #tpu.dot_dimension_numbers<[1], [0], [0], [1], [0, 0, 1, 1], [], []>} : vector<5x5xf32>, vector<5x8xf32>, vector<5x8xf32> -> vector<5x8xf32>
    %235 = vector.extract_strided_slice %219 {offsets = [0, 8], sizes = [5, 8], strides = [1, 1]} : vector<5x96xf32> to vector<5x8xf32>
    %236 = vector.extract_strided_slice %219 {offsets = [0, 40], sizes = [5, 8], strides = [1, 1]} : vector<5x96xf32> to vector<5x8xf32>
    %237 = vector.extract_strided_slice %219 {offsets = [0, 72], sizes = [5, 8], strides = [1, 1]} : vector<5x96xf32> to vector<5x8xf32>
    "tpu.trace_start"() <{level = 10 : i32, message = "ld,md->lm"}> : () -> ()
    %cst_114 = arith.constant dense<0.000000e+00> : vector<5x5xf32>
    %238 = tpu.matmul %235, %236, %cst_114 {dimension_numbers = #tpu.dot_dimension_numbers<[1], [1], [0], [0], [0, 0, 1, 0], [], []>} : vector<5x8xf32>, vector<5x8xf32>, vector<5x5xf32> -> vector<5x5xf32>
    "tpu.trace_stop"() : () -> ()
    %cst_115 = arith.constant dense<0xFF800000> : vector<5xf32>
    %239 = vector.multi_reduction <maximumf>, %238, %cst_115 [1] : vector<5x5xf32> to vector<5xf32>
    %240 = vector.shape_cast %239 : vector<5xf32> to vector<5x1xf32>
    %241 = vector.broadcast %240 : vector<5x1xf32> to vector<5x5xf32>
    %242 = arith.subf %238, %241 : vector<5x5xf32>
    %243 = math.exp %242 : vector<5x5xf32>
    %cst_116 = arith.constant dense<0.000000e+00> : vector<5xf32>
    %244 = vector.multi_reduction <add>, %243, %cst_116 [1] : vector<5x5xf32> to vector<5xf32>
    %245 = vector.shape_cast %244 : vector<5xf32> to vector<5x1xf32>
    %246 = tpu.reciprocal %245 {approx = true} : vector<5x1xf32> -> vector<5x1xf32>
    %247 = vector.broadcast %246 : vector<5x1xf32> to vector<5x5xf32>
    %248 = arith.mulf %243, %247 : vector<5x5xf32>
    %cst_117 = arith.constant dense<0.000000e+00> : vector<5x8xf32>
    %249 = tpu.matmul %248, %237, %cst_117 {dimension_numbers = #tpu.dot_dimension_numbers<[1], [0], [0], [1], [0, 0, 1, 1], [], []>} : vector<5x5xf32>, vector<5x8xf32>, vector<5x8xf32> -> vector<5x8xf32>
    %250 = vector.extract_strided_slice %219 {offsets = [0, 16], sizes = [5, 8], strides = [1, 1]} : vector<5x96xf32> to vector<5x8xf32>
    %251 = vector.extract_strided_slice %219 {offsets = [0, 48], sizes = [5, 8], strides = [1, 1]} : vector<5x96xf32> to vector<5x8xf32>
    %252 = vector.extract_strided_slice %219 {offsets = [0, 80], sizes = [5, 8], strides = [1, 1]} : vector<5x96xf32> to vector<5x8xf32>
    "tpu.trace_start"() <{level = 10 : i32, message = "ld,md->lm"}> : () -> ()
    %cst_118 = arith.constant dense<0.000000e+00> : vector<5x5xf32>
    %253 = tpu.matmul %250, %251, %cst_118 {dimension_numbers = #tpu.dot_dimension_numbers<[1], [1], [0], [0], [0, 0, 1, 0], [], []>} : vector<5x8xf32>, vector<5x8xf32>, vector<5x5xf32> -> vector<5x5xf32>
    "tpu.trace_stop"() : () -> ()
    %cst_119 = arith.constant dense<0xFF800000> : vector<5xf32>
    %254 = vector.multi_reduction <maximumf>, %253, %cst_119 [1] : vector<5x5xf32> to vector<5xf32>
    %255 = vector.shape_cast %254 : vector<5xf32> to vector<5x1xf32>
    %256 = vector.broadcast %255 : vector<5x1xf32> to vector<5x5xf32>
    %257 = arith.subf %253, %256 : vector<5x5xf32>
    %258 = math.exp %257 : vector<5x5xf32>
    %cst_120 = arith.constant dense<0.000000e+00> : vector<5xf32>
    %259 = vector.multi_reduction <add>, %258, %cst_120 [1] : vector<5x5xf32> to vector<5xf32>
    %260 = vector.shape_cast %259 : vector<5xf32> to vector<5x1xf32>
    %261 = tpu.reciprocal %260 {approx = true} : vector<5x1xf32> -> vector<5x1xf32>
    %262 = vector.broadcast %261 : vector<5x1xf32> to vector<5x5xf32>
    %263 = arith.mulf %258, %262 : vector<5x5xf32>
    %cst_121 = arith.constant dense<0.000000e+00> : vector<5x8xf32>
    %264 = tpu.matmul %263, %252, %cst_121 {dimension_numbers = #tpu.dot_dimension_numbers<[1], [0], [0], [1], [0, 0, 1, 1], [], []>} : vector<5x5xf32>, vector<5x8xf32>, vector<5x8xf32> -> vector<5x8xf32>
    %265 = vector.extract_strided_slice %219 {offsets = [0, 24], sizes = [5, 8], strides = [1, 1]} : vector<5x96xf32> to vector<5x8xf32>
    %266 = vector.extract_strided_slice %219 {offsets = [0, 56], sizes = [5, 8], strides = [1, 1]} : vector<5x96xf32> to vector<5x8xf32>
    %267 = vector.extract_strided_slice %219 {offsets = [0, 88], sizes = [5, 8], strides = [1, 1]} : vector<5x96xf32> to vector<5x8xf32>
    "tpu.trace_start"() <{level = 10 : i32, message = "ld,md->lm"}> : () -> ()
    %cst_122 = arith.constant dense<0.000000e+00> : vector<5x5xf32>
    %268 = tpu.matmul %265, %266, %cst_122 {dimension_numbers = #tpu.dot_dimension_numbers<[1], [1], [0], [0], [0, 0, 1, 0], [], []>} : vector<5x8xf32>, vector<5x8xf32>, vector<5x5xf32> -> vector<5x5xf32>
    "tpu.trace_stop"() : () -> ()
    %cst_123 = arith.constant dense<0xFF800000> : vector<5xf32>
    %269 = vector.multi_reduction <maximumf>, %268, %cst_123 [1] : vector<5x5xf32> to vector<5xf32>
    %270 = vector.shape_cast %269 : vector<5xf32> to vector<5x1xf32>
    %271 = vector.broadcast %270 : vector<5x1xf32> to vector<5x5xf32>
    %272 = arith.subf %268, %271 : vector<5x5xf32>
    %273 = math.exp %272 : vector<5x5xf32>
    %cst_124 = arith.constant dense<0.000000e+00> : vector<5xf32>
    %274 = vector.multi_reduction <add>, %273, %cst_124 [1] : vector<5x5xf32> to vector<5xf32>
    %275 = vector.shape_cast %274 : vector<5xf32> to vector<5x1xf32>
    %276 = tpu.reciprocal %275 {approx = true} : vector<5x1xf32> -> vector<5x1xf32>
    %277 = vector.broadcast %276 : vector<5x1xf32> to vector<5x5xf32>
    %278 = arith.mulf %273, %277 : vector<5x5xf32>
    %cst_125 = arith.constant dense<0.000000e+00> : vector<5x8xf32>
    %279 = tpu.matmul %278, %267, %cst_125 {dimension_numbers = #tpu.dot_dimension_numbers<[1], [0], [0], [1], [0, 0, 1, 1], [], []>} : vector<5x5xf32>, vector<5x8xf32>, vector<5x8xf32> -> vector<5x8xf32>
    %280 = tpu.concatenate %234, %249, %264, %279 in 1 : vector<5x8xf32>, vector<5x8xf32>, vector<5x8xf32>, vector<5x8xf32> -> vector<5x32xf32>
    %281 = vector.extract_strided_slice %94 {offsets = [15, 0], sizes = [5, 96], strides = [1, 1]} : vector<20x96xf32> to vector<5x96xf32>
    %282 = vector.extract_strided_slice %281 {offsets = [0, 0], sizes = [5, 8], strides = [1, 1]} : vector<5x96xf32> to vector<5x8xf32>
    %283 = vector.extract_strided_slice %281 {offsets = [0, 32], sizes = [5, 8], strides = [1, 1]} : vector<5x96xf32> to vector<5x8xf32>
    %284 = vector.extract_strided_slice %281 {offsets = [0, 64], sizes = [5, 8], strides = [1, 1]} : vector<5x96xf32> to vector<5x8xf32>
    "tpu.trace_start"() <{level = 10 : i32, message = "ld,md->lm"}> : () -> ()
    %cst_126 = arith.constant dense<0.000000e+00> : vector<5x5xf32>
    %285 = tpu.matmul %282, %283, %cst_126 {dimension_numbers = #tpu.dot_dimension_numbers<[1], [1], [0], [0], [0, 0, 1, 0], [], []>} : vector<5x8xf32>, vector<5x8xf32>, vector<5x5xf32> -> vector<5x5xf32>
    "tpu.trace_stop"() : () -> ()
    %cst_127 = arith.constant dense<0xFF800000> : vector<5xf32>
    %286 = vector.multi_reduction <maximumf>, %285, %cst_127 [1] : vector<5x5xf32> to vector<5xf32>
    %287 = vector.shape_cast %286 : vector<5xf32> to vector<5x1xf32>
    %288 = vector.broadcast %287 : vector<5x1xf32> to vector<5x5xf32>
    %289 = arith.subf %285, %288 : vector<5x5xf32>
    %290 = math.exp %289 : vector<5x5xf32>
    %cst_128 = arith.constant dense<0.000000e+00> : vector<5xf32>
    %291 = vector.multi_reduction <add>, %290, %cst_128 [1] : vector<5x5xf32> to vector<5xf32>
    %292 = vector.shape_cast %291 : vector<5xf32> to vector<5x1xf32>
    %293 = tpu.reciprocal %292 {approx = true} : vector<5x1xf32> -> vector<5x1xf32>
    %294 = vector.broadcast %293 : vector<5x1xf32> to vector<5x5xf32>
    %295 = arith.mulf %290, %294 : vector<5x5xf32>
    %cst_129 = arith.constant dense<0.000000e+00> : vector<5x8xf32>
    %296 = tpu.matmul %295, %284, %cst_129 {dimension_numbers = #tpu.dot_dimension_numbers<[1], [0], [0], [1], [0, 0, 1, 1], [], []>} : vector<5x5xf32>, vector<5x8xf32>, vector<5x8xf32> -> vector<5x8xf32>
    %297 = vector.extract_strided_slice %281 {offsets = [0, 8], sizes = [5, 8], strides = [1, 1]} : vector<5x96xf32> to vector<5x8xf32>
    %298 = vector.extract_strided_slice %281 {offsets = [0, 40], sizes = [5, 8], strides = [1, 1]} : vector<5x96xf32> to vector<5x8xf32>
    %299 = vector.extract_strided_slice %281 {offsets = [0, 72], sizes = [5, 8], strides = [1, 1]} : vector<5x96xf32> to vector<5x8xf32>
    "tpu.trace_start"() <{level = 10 : i32, message = "ld,md->lm"}> : () -> ()
    %cst_130 = arith.constant dense<0.000000e+00> : vector<5x5xf32>
    %300 = tpu.matmul %297, %298, %cst_130 {dimension_numbers = #tpu.dot_dimension_numbers<[1], [1], [0], [0], [0, 0, 1, 0], [], []>} : vector<5x8xf32>, vector<5x8xf32>, vector<5x5xf32> -> vector<5x5xf32>
    "tpu.trace_stop"() : () -> ()
    %cst_131 = arith.constant dense<0xFF800000> : vector<5xf32>
    %301 = vector.multi_reduction <maximumf>, %300, %cst_131 [1] : vector<5x5xf32> to vector<5xf32>
    %302 = vector.shape_cast %301 : vector<5xf32> to vector<5x1xf32>
    %303 = vector.broadcast %302 : vector<5x1xf32> to vector<5x5xf32>
    %304 = arith.subf %300, %303 : vector<5x5xf32>
    %305 = math.exp %304 : vector<5x5xf32>
    %cst_132 = arith.constant dense<0.000000e+00> : vector<5xf32>
    %306 = vector.multi_reduction <add>, %305, %cst_132 [1] : vector<5x5xf32> to vector<5xf32>
    %307 = vector.shape_cast %306 : vector<5xf32> to vector<5x1xf32>
    %308 = tpu.reciprocal %307 {approx = true} : vector<5x1xf32> -> vector<5x1xf32>
    %309 = vector.broadcast %308 : vector<5x1xf32> to vector<5x5xf32>
    %310 = arith.mulf %305, %309 : vector<5x5xf32>
    %cst_133 = arith.constant dense<0.000000e+00> : vector<5x8xf32>
    %311 = tpu.matmul %310, %299, %cst_133 {dimension_numbers = #tpu.dot_dimension_numbers<[1], [0], [0], [1], [0, 0, 1, 1], [], []>} : vector<5x5xf32>, vector<5x8xf32>, vector<5x8xf32> -> vector<5x8xf32>
    %312 = vector.extract_strided_slice %281 {offsets = [0, 16], sizes = [5, 8], strides = [1, 1]} : vector<5x96xf32> to vector<5x8xf32>
    %313 = vector.extract_strided_slice %281 {offsets = [0, 48], sizes = [5, 8], strides = [1, 1]} : vector<5x96xf32> to vector<5x8xf32>
    %314 = vector.extract_strided_slice %281 {offsets = [0, 80], sizes = [5, 8], strides = [1, 1]} : vector<5x96xf32> to vector<5x8xf32>
    "tpu.trace_start"() <{level = 10 : i32, message = "ld,md->lm"}> : () -> ()
    %cst_134 = arith.constant dense<0.000000e+00> : vector<5x5xf32>
    %315 = tpu.matmul %312, %313, %cst_134 {dimension_numbers = #tpu.dot_dimension_numbers<[1], [1], [0], [0], [0, 0, 1, 0], [], []>} : vector<5x8xf32>, vector<5x8xf32>, vector<5x5xf32> -> vector<5x5xf32>
    "tpu.trace_stop"() : () -> ()
    %cst_135 = arith.constant dense<0xFF800000> : vector<5xf32>
    %316 = vector.multi_reduction <maximumf>, %315, %cst_135 [1] : vector<5x5xf32> to vector<5xf32>
    %317 = vector.shape_cast %316 : vector<5xf32> to vector<5x1xf32>
    %318 = vector.broadcast %317 : vector<5x1xf32> to vector<5x5xf32>
    %319 = arith.subf %315, %318 : vector<5x5xf32>
    %320 = math.exp %319 : vector<5x5xf32>
    %cst_136 = arith.constant dense<0.000000e+00> : vector<5xf32>
    %321 = vector.multi_reduction <add>, %320, %cst_136 [1] : vector<5x5xf32> to vector<5xf32>
    %322 = vector.shape_cast %321 : vector<5xf32> to vector<5x1xf32>
    %323 = tpu.reciprocal %322 {approx = true} : vector<5x1xf32> -> vector<5x1xf32>
    %324 = vector.broadcast %323 : vector<5x1xf32> to vector<5x5xf32>
    %325 = arith.mulf %320, %324 : vector<5x5xf32>
    %cst_137 = arith.constant dense<0.000000e+00> : vector<5x8xf32>
    %326 = tpu.matmul %325, %314, %cst_137 {dimension_numbers = #tpu.dot_dimension_numbers<[1], [0], [0], [1], [0, 0, 1, 1], [], []>} : vector<5x5xf32>, vector<5x8xf32>, vector<5x8xf32> -> vector<5x8xf32>
    %327 = vector.extract_strided_slice %281 {offsets = [0, 24], sizes = [5, 8], strides = [1, 1]} : vector<5x96xf32> to vector<5x8xf32>
    %328 = vector.extract_strided_slice %281 {offsets = [0, 56], sizes = [5, 8], strides = [1, 1]} : vector<5x96xf32> to vector<5x8xf32>
    %329 = vector.extract_strided_slice %281 {offsets = [0, 88], sizes = [5, 8], strides = [1, 1]} : vector<5x96xf32> to vector<5x8xf32>
    "tpu.trace_start"() <{level = 10 : i32, message = "ld,md->lm"}> : () -> ()
    %cst_138 = arith.constant dense<0.000000e+00> : vector<5x5xf32>
    %330 = tpu.matmul %327, %328, %cst_138 {dimension_numbers = #tpu.dot_dimension_numbers<[1], [1], [0], [0], [0, 0, 1, 0], [], []>} : vector<5x8xf32>, vector<5x8xf32>, vector<5x5xf32> -> vector<5x5xf32>
    "tpu.trace_stop"() : () -> ()
    %cst_139 = arith.constant dense<0xFF800000> : vector<5xf32>
    %331 = vector.multi_reduction <maximumf>, %330, %cst_139 [1] : vector<5x5xf32> to vector<5xf32>
    %332 = vector.shape_cast %331 : vector<5xf32> to vector<5x1xf32>
    %333 = vector.broadcast %332 : vector<5x1xf32> to vector<5x5xf32>
    %334 = arith.subf %330, %333 : vector<5x5xf32>
    %335 = math.exp %334 : vector<5x5xf32>
    %cst_140 = arith.constant dense<0.000000e+00> : vector<5xf32>
    %336 = vector.multi_reduction <add>, %335, %cst_140 [1] : vector<5x5xf32> to vector<5xf32>
    %337 = vector.shape_cast %336 : vector<5xf32> to vector<5x1xf32>
    %338 = tpu.reciprocal %337 {approx = true} : vector<5x1xf32> -> vector<5x1xf32>
    %339 = vector.broadcast %338 : vector<5x1xf32> to vector<5x5xf32>
    %340 = arith.mulf %335, %339 : vector<5x5xf32>
    %cst_141 = arith.constant dense<0.000000e+00> : vector<5x8xf32>
    %341 = tpu.matmul %340, %329, %cst_141 {dimension_numbers = #tpu.dot_dimension_numbers<[1], [0], [0], [1], [0, 0, 1, 1], [], []>} : vector<5x5xf32>, vector<5x8xf32>, vector<5x8xf32> -> vector<5x8xf32>
    %342 = tpu.concatenate %296, %311, %326, %341 in 1 : vector<5x8xf32>, vector<5x8xf32>, vector<5x8xf32>, vector<5x8xf32> -> vector<5x32xf32>
    %343 = tpu.concatenate %156, %218, %280, %342 in 0 : vector<5x32xf32>, vector<5x32xf32>, vector<5x32xf32>, vector<5x32xf32> -> vector<20x32xf32>
    %cst_142 = arith.constant dense<0.000000e+00> : vector<20x32xf32>
    %344 = tpu.matmul %343, %10, %cst_142 {dimension_numbers = #tpu.dot_dimension_numbers<[1], [0], [0], [1], [0, 0, 1, 1], [], []>} : vector<20x32xf32>, vector<32x32xf32>, vector<20x32xf32> -> vector<20x32xf32>
    %345 = vector.broadcast %11 : vector<1x32xf32> to vector<20x32xf32>
    %346 = arith.addf %344, %345 : vector<20x32xf32>
    %347 = arith.addf %69, %346 : vector<20x32xf32>
    %cst_143 = arith.constant dense<0.000000e+00> : vector<20xf32>
    %348 = vector.multi_reduction <add>, %347, %cst_143 [1] : vector<20x32xf32> to vector<20xf32>
    %349 = vector.shape_cast %348 : vector<20xf32> to vector<20x1xf32>
    %cst_144 = arith.constant 3.200000e+01 : f32
    %350 = vector.broadcast %cst_144 : f32 to vector<20x1xf32>
    %351 = arith.divf %349, %350 : vector<20x1xf32>
    %352 = vector.broadcast %351 : vector<20x1xf32> to vector<20x32xf32>
    %353 = arith.subf %347, %352 : vector<20x32xf32>
    %354 = arith.mulf %353, %353 : vector<20x32xf32>
    %cst_145 = arith.constant dense<0.000000e+00> : vector<20xf32>
    %355 = vector.multi_reduction <add>, %354, %cst_145 [1] : vector<20x32xf32> to vector<20xf32>
    %356 = vector.shape_cast %355 : vector<20xf32> to vector<20x1xf32>
    %cst_146 = arith.constant 3.200000e+01 : f32
    %357 = vector.broadcast %cst_146 : f32 to vector<20x1xf32>
    %358 = arith.divf %356, %357 : vector<20x1xf32>
    %359 = vector.broadcast %351 : vector<20x1xf32> to vector<20x32xf32>
    %360 = arith.subf %347, %359 : vector<20x32xf32>
    %cst_147 = arith.constant 9.99999974E-6 : f32
    %361 = vector.broadcast %cst_147 : f32 to vector<20x1xf32>
    %362 = arith.addf %358, %361 : vector<20x1xf32>
    %363 = math.rsqrt %362 : vector<20x1xf32>
    %364 = vector.broadcast %363 : vector<20x1xf32> to vector<20x32xf32>
    %365 = arith.mulf %360, %364 : vector<20x32xf32>
    %366 = vector.broadcast %12 : vector<1x32xf32> to vector<20x32xf32>
    %367 = arith.mulf %365, %366 : vector<20x32xf32>
    %368 = vector.broadcast %13 : vector<1x32xf32> to vector<20x32xf32>
    %369 = arith.addf %367, %368 : vector<20x32xf32>
    %cst_148 = arith.constant dense<0.000000e+00> : vector<20x128xf32>
    %370 = tpu.matmul %369, %14, %cst_148 {dimension_numbers = #tpu.dot_dimension_numbers<[1], [0], [0], [1], [0, 0, 1, 1], [], []>} : vector<20x32xf32>, vector<32x128xf32>, vector<20x128xf32> -> vector<20x128xf32>
    %371 = vector.broadcast %15 : vector<1x128xf32> to vector<20x128xf32>
    %372 = arith.addf %370, %371 : vector<20x128xf32>
    %cst_149 = arith.constant 1.702000e+00 : f32
    %373 = vector.broadcast %cst_149 : f32 to vector<20x128xf32>
    %374 = arith.mulf %373, %372 : vector<20x128xf32>
    %375 = arith.negf %374 : vector<20x128xf32>
    %376 = math.exp %375 : vector<20x128xf32>
    %cst_150 = arith.constant 1.000000e+00 : f32
    %377 = vector.broadcast %cst_150 : f32 to vector<20x128xf32>
    %378 = arith.addf %377, %376 : vector<20x128xf32>
    %379 = arith.divf %377, %378 : vector<20x128xf32>
    %380 = arith.mulf %372, %379 : vector<20x128xf32>
    %cst_151 = arith.constant dense<0.000000e+00> : vector<20x32xf32>
    %381 = tpu.matmul %380, %16, %cst_151 {dimension_numbers = #tpu.dot_dimension_numbers<[1], [0], [0], [1], [0, 0, 1, 1], [], []>} : vector<20x128xf32>, vector<128x32xf32>, vector<20x32xf32> -> vector<20x32xf32>
    %382 = vector.broadcast %17 : vector<1x32xf32> to vector<20x32xf32>
    %383 = arith.addf %381, %382 : vector<20x32xf32>
    %384 = arith.addf %347, %383 : vector<20x32xf32>
    %cst_152 = arith.constant dense<0.000000e+00> : vector<20xf32>
    %385 = vector.multi_reduction <add>, %384, %cst_152 [1] : vector<20x32xf32> to vector<20xf32>
    %386 = vector.shape_cast %385 : vector<20xf32> to vector<20x1xf32>
    %cst_153 = arith.constant 3.200000e+01 : f32
    %387 = vector.broadcast %cst_153 : f32 to vector<20x1xf32>
    %388 = arith.divf %386, %387 : vector<20x1xf32>
    %389 = vector.broadcast %388 : vector<20x1xf32> to vector<20x32xf32>
    %390 = arith.subf %384, %389 : vector<20x32xf32>
    %391 = arith.mulf %390, %390 : vector<20x32xf32>
    %cst_154 = arith.constant dense<0.000000e+00> : vector<20xf32>
    %392 = vector.multi_reduction <add>, %391, %cst_154 [1] : vector<20x32xf32> to vector<20xf32>
    %393 = vector.shape_cast %392 : vector<20xf32> to vector<20x1xf32>
    %cst_155 = arith.constant 3.200000e+01 : f32
    %394 = vector.broadcast %cst_155 : f32 to vector<20x1xf32>
    %395 = arith.divf %393, %394 : vector<20x1xf32>
    %396 = vector.broadcast %388 : vector<20x1xf32> to vector<20x32xf32>
    %397 = arith.subf %384, %396 : vector<20x32xf32>
    %cst_156 = arith.constant 9.99999974E-6 : f32
    %398 = vector.broadcast %cst_156 : f32 to vector<20x1xf32>
    %399 = arith.addf %395, %398 : vector<20x1xf32>
    %400 = math.rsqrt %399 : vector<20x1xf32>
    %401 = vector.broadcast %400 : vector<20x1xf32> to vector<20x32xf32>
    %402 = arith.mulf %397, %401 : vector<20x32xf32>
    %403 = vector.broadcast %18 : vector<1x32xf32> to vector<20x32xf32>
    %404 = arith.mulf %402, %403 : vector<20x32xf32>
    %405 = vector.broadcast %19 : vector<1x32xf32> to vector<20x32xf32>
    %406 = arith.addf %404, %405 : vector<20x32xf32>
    %cst_157 = arith.constant dense<0.000000e+00> : vector<20x96xf32>
    %407 = tpu.matmul %406, %20, %cst_157 {dimension_numbers = #tpu.dot_dimension_numbers<[1], [0], [0], [1], [0, 0, 1, 1], [], []>} : vector<20x32xf32>, vector<32x96xf32>, vector<20x96xf32> -> vector<20x96xf32>
    %408 = vector.broadcast %21 : vector<1x96xf32> to vector<20x96xf32>
    %409 = arith.addf %407, %408 : vector<20x96xf32>
    %410 = vector.extract_strided_slice %409 {offsets = [0, 0], sizes = [5, 96], strides = [1, 1]} : vector<20x96xf32> to vector<5x96xf32>
    %411 = vector.extract_strided_slice %410 {offsets = [0, 0], sizes = [5, 8], strides = [1, 1]} : vector<5x96xf32> to vector<5x8xf32>
    %412 = vector.extract_strided_slice %410 {offsets = [0, 32], sizes = [5, 8], strides = [1, 1]} : vector<5x96xf32> to vector<5x8xf32>
    %413 = vector.extract_strided_slice %410 {offsets = [0, 64], sizes = [5, 8], strides = [1, 1]} : vector<5x96xf32> to vector<5x8xf32>
    "tpu.trace_start"() <{level = 10 : i32, message = "ld,md->lm"}> : () -> ()
    %cst_158 = arith.constant dense<0.000000e+00> : vector<5x5xf32>
    %414 = tpu.matmul %411, %412, %cst_158 {dimension_numbers = #tpu.dot_dimension_numbers<[1], [1], [0], [0], [0, 0, 1, 0], [], []>} : vector<5x8xf32>, vector<5x8xf32>, vector<5x5xf32> -> vector<5x5xf32>
    "tpu.trace_stop"() : () -> ()
    %cst_159 = arith.constant dense<0xFF800000> : vector<5xf32>
    %415 = vector.multi_reduction <maximumf>, %414, %cst_159 [1] : vector<5x5xf32> to vector<5xf32>
    %416 = vector.shape_cast %415 : vector<5xf32> to vector<5x1xf32>
    %417 = vector.broadcast %416 : vector<5x1xf32> to vector<5x5xf32>
    %418 = arith.subf %414, %417 : vector<5x5xf32>
    %419 = math.exp %418 : vector<5x5xf32>
    %cst_160 = arith.constant dense<0.000000e+00> : vector<5xf32>
    %420 = vector.multi_reduction <add>, %419, %cst_160 [1] : vector<5x5xf32> to vector<5xf32>
    %421 = vector.shape_cast %420 : vector<5xf32> to vector<5x1xf32>
    %422 = tpu.reciprocal %421 {approx = true} : vector<5x1xf32> -> vector<5x1xf32>
    %423 = vector.broadcast %422 : vector<5x1xf32> to vector<5x5xf32>
    %424 = arith.mulf %419, %423 : vector<5x5xf32>
    %cst_161 = arith.constant dense<0.000000e+00> : vector<5x8xf32>
    %425 = tpu.matmul %424, %413, %cst_161 {dimension_numbers = #tpu.dot_dimension_numbers<[1], [0], [0], [1], [0, 0, 1, 1], [], []>} : vector<5x5xf32>, vector<5x8xf32>, vector<5x8xf32> -> vector<5x8xf32>
    %426 = vector.extract_strided_slice %410 {offsets = [0, 8], sizes = [5, 8], strides = [1, 1]} : vector<5x96xf32> to vector<5x8xf32>
    %427 = vector.extract_strided_slice %410 {offsets = [0, 40], sizes = [5, 8], strides = [1, 1]} : vector<5x96xf32> to vector<5x8xf32>
    %428 = vector.extract_strided_slice %410 {offsets = [0, 72], sizes = [5, 8], strides = [1, 1]} : vector<5x96xf32> to vector<5x8xf32>
    "tpu.trace_start"() <{level = 10 : i32, message = "ld,md->lm"}> : () -> ()
    %cst_162 = arith.constant dense<0.000000e+00> : vector<5x5xf32>
    %429 = tpu.matmul %426, %427, %cst_162 {dimension_numbers = #tpu.dot_dimension_numbers<[1], [1], [0], [0], [0, 0, 1, 0], [], []>} : vector<5x8xf32>, vector<5x8xf32>, vector<5x5xf32> -> vector<5x5xf32>
    "tpu.trace_stop"() : () -> ()
    %cst_163 = arith.constant dense<0xFF800000> : vector<5xf32>
    %430 = vector.multi_reduction <maximumf>, %429, %cst_163 [1] : vector<5x5xf32> to vector<5xf32>
    %431 = vector.shape_cast %430 : vector<5xf32> to vector<5x1xf32>
    %432 = vector.broadcast %431 : vector<5x1xf32> to vector<5x5xf32>
    %433 = arith.subf %429, %432 : vector<5x5xf32>
    %434 = math.exp %433 : vector<5x5xf32>
    %cst_164 = arith.constant dense<0.000000e+00> : vector<5xf32>
    %435 = vector.multi_reduction <add>, %434, %cst_164 [1] : vector<5x5xf32> to vector<5xf32>
    %436 = vector.shape_cast %435 : vector<5xf32> to vector<5x1xf32>
    %437 = tpu.reciprocal %436 {approx = true} : vector<5x1xf32> -> vector<5x1xf32>
    %438 = vector.broadcast %437 : vector<5x1xf32> to vector<5x5xf32>
    %439 = arith.mulf %434, %438 : vector<5x5xf32>
    %cst_165 = arith.constant dense<0.000000e+00> : vector<5x8xf32>
    %440 = tpu.matmul %439, %428, %cst_165 {dimension_numbers = #tpu.dot_dimension_numbers<[1], [0], [0], [1], [0, 0, 1, 1], [], []>} : vector<5x5xf32>, vector<5x8xf32>, vector<5x8xf32> -> vector<5x8xf32>
    %441 = vector.extract_strided_slice %410 {offsets = [0, 16], sizes = [5, 8], strides = [1, 1]} : vector<5x96xf32> to vector<5x8xf32>
    %442 = vector.extract_strided_slice %410 {offsets = [0, 48], sizes = [5, 8], strides = [1, 1]} : vector<5x96xf32> to vector<5x8xf32>
    %443 = vector.extract_strided_slice %410 {offsets = [0, 80], sizes = [5, 8], strides = [1, 1]} : vector<5x96xf32> to vector<5x8xf32>
    "tpu.trace_start"() <{level = 10 : i32, message = "ld,md->lm"}> : () -> ()
    %cst_166 = arith.constant dense<0.000000e+00> : vector<5x5xf32>
    %444 = tpu.matmul %441, %442, %cst_166 {dimension_numbers = #tpu.dot_dimension_numbers<[1], [1], [0], [0], [0, 0, 1, 0], [], []>} : vector<5x8xf32>, vector<5x8xf32>, vector<5x5xf32> -> vector<5x5xf32>
    "tpu.trace_stop"() : () -> ()
    %cst_167 = arith.constant dense<0xFF800000> : vector<5xf32>
    %445 = vector.multi_reduction <maximumf>, %444, %cst_167 [1] : vector<5x5xf32> to vector<5xf32>
    %446 = vector.shape_cast %445 : vector<5xf32> to vector<5x1xf32>
    %447 = vector.broadcast %446 : vector<5x1xf32> to vector<5x5xf32>
    %448 = arith.subf %444, %447 : vector<5x5xf32>
    %449 = math.exp %448 : vector<5x5xf32>
    %cst_168 = arith.constant dense<0.000000e+00> : vector<5xf32>
    %450 = vector.multi_reduction <add>, %449, %cst_168 [1] : vector<5x5xf32> to vector<5xf32>
    %451 = vector.shape_cast %450 : vector<5xf32> to vector<5x1xf32>
    %452 = tpu.reciprocal %451 {approx = true} : vector<5x1xf32> -> vector<5x1xf32>
    %453 = vector.broadcast %452 : vector<5x1xf32> to vector<5x5xf32>
    %454 = arith.mulf %449, %453 : vector<5x5xf32>
    %cst_169 = arith.constant dense<0.000000e+00> : vector<5x8xf32>
    %455 = tpu.matmul %454, %443, %cst_169 {dimension_numbers = #tpu.dot_dimension_numbers<[1], [0], [0], [1], [0, 0, 1, 1], [], []>} : vector<5x5xf32>, vector<5x8xf32>, vector<5x8xf32> -> vector<5x8xf32>
    %456 = vector.extract_strided_slice %410 {offsets = [0, 24], sizes = [5, 8], strides = [1, 1]} : vector<5x96xf32> to vector<5x8xf32>
    %457 = vector.extract_strided_slice %410 {offsets = [0, 56], sizes = [5, 8], strides = [1, 1]} : vector<5x96xf32> to vector<5x8xf32>
    %458 = vector.extract_strided_slice %410 {offsets = [0, 88], sizes = [5, 8], strides = [1, 1]} : vector<5x96xf32> to vector<5x8xf32>
    "tpu.trace_start"() <{level = 10 : i32, message = "ld,md->lm"}> : () -> ()
    %cst_170 = arith.constant dense<0.000000e+00> : vector<5x5xf32>
    %459 = tpu.matmul %456, %457, %cst_170 {dimension_numbers = #tpu.dot_dimension_numbers<[1], [1], [0], [0], [0, 0, 1, 0], [], []>} : vector<5x8xf32>, vector<5x8xf32>, vector<5x5xf32> -> vector<5x5xf32>
    "tpu.trace_stop"() : () -> ()
    %cst_171 = arith.constant dense<0xFF800000> : vector<5xf32>
    %460 = vector.multi_reduction <maximumf>, %459, %cst_171 [1] : vector<5x5xf32> to vector<5xf32>
    %461 = vector.shape_cast %460 : vector<5xf32> to vector<5x1xf32>
    %462 = vector.broadcast %461 : vector<5x1xf32> to vector<5x5xf32>
    %463 = arith.subf %459, %462 : vector<5x5xf32>
    %464 = math.exp %463 : vector<5x5xf32>
    %cst_172 = arith.constant dense<0.000000e+00> : vector<5xf32>
    %465 = vector.multi_reduction <add>, %464, %cst_172 [1] : vector<5x5xf32> to vector<5xf32>
    %466 = vector.shape_cast %465 : vector<5xf32> to vector<5x1xf32>
    %467 = tpu.reciprocal %466 {approx = true} : vector<5x1xf32> -> vector<5x1xf32>
    %468 = vector.broadcast %467 : vector<5x1xf32> to vector<5x5xf32>
    %469 = arith.mulf %464, %468 : vector<5x5xf32>
    %cst_173 = arith.constant dense<0.000000e+00> : vector<5x8xf32>
    %470 = tpu.matmul %469, %458, %cst_173 {dimension_numbers = #tpu.dot_dimension_numbers<[1], [0], [0], [1], [0, 0, 1, 1], [], []>} : vector<5x5xf32>, vector<5x8xf32>, vector<5x8xf32> -> vector<5x8xf32>
    %471 = tpu.concatenate %425, %440, %455, %470 in 1 : vector<5x8xf32>, vector<5x8xf32>, vector<5x8xf32>, vector<5x8xf32> -> vector<5x32xf32>
    %472 = vector.extract_strided_slice %409 {offsets = [5, 0], sizes = [5, 96], strides = [1, 1]} : vector<20x96xf32> to vector<5x96xf32>
    %473 = vector.extract_strided_slice %472 {offsets = [0, 0], sizes = [5, 8], strides = [1, 1]} : vector<5x96xf32> to vector<5x8xf32>
    %474 = vector.extract_strided_slice %472 {offsets = [0, 32], sizes = [5, 8], strides = [1, 1]} : vector<5x96xf32> to vector<5x8xf32>
    %475 = vector.extract_strided_slice %472 {offsets = [0, 64], sizes = [5, 8], strides = [1, 1]} : vector<5x96xf32> to vector<5x8xf32>
    "tpu.trace_start"() <{level = 10 : i32, message = "ld,md->lm"}> : () -> ()
    %cst_174 = arith.constant dense<0.000000e+00> : vector<5x5xf32>
    %476 = tpu.matmul %473, %474, %cst_174 {dimension_numbers = #tpu.dot_dimension_numbers<[1], [1], [0], [0], [0, 0, 1, 0], [], []>} : vector<5x8xf32>, vector<5x8xf32>, vector<5x5xf32> -> vector<5x5xf32>
    "tpu.trace_stop"() : () -> ()
    %cst_175 = arith.constant dense<0xFF800000> : vector<5xf32>
    %477 = vector.multi_reduction <maximumf>, %476, %cst_175 [1] : vector<5x5xf32> to vector<5xf32>
    %478 = vector.shape_cast %477 : vector<5xf32> to vector<5x1xf32>
    %479 = vector.broadcast %478 : vector<5x1xf32> to vector<5x5xf32>
    %480 = arith.subf %476, %479 : vector<5x5xf32>
    %481 = math.exp %480 : vector<5x5xf32>
    %cst_176 = arith.constant dense<0.000000e+00> : vector<5xf32>
    %482 = vector.multi_reduction <add>, %481, %cst_176 [1] : vector<5x5xf32> to vector<5xf32>
    %483 = vector.shape_cast %482 : vector<5xf32> to vector<5x1xf32>
    %484 = tpu.reciprocal %483 {approx = true} : vector<5x1xf32> -> vector<5x1xf32>
    %485 = vector.broadcast %484 : vector<5x1xf32> to vector<5x5xf32>
    %486 = arith.mulf %481, %485 : vector<5x5xf32>
    %cst_177 = arith.constant dense<0.000000e+00> : vector<5x8xf32>
    %487 = tpu.matmul %486, %475, %cst_177 {dimension_numbers = #tpu.dot_dimension_numbers<[1], [0], [0], [1], [0, 0, 1, 1], [], []>} : vector<5x5xf32>, vector<5x8xf32>, vector<5x8xf32> -> vector<5x8xf32>
    %488 = vector.extract_strided_slice %472 {offsets = [0, 8], sizes = [5, 8], strides = [1, 1]} : vector<5x96xf32> to vector<5x8xf32>
    %489 = vector.extract_strided_slice %472 {offsets = [0, 40], sizes = [5, 8], strides = [1, 1]} : vector<5x96xf32> to vector<5x8xf32>
    %490 = vector.extract_strided_slice %472 {offsets = [0, 72], sizes = [5, 8], strides = [1, 1]} : vector<5x96xf32> to vector<5x8xf32>
    "tpu.trace_start"() <{level = 10 : i32, message = "ld,md->lm"}> : () -> ()
    %cst_178 = arith.constant dense<0.000000e+00> : vector<5x5xf32>
    %491 = tpu.matmul %488, %489, %cst_178 {dimension_numbers = #tpu.dot_dimension_numbers<[1], [1], [0], [0], [0, 0, 1, 0], [], []>} : vector<5x8xf32>, vector<5x8xf32>, vector<5x5xf32> -> vector<5x5xf32>
    "tpu.trace_stop"() : () -> ()
    %cst_179 = arith.constant dense<0xFF800000> : vector<5xf32>
    %492 = vector.multi_reduction <maximumf>, %491, %cst_179 [1] : vector<5x5xf32> to vector<5xf32>
    %493 = vector.shape_cast %492 : vector<5xf32> to vector<5x1xf32>
    %494 = vector.broadcast %493 : vector<5x1xf32> to vector<5x5xf32>
    %495 = arith.subf %491, %494 : vector<5x5xf32>
    %496 = math.exp %495 : vector<5x5xf32>
    %cst_180 = arith.constant dense<0.000000e+00> : vector<5xf32>
    %497 = vector.multi_reduction <add>, %496, %cst_180 [1] : vector<5x5xf32> to vector<5xf32>
    %498 = vector.shape_cast %497 : vector<5xf32> to vector<5x1xf32>
    %499 = tpu.reciprocal %498 {approx = true} : vector<5x1xf32> -> vector<5x1xf32>
    %500 = vector.broadcast %499 : vector<5x1xf32> to vector<5x5xf32>
    %501 = arith.mulf %496, %500 : vector<5x5xf32>
    %cst_181 = arith.constant dense<0.000000e+00> : vector<5x8xf32>
    %502 = tpu.matmul %501, %490, %cst_181 {dimension_numbers = #tpu.dot_dimension_numbers<[1], [0], [0], [1], [0, 0, 1, 1], [], []>} : vector<5x5xf32>, vector<5x8xf32>, vector<5x8xf32> -> vector<5x8xf32>
    %503 = vector.extract_strided_slice %472 {offsets = [0, 16], sizes = [5, 8], strides = [1, 1]} : vector<5x96xf32> to vector<5x8xf32>
    %504 = vector.extract_strided_slice %472 {offsets = [0, 48], sizes = [5, 8], strides = [1, 1]} : vector<5x96xf32> to vector<5x8xf32>
    %505 = vector.extract_strided_slice %472 {offsets = [0, 80], sizes = [5, 8], strides = [1, 1]} : vector<5x96xf32> to vector<5x8xf32>
    "tpu.trace_start"() <{level = 10 : i32, message = "ld,md->lm"}> : () -> ()
    %cst_182 = arith.constant dense<0.000000e+00> : vector<5x5xf32>
    %506 = tpu.matmul %503, %504, %cst_182 {dimension_numbers = #tpu.dot_dimension_numbers<[1], [1], [0], [0], [0, 0, 1, 0], [], []>} : vector<5x8xf32>, vector<5x8xf32>, vector<5x5xf32> -> vector<5x5xf32>
    "tpu.trace_stop"() : () -> ()
    %cst_183 = arith.constant dense<0xFF800000> : vector<5xf32>
    %507 = vector.multi_reduction <maximumf>, %506, %cst_183 [1] : vector<5x5xf32> to vector<5xf32>
    %508 = vector.shape_cast %507 : vector<5xf32> to vector<5x1xf32>
    %509 = vector.broadcast %508 : vector<5x1xf32> to vector<5x5xf32>
    %510 = arith.subf %506, %509 : vector<5x5xf32>
    %511 = math.exp %510 : vector<5x5xf32>
    %cst_184 = arith.constant dense<0.000000e+00> : vector<5xf32>
    %512 = vector.multi_reduction <add>, %511, %cst_184 [1] : vector<5x5xf32> to vector<5xf32>
    %513 = vector.shape_cast %512 : vector<5xf32> to vector<5x1xf32>
    %514 = tpu.reciprocal %513 {approx = true} : vector<5x1xf32> -> vector<5x1xf32>
    %515 = vector.broadcast %514 : vector<5x1xf32> to vector<5x5xf32>
    %516 = arith.mulf %511, %515 : vector<5x5xf32>
    %cst_185 = arith.constant dense<0.000000e+00> : vector<5x8xf32>
    %517 = tpu.matmul %516, %505, %cst_185 {dimension_numbers = #tpu.dot_dimension_numbers<[1], [0], [0], [1], [0, 0, 1, 1], [], []>} : vector<5x5xf32>, vector<5x8xf32>, vector<5x8xf32> -> vector<5x8xf32>
    %518 = vector.extract_strided_slice %472 {offsets = [0, 24], sizes = [5, 8], strides = [1, 1]} : vector<5x96xf32> to vector<5x8xf32>
    %519 = vector.extract_strided_slice %472 {offsets = [0, 56], sizes = [5, 8], strides = [1, 1]} : vector<5x96xf32> to vector<5x8xf32>
    %520 = vector.extract_strided_slice %472 {offsets = [0, 88], sizes = [5, 8], strides = [1, 1]} : vector<5x96xf32> to vector<5x8xf32>
    "tpu.trace_start"() <{level = 10 : i32, message = "ld,md->lm"}> : () -> ()
    %cst_186 = arith.constant dense<0.000000e+00> : vector<5x5xf32>
    %521 = tpu.matmul %518, %519, %cst_186 {dimension_numbers = #tpu.dot_dimension_numbers<[1], [1], [0], [0], [0, 0, 1, 0], [], []>} : vector<5x8xf32>, vector<5x8xf32>, vector<5x5xf32> -> vector<5x5xf32>
    "tpu.trace_stop"() : () -> ()
    %cst_187 = arith.constant dense<0xFF800000> : vector<5xf32>
    %522 = vector.multi_reduction <maximumf>, %521, %cst_187 [1] : vector<5x5xf32> to vector<5xf32>
    %523 = vector.shape_cast %522 : vector<5xf32> to vector<5x1xf32>
    %524 = vector.broadcast %523 : vector<5x1xf32> to vector<5x5xf32>
    %525 = arith.subf %521, %524 : vector<5x5xf32>
    %526 = math.exp %525 : vector<5x5xf32>
    %cst_188 = arith.constant dense<0.000000e+00> : vector<5xf32>
    %527 = vector.multi_reduction <add>, %526, %cst_188 [1] : vector<5x5xf32> to vector<5xf32>
    %528 = vector.shape_cast %527 : vector<5xf32> to vector<5x1xf32>
    %529 = tpu.reciprocal %528 {approx = true} : vector<5x1xf32> -> vector<5x1xf32>
    %530 = vector.broadcast %529 : vector<5x1xf32> to vector<5x5xf32>
    %531 = arith.mulf %526, %530 : vector<5x5xf32>
    %cst_189 = arith.constant dense<0.000000e+00> : vector<5x8xf32>
    %532 = tpu.matmul %531, %520, %cst_189 {dimension_numbers = #tpu.dot_dimension_numbers<[1], [0], [0], [1], [0, 0, 1, 1], [], []>} : vector<5x5xf32>, vector<5x8xf32>, vector<5x8xf32> -> vector<5x8xf32>
    %533 = tpu.concatenate %487, %502, %517, %532 in 1 : vector<5x8xf32>, vector<5x8xf32>, vector<5x8xf32>, vector<5x8xf32> -> vector<5x32xf32>
    %534 = vector.extract_strided_slice %409 {offsets = [10, 0], sizes = [5, 96], strides = [1, 1]} : vector<20x96xf32> to vector<5x96xf32>
    %535 = vector.extract_strided_slice %534 {offsets = [0, 0], sizes = [5, 8], strides = [1, 1]} : vector<5x96xf32> to vector<5x8xf32>
    %536 = vector.extract_strided_slice %534 {offsets = [0, 32], sizes = [5, 8], strides = [1, 1]} : vector<5x96xf32> to vector<5x8xf32>
    %537 = vector.extract_strided_slice %534 {offsets = [0, 64], sizes = [5, 8], strides = [1, 1]} : vector<5x96xf32> to vector<5x8xf32>
    "tpu.trace_start"() <{level = 10 : i32, message = "ld,md->lm"}> : () -> ()
    %cst_190 = arith.constant dense<0.000000e+00> : vector<5x5xf32>
    %538 = tpu.matmul %535, %536, %cst_190 {dimension_numbers = #tpu.dot_dimension_numbers<[1], [1], [0], [0], [0, 0, 1, 0], [], []>} : vector<5x8xf32>, vector<5x8xf32>, vector<5x5xf32> -> vector<5x5xf32>
    "tpu.trace_stop"() : () -> ()
    %cst_191 = arith.constant dense<0xFF800000> : vector<5xf32>
    %539 = vector.multi_reduction <maximumf>, %538, %cst_191 [1] : vector<5x5xf32> to vector<5xf32>
    %540 = vector.shape_cast %539 : vector<5xf32> to vector<5x1xf32>
    %541 = vector.broadcast %540 : vector<5x1xf32> to vector<5x5xf32>
    %542 = arith.subf %538, %541 : vector<5x5xf32>
    %543 = math.exp %542 : vector<5x5xf32>
    %cst_192 = arith.constant dense<0.000000e+00> : vector<5xf32>
    %544 = vector.multi_reduction <add>, %543, %cst_192 [1] : vector<5x5xf32> to vector<5xf32>
    %545 = vector.shape_cast %544 : vector<5xf32> to vector<5x1xf32>
    %546 = tpu.reciprocal %545 {approx = true} : vector<5x1xf32> -> vector<5x1xf32>
    %547 = vector.broadcast %546 : vector<5x1xf32> to vector<5x5xf32>
    %548 = arith.mulf %543, %547 : vector<5x5xf32>
    %cst_193 = arith.constant dense<0.000000e+00> : vector<5x8xf32>
    %549 = tpu.matmul %548, %537, %cst_193 {dimension_numbers = #tpu.dot_dimension_numbers<[1], [0], [0], [1], [0, 0, 1, 1], [], []>} : vector<5x5xf32>, vector<5x8xf32>, vector<5x8xf32> -> vector<5x8xf32>
    %550 = vector.extract_strided_slice %534 {offsets = [0, 8], sizes = [5, 8], strides = [1, 1]} : vector<5x96xf32> to vector<5x8xf32>
    %551 = vector.extract_strided_slice %534 {offsets = [0, 40], sizes = [5, 8], strides = [1, 1]} : vector<5x96xf32> to vector<5x8xf32>
    %552 = vector.extract_strided_slice %534 {offsets = [0, 72], sizes = [5, 8], strides = [1, 1]} : vector<5x96xf32> to vector<5x8xf32>
    "tpu.trace_start"() <{level = 10 : i32, message = "ld,md->lm"}> : () -> ()
    %cst_194 = arith.constant dense<0.000000e+00> : vector<5x5xf32>
    %553 = tpu.matmul %550, %551, %cst_194 {dimension_numbers = #tpu.dot_dimension_numbers<[1], [1], [0], [0], [0, 0, 1, 0], [], []>} : vector<5x8xf32>, vector<5x8xf32>, vector<5x5xf32> -> vector<5x5xf32>
    "tpu.trace_stop"() : () -> ()
    %cst_195 = arith.constant dense<0xFF800000> : vector<5xf32>
    %554 = vector.multi_reduction <maximumf>, %553, %cst_195 [1] : vector<5x5xf32> to vector<5xf32>
    %555 = vector.shape_cast %554 : vector<5xf32> to vector<5x1xf32>
    %556 = vector.broadcast %555 : vector<5x1xf32> to vector<5x5xf32>
    %557 = arith.subf %553, %556 : vector<5x5xf32>
    %558 = math.exp %557 : vector<5x5xf32>
    %cst_196 = arith.constant dense<0.000000e+00> : vector<5xf32>
    %559 = vector.multi_reduction <add>, %558, %cst_196 [1] : vector<5x5xf32> to vector<5xf32>
    %560 = vector.shape_cast %559 : vector<5xf32> to vector<5x1xf32>
    %561 = tpu.reciprocal %560 {approx = true} : vector<5x1xf32> -> vector<5x1xf32>
    %562 = vector.broadcast %561 : vector<5x1xf32> to vector<5x5xf32>
    %563 = arith.mulf %558, %562 : vector<5x5xf32>
    %cst_197 = arith.constant dense<0.000000e+00> : vector<5x8xf32>
    %564 = tpu.matmul %563, %552, %cst_197 {dimension_numbers = #tpu.dot_dimension_numbers<[1], [0], [0], [1], [0, 0, 1, 1], [], []>} : vector<5x5xf32>, vector<5x8xf32>, vector<5x8xf32> -> vector<5x8xf32>
    %565 = vector.extract_strided_slice %534 {offsets = [0, 16], sizes = [5, 8], strides = [1, 1]} : vector<5x96xf32> to vector<5x8xf32>
    %566 = vector.extract_strided_slice %534 {offsets = [0, 48], sizes = [5, 8], strides = [1, 1]} : vector<5x96xf32> to vector<5x8xf32>
    %567 = vector.extract_strided_slice %534 {offsets = [0, 80], sizes = [5, 8], strides = [1, 1]} : vector<5x96xf32> to vector<5x8xf32>
    "tpu.trace_start"() <{level = 10 : i32, message = "ld,md->lm"}> : () -> ()
    %cst_198 = arith.constant dense<0.000000e+00> : vector<5x5xf32>
    %568 = tpu.matmul %565, %566, %cst_198 {dimension_numbers = #tpu.dot_dimension_numbers<[1], [1], [0], [0], [0, 0, 1, 0], [], []>} : vector<5x8xf32>, vector<5x8xf32>, vector<5x5xf32> -> vector<5x5xf32>
    "tpu.trace_stop"() : () -> ()
    %cst_199 = arith.constant dense<0xFF800000> : vector<5xf32>
    %569 = vector.multi_reduction <maximumf>, %568, %cst_199 [1] : vector<5x5xf32> to vector<5xf32>
    %570 = vector.shape_cast %569 : vector<5xf32> to vector<5x1xf32>
    %571 = vector.broadcast %570 : vector<5x1xf32> to vector<5x5xf32>
    %572 = arith.subf %568, %571 : vector<5x5xf32>
    %573 = math.exp %572 : vector<5x5xf32>
    %cst_200 = arith.constant dense<0.000000e+00> : vector<5xf32>
    %574 = vector.multi_reduction <add>, %573, %cst_200 [1] : vector<5x5xf32> to vector<5xf32>
    %575 = vector.shape_cast %574 : vector<5xf32> to vector<5x1xf32>
    %576 = tpu.reciprocal %575 {approx = true} : vector<5x1xf32> -> vector<5x1xf32>
    %577 = vector.broadcast %576 : vector<5x1xf32> to vector<5x5xf32>
    %578 = arith.mulf %573, %577 : vector<5x5xf32>
    %cst_201 = arith.constant dense<0.000000e+00> : vector<5x8xf32>
    %579 = tpu.matmul %578, %567, %cst_201 {dimension_numbers = #tpu.dot_dimension_numbers<[1], [0], [0], [1], [0, 0, 1, 1], [], []>} : vector<5x5xf32>, vector<5x8xf32>, vector<5x8xf32> -> vector<5x8xf32>
    %580 = vector.extract_strided_slice %534 {offsets = [0, 24], sizes = [5, 8], strides = [1, 1]} : vector<5x96xf32> to vector<5x8xf32>
    %581 = vector.extract_strided_slice %534 {offsets = [0, 56], sizes = [5, 8], strides = [1, 1]} : vector<5x96xf32> to vector<5x8xf32>
    %582 = vector.extract_strided_slice %534 {offsets = [0, 88], sizes = [5, 8], strides = [1, 1]} : vector<5x96xf32> to vector<5x8xf32>
    "tpu.trace_start"() <{level = 10 : i32, message = "ld,md->lm"}> : () -> ()
    %cst_202 = arith.constant dense<0.000000e+00> : vector<5x5xf32>
    %583 = tpu.matmul %580, %581, %cst_202 {dimension_numbers = #tpu.dot_dimension_numbers<[1], [1], [0], [0], [0, 0, 1, 0], [], []>} : vector<5x8xf32>, vector<5x8xf32>, vector<5x5xf32> -> vector<5x5xf32>
    "tpu.trace_stop"() : () -> ()
    %cst_203 = arith.constant dense<0xFF800000> : vector<5xf32>
    %584 = vector.multi_reduction <maximumf>, %583, %cst_203 [1] : vector<5x5xf32> to vector<5xf32>
    %585 = vector.shape_cast %584 : vector<5xf32> to vector<5x1xf32>
    %586 = vector.broadcast %585 : vector<5x1xf32> to vector<5x5xf32>
    %587 = arith.subf %583, %586 : vector<5x5xf32>
    %588 = math.exp %587 : vector<5x5xf32>
    %cst_204 = arith.constant dense<0.000000e+00> : vector<5xf32>
    %589 = vector.multi_reduction <add>, %588, %cst_204 [1] : vector<5x5xf32> to vector<5xf32>
    %590 = vector.shape_cast %589 : vector<5xf32> to vector<5x1xf32>
    %591 = tpu.reciprocal %590 {approx = true} : vector<5x1xf32> -> vector<5x1xf32>
    %592 = vector.broadcast %591 : vector<5x1xf32> to vector<5x5xf32>
    %593 = arith.mulf %588, %592 : vector<5x5xf32>
    %cst_205 = arith.constant dense<0.000000e+00> : vector<5x8xf32>
    %594 = tpu.matmul %593, %582, %cst_205 {dimension_numbers = #tpu.dot_dimension_numbers<[1], [0], [0], [1], [0, 0, 1, 1], [], []>} : vector<5x5xf32>, vector<5x8xf32>, vector<5x8xf32> -> vector<5x8xf32>
    %595 = tpu.concatenate %549, %564, %579, %594 in 1 : vector<5x8xf32>, vector<5x8xf32>, vector<5x8xf32>, vector<5x8xf32> -> vector<5x32xf32>
    %596 = vector.extract_strided_slice %409 {offsets = [15, 0], sizes = [5, 96], strides = [1, 1]} : vector<20x96xf32> to vector<5x96xf32>
    %597 = vector.extract_strided_slice %596 {offsets = [0, 0], sizes = [5, 8], strides = [1, 1]} : vector<5x96xf32> to vector<5x8xf32>
    %598 = vector.extract_strided_slice %596 {offsets = [0, 32], sizes = [5, 8], strides = [1, 1]} : vector<5x96xf32> to vector<5x8xf32>
    %599 = vector.extract_strided_slice %596 {offsets = [0, 64], sizes = [5, 8], strides = [1, 1]} : vector<5x96xf32> to vector<5x8xf32>
    "tpu.trace_start"() <{level = 10 : i32, message = "ld,md->lm"}> : () -> ()
    %cst_206 = arith.constant dense<0.000000e+00> : vector<5x5xf32>
    %600 = tpu.matmul %597, %598, %cst_206 {dimension_numbers = #tpu.dot_dimension_numbers<[1], [1], [0], [0], [0, 0, 1, 0], [], []>} : vector<5x8xf32>, vector<5x8xf32>, vector<5x5xf32> -> vector<5x5xf32>
    "tpu.trace_stop"() : () -> ()
    %cst_207 = arith.constant dense<0xFF800000> : vector<5xf32>
    %601 = vector.multi_reduction <maximumf>, %600, %cst_207 [1] : vector<5x5xf32> to vector<5xf32>
    %602 = vector.shape_cast %601 : vector<5xf32> to vector<5x1xf32>
    %603 = vector.broadcast %602 : vector<5x1xf32> to vector<5x5xf32>
    %604 = arith.subf %600, %603 : vector<5x5xf32>
    %605 = math.exp %604 : vector<5x5xf32>
    %cst_208 = arith.constant dense<0.000000e+00> : vector<5xf32>
    %606 = vector.multi_reduction <add>, %605, %cst_208 [1] : vector<5x5xf32> to vector<5xf32>
    %607 = vector.shape_cast %606 : vector<5xf32> to vector<5x1xf32>
    %608 = tpu.reciprocal %607 {approx = true} : vector<5x1xf32> -> vector<5x1xf32>
    %609 = vector.broadcast %608 : vector<5x1xf32> to vector<5x5xf32>
    %610 = arith.mulf %605, %609 : vector<5x5xf32>
    %cst_209 = arith.constant dense<0.000000e+00> : vector<5x8xf32>
    %611 = tpu.matmul %610, %599, %cst_209 {dimension_numbers = #tpu.dot_dimension_numbers<[1], [0], [0], [1], [0, 0, 1, 1], [], []>} : vector<5x5xf32>, vector<5x8xf32>, vector<5x8xf32> -> vector<5x8xf32>
    %612 = vector.extract_strided_slice %596 {offsets = [0, 8], sizes = [5, 8], strides = [1, 1]} : vector<5x96xf32> to vector<5x8xf32>
    %613 = vector.extract_strided_slice %596 {offsets = [0, 40], sizes = [5, 8], strides = [1, 1]} : vector<5x96xf32> to vector<5x8xf32>
    %614 = vector.extract_strided_slice %596 {offsets = [0, 72], sizes = [5, 8], strides = [1, 1]} : vector<5x96xf32> to vector<5x8xf32>
    "tpu.trace_start"() <{level = 10 : i32, message = "ld,md->lm"}> : () -> ()
    %cst_210 = arith.constant dense<0.000000e+00> : vector<5x5xf32>
    %615 = tpu.matmul %612, %613, %cst_210 {dimension_numbers = #tpu.dot_dimension_numbers<[1], [1], [0], [0], [0, 0, 1, 0], [], []>} : vector<5x8xf32>, vector<5x8xf32>, vector<5x5xf32> -> vector<5x5xf32>
    "tpu.trace_stop"() : () -> ()
    %cst_211 = arith.constant dense<0xFF800000> : vector<5xf32>
    %616 = vector.multi_reduction <maximumf>, %615, %cst_211 [1] : vector<5x5xf32> to vector<5xf32>
    %617 = vector.shape_cast %616 : vector<5xf32> to vector<5x1xf32>
    %618 = vector.broadcast %617 : vector<5x1xf32> to vector<5x5xf32>
    %619 = arith.subf %615, %618 : vector<5x5xf32>
    %620 = math.exp %619 : vector<5x5xf32>
    %cst_212 = arith.constant dense<0.000000e+00> : vector<5xf32>
    %621 = vector.multi_reduction <add>, %620, %cst_212 [1] : vector<5x5xf32> to vector<5xf32>
    %622 = vector.shape_cast %621 : vector<5xf32> to vector<5x1xf32>
    %623 = tpu.reciprocal %622 {approx = true} : vector<5x1xf32> -> vector<5x1xf32>
    %624 = vector.broadcast %623 : vector<5x1xf32> to vector<5x5xf32>
    %625 = arith.mulf %620, %624 : vector<5x5xf32>
    %cst_213 = arith.constant dense<0.000000e+00> : vector<5x8xf32>
    %626 = tpu.matmul %625, %614, %cst_213 {dimension_numbers = #tpu.dot_dimension_numbers<[1], [0], [0], [1], [0, 0, 1, 1], [], []>} : vector<5x5xf32>, vector<5x8xf32>, vector<5x8xf32> -> vector<5x8xf32>
    %627 = vector.extract_strided_slice %596 {offsets = [0, 16], sizes = [5, 8], strides = [1, 1]} : vector<5x96xf32> to vector<5x8xf32>
    %628 = vector.extract_strided_slice %596 {offsets = [0, 48], sizes = [5, 8], strides = [1, 1]} : vector<5x96xf32> to vector<5x8xf32>
    %629 = vector.extract_strided_slice %596 {offsets = [0, 80], sizes = [5, 8], strides = [1, 1]} : vector<5x96xf32> to vector<5x8xf32>
    "tpu.trace_start"() <{level = 10 : i32, message = "ld,md->lm"}> : () -> ()
    %cst_214 = arith.constant dense<0.000000e+00> : vector<5x5xf32>
    %630 = tpu.matmul %627, %628, %cst_214 {dimension_numbers = #tpu.dot_dimension_numbers<[1], [1], [0], [0], [0, 0, 1, 0], [], []>} : vector<5x8xf32>, vector<5x8xf32>, vector<5x5xf32> -> vector<5x5xf32>
    "tpu.trace_stop"() : () -> ()
    %cst_215 = arith.constant dense<0xFF800000> : vector<5xf32>
    %631 = vector.multi_reduction <maximumf>, %630, %cst_215 [1] : vector<5x5xf32> to vector<5xf32>
    %632 = vector.shape_cast %631 : vector<5xf32> to vector<5x1xf32>
    %633 = vector.broadcast %632 : vector<5x1xf32> to vector<5x5xf32>
    %634 = arith.subf %630, %633 : vector<5x5xf32>
    %635 = math.exp %634 : vector<5x5xf32>
    %cst_216 = arith.constant dense<0.000000e+00> : vector<5xf32>
    %636 = vector.multi_reduction <add>, %635, %cst_216 [1] : vector<5x5xf32> to vector<5xf32>
    %637 = vector.shape_cast %636 : vector<5xf32> to vector<5x1xf32>
    %638 = tpu.reciprocal %637 {approx = true} : vector<5x1xf32> -> vector<5x1xf32>
    %639 = vector.broadcast %638 : vector<5x1xf32> to vector<5x5xf32>
    %640 = arith.mulf %635, %639 : vector<5x5xf32>
    %cst_217 = arith.constant dense<0.000000e+00> : vector<5x8xf32>
    %641 = tpu.matmul %640, %629, %cst_217 {dimension_numbers = #tpu.dot_dimension_numbers<[1], [0], [0], [1], [0, 0, 1, 1], [], []>} : vector<5x5xf32>, vector<5x8xf32>, vector<5x8xf32> -> vector<5x8xf32>
    %642 = vector.extract_strided_slice %596 {offsets = [0, 24], sizes = [5, 8], strides = [1, 1]} : vector<5x96xf32> to vector<5x8xf32>
    %643 = vector.extract_strided_slice %596 {offsets = [0, 56], sizes = [5, 8], strides = [1, 1]} : vector<5x96xf32> to vector<5x8xf32>
    %644 = vector.extract_strided_slice %596 {offsets = [0, 88], sizes = [5, 8], strides = [1, 1]} : vector<5x96xf32> to vector<5x8xf32>
    "tpu.trace_start"() <{level = 10 : i32, message = "ld,md->lm"}> : () -> ()
    %cst_218 = arith.constant dense<0.000000e+00> : vector<5x5xf32>
    %645 = tpu.matmul %642, %643, %cst_218 {dimension_numbers = #tpu.dot_dimension_numbers<[1], [1], [0], [0], [0, 0, 1, 0], [], []>} : vector<5x8xf32>, vector<5x8xf32>, vector<5x5xf32> -> vector<5x5xf32>
    "tpu.trace_stop"() : () -> ()
    %cst_219 = arith.constant dense<0xFF800000> : vector<5xf32>
    %646 = vector.multi_reduction <maximumf>, %645, %cst_219 [1] : vector<5x5xf32> to vector<5xf32>
    %647 = vector.shape_cast %646 : vector<5xf32> to vector<5x1xf32>
    %648 = vector.broadcast %647 : vector<5x1xf32> to vector<5x5xf32>
    %649 = arith.subf %645, %648 : vector<5x5xf32>
    %650 = math.exp %649 : vector<5x5xf32>
    %cst_220 = arith.constant dense<0.000000e+00> : vector<5xf32>
    %651 = vector.multi_reduction <add>, %650, %cst_220 [1] : vector<5x5xf32> to vector<5xf32>
    %652 = vector.shape_cast %651 : vector<5xf32> to vector<5x1xf32>
    %653 = tpu.reciprocal %652 {approx = true} : vector<5x1xf32> -> vector<5x1xf32>
    %654 = vector.broadcast %653 : vector<5x1xf32> to vector<5x5xf32>
    %655 = arith.mulf %650, %654 : vector<5x5xf32>
    %cst_221 = arith.constant dense<0.000000e+00> : vector<5x8xf32>
    %656 = tpu.matmul %655, %644, %cst_221 {dimension_numbers = #tpu.dot_dimension_numbers<[1], [0], [0], [1], [0, 0, 1, 1], [], []>} : vector<5x5xf32>, vector<5x8xf32>, vector<5x8xf32> -> vector<5x8xf32>
    %657 = tpu.concatenate %611, %626, %641, %656 in 1 : vector<5x8xf32>, vector<5x8xf32>, vector<5x8xf32>, vector<5x8xf32> -> vector<5x32xf32>
    %658 = tpu.concatenate %471, %533, %595, %657 in 0 : vector<5x32xf32>, vector<5x32xf32>, vector<5x32xf32>, vector<5x32xf32> -> vector<20x32xf32>
    %cst_222 = arith.constant dense<0.000000e+00> : vector<20x32xf32>
    %659 = tpu.matmul %658, %22, %cst_222 {dimension_numbers = #tpu.dot_dimension_numbers<[1], [0], [0], [1], [0, 0, 1, 1], [], []>} : vector<20x32xf32>, vector<32x32xf32>, vector<20x32xf32> -> vector<20x32xf32>
    %660 = vector.broadcast %23 : vector<1x32xf32> to vector<20x32xf32>
    %661 = arith.addf %659, %660 : vector<20x32xf32>
    %662 = arith.addf %384, %661 : vector<20x32xf32>
    %cst_223 = arith.constant dense<0.000000e+00> : vector<20xf32>
    %663 = vector.multi_reduction <add>, %662, %cst_223 [1] : vector<20x32xf32> to vector<20xf32>
    %664 = vector.shape_cast %663 : vector<20xf32> to vector<20x1xf32>
    %cst_224 = arith.constant 3.200000e+01 : f32
    %665 = vector.broadcast %cst_224 : f32 to vector<20x1xf32>
    %666 = arith.divf %664, %665 : vector<20x1xf32>
    %667 = vector.broadcast %666 : vector<20x1xf32> to vector<20x32xf32>
    %668 = arith.subf %662, %667 : vector<20x32xf32>
    %669 = arith.mulf %668, %668 : vector<20x32xf32>
    %cst_225 = arith.constant dense<0.000000e+00> : vector<20xf32>
    %670 = vector.multi_reduction <add>, %669, %cst_225 [1] : vector<20x32xf32> to vector<20xf32>
    %671 = vector.shape_cast %670 : vector<20xf32> to vector<20x1xf32>
    %cst_226 = arith.constant 3.200000e+01 : f32
    %672 = vector.broadcast %cst_226 : f32 to vector<20x1xf32>
    %673 = arith.divf %671, %672 : vector<20x1xf32>
    %674 = vector.broadcast %666 : vector<20x1xf32> to vector<20x32xf32>
    %675 = arith.subf %662, %674 : vector<20x32xf32>
    %cst_227 = arith.constant 9.99999974E-6 : f32
    %676 = vector.broadcast %cst_227 : f32 to vector<20x1xf32>
    %677 = arith.addf %673, %676 : vector<20x1xf32>
    %678 = math.rsqrt %677 : vector<20x1xf32>
    %679 = vector.broadcast %678 : vector<20x1xf32> to vector<20x32xf32>
    %680 = arith.mulf %675, %679 : vector<20x32xf32>
    %681 = vector.broadcast %24 : vector<1x32xf32> to vector<20x32xf32>
    %682 = arith.mulf %680, %681 : vector<20x32xf32>
    %683 = vector.broadcast %25 : vector<1x32xf32> to vector<20x32xf32>
    %684 = arith.addf %682, %683 : vector<20x32xf32>
    %cst_228 = arith.constant dense<0.000000e+00> : vector<20x128xf32>
    %685 = tpu.matmul %684, %26, %cst_228 {dimension_numbers = #tpu.dot_dimension_numbers<[1], [0], [0], [1], [0, 0, 1, 1], [], []>} : vector<20x32xf32>, vector<32x128xf32>, vector<20x128xf32> -> vector<20x128xf32>
    %686 = vector.broadcast %27 : vector<1x128xf32> to vector<20x128xf32>
    %687 = arith.addf %685, %686 : vector<20x128xf32>
    %cst_229 = arith.constant 1.702000e+00 : f32
    %688 = vector.broadcast %cst_229 : f32 to vector<20x128xf32>
    %689 = arith.mulf %688, %687 : vector<20x128xf32>
    %690 = arith.negf %689 : vector<20x128xf32>
    %691 = math.exp %690 : vector<20x128xf32>
    %cst_230 = arith.constant 1.000000e+00 : f32
    %692 = vector.broadcast %cst_230 : f32 to vector<20x128xf32>
    %693 = arith.addf %692, %691 : vector<20x128xf32>
    %694 = arith.divf %692, %693 : vector<20x128xf32>
    %695 = arith.mulf %687, %694 : vector<20x128xf32>
    %cst_231 = arith.constant dense<0.000000e+00> : vector<20x32xf32>
    %696 = tpu.matmul %695, %28, %cst_231 {dimension_numbers = #tpu.dot_dimension_numbers<[1], [0], [0], [1], [0, 0, 1, 1], [], []>} : vector<20x128xf32>, vector<128x32xf32>, vector<20x32xf32> -> vector<20x32xf32>
    %697 = vector.broadcast %29 : vector<1x32xf32> to vector<20x32xf32>
    %698 = arith.addf %696, %697 : vector<20x32xf32>
    %699 = arith.addf %662, %698 : vector<20x32xf32>
    %700 = vector.extract_strided_slice %699 {offsets = [0, 0], sizes = [1, 32], strides = [1, 1]} : vector<20x32xf32> to vector<1x32xf32>
    %701 = vector.extract_strided_slice %699 {offsets = [5, 0], sizes = [1, 32], strides = [1, 1]} : vector<20x32xf32> to vector<1x32xf32>
    %702 = arith.addf %700, %701 : vector<1x32xf32>
    %cst_232 = arith.constant 5.000000e-01 : f32
    %703 = vector.broadcast %cst_232 : f32 to vector<1x32xf32>
    %704 = arith.mulf %702, %703 : vector<1x32xf32>
    %705 = vector.extract_strided_slice %699 {offsets = [10, 0], sizes = [1, 32], strides = [1, 1]} : vector<20x32xf32> to vector<1x32xf32>
    %706 = vector.extract_strided_slice %699 {offsets = [15, 0], sizes = [1, 32], strides = [1, 1]} : vector<20x32xf32> to vector<1x32xf32>
    %707 = arith.addf %705, %706 : vector<1x32xf32>
    %cst_233 = arith.constant 5.000000e-01 : f32
    %708 = vector.broadcast %cst_233 : f32 to vector<1x32xf32>
    %709 = arith.mulf %707, %708 : vector<1x32xf32>
    %710 = tpu.concatenate %704, %709 in 0 : vector<1x32xf32>, vector<1x32xf32> -> vector<2x32xf32>
    %cst_234 = arith.constant dense<0.000000e+00> : vector<2xf32>
    %711 = vector.multi_reduction <add>, %710, %cst_234 [1] : vector<2x32xf32> to vector<2xf32>
    %712 = vector.shape_cast %711 : vector<2xf32> to vector<2x1xf32>
    %cst_235 = arith.constant 3.200000e+01 : f32
    %713 = vector.broadcast %cst_235 : f32 to vector<2x1xf32>
    %714 = arith.divf %712, %713 : vector<2x1xf32>
    %715 = vector.broadcast %714 : vector<2x1xf32> to vector<2x32xf32>
    %716 = arith.subf %710, %715 : vector<2x32xf32>
    %717 = arith.mulf %716, %716 : vector<2x32xf32>
    %cst_236 = arith.constant dense<0.000000e+00> : vector<2xf32>
    %718 = vector.multi_reduction <add>, %717, %cst_236 [1] : vector<2x32xf32> to vector<2xf32>
    %719 = vector.shape_cast %718 : vector<2xf32> to vector<2x1xf32>
    %cst_237 = arith.constant 3.200000e+01 : f32
    %720 = vector.broadcast %cst_237 : f32 to vector<2x1xf32>
    %721 = arith.divf %719, %720 : vector<2x1xf32>
    %722 = vector.broadcast %714 : vector<2x1xf32> to vector<2x32xf32>
    %723 = arith.subf %710, %722 : vector<2x32xf32>
    %cst_238 = arith.constant 9.99999974E-6 : f32
    %724 = vector.broadcast %cst_238 : f32 to vector<2x1xf32>
    %725 = arith.addf %721, %724 : vector<2x1xf32>
    %726 = math.rsqrt %725 : vector<2x1xf32>
    %727 = vector.broadcast %726 : vector<2x1xf32> to vector<2x32xf32>
    %728 = arith.mulf %723, %727 : vector<2x32xf32>
    %729 = vector.broadcast %30 : vector<1x32xf32> to vector<2x32xf32>
    %730 = arith.mulf %728, %729 : vector<2x32xf32>
    %731 = vector.broadcast %31 : vector<1x32xf32> to vector<2x32xf32>
    %732 = arith.addf %730, %731 : vector<2x32xf32>
    %cst_239 = arith.constant dense<0.000000e+00> : vector<2x16xf32>
    %733 = tpu.matmul %732, %32, %cst_239 {dimension_numbers = #tpu.dot_dimension_numbers<[1], [0], [0], [1], [0, 0, 1, 1], [], []>} : vector<2x32xf32>, vector<32x16xf32>, vector<2x16xf32> -> vector<2x16xf32>
    %734 = vector.broadcast %33 : vector<1x16xf32> to vector<2x16xf32>
    %735 = arith.addf %733, %734 : vector<2x16xf32>
    %c0_240 = arith.constant 0 : index
    %c0_241 = arith.constant 0 : index
    %736 = vector.load %arg34[%c0_240, %c0_241] : memref<2x16xf32, #tpu.memory_space<vmem>>, vector<2x16xf32>
    tpu.vector_store %arg34[%c0_240, %c0_241], %735 {strides = array<i32>} : memref<2x16xf32, #tpu.memory_space<vmem>>, vector<2x16xf32>,
    return
  }
}

</mosaic_0001>

<llo_original>
// kernel: vision_transformer_forward.1
$region0: #{vision_transformer_forward.1}
  #allocation0 [shape = 'u32[]', space=smem, size = 0x4, offset = 0x4, fixed_abs, tag = 'smem constant byte address 0x4 - core index']
  #allocation1 [shape = 'u32[144,128]{1,0:T(1,128)}', space=vmem, size = 0x12000, scoped, tag = 'internal scratch']
  %s0 = inlined_call_operand.smem [shape: u32[35], index: -1, kind: input, shape index: {}]
  %s1 = sld [smem:[%s0]]
  %s2 = scalar_lea.smem %s0, 1
  %s3 = sld [smem:[%s2]]
  %s4 = scalar_lea.smem %s0, 2
  %s5 = sld [smem:[%s4]]
  %s6 = scalar_lea.smem %s0, 3
  %s7 = sld [smem:[%s6]]
  %s8 = scalar_lea.smem %s0, 4
  %s9 = sld [smem:[%s8]]
  %s10 = scalar_lea.smem %s0, 5
  %s11 = sld [smem:[%s10]]
  %s12 = scalar_lea.smem %s0, 6
  %s13 = sld [smem:[%s12]]
  %s14 = scalar_lea.smem %s0, 7
  %s15 = sld [smem:[%s14]]
  %s16 = scalar_lea.smem %s0, 8
  %s17 = sld [smem:[%s16]]
  %s18 = scalar_lea.smem %s0, 9
  %s19 = sld [smem:[%s18]]
  %s20 = scalar_lea.smem %s0, 10
  %s21 = sld [smem:[%s20]]
  %s22 = scalar_lea.smem %s0, 11
  %s23 = sld [smem:[%s22]]
  %s24 = scalar_lea.smem %s0, 12
  %s25 = sld [smem:[%s24]]
  %s26 = scalar_lea.smem %s0, 13
  %s27 = sld [smem:[%s26]]
  %s28 = scalar_lea.smem %s0, 14
  %s29 = sld [smem:[%s28]]
  %s30 = scalar_lea.smem %s0, 15
  %s31 = sld [smem:[%s30]]
  %s32 = scalar_lea.smem %s0, 16
  %s33 = sld [smem:[%s32]]
  %s34 = scalar_lea.smem %s0, 17
  %s35 = sld [smem:[%s34]]
  %s36 = scalar_lea.smem %s0, 18
  %s37 = sld [smem:[%s36]]
  %s38 = scalar_lea.smem %s0, 19
  %s39 = sld [smem:[%s38]]
  %s40 = scalar_lea.smem %s0, 20
  %s41 = sld [smem:[%s40]]
  %s42 = scalar_lea.smem %s0, 21
  %s43 = sld [smem:[%s42]]
  %s44 = scalar_lea.smem %s0, 22
  %s45 = sld [smem:[%s44]]
  %s46 = scalar_lea.smem %s0, 23
  %s47 = sld [smem:[%s46]]
  %s48 = scalar_lea.smem %s0, 24
  %s49 = sld [smem:[%s48]]
  %s50 = scalar_lea.smem %s0, 25
  %s51 = sld [smem:[%s50]]
  %s52 = scalar_lea.smem %s0, 26
  %s53 = sld [smem:[%s52]]
  %s54 = scalar_lea.smem %s0, 27
  %s55 = sld [smem:[%s54]]
  %s56 = scalar_lea.smem %s0, 28
  %s57 = sld [smem:[%s56]]
  %s58 = scalar_lea.smem %s0, 29
  %s59 = sld [smem:[%s58]]
  %s60 = scalar_lea.smem %s0, 30
  %s61 = sld [smem:[%s60]]
  %s62 = scalar_lea.smem %s0, 31
  %s63 = sld [smem:[%s62]]
  %s64 = scalar_lea.smem %s0, 32
  %s65 = sld [smem:[%s64]]
  %s66 = scalar_lea.smem %s0, 33
  %s67 = sld [smem:[%s66]]
  %s68 = scalar_lea.smem %s0, 34
  %s69 = sld [smem:[%s68]]
  %s70 = sld [smem:[#allocation0]]
  $region146: #{vision_transformer_forward.1} parent=0
    _
  %s72 = ssub.s32 1, %s70
  %s73 = scalar_select 0, %s72, %s70
  $region1: #{vision_transformer_forward.1} parent=0
    #allocation2 [shape = 'u8[1024]{0}', space=vmem, size = 0x400, scoped, tag = 'output window, operand 0, single buffered']
    #allocation3 [shape = 's32[1]{0}', space=sflag, size = 0x4, scoped, tag = 'scoped memory for vision_transformer_forward.1']
    %74 = vsyncpa [#allocation3], 0
    // Predicated region
    $region2: #{vision_transformer_forward.1} parent=1 // pred_check
      _
    $region3: #{vision_transformer_forward.1} parent=1 // pred_check_branch
      %76 = sbr.rel (0) target = $region5
    $region4: #{vision_transformer_forward.1} parent=1 // pred_region
      _
    $region5: #{vision_transformer_forward.1} parent=1 // pred_fallthru
      _
    // Predicated region
    $region6: #{vision_transformer_forward.1} parent=1 // pred_check
      _
    $region7: #{vision_transformer_forward.1} parent=1 // pred_check_branch
      %78 = sbr.rel (0) target = $region9
    $region8: #{vision_transformer_forward.1} parent=1 // pred_region
      _
    $region9: #{vision_transformer_forward.1} parent=1 // pred_fallthru
      _
    // Predicated region
    $region10: #{vision_transformer_forward.1} parent=1 // pred_check
      _
    $region11: #{vision_transformer_forward.1} parent=1 // pred_check_branch
      %80 = sbr.rel (0) target = $region13
    $region12: #{vision_transformer_forward.1} parent=1 // pred_region
      _
    $region13: #{vision_transformer_forward.1} parent=1 // pred_fallthru
      _
    // Predicated region
    $region14: #{vision_transformer_forward.1} parent=1 // pred_check
      _
    $region15: #{vision_transformer_forward.1} parent=1 // pred_check_branch
      %82 = sbr.rel (0) target = $region17
    $region16: #{vision_transformer_forward.1} parent=1 // pred_region
      _
    $region17: #{vision_transformer_forward.1} parent=1 // pred_fallthru
      _
    // Predicated region
    $region18: #{vision_transformer_forward.1} parent=1 // pred_check
      _
    $region19: #{vision_transformer_forward.1} parent=1 // pred_check_branch
      %84 = sbr.rel (0) target = $region21
    $region20: #{vision_transformer_forward.1} parent=1 // pred_region
      _
    $region21: #{vision_transformer_forward.1} parent=1 // pred_fallthru
      _
    // Predicated region
    $region22: #{vision_transformer_forward.1} parent=1 // pred_check
      _
    $region23: #{vision_transformer_forward.1} parent=1 // pred_check_branch
      %86 = sbr.rel (0) target = $region25
    $region24: #{vision_transformer_forward.1} parent=1 // pred_region
      _
    $region25: #{vision_transformer_forward.1} parent=1 // pred_fallthru
      _
    // Predicated region
    $region26: #{vision_transformer_forward.1} parent=1 // pred_check
      _
    $region27: #{vision_transformer_forward.1} parent=1 // pred_check_branch
      %88 = sbr.rel (0) target = $region29
    $region28: #{vision_transformer_forward.1} parent=1 // pred_region
      _
    $region29: #{vision_transformer_forward.1} parent=1 // pred_fallthru
      _
    // Predicated region
    $region30: #{vision_transformer_forward.1} parent=1 // pred_check
      _
    $region31: #{vision_transformer_forward.1} parent=1 // pred_check_branch
      %90 = sbr.rel (0) target = $region33
    $region32: #{vision_transformer_forward.1} parent=1 // pred_region
      _
    $region33: #{vision_transformer_forward.1} parent=1 // pred_fallthru
      _
    // Predicated region
    $region34: #{vision_transformer_forward.1} parent=1 // pred_check
      _
    $region35: #{vision_transformer_forward.1} parent=1 // pred_check_branch
      %92 = sbr.rel (0) target = $region37
    $region36: #{vision_transformer_forward.1} parent=1 // pred_region
      _
    $region37: #{vision_transformer_forward.1} parent=1 // pred_fallthru
      _
    // Predicated region
    $region38: #{vision_transformer_forward.1} parent=1 // pred_check
      _
    $region39: #{vision_transformer_forward.1} parent=1 // pred_check_branch
      %94 = sbr.rel (0) target = $region41
    $region40: #{vision_transformer_forward.1} parent=1 // pred_region
      _
    $region41: #{vision_transformer_forward.1} parent=1 // pred_fallthru
      _
    // Predicated region
    $region42: #{vision_transformer_forward.1} parent=1 // pred_check
      _
    $region43: #{vision_transformer_forward.1} parent=1 // pred_check_branch
      %96 = sbr.rel (0) target = $region45
    $region44: #{vision_transformer_forward.1} parent=1 // pred_region
      _
    $region45: #{vision_transformer_forward.1} parent=1 // pred_fallthru
      _
    // Predicated region
    $region46: #{vision_transformer_forward.1} parent=1 // pred_check
      _
    $region47: #{vision_transformer_forward.1} parent=1 // pred_check_branch
      %98 = sbr.rel (0) target = $region49
    $region48: #{vision_transformer_forward.1} parent=1 // pred_region
      _
    $region49: #{vision_transformer_forward.1} parent=1 // pred_fallthru
      _
    // Predicated region
    $region50: #{vision_transformer_forward.1} parent=1 // pred_check
      _
    $region51: #{vision_transformer_forward.1} parent=1 // pred_check_branch
      %100 = sbr.rel (0) target = $region53
    $region52: #{vision_transformer_forward.1} parent=1 // pred_region
      _
    $region53: #{vision_transformer_forward.1} parent=1 // pred_fallthru
      _
    // Predicated region
    $region54: #{vision_transformer_forward.1} parent=1 // pred_check
      _
    $region55: #{vision_transformer_forward.1} parent=1 // pred_check_branch
      %102 = sbr.rel (0) target = $region57
    $region56: #{vision_transformer_forward.1} parent=1 // pred_region
      _
    $region57: #{vision_transformer_forward.1} parent=1 // pred_fallthru
      _
    // Predicated region
    $region58: #{vision_transformer_forward.1} parent=1 // pred_check
      _
    $region59: #{vision_transformer_forward.1} parent=1 // pred_check_branch
      %104 = sbr.rel (0) target = $region61
    $region60: #{vision_transformer_forward.1} parent=1 // pred_region
      _
    $region61: #{vision_transformer_forward.1} parent=1 // pred_fallthru
      _
    // Predicated region
    $region62: #{vision_transformer_forward.1} parent=1 // pred_check
      _
    $region63: #{vision_transformer_forward.1} parent=1 // pred_check_branch
      %106 = sbr.rel (0) target = $region65
    $region64: #{vision_transformer_forward.1} parent=1 // pred_region
      _
    $region65: #{vision_transformer_forward.1} parent=1 // pred_fallthru
      _
    // Predicated region
    $region66: #{vision_transformer_forward.1} parent=1 // pred_check
      _
    $region67: #{vision_transformer_forward.1} parent=1 // pred_check_branch
      %108 = sbr.rel (0) target = $region69
    $region68: #{vision_transformer_forward.1} parent=1 // pred_region
      _
    $region69: #{vision_transformer_forward.1} parent=1 // pred_fallthru
      _
    // Predicated region
    $region70: #{vision_transformer_forward.1} parent=1 // pred_check
      _
    $region71: #{vision_transformer_forward.1} parent=1 // pred_check_branch
      %110 = sbr.rel (0) target = $region73
    $region72: #{vision_transformer_forward.1} parent=1 // pred_region
      _
    $region73: #{vision_transformer_forward.1} parent=1 // pred_fallthru
      _
    // Predicated region
    $region74: #{vision_transformer_forward.1} parent=1 // pred_check
      _
    $region75: #{vision_transformer_forward.1} parent=1 // pred_check_branch
      %112 = sbr.rel (0) target = $region77
    $region76: #{vision_transformer_forward.1} parent=1 // pred_region
      _
    $region77: #{vision_transformer_forward.1} parent=1 // pred_fallthru
      _
    // Predicated region
    $region78: #{vision_transformer_forward.1} parent=1 // pred_check
      _
    $region79: #{vision_transformer_forward.1} parent=1 // pred_check_branch
      %114 = sbr.rel (0) target = $region81
    $region80: #{vision_transformer_forward.1} parent=1 // pred_region
      _
    $region81: #{vision_transformer_forward.1} parent=1 // pred_fallthru
      _
    // Predicated region
    $region82: #{vision_transformer_forward.1} parent=1 // pred_check
      _
    $region83: #{vision_transformer_forward.1} parent=1 // pred_check_branch
      %116 = sbr.rel (0) target = $region85
    $region84: #{vision_transformer_forward.1} parent=1 // pred_region
      _
    $region85: #{vision_transformer_forward.1} parent=1 // pred_fallthru
      _
    // Predicated region
    $region86: #{vision_transformer_forward.1} parent=1 // pred_check
      _
    $region87: #{vision_transformer_forward.1} parent=1 // pred_check_branch
      %118 = sbr.rel (0) target = $region89
    $region88: #{vision_transformer_forward.1} parent=1 // pred_region
      _
    $region89: #{vision_transformer_forward.1} parent=1 // pred_fallthru
      _
    // Predicated region
    $region90: #{vision_transformer_forward.1} parent=1 // pred_check
      _
    $region91: #{vision_transformer_forward.1} parent=1 // pred_check_branch
      %120 = sbr.rel (0) target = $region93
    $region92: #{vision_transformer_forward.1} parent=1 // pred_region
      _
    $region93: #{vision_transformer_forward.1} parent=1 // pred_fallthru
      _
    // Predicated region
    $region94: #{vision_transformer_forward.1} parent=1 // pred_check
      _
    $region95: #{vision_transformer_forward.1} parent=1 // pred_check_branch
      %122 = sbr.rel (0) target = $region97
    $region96: #{vision_transformer_forward.1} parent=1 // pred_region
      _
    $region97: #{vision_transformer_forward.1} parent=1 // pred_fallthru
      _
    // Predicated region
    $region98: #{vision_transformer_forward.1} parent=1 // pred_check
      _
    $region99: #{vision_transformer_forward.1} parent=1 // pred_check_branch
      %124 = sbr.rel (0) target = $region101
    $region100: #{vision_transformer_forward.1} parent=1 // pred_region
      _
    $region101: #{vision_transformer_forward.1} parent=1 // pred_fallthru
      _
    // Predicated region
    $region102: #{vision_transformer_forward.1} parent=1 // pred_check
      _
    $region103: #{vision_transformer_forward.1} parent=1 // pred_check_branch
      %126 = sbr.rel (0) target = $region105
    $region104: #{vision_transformer_forward.1} parent=1 // pred_region
      _
    $region105: #{vision_transformer_forward.1} parent=1 // pred_fallthru
      _
    // Predicated region
    $region106: #{vision_transformer_forward.1} parent=1 // pred_check
      _
    $region107: #{vision_transformer_forward.1} parent=1 // pred_check_branch
      %128 = sbr.rel (0) target = $region109
    $region108: #{vision_transformer_forward.1} parent=1 // pred_region
      _
    $region109: #{vision_transformer_forward.1} parent=1 // pred_fallthru
      _
    // Predicated region
    $region110: #{vision_transformer_forward.1} parent=1 // pred_check
      _
    $region111: #{vision_transformer_forward.1} parent=1 // pred_check_branch
      %130 = sbr.rel (0) target = $region113
    $region112: #{vision_transformer_forward.1} parent=1 // pred_region
      _
    $region113: #{vision_transformer_forward.1} parent=1 // pred_fallthru
      _
    // Predicated region
    $region114: #{vision_transformer_forward.1} parent=1 // pred_check
      _
    $region115: #{vision_transformer_forward.1} parent=1 // pred_check_branch
      %132 = sbr.rel (0) target = $region117
    $region116: #{vision_transformer_forward.1} parent=1 // pred_region
      _
    $region117: #{vision_transformer_forward.1} parent=1 // pred_fallthru
      _
    // Predicated region
    $region118: #{vision_transformer_forward.1} parent=1 // pred_check
      _
    $region119: #{vision_transformer_forward.1} parent=1 // pred_check_branch
      %134 = sbr.rel (0) target = $region121
    $region120: #{vision_transformer_forward.1} parent=1 // pred_region
      _
    $region121: #{vision_transformer_forward.1} parent=1 // pred_fallthru
      _
    // Predicated region
    $region122: #{vision_transformer_forward.1} parent=1 // pred_check
      _
    $region123: #{vision_transformer_forward.1} parent=1 // pred_check_branch
      %136 = sbr.rel (0) target = $region125
    $region124: #{vision_transformer_forward.1} parent=1 // pred_region
      _
    $region125: #{vision_transformer_forward.1} parent=1 // pred_fallthru
      _
    // Predicated region
    $region126: #{vision_transformer_forward.1} parent=1 // pred_check
      _
    $region127: #{vision_transformer_forward.1} parent=1 // pred_check_branch
      %138 = sbr.rel (0) target = $region129
    $region128: #{vision_transformer_forward.1} parent=1 // pred_region
      _
    $region129: #{vision_transformer_forward.1} parent=1 // pred_fallthru
      _
    // Predicated region
    $region130: #{vision_transformer_forward.1} parent=1 // pred_check
      _
    $region131: #{vision_transformer_forward.1} parent=1 // pred_check_branch
      %140 = sbr.rel (0) target = $region133
    $region132: #{vision_transformer_forward.1} parent=1 // pred_region
      _
    $region133: #{vision_transformer_forward.1} parent=1 // pred_fallthru
      _
    // Predicated region
    $region134: #{vision_transformer_forward.1} parent=1 // pred_check
      _
    $region135: #{vision_transformer_forward.1} parent=1 // pred_check_branch
      %142 = sbr.rel (0) target = $region137
    $region136: #{vision_transformer_forward.1} parent=1 // pred_region
      _
    $region137: #{vision_transformer_forward.1} parent=1 // pred_fallthru
      _
    %v143 = vld [vmem:[%s1] sm:$0xff]
    %v144 = vld [vmem:[%s1 + $0x8] sm:$0xff]
    %v145 = vld [vmem:[%s1 + $0x10] sm:$0xff]
    %v146 = vld [vmem:[%s1 + $0x18] sm:$0xff]
    %v147 = vld [vmem:[%s3] sm:$0xff]
    %v148 = vld [vmem:[%s3 + $0x8] sm:$0xff]
    %v149 = vld [vmem:[%s3 + $0x10] sm:$0xff]
    %v150 = vld [vmem:[%s3 + $0x18] sm:$0xff]
    %v151 = vld [vmem:[%s3 + $0x20] sm:$0xff]
    %v152 = vld [vmem:[%s3 + $0x28] sm:$0xff]
    %v153 = vld [vmem:[%s3 + $0x30] sm:$0xff]
    %v154 = vld [vmem:[%s3 + $0x38] sm:$0xff]
    %v155 = vld [vmem:[%s3 + $0x40] sm:$0xff]
    %v156 = vld [vmem:[%s3 + $0x48] sm:$0xff]
    %v157 = vld [vmem:[%s3 + $0x50] sm:$0xff]
    %v158 = vld [vmem:[%s3 + $0x58] sm:$0xff]
    %v159 = vld [vmem:[%s3 + $0x60] sm:$0xff]
    %v160 = vld [vmem:[%s3 + $0x68] sm:$0xff]
    %v161 = vld [vmem:[%s3 + $0x70] sm:$0xff]
    %v162 = vld [vmem:[%s3 + $0x78] sm:$0xff]
    %v163 = vld [vmem:[%s3 + $0x80] sm:$0xff]
    %v164 = vld [vmem:[%s3 + $0x88] sm:$0xff]
    %v165 = vld [vmem:[%s3 + $0x90] sm:$0xff]
    %v166 = vld [vmem:[%s3 + $0x98] sm:$0xff]
    %v167 = vld [vmem:[%s3 + $0xa0] sm:$0xff]
    %v168 = vld [vmem:[%s3 + $0xa8] sm:$0xff]
    %v169 = vld [vmem:[%s3 + $0xb0] sm:$0xff]
    %v170 = vld [vmem:[%s3 + $0xb8] sm:$0xff]
    %v171 = vld [vmem:[%s5] sm:$0x1]
    %v172 = vld [vmem:[%s7] sm:$0x1f]
    %v173 = vld [vmem:[%s9] sm:$0x1]
    %v174 = vld [vmem:[%s11] sm:$0x1]
    %v175 = vld [vmem:[%s13] sm:$0x1]
    %v176 = vld [vmem:[%s15] sm:$0x1]
    %v177 = vld [vmem:[%s17] sm:$0xff]
    %v178 = vld [vmem:[%s17 + $0x8] sm:$0xff]
    %v179 = vld [vmem:[%s17 + $0x10] sm:$0xff]
    %v180 = vld [vmem:[%s17 + $0x18] sm:$0xff]
    %v181 = vld [vmem:[%s19] sm:$0x1]
    %v182 = vld [vmem:[%s21] sm:$0xff]
    %v183 = vld [vmem:[%s21 + $0x8] sm:$0xff]
    %v184 = vld [vmem:[%s21 + $0x10] sm:$0xff]
    %v185 = vld [vmem:[%s21 + $0x18] sm:$0xff]
    %v186 = vld [vmem:[%s23] sm:$0x1]
    %v187 = vld [vmem:[%s25] sm:$0x1]
    %v188 = vld [vmem:[%s27] sm:$0x1]
    %v189 = vld [vmem:[%s29] sm:$0xff]
    %v190 = vld [vmem:[%s29 + $0x8] sm:$0xff]
    %v191 = vld [vmem:[%s29 + $0x10] sm:$0xff]
    %v192 = vld [vmem:[%s29 + $0x18] sm:$0xff]
    %v193 = vld [vmem:[%s31] sm:$0x1]
    %v194 = vld [vmem:[%s33] sm:$0xff]
    %v195 = vld [vmem:[%s33 + $0x8] sm:$0xff]
    %v196 = vld [vmem:[%s33 + $0x10] sm:$0xff]
    %v197 = vld [vmem:[%s33 + $0x18] sm:$0xff]
    %v198 = vld [vmem:[%s33 + $0x20] sm:$0xff]
    %v199 = vld [vmem:[%s33 + $0x28] sm:$0xff]
    %v200 = vld [vmem:[%s33 + $0x30] sm:$0xff]
    %v201 = vld [vmem:[%s33 + $0x38] sm:$0xff]
    %v202 = vld [vmem:[%s33 + $0x40] sm:$0xff]
    %v203 = vld [vmem:[%s33 + $0x48] sm:$0xff]
    %v204 = vld [vmem:[%s33 + $0x50] sm:$0xff]
    %v205 = vld [vmem:[%s33 + $0x58] sm:$0xff]
    %v206 = vld [vmem:[%s33 + $0x60] sm:$0xff]
    %v207 = vld [vmem:[%s33 + $0x68] sm:$0xff]
    %v208 = vld [vmem:[%s33 + $0x70] sm:$0xff]
    %v209 = vld [vmem:[%s33 + $0x78] sm:$0xff]
    %v210 = vld [vmem:[%s35] sm:$0x1]
    %v211 = vld [vmem:[%s37] sm:$0x1]
    %v212 = vld [vmem:[%s39] sm:$0x1]
    %v213 = vld [vmem:[%s41] sm:$0xff]
    %v214 = vld [vmem:[%s41 + $0x8] sm:$0xff]
    %v215 = vld [vmem:[%s41 + $0x10] sm:$0xff]
    %v216 = vld [vmem:[%s41 + $0x18] sm:$0xff]
    %v217 = vld [vmem:[%s43] sm:$0x1]
    %v218 = vld [vmem:[%s45] sm:$0xff]
    %v219 = vld [vmem:[%s45 + $0x8] sm:$0xff]
    %v220 = vld [vmem:[%s45 + $0x10] sm:$0xff]
    %v221 = vld [vmem:[%s45 + $0x18] sm:$0xff]
    %v222 = vld [vmem:[%s47] sm:$0x1]
    %v223 = vld [vmem:[%s49] sm:$0x1]
    %v224 = vld [vmem:[%s51] sm:$0x1]
    %v225 = vld [vmem:[%s53] sm:$0xff]
    %v226 = vld [vmem:[%s53 + $0x8] sm:$0xff]
    %v227 = vld [vmem:[%s53 + $0x10] sm:$0xff]
    %v228 = vld [vmem:[%s53 + $0x18] sm:$0xff]
    %v229 = vld [vmem:[%s55] sm:$0x1]
    %v230 = vld [vmem:[%s57] sm:$0xff]
    %v231 = vld [vmem:[%s57 + $0x8] sm:$0xff]
    %v232 = vld [vmem:[%s57 + $0x10] sm:$0xff]
    %v233 = vld [vmem:[%s57 + $0x18] sm:$0xff]
    %v234 = vld [vmem:[%s57 + $0x20] sm:$0xff]
    %v235 = vld [vmem:[%s57 + $0x28] sm:$0xff]
    %v236 = vld [vmem:[%s57 + $0x30] sm:$0xff]
    %v237 = vld [vmem:[%s57 + $0x38] sm:$0xff]
    %v238 = vld [vmem:[%s57 + $0x40] sm:$0xff]
    %v239 = vld [vmem:[%s57 + $0x48] sm:$0xff]
    %v240 = vld [vmem:[%s57 + $0x50] sm:$0xff]
    %v241 = vld [vmem:[%s57 + $0x58] sm:$0xff]
    %v242 = vld [vmem:[%s57 + $0x60] sm:$0xff]
    %v243 = vld [vmem:[%s57 + $0x68] sm:$0xff]
    %v244 = vld [vmem:[%s57 + $0x70] sm:$0xff]
    %v245 = vld [vmem:[%s57 + $0x78] sm:$0xff]
    %v246 = vld [vmem:[%s59] sm:$0x1]
    %v247 = vld [vmem:[%s61] sm:$0x1]
    %v248 = vld [vmem:[%s63] sm:$0x1]
    %v249 = vld [vmem:[%s65] sm:$0xff]
    %v250 = vld [vmem:[%s65 + $0x8] sm:$0xff]
    %v251 = vld [vmem:[%s65 + $0x10] sm:$0xff]
    %v252 = vld [vmem:[%s65 + $0x18] sm:$0xff]
    %v253 = vld [vmem:[%s67] sm:$0x1]
    %vm254 = vcmask 523264
    %v256 = vsel %vm254, %v144, 0
    %v259 = vsel %vm254, %v146, 0
    %261 = vmatprep.subr.mxu0 0.0
    %262 = vmatpush1.msra.mxu0 %v147
    %263 = vmatprep.subr.mxu0 0.0
    %264 = vmatpush1.msra.mxu0 %v148
    %265 = vmatprep.subr.mxu0 0.0
    %266 = vmatpush1.msra.mxu0 %v149
    %267 = vmatprep.subr.mxu0 0.0
    %268 = vmatpush1.msra.mxu0 %v150
    %269 = vmatprep.subr.mxu0 0.0
    %270 = vmatpush1.msra.mxu0 %v151
    %271 = vmatprep.subr.mxu0 0.0
    %272 = vmatpush1.msra.mxu0 %v152
    %273 = vmatprep.subr.mxu0 0.0
    %274 = vmatpush1.msra.mxu0 %v153
    %275 = vmatprep.subr.mxu0 0.0
    %276 = vmatpush1.msra.mxu0 %v154
    %277 = vmatprep.subr.mxu0 0.0
    %278 = vmatpush1.msra.mxu0 %v155
    %279 = vmatprep.subr.mxu0 0.0
    %280 = vmatpush1.msra.mxu0 %v156
    %281 = vmatprep.subr.mxu0 0.0
    %282 = vmatpush1.msra.mxu0 %v157
    %283 = vmatprep.subr.mxu0 0.0
    %284 = vmatpush1.msra.mxu0 %v158
    %285 = vmatprep.subr.mxu0 0.0
    %286 = vmatpush1.msra.mxu0 %v159
    %287 = vmatprep.subr.mxu0 0.0
    %288 = vmatpush1.msra.mxu0 %v160
    %289 = vmatprep.subr.mxu0 0.0
    %290 = vmatpush1.msra.mxu0 %v161
    %291 = vmatprep.subr.mxu0 0.0
    %292 = vmatpush1.msra.mxu0 %v162
    %293 = vmatprep.subr.mxu0 0.0
    %294 = vmatpush1.msra.mxu0 %v163
    %295 = vmatprep.subr.mxu0 0.0
    %296 = vmatpush1.msra.mxu0 %v164
    %297 = vmatprep.subr.mxu0 0.0
    %298 = vmatpush1.msra.mxu0 %v165
    %299 = vmatprep.subr.mxu0 0.0
    %300 = vmatpush1.msra.mxu0 %v166
    %301 = vmatprep.subr.mxu0 0.0
    %302 = vmatpush1.msra.mxu0 %v167
    %303 = vmatprep.subr.mxu0 0.0
    %304 = vmatpush1.msra.mxu0 %v168
    %305 = vmatprep.subr.mxu0 0.0
    %306 = vmatpush1.msra.mxu0 %v169
    %307 = vmatprep.subr.mxu0 0.0
    %308 = vmatpush1.msra.mxu0 %v170
    %309 = vmatprep.subr.mxu0 0.0
    %310 = vmatpush1.msra.mxu0 0.0
    %311 = vmatprep.subr.mxu0 0.0
    %312 = vmatpush1.msra.mxu0 0.0
    %313 = vmatprep.subr.mxu0 0.0
    %314 = vmatpush1.msra.mxu0 0.0
    %315 = vmatprep.subr.mxu0 0.0
    %316 = vmatpush1.msra.mxu0 0.0
    %317 = vmatprep.subr.mxu0 0.0
    %318 = vmatpush1.msra.mxu0 0.0
    %319 = vmatprep.subr.mxu0 0.0
    %320 = vmatpush1.msra.mxu0 0.0
    %321 = vmatprep.subr.mxu0 0.0
    %322 = vmatpush1.msra.mxu0 0.0
    %323 = vmatprep.subr.mxu0 0.0
    %324 = vmatpush1.msra.mxu0 0.0
    %325 = vmatprep.mubr.f32.mxu0 %v256
    %326 = vmatmul.mubr.f32.gmra.mrb[0].mxu0 %v143
    %v327 = vpop.f32.mrb[0].mxu0
    %v328 = vadd.f32 0.0, %v327
    %v329 = vpop.f32.mrb[0].mxu0
    %330 = vmatprep.mubr.f32.mxu0 %v259
    %331 = vmatmul.mubr.f32.gmra.mrb[0].mxu0 %v145
    %v332 = vpop.f32.mrb[0].mxu0
    %v333 = vadd.f32 0.0, %v332
    %v334 = vpop.f32.mrb[0].mxu0
    %335 = vdwg.mxu0
    %v337 = vrot.slane %v328, 7
    %vm339 = vcmask 1040384
    %v340 = vsel %vm339, %v171, %v337
    %v341 = vadd.f32 %v340, %v172
    %v342 = vrot.slane %v328, 3
    %v344 = vsel %vm339, %v171, %v342
    %v345 = vadd.f32 %v344, %v172
    %v347 = vrot.slane %v333, 7
    %v349 = vsel %vm339, %v171, %v347
    %v350 = vadd.f32 %v349, %v172
    %v351 = vrot.slane %v333, 3
    %v353 = vsel %vm339, %v171, %v351
    %v354 = vadd.f32 %v353, %v172
    %v356 = vrot.slane %v345, 3
    %v359 = vrot.slane %v350, 6
    %v362 = vrot.slane %v354, 1
    %vm364 = vcmask 1044480
    %v365 = vsel %vm364, %v341, %v356
    %vm366 = vcmask 1041408
    %v367 = vsel %vm366, %v356, %v359
    %vm368 = vcmask 1046528
    %v369 = vsel %vm368, %v367, %v362
    %vm370 = vcmask 261120
    %v371 = vsel %vm370, %v365, 0.0
    %372 = vadd.xlane.f32.xlu0 %v371
    %v373 = vpop.xlane.xlu0 %372
    %v374 = vsel %vm370, %v369, 0.0
    %375 = vadd.xlane.f32.xlu0 %v374
    %v376 = vpop.xlane.xlu0 %375
    %vm377 = vcmask 257024
    %v378 = vsel %vm377, %v362, 0.0
    %379 = vadd.xlane.f32.xlu0 %v378
    %v380 = vpop.xlane.xlu0 %379
    %v381 = vrcp.pop 32.0
    %v382 = vmul.f32 %v373, %v381
    %v383 = vmul.f32 %v376, %v381
    %v384 = vmul.f32 %v380, %v381
    %v385 = vsub.f32 %v365, %v382
    %v386 = vsub.f32 %v369, %v383
    %v387 = vsub.f32 %v362, %v384
    %v388 = vmul.f32 %v385, %v385
    %v389 = vmul.f32 %v386, %v386
    %v390 = vmul.f32 %v387, %v387
    %v391 = vsel %vm370, %v388, 0.0
    %392 = vadd.xlane.f32.xlu0 %v391
    %v393 = vpop.xlane.xlu0 %392
    %v394 = vsel %vm370, %v389, 0.0
    %395 = vadd.xlane.f32.xlu0 %v394
    %v396 = vpop.xlane.xlu0 %395
    %v397 = vsel %vm377, %v390, 0.0
    %398 = vadd.xlane.f32.xlu0 %v397
    %v399 = vpop.xlane.xlu0 %398
    %v400 = vmul.f32 %v393, %v381
    %v401 = vmul.f32 %v396, %v381
    %v402 = vmul.f32 %v399, %v381
    %v403 = vadd.f32 %v400, 1e-05
    %v404 = vadd.f32 %v401, 1e-05
    %v405 = vadd.f32 %v402, 1e-05
    %v406 = vrsqrt.pop %v403
    %v407 = vrsqrt.pop %v404
    %v408 = vrsqrt.pop %v405
    %v409 = vmul.f32 %v385, %v406
    %v410 = vmul.f32 %v386, %v407
    %v411 = vmul.f32 %v387, %v408
    %v413 = vlaneseq
    %v414 = vshrl.u32 %v413, 7
    %v415 = vsub.s32 0, %v414
    %v416 = vrot.slane %v173, %v415
    %v418 = vmul.f32 %v409, %v416
    %v419 = vmul.f32 %v410, %v416
    %v420 = vmul.f32 %v411, %v416
    %v422 = vlaneseq
    %v423 = vshrl.u32 %v422, 7
    %v424 = vsub.s32 0, %v423
    %v425 = vrot.slane %v174, %v424
    %v427 = vadd.f32 %v418, %v425
    %v428 = vadd.f32 %v419, %v425
    %v429 = vadd.f32 %v420, %v425
    %v430 = vsel %vm370, %v427, 0.0
    %431 = vadd.xlane.f32.xlu0 %v430
    %v432 = vpop.xlane.xlu0 %431
    %v433 = vsel %vm370, %v428, 0.0
    %434 = vadd.xlane.f32.xlu0 %v433
    %v435 = vpop.xlane.xlu0 %434
    %v436 = vsel %vm377, %v429, 0.0
    %437 = vadd.xlane.f32.xlu0 %v436
    %v438 = vpop.xlane.xlu0 %437
    %v439 = vmul.f32 %v432, %v381
    %v440 = vmul.f32 %v435, %v381
    %v441 = vmul.f32 %v438, %v381
    %v442 = vsub.f32 %v427, %v439
    %v443 = vsub.f32 %v428, %v440
    %v444 = vsub.f32 %v429, %v441
    %v445 = vmul.f32 %v442, %v442
    %v446 = vmul.f32 %v443, %v443
    %v447 = vmul.f32 %v444, %v444
    %v448 = vsel %vm370, %v445, 0.0
    %449 = vadd.xlane.f32.xlu0 %v448
    %v450 = vpop.xlane.xlu0 %449
    %v451 = vsel %vm370, %v446, 0.0
    %452 = vadd.xlane.f32.xlu0 %v451
    %v453 = vpop.xlane.xlu0 %452
    %v454 = vsel %vm377, %v447, 0.0
    %455 = vadd.xlane.f32.xlu0 %v454
    %v456 = vpop.xlane.xlu0 %455
    %v457 = vmul.f32 %v450, %v381
    %v458 = vmul.f32 %v453, %v381
    %v459 = vmul.f32 %v456, %v381
    %v460 = vadd.f32 %v457, 1e-05
    %v461 = vadd.f32 %v458, 1e-05
    %v462 = vadd.f32 %v459, 1e-05
    %v463 = vrsqrt.pop %v460
    %v464 = vrsqrt.pop %v461
    %v465 = vrsqrt.pop %v462
    %v466 = vmul.f32 %v442, %v463
    %v467 = vmul.f32 %v443, %v464
    %v468 = vmul.f32 %v444, %v465
    %v470 = vlaneseq
    %v471 = vshrl.u32 %v470, 7
    %v472 = vsub.s32 0, %v471
    %v473 = vrot.slane %v175, %v472
    %v475 = vmul.f32 %v466, %v473
    %v476 = vmul.f32 %v467, %v473
    %v477 = vmul.f32 %v468, %v473
    %v479 = vlaneseq
    %v480 = vshrl.u32 %v479, 7
    %v481 = vsub.s32 0, %v480
    %v482 = vrot.slane %v176, %v481
    %v484 = vadd.f32 %v475, %v482
    %v485 = vadd.f32 %v476, %v482
    %v486 = vadd.f32 %v477, %v482
    %v488 = vlaneseq
    %v489 = vshrl.u32 %v488, 7
    %v490 = vsub.s32 0, %v489
    %v491 = vrot.slane %v181, %v490
    %v494 = vsel %vm370, %v484, 0
    %v497 = vsel %vm370, %v485, 0
    %v500 = vsel %vm370, %v486, 0
    %502 = vmatprep.subr.mxu0 0.0
    %503 = vmatpush1.msra.mxu0 %v177
    %504 = vmatprep.subr.mxu0 0.0
    %505 = vmatpush1.msra.mxu0 %v178
    %506 = vmatprep.subr.mxu0 0.0
    %507 = vmatpush1.msra.mxu0 %v179
    %508 = vmatprep.subr.mxu0 0.0
    %509 = vmatpush1.msra.mxu0 %v180
    %510 = vmatprep.subr.mxu0 0.0
    %511 = vmatpush1.msra.mxu0 0.0
    %512 = vmatprep.subr.mxu0 0.0
    %513 = vmatpush1.msra.mxu0 0.0
    %514 = vmatprep.subr.mxu0 0.0
    %515 = vmatpush1.msra.mxu0 0.0
    %516 = vmatprep.subr.mxu0 0.0
    %517 = vmatpush1.msra.mxu0 0.0
    %518 = vmatprep.subr.mxu0 0.0
    %519 = vmatpush1.msra.mxu0 0.0
    %520 = vmatprep.subr.mxu0 0.0
    %521 = vmatpush1.msra.mxu0 0.0
    %522 = vmatprep.subr.mxu0 0.0
    %523 = vmatpush1.msra.mxu0 0.0
    %524 = vmatprep.subr.mxu0 0.0
    %525 = vmatpush1.msra.mxu0 0.0
    %526 = vmatprep.subr.mxu0 0.0
    %527 = vmatpush1.msra.mxu0 0.0
    %528 = vmatprep.subr.mxu0 0.0
    %529 = vmatpush1.msra.mxu0 0.0
    %530 = vmatprep.subr.mxu0 0.0
    %531 = vmatpush1.msra.mxu0 0.0
    %532 = vmatprep.subr.mxu0 0.0
    %533 = vmatpush1.msra.mxu0 0.0
    %534 = vmatprep.subr.mxu0 0.0
    %535 = vmatpush1.msra.mxu0 0.0
    %536 = vmatprep.subr.mxu0 0.0
    %537 = vmatpush1.msra.mxu0 0.0
    %538 = vmatprep.subr.mxu0 0.0
    %539 = vmatpush1.msra.mxu0 0.0
    %540 = vmatprep.subr.mxu0 0.0
    %541 = vmatpush1.msra.mxu0 0.0
    %542 = vmatprep.subr.mxu0 0.0
    %543 = vmatpush1.msra.mxu0 0.0
    %544 = vmatprep.subr.mxu0 0.0
    %545 = vmatpush1.msra.mxu0 0.0
    %546 = vmatprep.subr.mxu0 0.0
    %547 = vmatpush1.msra.mxu0 0.0
    %548 = vmatprep.subr.mxu0 0.0
    %549 = vmatpush1.msra.mxu0 0.0
    %550 = vmatprep.subr.mxu0 0.0
    %551 = vmatpush1.msra.mxu0 0.0
    %552 = vmatprep.subr.mxu0 0.0
    %553 = vmatpush1.msra.mxu0 0.0
    %554 = vmatprep.subr.mxu0 0.0
    %555 = vmatpush1.msra.mxu0 0.0
    %556 = vmatprep.subr.mxu0 0.0
    %557 = vmatpush1.msra.mxu0 0.0
    %558 = vmatprep.subr.mxu0 0.0
    %559 = vmatpush1.msra.mxu0 0.0
    %560 = vmatprep.subr.mxu0 0.0
    %561 = vmatpush1.msra.mxu0 0.0
    %562 = vmatprep.subr.mxu0 0.0
    %563 = vmatpush1.msra.mxu0 0.0
    %564 = vmatprep.subr.mxu0 0.0
    %565 = vmatpush1.msra.mxu0 0.0
    %566 = vmatprep.mubr.f32.mxu0 0.0
    %567 = vmatmul.mubr.f32.gmra.mrb[0].mxu0 %v494
    %v568 = vpop.f32.mrb[0].mxu0
    %v569 = vadd.f32 %v491, %v568
    %v570 = vpop.f32.mrb[0].mxu0
    %571 = vmatprep.mubr.f32.mxu0 0.0
    %572 = vmatmul.mubr.f32.gmra.mrb[0].mxu0 %v497
    %v573 = vpop.f32.mrb[0].mxu0
    %v574 = vadd.f32 %v491, %v573
    %v575 = vpop.f32.mrb[0].mxu0
    %576 = vmatprep.mubr.f32.mxu0 0.0
    %577 = vmatmul.mubr.f32.gmra.mrb[0].mxu0 %v500
    %v578 = vpop.f32.mrb[0].mxu0
    %v579 = vadd.f32 %v491, %v578
    %v580 = vpop.f32.mrb[0].mxu0
    %581 = vdwg.mxu0
    %583 = vrot.lane.b32.xlu0 %v569, 96
    %v584 = vpop.permute.xlu0 %583
    %vm585 = vcmask 64512
    %v586 = vsel %vm585, %v569, 0
    %v588 = vsel %vm585, %v584, 0
    %590 = vmatprep.subr.mxu0 0.0
    %591 = vmatpush1.xpose.msra.mxu0 %v588
    %592 = vmatprep.subr.mxu0 0.0
    %593 = vmatpush1.xpose.msra.mxu0 0.0
    %594 = vmatprep.subr.mxu0 0.0
    %595 = vmatpush1.xpose.msra.mxu0 0.0
    %596 = vmatprep.subr.mxu0 0.0
    %597 = vmatpush1.xpose.msra.mxu0 0.0
    %598 = vmatprep.subr.mxu0 0.0
    %599 = vmatpush1.xpose.msra.mxu0 0.0
    %600 = vmatprep.subr.mxu0 0.0
    %601 = vmatpush1.xpose.msra.mxu0 0.0
    %602 = vmatprep.subr.mxu0 0.0
    %603 = vmatpush1.xpose.msra.mxu0 0.0
    %604 = vmatprep.subr.mxu0 0.0
    %605 = vmatpush1.xpose.msra.mxu0 0.0
    %606 = vmatprep.subr.mxu0 0.0
    %607 = vmatpush1.xpose.msra.mxu0 0.0
    %608 = vmatprep.subr.mxu0 0.0
    %609 = vmatpush1.xpose.msra.mxu0 0.0
    %610 = vmatprep.subr.mxu0 0.0
    %611 = vmatpush1.xpose.msra.mxu0 0.0
    %612 = vmatprep.subr.mxu0 0.0
    %613 = vmatpush1.xpose.msra.mxu0 0.0
    %614 = vmatprep.subr.mxu0 0.0
    %615 = vmatpush1.xpose.msra.mxu0 0.0
    %616 = vmatprep.subr.mxu0 0.0
    %617 = vmatpush1.xpose.msra.mxu0 0.0
    %618 = vmatprep.subr.mxu0 0.0
    %619 = vmatpush1.xpose.msra.mxu0 0.0
    %620 = vmatprep.subr.mxu0 0.0
    %621 = vmatpush1.xpose.msra.mxu0 0.0
    %622 = vmatprep.subr.mxu0 0.0
    %623 = vmatpush1.xpose.msra.mxu0 0.0
    %624 = vmatprep.subr.mxu0 0.0
    %625 = vmatpush1.xpose.msra.mxu0 0.0
    %626 = vmatprep.subr.mxu0 0.0
    %627 = vmatpush1.xpose.msra.mxu0 0.0
    %628 = vmatprep.subr.mxu0 0.0
    %629 = vmatpush1.xpose.msra.mxu0 0.0
    %630 = vmatprep.subr.mxu0 0.0
    %631 = vmatpush1.xpose.msra.mxu0 0.0
    %632 = vmatprep.subr.mxu0 0.0
    %633 = vmatpush1.xpose.msra.mxu0 0.0
    %634 = vmatprep.subr.mxu0 0.0
    %635 = vmatpush1.xpose.msra.mxu0 0.0
    %636 = vmatprep.subr.mxu0 0.0
    %637 = vmatpush1.xpose.msra.mxu0 0.0
    %638 = vmatprep.subr.mxu0 0.0
    %639 = vmatpush1.xpose.msra.mxu0 0.0
    %640 = vmatprep.subr.mxu0 0.0
    %641 = vmatpush1.xpose.msra.mxu0 0.0
    %642 = vmatprep.subr.mxu0 0.0
    %643 = vmatpush1.xpose.msra.mxu0 0.0
    %644 = vmatprep.subr.mxu0 0.0
    %645 = vmatpush1.xpose.msra.mxu0 0.0
    %646 = vmatprep.subr.mxu0 0.0
    %647 = vmatpush1.xpose.msra.mxu0 0.0
    %648 = vmatprep.subr.mxu0 0.0
    %649 = vmatpush1.xpose.msra.mxu0 0.0
    %650 = vmatprep.subr.mxu0 0.0
    %651 = vmatpush1.xpose.msra.mxu0 0.0
    %652 = vmatprep.subr.mxu0 0.0
    %653 = vmatpush1.xpose.msra.mxu0 0.0
    %654 = vmatprep.mubr.f32.mxu0 0.0
    %655 = vmatmul.mubr.f32.gmra.mrb[0].mxu0 %v586
    %v656 = vpop.f32.mrb[0].mxu0
    %v657 = vadd.f32 0.0, %v656
    %v658 = vpop.f32.mrb[0].mxu0
    %659 = vdwg.mxu0
    %vm660 = vcmask 36864
    %v661 = vsel %vm660, %v657, -inf
    %662 = vmax.xlane.f32.xlu0 %v661
    %v663 = vpop.xlane.xlu0 %662
    %v664 = vsub.f32 %v657, %v663
    %v665 = vmul.f32 %v664, 1.442695
    %v666 = vpow.pop %v665
    %v667 = vsel %vm660, %v666, 0.0
    %668 = vadd.xlane.f32.xlu0 %v667
    %v669 = vpop.xlane.xlu0 %668
    %v670 = vrcp.pop %v669
    %v671 = vmul.f32 %v666, %v670
    %672 = vrot.lane.b32.xlu0 %v569, 64
    %v673 = vpop.permute.xlu0 %672
    %vm674 = vcmask 39936
    %v676 = vsel %vm674, %v671, 0
    %v678 = vsel %vm364, %v673, 0
    %680 = vmatprep.subr.mxu0 0.0
    %681 = vmatpush1.msra.mxu0 %v678
    %682 = vmatprep.subr.mxu0 0.0
    %683 = vmatpush1.msra.mxu0 0.0
    %684 = vmatprep.subr.mxu0 0.0
    %685 = vmatpush1.msra.mxu0 0.0
    %686 = vmatprep.subr.mxu0 0.0
    %687 = vmatpush1.msra.mxu0 0.0
    %688 = vmatprep.subr.mxu0 0.0
    %689 = vmatpush1.msra.mxu0 0.0
    %690 = vmatprep.subr.mxu0 0.0
    %691 = vmatpush1.msra.mxu0 0.0
    %692 = vmatprep.subr.mxu0 0.0
    %693 = vmatpush1.msra.mxu0 0.0
    %694 = vmatprep.subr.mxu0 0.0
    %695 = vmatpush1.msra.mxu0 0.0
    %696 = vmatprep.subr.mxu0 0.0
    %697 = vmatpush1.msra.mxu0 0.0
    %698 = vmatprep.subr.mxu0 0.0
    %699 = vmatpush1.msra.mxu0 0.0
    %700 = vmatprep.subr.mxu0 0.0
    %701 = vmatpush1.msra.mxu0 0.0
    %702 = vmatprep.subr.mxu0 0.0
    %703 = vmatpush1.msra.mxu0 0.0
    %704 = vmatprep.subr.mxu0 0.0
    %705 = vmatpush1.msra.mxu0 0.0
    %706 = vmatprep.subr.mxu0 0.0
    %707 = vmatpush1.msra.mxu0 0.0
    %708 = vmatprep.subr.mxu0 0.0
    %709 = vmatpush1.msra.mxu0 0.0
    %710 = vmatprep.subr.mxu0 0.0
    %711 = vmatpush1.msra.mxu0 0.0
    %712 = vmatprep.subr.mxu0 0.0
    %713 = vmatpush1.msra.mxu0 0.0
    %714 = vmatprep.subr.mxu0 0.0
    %715 = vmatpush1.msra.mxu0 0.0
    %716 = vmatprep.subr.mxu0 0.0
    %717 = vmatpush1.msra.mxu0 0.0
    %718 = vmatprep.subr.mxu0 0.0
    %719 = vmatpush1.msra.mxu0 0.0
    %720 = vmatprep.subr.mxu0 0.0
    %721 = vmatpush1.msra.mxu0 0.0
    %722 = vmatprep.subr.mxu0 0.0
    %723 = vmatpush1.msra.mxu0 0.0
    %724 = vmatprep.subr.mxu0 0.0
    %725 = vmatpush1.msra.mxu0 0.0
    %726 = vmatprep.subr.mxu0 0.0
    %727 = vmatpush1.msra.mxu0 0.0
    %728 = vmatprep.subr.mxu0 0.0
    %729 = vmatpush1.msra.mxu0 0.0
    %730 = vmatprep.subr.mxu0 0.0
    %731 = vmatpush1.msra.mxu0 0.0
    %732 = vmatprep.subr.mxu0 0.0
    %733 = vmatpush1.msra.mxu0 0.0
    %734 = vmatprep.subr.mxu0 0.0
    %735 = vmatpush1.msra.mxu0 0.0
    %736 = vmatprep.subr.mxu0 0.0
    %737 = vmatpush1.msra.mxu0 0.0
    %738 = vmatprep.subr.mxu0 0.0
    %739 = vmatpush1.msra.mxu0 0.0
    %740 = vmatprep.subr.mxu0 0.0
    %741 = vmatpush1.msra.mxu0 0.0
    %742 = vmatprep.subr.mxu0 0.0
    %743 = vmatpush1.msra.mxu0 0.0
    %744 = vmatprep.mubr.f32.mxu0 0.0
    %745 = vmatmul.mubr.f32.gmra.mrb[0].mxu0 %v676
    %v746 = vpop.f32.mrb[0].mxu0
    %v747 = vadd.f32 0.0, %v746
    %v748 = vpop.f32.mrb[0].mxu0
    %749 = vdwg.mxu0
    %750 = vrot.lane.b32.xlu0 %v569, 120
    %v751 = vpop.permute.xlu0 %750
    %752 = vrot.lane.b32.xlu0 %v569, 88
    %v753 = vpop.permute.xlu0 %752
    %v754 = vsel %vm585, %v751, 0
    %v756 = vsel %vm585, %v753, 0
    %758 = vmatprep.subr.mxu0 0.0
    %759 = vmatpush1.xpose.msra.mxu0 %v756
    %760 = vmatprep.subr.mxu0 0.0
    %761 = vmatpush1.xpose.msra.mxu0 0.0
    %762 = vmatprep.subr.mxu0 0.0
    %763 = vmatpush1.xpose.msra.mxu0 0.0
    %764 = vmatprep.subr.mxu0 0.0
    %765 = vmatpush1.xpose.msra.mxu0 0.0
    %766 = vmatprep.subr.mxu0 0.0
    %767 = vmatpush1.xpose.msra.mxu0 0.0
    %768 = vmatprep.subr.mxu0 0.0
    %769 = vmatpush1.xpose.msra.mxu0 0.0
    %770 = vmatprep.subr.mxu0 0.0
    %771 = vmatpush1.xpose.msra.mxu0 0.0
    %772 = vmatprep.subr.mxu0 0.0
    %773 = vmatpush1.xpose.msra.mxu0 0.0
    %774 = vmatprep.subr.mxu0 0.0
    %775 = vmatpush1.xpose.msra.mxu0 0.0
    %776 = vmatprep.subr.mxu0 0.0
    %777 = vmatpush1.xpose.msra.mxu0 0.0
    %778 = vmatprep.subr.mxu0 0.0
    %779 = vmatpush1.xpose.msra.mxu0 0.0
    %780 = vmatprep.subr.mxu0 0.0
    %781 = vmatpush1.xpose.msra.mxu0 0.0
    %782 = vmatprep.subr.mxu0 0.0
    %783 = vmatpush1.xpose.msra.mxu0 0.0
    %784 = vmatprep.subr.mxu0 0.0
    %785 = vmatpush1.xpose.msra.mxu0 0.0
    %786 = vmatprep.subr.mxu0 0.0
    %787 = vmatpush1.xpose.msra.mxu0 0.0
    %788 = vmatprep.subr.mxu0 0.0
    %789 = vmatpush1.xpose.msra.mxu0 0.0
    %790 = vmatprep.subr.mxu0 0.0
    %791 = vmatpush1.xpose.msra.mxu0 0.0
    %792 = vmatprep.subr.mxu0 0.0
    %793 = vmatpush1.xpose.msra.mxu0 0.0
    %794 = vmatprep.subr.mxu0 0.0
    %795 = vmatpush1.xpose.msra.mxu0 0.0
    %796 = vmatprep.subr.mxu0 0.0
    %797 = vmatpush1.xpose.msra.mxu0 0.0
    %798 = vmatprep.subr.mxu0 0.0
    %799 = vmatpush1.xpose.msra.mxu0 0.0
    %800 = vmatprep.subr.mxu0 0.0
    %801 = vmatpush1.xpose.msra.mxu0 0.0
    %802 = vmatprep.subr.mxu0 0.0
    %803 = vmatpush1.xpose.msra.mxu0 0.0
    %804 = vmatprep.subr.mxu0 0.0
    %805 = vmatpush1.xpose.msra.mxu0 0.0
    %806 = vmatprep.subr.mxu0 0.0
    %807 = vmatpush1.xpose.msra.mxu0 0.0
    %808 = vmatprep.subr.mxu0 0.0
    %809 = vmatpush1.xpose.msra.mxu0 0.0
    %810 = vmatprep.subr.mxu0 0.0
    %811 = vmatpush1.xpose.msra.mxu0 0.0
    %812 = vmatprep.subr.mxu0 0.0
    %813 = vmatpush1.xpose.msra.mxu0 0.0
    %814 = vmatprep.subr.mxu0 0.0
    %815 = vmatpush1.xpose.msra.mxu0 0.0
    %816 = vmatprep.subr.mxu0 0.0
    %817 = vmatpush1.xpose.msra.mxu0 0.0
    %818 = vmatprep.subr.mxu0 0.0
    %819 = vmatpush1.xpose.msra.mxu0 0.0
    %820 = vmatprep.subr.mxu0 0.0
    %821 = vmatpush1.xpose.msra.mxu0 0.0
    %822 = vmatprep.mubr.f32.mxu0 0.0
    %823 = vmatmul.mubr.f32.gmra.mrb[0].mxu0 %v754
    %v824 = vpop.f32.mrb[0].mxu0
    %v825 = vadd.f32 0.0, %v824
    %v826 = vpop.f32.mrb[0].mxu0
    %827 = vdwg.mxu0
    %v828 = vsel %vm660, %v825, -inf
    %829 = vmax.xlane.f32.xlu0 %v828
    %v830 = vpop.xlane.xlu0 %829
    %v831 = vsub.f32 %v825, %v830
    %v832 = vmul.f32 %v831, 1.442695
    %v833 = vpow.pop %v832
    %v834 = vsel %vm660, %v833, 0.0
    %835 = vadd.xlane.f32.xlu0 %v834
    %v836 = vpop.xlane.xlu0 %835
    %v837 = vrcp.pop %v836
    %v838 = vmul.f32 %v833, %v837
    %839 = vrot.lane.b32.xlu0 %v569, 56
    %v840 = vpop.permute.xlu0 %839
    %v842 = vsel %vm674, %v838, 0
    %v844 = vsel %vm364, %v840, 0
    %846 = vmatprep.subr.mxu0 0.0
    %847 = vmatpush1.msra.mxu0 %v844
    %848 = vmatprep.subr.mxu0 0.0
    %849 = vmatpush1.msra.mxu0 0.0
    %850 = vmatprep.subr.mxu0 0.0
    %851 = vmatpush1.msra.mxu0 0.0
    %852 = vmatprep.subr.mxu0 0.0
    %853 = vmatpush1.msra.mxu0 0.0
    %854 = vmatprep.subr.mxu0 0.0
    %855 = vmatpush1.msra.mxu0 0.0
    %856 = vmatprep.subr.mxu0 0.0
    %857 = vmatpush1.msra.mxu0 0.0
    %858 = vmatprep.subr.mxu0 0.0
    %859 = vmatpush1.msra.mxu0 0.0
    %860 = vmatprep.subr.mxu0 0.0
    %861 = vmatpush1.msra.mxu0 0.0
    %862 = vmatprep.subr.mxu0 0.0
    %863 = vmatpush1.msra.mxu0 0.0
    %864 = vmatprep.subr.mxu0 0.0
    %865 = vmatpush1.msra.mxu0 0.0
    %866 = vmatprep.subr.mxu0 0.0
    %867 = vmatpush1.msra.mxu0 0.0
    %868 = vmatprep.subr.mxu0 0.0
    %869 = vmatpush1.msra.mxu0 0.0
    %870 = vmatprep.subr.mxu0 0.0
    %871 = vmatpush1.msra.mxu0 0.0
    %872 = vmatprep.subr.mxu0 0.0
    %873 = vmatpush1.msra.mxu0 0.0
    %874 = vmatprep.subr.mxu0 0.0
    %875 = vmatpush1.msra.mxu0 0.0
    %876 = vmatprep.subr.mxu0 0.0
    %877 = vmatpush1.msra.mxu0 0.0
    %878 = vmatprep.subr.mxu0 0.0
    %879 = vmatpush1.msra.mxu0 0.0
    %880 = vmatprep.subr.mxu0 0.0
    %881 = vmatpush1.msra.mxu0 0.0
    %882 = vmatprep.subr.mxu0 0.0
    %883 = vmatpush1.msra.mxu0 0.0
    %884 = vmatprep.subr.mxu0 0.0
    %885 = vmatpush1.msra.mxu0 0.0
    %886 = vmatprep.subr.mxu0 0.0
    %887 = vmatpush1.msra.mxu0 0.0
    %888 = vmatprep.subr.mxu0 0.0
    %889 = vmatpush1.msra.mxu0 0.0
    %890 = vmatprep.subr.mxu0 0.0
    %891 = vmatpush1.msra.mxu0 0.0
    %892 = vmatprep.subr.mxu0 0.0
    %893 = vmatpush1.msra.mxu0 0.0
    %894 = vmatprep.subr.mxu0 0.0
    %895 = vmatpush1.msra.mxu0 0.0
    %896 = vmatprep.subr.mxu0 0.0
    %897 = vmatpush1.msra.mxu0 0.0
    %898 = vmatprep.subr.mxu0 0.0
    %899 = vmatpush1.msra.mxu0 0.0
    %900 = vmatprep.subr.mxu0 0.0
    %901 = vmatpush1.msra.mxu0 0.0
    %902 = vmatprep.subr.mxu0 0.0
    %903 = vmatpush1.msra.mxu0 0.0
    %904 = vmatprep.subr.mxu0 0.0
    %905 = vmatpush1.msra.mxu0 0.0
    %906 = vmatprep.subr.mxu0 0.0
    %907 = vmatpush1.msra.mxu0 0.0
    %908 = vmatprep.subr.mxu0 0.0
    %909 = vmatpush1.msra.mxu0 0.0
    %910 = vmatprep.mubr.f32.mxu0 0.0
    %911 = vmatmul.mubr.f32.gmra.mrb[0].mxu0 %v842
    %v912 = vpop.f32.mrb[0].mxu0
    %v913 = vadd.f32 0.0, %v912
    %v914 = vpop.f32.mrb[0].mxu0
    %915 = vdwg.mxu0
    %916 = vrot.lane.b32.xlu0 %v569, 112
    %v917 = vpop.permute.xlu0 %916
    %918 = vrot.lane.b32.xlu0 %v569, 80
    %v919 = vpop.permute.xlu0 %918
    %v920 = vsel %vm585, %v917, 0
    %v922 = vsel %vm585, %v919, 0
    %924 = vmatprep.subr.mxu0 0.0
    %925 = vmatpush1.xpose.msra.mxu0 %v922
    %926 = vmatprep.subr.mxu0 0.0
    %927 = vmatpush1.xpose.msra.mxu0 0.0
    %928 = vmatprep.subr.mxu0 0.0
    %929 = vmatpush1.xpose.msra.mxu0 0.0
    %930 = vmatprep.subr.mxu0 0.0
    %931 = vmatpush1.xpose.msra.mxu0 0.0
    %932 = vmatprep.subr.mxu0 0.0
    %933 = vmatpush1.xpose.msra.mxu0 0.0
    %934 = vmatprep.subr.mxu0 0.0
    %935 = vmatpush1.xpose.msra.mxu0 0.0
    %936 = vmatprep.subr.mxu0 0.0
    %937 = vmatpush1.xpose.msra.mxu0 0.0
    %938 = vmatprep.subr.mxu0 0.0
    %939 = vmatpush1.xpose.msra.mxu0 0.0
    %940 = vmatprep.subr.mxu0 0.0
    %941 = vmatpush1.xpose.msra.mxu0 0.0
    %942 = vmatprep.subr.mxu0 0.0
    %943 = vmatpush1.xpose.msra.mxu0 0.0
    %944 = vmatprep.subr.mxu0 0.0
    %945 = vmatpush1.xpose.msra.mxu0 0.0
    %946 = vmatprep.subr.mxu0 0.0
    %947 = vmatpush1.xpose.msra.mxu0 0.0
    %948 = vmatprep.subr.mxu0 0.0
    %949 = vmatpush1.xpose.msra.mxu0 0.0
    %950 = vmatprep.subr.mxu0 0.0
    %951 = vmatpush1.xpose.msra.mxu0 0.0
    %952 = vmatprep.subr.mxu0 0.0
    %953 = vmatpush1.xpose.msra.mxu0 0.0
    %954 = vmatprep.subr.mxu0 0.0
    %955 = vmatpush1.xpose.msra.mxu0 0.0
    %956 = vmatprep.subr.mxu0 0.0
    %957 = vmatpush1.xpose.msra.mxu0 0.0
    %958 = vmatprep.subr.mxu0 0.0
    %959 = vmatpush1.xpose.msra.mxu0 0.0
    %960 = vmatprep.subr.mxu0 0.0
    %961 = vmatpush1.xpose.msra.mxu0 0.0
    %962 = vmatprep.subr.mxu0 0.0
    %963 = vmatpush1.xpose.msra.mxu0 0.0
    %964 = vmatprep.subr.mxu0 0.0
    %965 = vmatpush1.xpose.msra.mxu0 0.0
    %966 = vmatprep.subr.mxu0 0.0
    %967 = vmatpush1.xpose.msra.mxu0 0.0
    %968 = vmatprep.subr.mxu0 0.0
    %969 = vmatpush1.xpose.msra.mxu0 0.0
    %970 = vmatprep.subr.mxu0 0.0
    %971 = vmatpush1.xpose.msra.mxu0 0.0
    %972 = vmatprep.subr.mxu0 0.0
    %973 = vmatpush1.xpose.msra.mxu0 0.0
    %974 = vmatprep.subr.mxu0 0.0
    %975 = vmatpush1.xpose.msra.mxu0 0.0
    %976 = vmatprep.subr.mxu0 0.0
    %977 = vmatpush1.xpose.msra.mxu0 0.0
    %978 = vmatprep.subr.mxu0 0.0
    %979 = vmatpush1.xpose.msra.mxu0 0.0
    %980 = vmatprep.subr.mxu0 0.0
    %981 = vmatpush1.xpose.msra.mxu0 0.0
    %982 = vmatprep.subr.mxu0 0.0
    %983 = vmatpush1.xpose.msra.mxu0 0.0
    %984 = vmatprep.subr.mxu0 0.0
    %985 = vmatpush1.xpose.msra.mxu0 0.0
    %986 = vmatprep.subr.mxu0 0.0
    %987 = vmatpush1.xpose.msra.mxu0 0.0
    %988 = vmatprep.mubr.f32.mxu0 0.0
    %989 = vmatmul.mubr.f32.gmra.mrb[0].mxu0 %v920
    %v990 = vpop.f32.mrb[0].mxu0
    %v991 = vadd.f32 0.0, %v990
    %v992 = vpop.f32.mrb[0].mxu0
    %993 = vdwg.mxu0
    %v994 = vsel %vm660, %v991, -inf
    %995 = vmax.xlane.f32.xlu0 %v994
    %v996 = vpop.xlane.xlu0 %995
    %v997 = vsub.f32 %v991, %v996
    %v998 = vmul.f32 %v997, 1.442695
    %v999 = vpow.pop %v998
    %v1000 = vsel %vm660, %v999, 0.0
    %1001 = vadd.xlane.f32.xlu0 %v1000
    %v1002 = vpop.xlane.xlu0 %1001
    %v1003 = vrcp.pop %v1002
    %v1004 = vmul.f32 %v999, %v1003
    %1005 = vrot.lane.b32.xlu0 %v569, 48
    %v1006 = vpop.permute.xlu0 %1005
    %v1008 = vsel %vm674, %v1004, 0
    %v1010 = vsel %vm364, %v1006, 0
    %1012 = vmatprep.subr.mxu0 0.0
    %1013 = vmatpush1.msra.mxu0 %v1010
    %1014 = vmatprep.subr.mxu0 0.0
    %1015 = vmatpush1.msra.mxu0 0.0
    %1016 = vmatprep.subr.mxu0 0.0
    %1017 = vmatpush1.msra.mxu0 0.0
    %1018 = vmatprep.subr.mxu0 0.0
    %1019 = vmatpush1.msra.mxu0 0.0
    %1020 = vmatprep.subr.mxu0 0.0
    %1021 = vmatpush1.msra.mxu0 0.0
    %1022 = vmatprep.subr.mxu0 0.0
    %1023 = vmatpush1.msra.mxu0 0.0
    %1024 = vmatprep.subr.mxu0 0.0
    %1025 = vmatpush1.msra.mxu0 0.0
    %1026 = vmatprep.subr.mxu0 0.0
    %1027 = vmatpush1.msra.mxu0 0.0
    %1028 = vmatprep.subr.mxu0 0.0
    %1029 = vmatpush1.msra.mxu0 0.0
    %1030 = vmatprep.subr.mxu0 0.0
    %1031 = vmatpush1.msra.mxu0 0.0
    %1032 = vmatprep.subr.mxu0 0.0
    %1033 = vmatpush1.msra.mxu0 0.0
    %1034 = vmatprep.subr.mxu0 0.0
    %1035 = vmatpush1.msra.mxu0 0.0
    %1036 = vmatprep.subr.mxu0 0.0
    %1037 = vmatpush1.msra.mxu0 0.0
    %1038 = vmatprep.subr.mxu0 0.0
    %1039 = vmatpush1.msra.mxu0 0.0
    %1040 = vmatprep.subr.mxu0 0.0
    %1041 = vmatpush1.msra.mxu0 0.0
    %1042 = vmatprep.subr.mxu0 0.0
    %1043 = vmatpush1.msra.mxu0 0.0
    %1044 = vmatprep.subr.mxu0 0.0
    %1045 = vmatpush1.msra.mxu0 0.0
    %1046 = vmatprep.subr.mxu0 0.0
    %1047 = vmatpush1.msra.mxu0 0.0
    %1048 = vmatprep.subr.mxu0 0.0
    %1049 = vmatpush1.msra.mxu0 0.0
    %1050 = vmatprep.subr.mxu0 0.0
    %1051 = vmatpush1.msra.mxu0 0.0
    %1052 = vmatprep.subr.mxu0 0.0
    %1053 = vmatpush1.msra.mxu0 0.0
    %1054 = vmatprep.subr.mxu0 0.0
    %1055 = vmatpush1.msra.mxu0 0.0
    %1056 = vmatprep.subr.mxu0 0.0
    %1057 = vmatpush1.msra.mxu0 0.0
    %1058 = vmatprep.subr.mxu0 0.0
    %1059 = vmatpush1.msra.mxu0 0.0
    %1060 = vmatprep.subr.mxu0 0.0
    %1061 = vmatpush1.msra.mxu0 0.0
    %1062 = vmatprep.subr.mxu0 0.0
    %1063 = vmatpush1.msra.mxu0 0.0
    %1064 = vmatprep.subr.mxu0 0.0
    %1065 = vmatpush1.msra.mxu0 0.0
    %1066 = vmatprep.subr.mxu0 0.0
    %1067 = vmatpush1.msra.mxu0 0.0
    %1068 = vmatprep.subr.mxu0 0.0
    %1069 = vmatpush1.msra.mxu0 0.0
    %1070 = vmatprep.subr.mxu0 0.0
    %1071 = vmatpush1.msra.mxu0 0.0
    %1072 = vmatprep.subr.mxu0 0.0
    %1073 = vmatpush1.msra.mxu0 0.0
    %1074 = vmatprep.subr.mxu0 0.0
    %1075 = vmatpush1.msra.mxu0 0.0
    %1076 = vmatprep.mubr.f32.mxu0 0.0
    %1077 = vmatmul.mubr.f32.gmra.mrb[0].mxu0 %v1008
    %v1078 = vpop.f32.mrb[0].mxu0
    %v1079 = vadd.f32 0.0, %v1078
    %v1080 = vpop.f32.mrb[0].mxu0
    %1081 = vdwg.mxu0
    %1082 = vrot.lane.b32.xlu0 %v569, 104
    %v1083 = vpop.permute.xlu0 %1082
    %1084 = vrot.lane.b32.xlu0 %v569, 72
    %v1085 = vpop.permute.xlu0 %1084
    %v1086 = vsel %vm585, %v1083, 0
    %v1088 = vsel %vm585, %v1085, 0
    %1090 = vmatprep.subr.mxu0 0.0
    %1091 = vmatpush1.xpose.msra.mxu0 %v1088
    %1092 = vmatprep.subr.mxu0 0.0
    %1093 = vmatpush1.xpose.msra.mxu0 0.0
    %1094 = vmatprep.subr.mxu0 0.0
    %1095 = vmatpush1.xpose.msra.mxu0 0.0
    %1096 = vmatprep.subr.mxu0 0.0
    %1097 = vmatpush1.xpose.msra.mxu0 0.0
    %1098 = vmatprep.subr.mxu0 0.0
    %1099 = vmatpush1.xpose.msra.mxu0 0.0
    %1100 = vmatprep.subr.mxu0 0.0
    %1101 = vmatpush1.xpose.msra.mxu0 0.0
    %1102 = vmatprep.subr.mxu0 0.0
    %1103 = vmatpush1.xpose.msra.mxu0 0.0
    %1104 = vmatprep.subr.mxu0 0.0
    %1105 = vmatpush1.xpose.msra.mxu0 0.0
    %1106 = vmatprep.subr.mxu0 0.0
    %1107 = vmatpush1.xpose.msra.mxu0 0.0
    %1108 = vmatprep.subr.mxu0 0.0
    %1109 = vmatpush1.xpose.msra.mxu0 0.0
    %1110 = vmatprep.subr.mxu0 0.0
    %1111 = vmatpush1.xpose.msra.mxu0 0.0
    %1112 = vmatprep.subr.mxu0 0.0
    %1113 = vmatpush1.xpose.msra.mxu0 0.0
    %1114 = vmatprep.subr.mxu0 0.0
    %1115 = vmatpush1.xpose.msra.mxu0 0.0
    %1116 = vmatprep.subr.mxu0 0.0
    %1117 = vmatpush1.xpose.msra.mxu0 0.0
    %1118 = vmatprep.subr.mxu0 0.0
    %1119 = vmatpush1.xpose.msra.mxu0 0.0
    %1120 = vmatprep.subr.mxu0 0.0
    %1121 = vmatpush1.xpose.msra.mxu0 0.0
    %1122 = vmatprep.subr.mxu0 0.0
    %1123 = vmatpush1.xpose.msra.mxu0 0.0
    %1124 = vmatprep.subr.mxu0 0.0
    %1125 = vmatpush1.xpose.msra.mxu0 0.0
    %1126 = vmatprep.subr.mxu0 0.0
    %1127 = vmatpush1.xpose.msra.mxu0 0.0
    %1128 = vmatprep.subr.mxu0 0.0
    %1129 = vmatpush1.xpose.msra.mxu0 0.0
    %1130 = vmatprep.subr.mxu0 0.0
    %1131 = vmatpush1.xpose.msra.mxu0 0.0
    %1132 = vmatprep.subr.mxu0 0.0
    %1133 = vmatpush1.xpose.msra.mxu0 0.0
    %1134 = vmatprep.subr.mxu0 0.0
    %1135 = vmatpush1.xpose.msra.mxu0 0.0
    %1136 = vmatprep.subr.mxu0 0.0
    %1137 = vmatpush1.xpose.msra.mxu0 0.0
    %1138 = vmatprep.subr.mxu0 0.0
    %1139 = vmatpush1.xpose.msra.mxu0 0.0
    %1140 = vmatprep.subr.mxu0 0.0
    %1141 = vmatpush1.xpose.msra.mxu0 0.0
    %1142 = vmatprep.subr.mxu0 0.0
    %1143 = vmatpush1.xpose.msra.mxu0 0.0
    %1144 = vmatprep.subr.mxu0 0.0
    %1145 = vmatpush1.xpose.msra.mxu0 0.0
    %1146 = vmatprep.subr.mxu0 0.0
    %1147 = vmatpush1.xpose.msra.mxu0 0.0
    %1148 = vmatprep.subr.mxu0 0.0
    %1149 = vmatpush1.xpose.msra.mxu0 0.0
    %1150 = vmatprep.subr.mxu0 0.0
    %1151 = vmatpush1.xpose.msra.mxu0 0.0
    %1152 = vmatprep.subr.mxu0 0.0
    %1153 = vmatpush1.xpose.msra.mxu0 0.0
    %1154 = vmatprep.mubr.f32.mxu0 0.0
    %1155 = vmatmul.mubr.f32.gmra.mrb[0].mxu0 %v1086
    %v1156 = vpop.f32.mrb[0].mxu0
    %v1157 = vadd.f32 0.0, %v1156
    %v1158 = vpop.f32.mrb[0].mxu0
    %1159 = vdwg.mxu0
    %v1160 = vsel %vm660, %v1157, -inf
    %1161 = vmax.xlane.f32.xlu0 %v1160
    %v1162 = vpop.xlane.xlu0 %1161
    %v1163 = vsub.f32 %v1157, %v1162
    %v1164 = vmul.f32 %v1163, 1.442695
    %v1165 = vpow.pop %v1164
    %v1166 = vsel %vm660, %v1165, 0.0
    %1167 = vadd.xlane.f32.xlu0 %v1166
    %v1168 = vpop.xlane.xlu0 %1167
    %v1169 = vrcp.pop %v1168
    %v1170 = vmul.f32 %v1165, %v1169
    %1171 = vrot.lane.b32.xlu0 %v569, 40
    %v1172 = vpop.permute.xlu0 %1171
    %v1174 = vsel %vm674, %v1170, 0
    %v1176 = vsel %vm364, %v1172, 0
    %1178 = vmatprep.subr.mxu0 0.0
    %1179 = vmatpush1.msra.mxu0 %v1176
    %1180 = vmatprep.subr.mxu0 0.0
    %1181 = vmatpush1.msra.mxu0 0.0
    %1182 = vmatprep.subr.mxu0 0.0
    %1183 = vmatpush1.msra.mxu0 0.0
    %1184 = vmatprep.subr.mxu0 0.0
    %1185 = vmatpush1.msra.mxu0 0.0
    %1186 = vmatprep.subr.mxu0 0.0
    %1187 = vmatpush1.msra.mxu0 0.0
    %1188 = vmatprep.subr.mxu0 0.0
    %1189 = vmatpush1.msra.mxu0 0.0
    %1190 = vmatprep.subr.mxu0 0.0
    %1191 = vmatpush1.msra.mxu0 0.0
    %1192 = vmatprep.subr.mxu0 0.0
    %1193 = vmatpush1.msra.mxu0 0.0
    %1194 = vmatprep.subr.mxu0 0.0
    %1195 = vmatpush1.msra.mxu0 0.0
    %1196 = vmatprep.subr.mxu0 0.0
    %1197 = vmatpush1.msra.mxu0 0.0
    %1198 = vmatprep.subr.mxu0 0.0
    %1199 = vmatpush1.msra.mxu0 0.0
    %1200 = vmatprep.subr.mxu0 0.0
    %1201 = vmatpush1.msra.mxu0 0.0
    %1202 = vmatprep.subr.mxu0 0.0
    %1203 = vmatpush1.msra.mxu0 0.0
    %1204 = vmatprep.subr.mxu0 0.0
    %1205 = vmatpush1.msra.mxu0 0.0
    %1206 = vmatprep.subr.mxu0 0.0
    %1207 = vmatpush1.msra.mxu0 0.0
    %1208 = vmatprep.subr.mxu0 0.0
    %1209 = vmatpush1.msra.mxu0 0.0
    %1210 = vmatprep.subr.mxu0 0.0
    %1211 = vmatpush1.msra.mxu0 0.0
    %1212 = vmatprep.subr.mxu0 0.0
    %1213 = vmatpush1.msra.mxu0 0.0
    %1214 = vmatprep.subr.mxu0 0.0
    %1215 = vmatpush1.msra.mxu0 0.0
    %1216 = vmatprep.subr.mxu0 0.0
    %1217 = vmatpush1.msra.mxu0 0.0
    %1218 = vmatprep.subr.mxu0 0.0
    %1219 = vmatpush1.msra.mxu0 0.0
    %1220 = vmatprep.subr.mxu0 0.0
    %1221 = vmatpush1.msra.mxu0 0.0
    %1222 = vmatprep.subr.mxu0 0.0
    %1223 = vmatpush1.msra.mxu0 0.0
    %1224 = vmatprep.subr.mxu0 0.0
    %1225 = vmatpush1.msra.mxu0 0.0
    %1226 = vmatprep.subr.mxu0 0.0
    %1227 = vmatpush1.msra.mxu0 0.0
    %1228 = vmatprep.subr.mxu0 0.0
    %1229 = vmatpush1.msra.mxu0 0.0
    %1230 = vmatprep.subr.mxu0 0.0
    %1231 = vmatpush1.msra.mxu0 0.0
    %1232 = vmatprep.subr.mxu0 0.0
    %1233 = vmatpush1.msra.mxu0 0.0
    %1234 = vmatprep.subr.mxu0 0.0
    %1235 = vmatpush1.msra.mxu0 0.0
    %1236 = vmatprep.subr.mxu0 0.0
    %1237 = vmatpush1.msra.mxu0 0.0
    %1238 = vmatprep.subr.mxu0 0.0
    %1239 = vmatpush1.msra.mxu0 0.0
    %1240 = vmatprep.subr.mxu0 0.0
    %1241 = vmatpush1.msra.mxu0 0.0
    %1242 = vmatprep.mubr.f32.mxu0 0.0
    %1243 = vmatmul.mubr.f32.gmra.mrb[0].mxu0 %v1174
    %v1244 = vpop.f32.mrb[0].mxu0
    %v1245 = vadd.f32 0.0, %v1244
    %v1246 = vpop.f32.mrb[0].mxu0
    %1247 = vdwg.mxu0
    %1249 = vrot.lane.b32.xlu0 %v913, 8
    %v1250 = vpop.permute.xlu0 %1249
    %1253 = vrot.lane.b32.xlu0 %v1079, 16
    %v1254 = vpop.permute.xlu0 %1253
    %1257 = vrot.lane.b32.xlu0 %v1245, 24
    %v1258 = vpop.permute.xlu0 %1257
    %v1260 = vsel %vm585, %v747, %v1250
    %vm1261 = vcmask 130048
    %v1262 = vsel %vm1261, %v1260, %v1254
    %vm1263 = vcmask 195584
    %v1264 = vsel %vm1263, %v1262, %v1258
    %vm1266 = vcmask 1042432
    %v1267 = vrot.slane %v569, 5
    %v1268 = vrot.slane %v574, 5
    %v1269 = vsel %vm1266, %v1267, %v1268
    %1270 = vrot.lane.b32.xlu0 %v1269, 96
    %v1271 = vpop.permute.xlu0 %1270
    %v1272 = vsel %vm585, %v1269, 0
    %v1274 = vsel %vm585, %v1271, 0
    %1276 = vmatprep.subr.mxu0 0.0
    %1277 = vmatpush1.xpose.msra.mxu0 %v1274
    %1278 = vmatprep.subr.mxu0 0.0
    %1279 = vmatpush1.xpose.msra.mxu0 0.0
    %1280 = vmatprep.subr.mxu0 0.0
    %1281 = vmatpush1.xpose.msra.mxu0 0.0
    %1282 = vmatprep.subr.mxu0 0.0
    %1283 = vmatpush1.xpose.msra.mxu0 0.0
    %1284 = vmatprep.subr.mxu0 0.0
    %1285 = vmatpush1.xpose.msra.mxu0 0.0
    %1286 = vmatprep.subr.mxu0 0.0
    %1287 = vmatpush1.xpose.msra.mxu0 0.0
    %1288 = vmatprep.subr.mxu0 0.0
    %1289 = vmatpush1.xpose.msra.mxu0 0.0
    %1290 = vmatprep.subr.mxu0 0.0
    %1291 = vmatpush1.xpose.msra.mxu0 0.0
    %1292 = vmatprep.subr.mxu0 0.0
    %1293 = vmatpush1.xpose.msra.mxu0 0.0
    %1294 = vmatprep.subr.mxu0 0.0
    %1295 = vmatpush1.xpose.msra.mxu0 0.0
    %1296 = vmatprep.subr.mxu0 0.0
    %1297 = vmatpush1.xpose.msra.mxu0 0.0
    %1298 = vmatprep.subr.mxu0 0.0
    %1299 = vmatpush1.xpose.msra.mxu0 0.0
    %1300 = vmatprep.subr.mxu0 0.0
    %1301 = vmatpush1.xpose.msra.mxu0 0.0
    %1302 = vmatprep.subr.mxu0 0.0
    %1303 = vmatpush1.xpose.msra.mxu0 0.0
    %1304 = vmatprep.subr.mxu0 0.0
    %1305 = vmatpush1.xpose.msra.mxu0 0.0
    %1306 = vmatprep.subr.mxu0 0.0
    %1307 = vmatpush1.xpose.msra.mxu0 0.0
    %1308 = vmatprep.subr.mxu0 0.0
    %1309 = vmatpush1.xpose.msra.mxu0 0.0
    %1310 = vmatprep.subr.mxu0 0.0
    %1311 = vmatpush1.xpose.msra.mxu0 0.0
    %1312 = vmatprep.subr.mxu0 0.0
    %1313 = vmatpush1.xpose.msra.mxu0 0.0
    %1314 = vmatprep.subr.mxu0 0.0
    %1315 = vmatpush1.xpose.msra.mxu0 0.0
    %1316 = vmatprep.subr.mxu0 0.0
    %1317 = vmatpush1.xpose.msra.mxu0 0.0
    %1318 = vmatprep.subr.mxu0 0.0
    %1319 = vmatpush1.xpose.msra.mxu0 0.0
    %1320 = vmatprep.subr.mxu0 0.0
    %1321 = vmatpush1.xpose.msra.mxu0 0.0
    %1322 = vmatprep.subr.mxu0 0.0
    %1323 = vmatpush1.xpose.msra.mxu0 0.0
    %1324 = vmatprep.subr.mxu0 0.0
    %1325 = vmatpush1.xpose.msra.mxu0 0.0
    %1326 = vmatprep.subr.mxu0 0.0
    %1327 = vmatpush1.xpose.msra.mxu0 0.0
    %1328 = vmatprep.subr.mxu0 0.0
    %1329 = vmatpush1.xpose.msra.mxu0 0.0
    %1330 = vmatprep.subr.mxu0 0.0
    %1331 = vmatpush1.xpose.msra.mxu0 0.0
    %1332 = vmatprep.subr.mxu0 0.0
    %1333 = vmatpush1.xpose.msra.mxu0 0.0
    %1334 = vmatprep.subr.mxu0 0.0
    %1335 = vmatpush1.xpose.msra.mxu0 0.0
    %1336 = vmatprep.subr.mxu0 0.0
    %1337 = vmatpush1.xpose.msra.mxu0 0.0
    %1338 = vmatprep.subr.mxu0 0.0
    %1339 = vmatpush1.xpose.msra.mxu0 0.0
    %1340 = vmatprep.mubr.f32.mxu0 0.0
    %1341 = vmatmul.mubr.f32.gmra.mrb[0].mxu0 %v1272
    %v1342 = vpop.f32.mrb[0].mxu0
    %v1343 = vadd.f32 0.0, %v1342
    %v1344 = vpop.f32.mrb[0].mxu0
    %1345 = vdwg.mxu0
    %v1346 = vsel %vm660, %v1343, -inf
    %1347 = vmax.xlane.f32.xlu0 %v1346
    %v1348 = vpop.xlane.xlu0 %1347
    %v1349 = vsub.f32 %v1343, %v1348
    %v1350 = vmul.f32 %v1349, 1.442695
    %v1351 = vpow.pop %v1350
    %v1352 = vsel %vm660, %v1351, 0.0
    %1353 = vadd.xlane.f32.xlu0 %v1352
    %v1354 = vpop.xlane.xlu0 %1353
    %v1355 = vrcp.pop %v1354
    %v1356 = vmul.f32 %v1351, %v1355
    %1357 = vrot.lane.b32.xlu0 %v1269, 64
    %v1358 = vpop.permute.xlu0 %1357
    %v1360 = vsel %vm674, %v1356, 0
    %v1362 = vsel %vm364, %v1358, 0
    %1364 = vmatprep.subr.mxu0 0.0
    %1365 = vmatpush1.msra.mxu0 %v1362
    %1366 = vmatprep.subr.mxu0 0.0
    %1367 = vmatpush1.msra.mxu0 0.0
    %1368 = vmatprep.subr.mxu0 0.0
    %1369 = vmatpush1.msra.mxu0 0.0
    %1370 = vmatprep.subr.mxu0 0.0
    %1371 = vmatpush1.msra.mxu0 0.0
    %1372 = vmatprep.subr.mxu0 0.0
    %1373 = vmatpush1.msra.mxu0 0.0
    %1374 = vmatprep.subr.mxu0 0.0
    %1375 = vmatpush1.msra.mxu0 0.0
    %1376 = vmatprep.subr.mxu0 0.0
    %1377 = vmatpush1.msra.mxu0 0.0
    %1378 = vmatprep.subr.mxu0 0.0
    %1379 = vmatpush1.msra.mxu0 0.0
    %1380 = vmatprep.subr.mxu0 0.0
    %1381 = vmatpush1.msra.mxu0 0.0
    %1382 = vmatprep.subr.mxu0 0.0
    %1383 = vmatpush1.msra.mxu0 0.0
    %1384 = vmatprep.subr.mxu0 0.0
    %1385 = vmatpush1.msra.mxu0 0.0
    %1386 = vmatprep.subr.mxu0 0.0
    %1387 = vmatpush1.msra.mxu0 0.0
    %1388 = vmatprep.subr.mxu0 0.0
    %1389 = vmatpush1.msra.mxu0 0.0
    %1390 = vmatprep.subr.mxu0 0.0
    %1391 = vmatpush1.msra.mxu0 0.0
    %1392 = vmatprep.subr.mxu0 0.0
    %1393 = vmatpush1.msra.mxu0 0.0
    %1394 = vmatprep.subr.mxu0 0.0
    %1395 = vmatpush1.msra.mxu0 0.0
    %1396 = vmatprep.subr.mxu0 0.0
    %1397 = vmatpush1.msra.mxu0 0.0
    %1398 = vmatprep.subr.mxu0 0.0
    %1399 = vmatpush1.msra.mxu0 0.0
    %1400 = vmatprep.subr.mxu0 0.0
    %1401 = vmatpush1.msra.mxu0 0.0
    %1402 = vmatprep.subr.mxu0 0.0
    %1403 = vmatpush1.msra.mxu0 0.0
    %1404 = vmatprep.subr.mxu0 0.0
    %1405 = vmatpush1.msra.mxu0 0.0
    %1406 = vmatprep.subr.mxu0 0.0
    %1407 = vmatpush1.msra.mxu0 0.0
    %1408 = vmatprep.subr.mxu0 0.0
    %1409 = vmatpush1.msra.mxu0 0.0
    %1410 = vmatprep.subr.mxu0 0.0
    %1411 = vmatpush1.msra.mxu0 0.0
    %1412 = vmatprep.subr.mxu0 0.0
    %1413 = vmatpush1.msra.mxu0 0.0
    %1414 = vmatprep.subr.mxu0 0.0
    %1415 = vmatpush1.msra.mxu0 0.0
    %1416 = vmatprep.subr.mxu0 0.0
    %1417 = vmatpush1.msra.mxu0 0.0
    %1418 = vmatprep.subr.mxu0 0.0
    %1419 = vmatpush1.msra.mxu0 0.0
    %1420 = vmatprep.subr.mxu0 0.0
    %1421 = vmatpush1.msra.mxu0 0.0
    %1422 = vmatprep.subr.mxu0 0.0
    %1423 = vmatpush1.msra.mxu0 0.0
    %1424 = vmatprep.subr.mxu0 0.0
    %1425 = vmatpush1.msra.mxu0 0.0
    %1426 = vmatprep.subr.mxu0 0.0
    %1427 = vmatpush1.msra.mxu0 0.0
    %1428 = vmatprep.mubr.f32.mxu0 0.0
    %1429 = vmatmul.mubr.f32.gmra.mrb[0].mxu0 %v1360
    %v1430 = vpop.f32.mrb[0].mxu0
    %v1431 = vadd.f32 0.0, %v1430
    %v1432 = vpop.f32.mrb[0].mxu0
    %1433 = vdwg.mxu0
    %1434 = vrot.lane.b32.xlu0 %v1269, 120
    %v1435 = vpop.permute.xlu0 %1434
    %1436 = vrot.lane.b32.xlu0 %v1269, 88
    %v1437 = vpop.permute.xlu0 %1436
    %v1438 = vsel %vm585, %v1435, 0
    %v1440 = vsel %vm585, %v1437, 0
    %1442 = vmatprep.subr.mxu0 0.0
    %1443 = vmatpush1.xpose.msra.mxu0 %v1440
    %1444 = vmatprep.subr.mxu0 0.0
    %1445 = vmatpush1.xpose.msra.mxu0 0.0
    %1446 = vmatprep.subr.mxu0 0.0
    %1447 = vmatpush1.xpose.msra.mxu0 0.0
    %1448 = vmatprep.subr.mxu0 0.0
    %1449 = vmatpush1.xpose.msra.mxu0 0.0
    %1450 = vmatprep.subr.mxu0 0.0
    %1451 = vmatpush1.xpose.msra.mxu0 0.0
    %1452 = vmatprep.subr.mxu0 0.0
    %1453 = vmatpush1.xpose.msra.mxu0 0.0
    %1454 = vmatprep.subr.mxu0 0.0
    %1455 = vmatpush1.xpose.msra.mxu0 0.0
    %1456 = vmatprep.subr.mxu0 0.0
    %1457 = vmatpush1.xpose.msra.mxu0 0.0
    %1458 = vmatprep.subr.mxu0 0.0
    %1459 = vmatpush1.xpose.msra.mxu0 0.0
    %1460 = vmatprep.subr.mxu0 0.0
    %1461 = vmatpush1.xpose.msra.mxu0 0.0
    %1462 = vmatprep.subr.mxu0 0.0
    %1463 = vmatpush1.xpose.msra.mxu0 0.0
    %1464 = vmatprep.subr.mxu0 0.0
    %1465 = vmatpush1.xpose.msra.mxu0 0.0
    %1466 = vmatprep.subr.mxu0 0.0
    %1467 = vmatpush1.xpose.msra.mxu0 0.0
    %1468 = vmatprep.subr.mxu0 0.0
    %1469 = vmatpush1.xpose.msra.mxu0 0.0
    %1470 = vmatprep.subr.mxu0 0.0
    %1471 = vmatpush1.xpose.msra.mxu0 0.0
    %1472 = vmatprep.subr.mxu0 0.0
    %1473 = vmatpush1.xpose.msra.mxu0 0.0
    %1474 = vmatprep.subr.mxu0 0.0
    %1475 = vmatpush1.xpose.msra.mxu0 0.0
    %1476 = vmatprep.subr.mxu0 0.0
    %1477 = vmatpush1.xpose.msra.mxu0 0.0
    %1478 = vmatprep.subr.mxu0 0.0
    %1479 = vmatpush1.xpose.msra.mxu0 0.0
    %1480 = vmatprep.subr.mxu0 0.0
    %1481 = vmatpush1.xpose.msra.mxu0 0.0
    %1482 = vmatprep.subr.mxu0 0.0
    %1483 = vmatpush1.xpose.msra.mxu0 0.0
    %1484 = vmatprep.subr.mxu0 0.0
    %1485 = vmatpush1.xpose.msra.mxu0 0.0
    %1486 = vmatprep.subr.mxu0 0.0
    %1487 = vmatpush1.xpose.msra.mxu0 0.0
    %1488 = vmatprep.subr.mxu0 0.0
    %1489 = vmatpush1.xpose.msra.mxu0 0.0
    %1490 = vmatprep.subr.mxu0 0.0
    %1491 = vmatpush1.xpose.msra.mxu0 0.0
    %1492 = vmatprep.subr.mxu0 0.0
    %1493 = vmatpush1.xpose.msra.mxu0 0.0
    %1494 = vmatprep.subr.mxu0 0.0
    %1495 = vmatpush1.xpose.msra.mxu0 0.0
    %1496 = vmatprep.subr.mxu0 0.0
    %1497 = vmatpush1.xpose.msra.mxu0 0.0
    %1498 = vmatprep.subr.mxu0 0.0
    %1499 = vmatpush1.xpose.msra.mxu0 0.0
    %1500 = vmatprep.subr.mxu0 0.0
    %1501 = vmatpush1.xpose.msra.mxu0 0.0
    %1502 = vmatprep.subr.mxu0 0.0
    %1503 = vmatpush1.xpose.msra.mxu0 0.0
    %1504 = vmatprep.subr.mxu0 0.0
    %1505 = vmatpush1.xpose.msra.mxu0 0.0
    %1506 = vmatprep.mubr.f32.mxu0 0.0
    %1507 = vmatmul.mubr.f32.gmra.mrb[0].mxu0 %v1438
    %v1508 = vpop.f32.mrb[0].mxu0
    %v1509 = vadd.f32 0.0, %v1508
    %v1510 = vpop.f32.mrb[0].mxu0
    %1511 = vdwg.mxu0
    %v1512 = vsel %vm660, %v1509, -inf
    %1513 = vmax.xlane.f32.xlu0 %v1512
    %v1514 = vpop.xlane.xlu0 %1513
    %v1515 = vsub.f32 %v1509, %v1514
    %v1516 = vmul.f32 %v1515, 1.442695
    %v1517 = vpow.pop %v1516
    %v1518 = vsel %vm660, %v1517, 0.0
    %1519 = vadd.xlane.f32.xlu0 %v1518
    %v1520 = vpop.xlane.xlu0 %1519
    %v1521 = vrcp.pop %v1520
    %v1522 = vmul.f32 %v1517, %v1521
    %1523 = vrot.lane.b32.xlu0 %v1269, 56
    %v1524 = vpop.permute.xlu0 %1523
    %v1526 = vsel %vm674, %v1522, 0
    %v1528 = vsel %vm364, %v1524, 0
    %1530 = vmatprep.subr.mxu0 0.0
    %1531 = vmatpush1.msra.mxu0 %v1528
    %1532 = vmatprep.subr.mxu0 0.0
    %1533 = vmatpush1.msra.mxu0 0.0
    %1534 = vmatprep.subr.mxu0 0.0
    %1535 = vmatpush1.msra.mxu0 0.0
    %1536 = vmatprep.subr.mxu0 0.0
    %1537 = vmatpush1.msra.mxu0 0.0
    %1538 = vmatprep.subr.mxu0 0.0
    %1539 = vmatpush1.msra.mxu0 0.0
    %1540 = vmatprep.subr.mxu0 0.0
    %1541 = vmatpush1.msra.mxu0 0.0
    %1542 = vmatprep.subr.mxu0 0.0
    %1543 = vmatpush1.msra.mxu0 0.0
    %1544 = vmatprep.subr.mxu0 0.0
    %1545 = vmatpush1.msra.mxu0 0.0
    %1546 = vmatprep.subr.mxu0 0.0
    %1547 = vmatpush1.msra.mxu0 0.0
    %1548 = vmatprep.subr.mxu0 0.0
    %1549 = vmatpush1.msra.mxu0 0.0
    %1550 = vmatprep.subr.mxu0 0.0
    %1551 = vmatpush1.msra.mxu0 0.0
    %1552 = vmatprep.subr.mxu0 0.0
    %1553 = vmatpush1.msra.mxu0 0.0
    %1554 = vmatprep.subr.mxu0 0.0
    %1555 = vmatpush1.msra.mxu0 0.0
    %1556 = vmatprep.subr.mxu0 0.0
    %1557 = vmatpush1.msra.mxu0 0.0
    %1558 = vmatprep.subr.mxu0 0.0
    %1559 = vmatpush1.msra.mxu0 0.0
    %1560 = vmatprep.subr.mxu0 0.0
    %1561 = vmatpush1.msra.mxu0 0.0
    %1562 = vmatprep.subr.mxu0 0.0
    %1563 = vmatpush1.msra.mxu0 0.0
    %1564 = vmatprep.subr.mxu0 0.0
    %1565 = vmatpush1.msra.mxu0 0.0
    %1566 = vmatprep.subr.mxu0 0.0
    %1567 = vmatpush1.msra.mxu0 0.0
    %1568 = vmatprep.subr.mxu0 0.0
    %1569 = vmatpush1.msra.mxu0 0.0
    %1570 = vmatprep.subr.mxu0 0.0
    %1571 = vmatpush1.msra.mxu0 0.0
    %1572 = vmatprep.subr.mxu0 0.0
    %1573 = vmatpush1.msra.mxu0 0.0
    %1574 = vmatprep.subr.mxu0 0.0
    %1575 = vmatpush1.msra.mxu0 0.0
    %1576 = vmatprep.subr.mxu0 0.0
    %1577 = vmatpush1.msra.mxu0 0.0
    %1578 = vmatprep.subr.mxu0 0.0
    %1579 = vmatpush1.msra.mxu0 0.0
    %1580 = vmatprep.subr.mxu0 0.0
    %1581 = vmatpush1.msra.mxu0 0.0
    %1582 = vmatprep.subr.mxu0 0.0
    %1583 = vmatpush1.msra.mxu0 0.0
    %1584 = vmatprep.subr.mxu0 0.0
    %1585 = vmatpush1.msra.mxu0 0.0
    %1586 = vmatprep.subr.mxu0 0.0
    %1587 = vmatpush1.msra.mxu0 0.0
    %1588 = vmatprep.subr.mxu0 0.0
    %1589 = vmatpush1.msra.mxu0 0.0
    %1590 = vmatprep.subr.mxu0 0.0
    %1591 = vmatpush1.msra.mxu0 0.0
    %1592 = vmatprep.subr.mxu0 0.0
    %1593 = vmatpush1.msra.mxu0 0.0
    %1594 = vmatprep.mubr.f32.mxu0 0.0
    %1595 = vmatmul.mubr.f32.gmra.mrb[0].mxu0 %v1526
    %v1596 = vpop.f32.mrb[0].mxu0
    %v1597 = vadd.f32 0.0, %v1596
    %v1598 = vpop.f32.mrb[0].mxu0
    %1599 = vdwg.mxu0
    %1600 = vrot.lane.b32.xlu0 %v1269, 112
    %v1601 = vpop.permute.xlu0 %1600
    %1602 = vrot.lane.b32.xlu0 %v1269, 80
    %v1603 = vpop.permute.xlu0 %1602
    %v1604 = vsel %vm585, %v1601, 0
    %v1606 = vsel %vm585, %v1603, 0
    %1608 = vmatprep.subr.mxu0 0.0
    %1609 = vmatpush1.xpose.msra.mxu0 %v1606
    %1610 = vmatprep.subr.mxu0 0.0
    %1611 = vmatpush1.xpose.msra.mxu0 0.0
    %1612 = vmatprep.subr.mxu0 0.0
    %1613 = vmatpush1.xpose.msra.mxu0 0.0
    %1614 = vmatprep.subr.mxu0 0.0
    %1615 = vmatpush1.xpose.msra.mxu0 0.0
    %1616 = vmatprep.subr.mxu0 0.0
    %1617 = vmatpush1.xpose.msra.mxu0 0.0
    %1618 = vmatprep.subr.mxu0 0.0
    %1619 = vmatpush1.xpose.msra.mxu0 0.0
    %1620 = vmatprep.subr.mxu0 0.0
    %1621 = vmatpush1.xpose.msra.mxu0 0.0
    %1622 = vmatprep.subr.mxu0 0.0
    %1623 = vmatpush1.xpose.msra.mxu0 0.0
    %1624 = vmatprep.subr.mxu0 0.0
    %1625 = vmatpush1.xpose.msra.mxu0 0.0
    %1626 = vmatprep.subr.mxu0 0.0
    %1627 = vmatpush1.xpose.msra.mxu0 0.0
    %1628 = vmatprep.subr.mxu0 0.0
    %1629 = vmatpush1.xpose.msra.mxu0 0.0
    %1630 = vmatprep.subr.mxu0 0.0
    %1631 = vmatpush1.xpose.msra.mxu0 0.0
    %1632 = vmatprep.subr.mxu0 0.0
    %1633 = vmatpush1.xpose.msra.mxu0 0.0
    %1634 = vmatprep.subr.mxu0 0.0
    %1635 = vmatpush1.xpose.msra.mxu0 0.0
    %1636 = vmatprep.subr.mxu0 0.0
    %1637 = vmatpush1.xpose.msra.mxu0 0.0
    %1638 = vmatprep.subr.mxu0 0.0
    %1639 = vmatpush1.xpose.msra.mxu0 0.0
    %1640 = vmatprep.subr.mxu0 0.0
    %1641 = vmatpush1.xpose.msra.mxu0 0.0
    %1642 = vmatprep.subr.mxu0 0.0
    %1643 = vmatpush1.xpose.msra.mxu0 0.0
    %1644 = vmatprep.subr.mxu0 0.0
    %1645 = vmatpush1.xpose.msra.mxu0 0.0
    %1646 = vmatprep.subr.mxu0 0.0
    %1647 = vmatpush1.xpose.msra.mxu0 0.0
    %1648 = vmatprep.subr.mxu0 0.0
    %1649 = vmatpush1.xpose.msra.mxu0 0.0
    %1650 = vmatprep.subr.mxu0 0.0
    %1651 = vmatpush1.xpose.msra.mxu0 0.0
    %1652 = vmatprep.subr.mxu0 0.0
    %1653 = vmatpush1.xpose.msra.mxu0 0.0
    %1654 = vmatprep.subr.mxu0 0.0
    %1655 = vmatpush1.xpose.msra.mxu0 0.0
    %1656 = vmatprep.subr.mxu0 0.0
    %1657 = vmatpush1.xpose.msra.mxu0 0.0
    %1658 = vmatprep.subr.mxu0 0.0
    %1659 = vmatpush1.xpose.msra.mxu0 0.0
    %1660 = vmatprep.subr.mxu0 0.0
    %1661 = vmatpush1.xpose.msra.mxu0 0.0
    %1662 = vmatprep.subr.mxu0 0.0
    %1663 = vmatpush1.xpose.msra.mxu0 0.0
    %1664 = vmatprep.subr.mxu0 0.0
    %1665 = vmatpush1.xpose.msra.mxu0 0.0
    %1666 = vmatprep.subr.mxu0 0.0
    %1667 = vmatpush1.xpose.msra.mxu0 0.0
    %1668 = vmatprep.subr.mxu0 0.0
    %1669 = vmatpush1.xpose.msra.mxu0 0.0
    %1670 = vmatprep.subr.mxu0 0.0
    %1671 = vmatpush1.xpose.msra.mxu0 0.0
    %1672 = vmatprep.mubr.f32.mxu0 0.0
    %1673 = vmatmul.mubr.f32.gmra.mrb[0].mxu0 %v1604
    %v1674 = vpop.f32.mrb[0].mxu0
    %v1675 = vadd.f32 0.0, %v1674
    %v1676 = vpop.f32.mrb[0].mxu0
    %1677 = vdwg.mxu0
    %v1678 = vsel %vm660, %v1675, -inf
    %1679 = vmax.xlane.f32.xlu0 %v1678
    %v1680 = vpop.xlane.xlu0 %1679
    %v1681 = vsub.f32 %v1675, %v1680
    %v1682 = vmul.f32 %v1681, 1.442695
    %v1683 = vpow.pop %v1682
    %v1684 = vsel %vm660, %v1683, 0.0
    %1685 = vadd.xlane.f32.xlu0 %v1684
    %v1686 = vpop.xlane.xlu0 %1685
    %v1687 = vrcp.pop %v1686
    %v1688 = vmul.f32 %v1683, %v1687
    %1689 = vrot.lane.b32.xlu0 %v1269, 48
    %v1690 = vpop.permute.xlu0 %1689
    %v1692 = vsel %vm674, %v1688, 0
    %v1694 = vsel %vm364, %v1690, 0
    %1696 = vmatprep.subr.mxu0 0.0
    %1697 = vmatpush1.msra.mxu0 %v1694
    %1698 = vmatprep.subr.mxu0 0.0
    %1699 = vmatpush1.msra.mxu0 0.0
    %1700 = vmatprep.subr.mxu0 0.0
    %1701 = vmatpush1.msra.mxu0 0.0
    %1702 = vmatprep.subr.mxu0 0.0
    %1703 = vmatpush1.msra.mxu0 0.0
    %1704 = vmatprep.subr.mxu0 0.0
    %1705 = vmatpush1.msra.mxu0 0.0
    %1706 = vmatprep.subr.mxu0 0.0
    %1707 = vmatpush1.msra.mxu0 0.0
    %1708 = vmatprep.subr.mxu0 0.0
    %1709 = vmatpush1.msra.mxu0 0.0
    %1710 = vmatprep.subr.mxu0 0.0
    %1711 = vmatpush1.msra.mxu0 0.0
    %1712 = vmatprep.subr.mxu0 0.0
    %1713 = vmatpush1.msra.mxu0 0.0
    %1714 = vmatprep.subr.mxu0 0.0
    %1715 = vmatpush1.msra.mxu0 0.0
    %1716 = vmatprep.subr.mxu0 0.0
    %1717 = vmatpush1.msra.mxu0 0.0
    %1718 = vmatprep.subr.mxu0 0.0
    %1719 = vmatpush1.msra.mxu0 0.0
    %1720 = vmatprep.subr.mxu0 0.0
    %1721 = vmatpush1.msra.mxu0 0.0
    %1722 = vmatprep.subr.mxu0 0.0
    %1723 = vmatpush1.msra.mxu0 0.0
    %1724 = vmatprep.subr.mxu0 0.0
    %1725 = vmatpush1.msra.mxu0 0.0
    %1726 = vmatprep.subr.mxu0 0.0
    %1727 = vmatpush1.msra.mxu0 0.0
    %1728 = vmatprep.subr.mxu0 0.0
    %1729 = vmatpush1.msra.mxu0 0.0
    %1730 = vmatprep.subr.mxu0 0.0
    %1731 = vmatpush1.msra.mxu0 0.0
    %1732 = vmatprep.subr.mxu0 0.0
    %1733 = vmatpush1.msra.mxu0 0.0
    %1734 = vmatprep.subr.mxu0 0.0
    %1735 = vmatpush1.msra.mxu0 0.0
    %1736 = vmatprep.subr.mxu0 0.0
    %1737 = vmatpush1.msra.mxu0 0.0
    %1738 = vmatprep.subr.mxu0 0.0
    %1739 = vmatpush1.msra.mxu0 0.0
    %1740 = vmatprep.subr.mxu0 0.0
    %1741 = vmatpush1.msra.mxu0 0.0
    %1742 = vmatprep.subr.mxu0 0.0
    %1743 = vmatpush1.msra.mxu0 0.0
    %1744 = vmatprep.subr.mxu0 0.0
    %1745 = vmatpush1.msra.mxu0 0.0
    %1746 = vmatprep.subr.mxu0 0.0
    %1747 = vmatpush1.msra.mxu0 0.0
    %1748 = vmatprep.subr.mxu0 0.0
    %1749 = vmatpush1.msra.mxu0 0.0
    %1750 = vmatprep.subr.mxu0 0.0
    %1751 = vmatpush1.msra.mxu0 0.0
    %1752 = vmatprep.subr.mxu0 0.0
    %1753 = vmatpush1.msra.mxu0 0.0
    %1754 = vmatprep.subr.mxu0 0.0
    %1755 = vmatpush1.msra.mxu0 0.0
    %1756 = vmatprep.subr.mxu0 0.0
    %1757 = vmatpush1.msra.mxu0 0.0
    %1758 = vmatprep.subr.mxu0 0.0
    %1759 = vmatpush1.msra.mxu0 0.0
    %1760 = vmatprep.mubr.f32.mxu0 0.0
    %1761 = vmatmul.mubr.f32.gmra.mrb[0].mxu0 %v1692
    %v1762 = vpop.f32.mrb[0].mxu0
    %v1763 = vadd.f32 0.0, %v1762
    %v1764 = vpop.f32.mrb[0].mxu0
    %1765 = vdwg.mxu0
    %1766 = vrot.lane.b32.xlu0 %v1269, 104
    %v1767 = vpop.permute.xlu0 %1766
    %1768 = vrot.lane.b32.xlu0 %v1269, 72
    %v1769 = vpop.permute.xlu0 %1768
    %v1770 = vsel %vm585, %v1767, 0
    %v1772 = vsel %vm585, %v1769, 0
    %1774 = vmatprep.subr.mxu0 0.0
    %1775 = vmatpush1.xpose.msra.mxu0 %v1772
    %1776 = vmatprep.subr.mxu0 0.0
    %1777 = vmatpush1.xpose.msra.mxu0 0.0
    %1778 = vmatprep.subr.mxu0 0.0
    %1779 = vmatpush1.xpose.msra.mxu0 0.0
    %1780 = vmatprep.subr.mxu0 0.0
    %1781 = vmatpush1.xpose.msra.mxu0 0.0
    %1782 = vmatprep.subr.mxu0 0.0
    %1783 = vmatpush1.xpose.msra.mxu0 0.0
    %1784 = vmatprep.subr.mxu0 0.0
    %1785 = vmatpush1.xpose.msra.mxu0 0.0
    %1786 = vmatprep.subr.mxu0 0.0
    %1787 = vmatpush1.xpose.msra.mxu0 0.0
    %1788 = vmatprep.subr.mxu0 0.0
    %1789 = vmatpush1.xpose.msra.mxu0 0.0
    %1790 = vmatprep.subr.mxu0 0.0
    %1791 = vmatpush1.xpose.msra.mxu0 0.0
    %1792 = vmatprep.subr.mxu0 0.0
    %1793 = vmatpush1.xpose.msra.mxu0 0.0
    %1794 = vmatprep.subr.mxu0 0.0
    %1795 = vmatpush1.xpose.msra.mxu0 0.0
    %1796 = vmatprep.subr.mxu0 0.0
    %1797 = vmatpush1.xpose.msra.mxu0 0.0
    %1798 = vmatprep.subr.mxu0 0.0
    %1799 = vmatpush1.xpose.msra.mxu0 0.0
    %1800 = vmatprep.subr.mxu0 0.0
    %1801 = vmatpush1.xpose.msra.mxu0 0.0
    %1802 = vmatprep.subr.mxu0 0.0
    %1803 = vmatpush1.xpose.msra.mxu0 0.0
    %1804 = vmatprep.subr.mxu0 0.0
    %1805 = vmatpush1.xpose.msra.mxu0 0.0
    %1806 = vmatprep.subr.mxu0 0.0
    %1807 = vmatpush1.xpose.msra.mxu0 0.0
    %1808 = vmatprep.subr.mxu0 0.0
    %1809 = vmatpush1.xpose.msra.mxu0 0.0
    %1810 = vmatprep.subr.mxu0 0.0
    %1811 = vmatpush1.xpose.msra.mxu0 0.0
    %1812 = vmatprep.subr.mxu0 0.0
    %1813 = vmatpush1.xpose.msra.mxu0 0.0
    %1814 = vmatprep.subr.mxu0 0.0
    %1815 = vmatpush1.xpose.msra.mxu0 0.0
    %1816 = vmatprep.subr.mxu0 0.0
    %1817 = vmatpush1.xpose.msra.mxu0 0.0
    %1818 = vmatprep.subr.mxu0 0.0
    %1819 = vmatpush1.xpose.msra.mxu0 0.0
    %1820 = vmatprep.subr.mxu0 0.0
    %1821 = vmatpush1.xpose.msra.mxu0 0.0
    %1822 = vmatprep.subr.mxu0 0.0
    %1823 = vmatpush1.xpose.msra.mxu0 0.0
    %1824 = vmatprep.subr.mxu0 0.0
    %1825 = vmatpush1.xpose.msra.mxu0 0.0
    %1826 = vmatprep.subr.mxu0 0.0
    %1827 = vmatpush1.xpose.msra.mxu0 0.0
    %1828 = vmatprep.subr.mxu0 0.0
    %1829 = vmatpush1.xpose.msra.mxu0 0.0
    %1830 = vmatprep.subr.mxu0 0.0
    %1831 = vmatpush1.xpose.msra.mxu0 0.0
    %1832 = vmatprep.subr.mxu0 0.0
    %1833 = vmatpush1.xpose.msra.mxu0 0.0
    %1834 = vmatprep.subr.mxu0 0.0
    %1835 = vmatpush1.xpose.msra.mxu0 0.0
    %1836 = vmatprep.subr.mxu0 0.0
    %1837 = vmatpush1.xpose.msra.mxu0 0.0
    %1838 = vmatprep.mubr.f32.mxu0 0.0
    %1839 = vmatmul.mubr.f32.gmra.mrb[0].mxu0 %v1770
    %v1840 = vpop.f32.mrb[0].mxu0
    %v1841 = vadd.f32 0.0, %v1840
    %v1842 = vpop.f32.mrb[0].mxu0
    %1843 = vdwg.mxu0
    %v1844 = vsel %vm660, %v1841, -inf
    %1845 = vmax.xlane.f32.xlu0 %v1844
    %v1846 = vpop.xlane.xlu0 %1845
    %v1847 = vsub.f32 %v1841, %v1846
    %v1848 = vmul.f32 %v1847, 1.442695
    %v1849 = vpow.pop %v1848
    %v1850 = vsel %vm660, %v1849, 0.0
    %1851 = vadd.xlane.f32.xlu0 %v1850
    %v1852 = vpop.xlane.xlu0 %1851
    %v1853 = vrcp.pop %v1852
    %v1854 = vmul.f32 %v1849, %v1853
    %1855 = vrot.lane.b32.xlu0 %v1269, 40
    %v1856 = vpop.permute.xlu0 %1855
    %v1858 = vsel %vm674, %v1854, 0
    %v1860 = vsel %vm364, %v1856, 0
    %1862 = vmatprep.subr.mxu0 0.0
    %1863 = vmatpush1.msra.mxu0 %v1860
    %1864 = vmatprep.subr.mxu0 0.0
    %1865 = vmatpush1.msra.mxu0 0.0
    %1866 = vmatprep.subr.mxu0 0.0
    %1867 = vmatpush1.msra.mxu0 0.0
    %1868 = vmatprep.subr.mxu0 0.0
    %1869 = vmatpush1.msra.mxu0 0.0
    %1870 = vmatprep.subr.mxu0 0.0
    %1871 = vmatpush1.msra.mxu0 0.0
    %1872 = vmatprep.subr.mxu0 0.0
    %1873 = vmatpush1.msra.mxu0 0.0
    %1874 = vmatprep.subr.mxu0 0.0
    %1875 = vmatpush1.msra.mxu0 0.0
    %1876 = vmatprep.subr.mxu0 0.0
    %1877 = vmatpush1.msra.mxu0 0.0
    %1878 = vmatprep.subr.mxu0 0.0
    %1879 = vmatpush1.msra.mxu0 0.0
    %1880 = vmatprep.subr.mxu0 0.0
    %1881 = vmatpush1.msra.mxu0 0.0
    %1882 = vmatprep.subr.mxu0 0.0
    %1883 = vmatpush1.msra.mxu0 0.0
    %1884 = vmatprep.subr.mxu0 0.0
    %1885 = vmatpush1.msra.mxu0 0.0
    %1886 = vmatprep.subr.mxu0 0.0
    %1887 = vmatpush1.msra.mxu0 0.0
    %1888 = vmatprep.subr.mxu0 0.0
    %1889 = vmatpush1.msra.mxu0 0.0
    %1890 = vmatprep.subr.mxu0 0.0
    %1891 = vmatpush1.msra.mxu0 0.0
    %1892 = vmatprep.subr.mxu0 0.0
    %1893 = vmatpush1.msra.mxu0 0.0
    %1894 = vmatprep.subr.mxu0 0.0
    %1895 = vmatpush1.msra.mxu0 0.0
    %1896 = vmatprep.subr.mxu0 0.0
    %1897 = vmatpush1.msra.mxu0 0.0
    %1898 = vmatprep.subr.mxu0 0.0
    %1899 = vmatpush1.msra.mxu0 0.0
    %1900 = vmatprep.subr.mxu0 0.0
    %1901 = vmatpush1.msra.mxu0 0.0
    %1902 = vmatprep.subr.mxu0 0.0
    %1903 = vmatpush1.msra.mxu0 0.0
    %1904 = vmatprep.subr.mxu0 0.0
    %1905 = vmatpush1.msra.mxu0 0.0
    %1906 = vmatprep.subr.mxu0 0.0
    %1907 = vmatpush1.msra.mxu0 0.0
    %1908 = vmatprep.subr.mxu0 0.0
    %1909 = vmatpush1.msra.mxu0 0.0
    %1910 = vmatprep.subr.mxu0 0.0
    %1911 = vmatpush1.msra.mxu0 0.0
    %1912 = vmatprep.subr.mxu0 0.0
    %1913 = vmatpush1.msra.mxu0 0.0
    %1914 = vmatprep.subr.mxu0 0.0
    %1915 = vmatpush1.msra.mxu0 0.0
    %1916 = vmatprep.subr.mxu0 0.0
    %1917 = vmatpush1.msra.mxu0 0.0
    %1918 = vmatprep.subr.mxu0 0.0
    %1919 = vmatpush1.msra.mxu0 0.0
    %1920 = vmatprep.subr.mxu0 0.0
    %1921 = vmatpush1.msra.mxu0 0.0
    %1922 = vmatprep.subr.mxu0 0.0
    %1923 = vmatpush1.msra.mxu0 0.0
    %1924 = vmatprep.subr.mxu0 0.0
    %1925 = vmatpush1.msra.mxu0 0.0
    %1926 = vmatprep.mubr.f32.mxu0 0.0
    %1927 = vmatmul.mubr.f32.gmra.mrb[0].mxu0 %v1858
    %v1928 = vpop.f32.mrb[0].mxu0
    %v1929 = vadd.f32 0.0, %v1928
    %v1930 = vpop.f32.mrb[0].mxu0
    %1931 = vdwg.mxu0
    %1933 = vrot.lane.b32.xlu0 %v1597, 8
    %v1934 = vpop.permute.xlu0 %1933
    %1937 = vrot.lane.b32.xlu0 %v1763, 16
    %v1938 = vpop.permute.xlu0 %1937
    %1941 = vrot.lane.b32.xlu0 %v1929, 24
    %v1942 = vpop.permute.xlu0 %1941
    %v1944 = vsel %vm585, %v1431, %v1934
    %v1945 = vsel %vm1261, %v1944, %v1938
    %v1946 = vsel %vm1263, %v1945, %v1942
    %v1947 = vrot.slane %v574, 2
    %1948 = vrot.lane.b32.xlu0 %v1947, 96
    %v1949 = vpop.permute.xlu0 %1948
    %v1950 = vsel %vm585, %v1947, 0
    %v1952 = vsel %vm585, %v1949, 0
    %1954 = vmatprep.subr.mxu0 0.0
    %1955 = vmatpush1.xpose.msra.mxu0 %v1952
    %1956 = vmatprep.subr.mxu0 0.0
    %1957 = vmatpush1.xpose.msra.mxu0 0.0
    %1958 = vmatprep.subr.mxu0 0.0
    %1959 = vmatpush1.xpose.msra.mxu0 0.0
    %1960 = vmatprep.subr.mxu0 0.0
    %1961 = vmatpush1.xpose.msra.mxu0 0.0
    %1962 = vmatprep.subr.mxu0 0.0
    %1963 = vmatpush1.xpose.msra.mxu0 0.0
    %1964 = vmatprep.subr.mxu0 0.0
    %1965 = vmatpush1.xpose.msra.mxu0 0.0
    %1966 = vmatprep.subr.mxu0 0.0
    %1967 = vmatpush1.xpose.msra.mxu0 0.0
    %1968 = vmatprep.subr.mxu0 0.0
    %1969 = vmatpush1.xpose.msra.mxu0 0.0
    %1970 = vmatprep.subr.mxu0 0.0
    %1971 = vmatpush1.xpose.msra.mxu0 0.0
    %1972 = vmatprep.subr.mxu0 0.0
    %1973 = vmatpush1.xpose.msra.mxu0 0.0
    %1974 = vmatprep.subr.mxu0 0.0
    %1975 = vmatpush1.xpose.msra.mxu0 0.0
    %1976 = vmatprep.subr.mxu0 0.0
    %1977 = vmatpush1.xpose.msra.mxu0 0.0
    %1978 = vmatprep.subr.mxu0 0.0
    %1979 = vmatpush1.xpose.msra.mxu0 0.0
    %1980 = vmatprep.subr.mxu0 0.0
    %1981 = vmatpush1.xpose.msra.mxu0 0.0
    %1982 = vmatprep.subr.mxu0 0.0
    %1983 = vmatpush1.xpose.msra.mxu0 0.0
    %1984 = vmatprep.subr.mxu0 0.0
    %1985 = vmatpush1.xpose.msra.mxu0 0.0
    %1986 = vmatprep.subr.mxu0 0.0
    %1987 = vmatpush1.xpose.msra.mxu0 0.0
    %1988 = vmatprep.subr.mxu0 0.0
    %1989 = vmatpush1.xpose.msra.mxu0 0.0
    %1990 = vmatprep.subr.mxu0 0.0
    %1991 = vmatpush1.xpose.msra.mxu0 0.0
    %1992 = vmatprep.subr.mxu0 0.0
    %1993 = vmatpush1.xpose.msra.mxu0 0.0
    %1994 = vmatprep.subr.mxu0 0.0
    %1995 = vmatpush1.xpose.msra.mxu0 0.0
    %1996 = vmatprep.subr.mxu0 0.0
    %1997 = vmatpush1.xpose.msra.mxu0 0.0
    %1998 = vmatprep.subr.mxu0 0.0
    %1999 = vmatpush1.xpose.msra.mxu0 0.0
    %2000 = vmatprep.subr.mxu0 0.0
    %2001 = vmatpush1.xpose.msra.mxu0 0.0
    %2002 = vmatprep.subr.mxu0 0.0
    %2003 = vmatpush1.xpose.msra.mxu0 0.0
    %2004 = vmatprep.subr.mxu0 0.0
    %2005 = vmatpush1.xpose.msra.mxu0 0.0
    %2006 = vmatprep.subr.mxu0 0.0
    %2007 = vmatpush1.xpose.msra.mxu0 0.0
    %2008 = vmatprep.subr.mxu0 0.0
    %2009 = vmatpush1.xpose.msra.mxu0 0.0
    %2010 = vmatprep.subr.mxu0 0.0
    %2011 = vmatpush1.xpose.msra.mxu0 0.0
    %2012 = vmatprep.subr.mxu0 0.0
    %2013 = vmatpush1.xpose.msra.mxu0 0.0
    %2014 = vmatprep.subr.mxu0 0.0
    %2015 = vmatpush1.xpose.msra.mxu0 0.0
    %2016 = vmatprep.subr.mxu0 0.0
    %2017 = vmatpush1.xpose.msra.mxu0 0.0
    %2018 = vmatprep.mubr.f32.mxu0 0.0
    %2019 = vmatmul.mubr.f32.gmra.mrb[0].mxu0 %v1950
    %v2020 = vpop.f32.mrb[0].mxu0
    %v2021 = vadd.f32 0.0, %v2020
    %v2022 = vpop.f32.mrb[0].mxu0
    %2023 = vdwg.mxu0
    %v2024 = vsel %vm660, %v2021, -inf
    %2025 = vmax.xlane.f32.xlu0 %v2024
    %v2026 = vpop.xlane.xlu0 %2025
    %v2027 = vsub.f32 %v2021, %v2026
    %v2028 = vmul.f32 %v2027, 1.442695
    %v2029 = vpow.pop %v2028
    %v2030 = vsel %vm660, %v2029, 0.0
    %2031 = vadd.xlane.f32.xlu0 %v2030
    %v2032 = vpop.xlane.xlu0 %2031
    %v2033 = vrcp.pop %v2032
    %v2034 = vmul.f32 %v2029, %v2033
    %2035 = vrot.lane.b32.xlu0 %v1947, 64
    %v2036 = vpop.permute.xlu0 %2035
    %v2038 = vsel %vm674, %v2034, 0
    %v2040 = vsel %vm364, %v2036, 0
    %2042 = vmatprep.subr.mxu0 0.0
    %2043 = vmatpush1.msra.mxu0 %v2040
    %2044 = vmatprep.subr.mxu0 0.0
    %2045 = vmatpush1.msra.mxu0 0.0
    %2046 = vmatprep.subr.mxu0 0.0
    %2047 = vmatpush1.msra.mxu0 0.0
    %2048 = vmatprep.subr.mxu0 0.0
    %2049 = vmatpush1.msra.mxu0 0.0
    %2050 = vmatprep.subr.mxu0 0.0
    %2051 = vmatpush1.msra.mxu0 0.0
    %2052 = vmatprep.subr.mxu0 0.0
    %2053 = vmatpush1.msra.mxu0 0.0
    %2054 = vmatprep.subr.mxu0 0.0
    %2055 = vmatpush1.msra.mxu0 0.0
    %2056 = vmatprep.subr.mxu0 0.0
    %2057 = vmatpush1.msra.mxu0 0.0
    %2058 = vmatprep.subr.mxu0 0.0
    %2059 = vmatpush1.msra.mxu0 0.0
    %2060 = vmatprep.subr.mxu0 0.0
    %2061 = vmatpush1.msra.mxu0 0.0
    %2062 = vmatprep.subr.mxu0 0.0
    %2063 = vmatpush1.msra.mxu0 0.0
    %2064 = vmatprep.subr.mxu0 0.0
    %2065 = vmatpush1.msra.mxu0 0.0
    %2066 = vmatprep.subr.mxu0 0.0
    %2067 = vmatpush1.msra.mxu0 0.0
    %2068 = vmatprep.subr.mxu0 0.0
    %2069 = vmatpush1.msra.mxu0 0.0
    %2070 = vmatprep.subr.mxu0 0.0
    %2071 = vmatpush1.msra.mxu0 0.0
    %2072 = vmatprep.subr.mxu0 0.0
    %2073 = vmatpush1.msra.mxu0 0.0
    %2074 = vmatprep.subr.mxu0 0.0
    %2075 = vmatpush1.msra.mxu0 0.0
    %2076 = vmatprep.subr.mxu0 0.0
    %2077 = vmatpush1.msra.mxu0 0.0
    %2078 = vmatprep.subr.mxu0 0.0
    %2079 = vmatpush1.msra.mxu0 0.0
    %2080 = vmatprep.subr.mxu0 0.0
    %2081 = vmatpush1.msra.mxu0 0.0
    %2082 = vmatprep.subr.mxu0 0.0
    %2083 = vmatpush1.msra.mxu0 0.0
    %2084 = vmatprep.subr.mxu0 0.0
    %2085 = vmatpush1.msra.mxu0 0.0
    %2086 = vmatprep.subr.mxu0 0.0
    %2087 = vmatpush1.msra.mxu0 0.0
    %2088 = vmatprep.subr.mxu0 0.0
    %2089 = vmatpush1.msra.mxu0 0.0
    %2090 = vmatprep.subr.mxu0 0.0
    %2091 = vmatpush1.msra.mxu0 0.0
    %2092 = vmatprep.subr.mxu0 0.0
    %2093 = vmatpush1.msra.mxu0 0.0
    %2094 = vmatprep.subr.mxu0 0.0
    %2095 = vmatpush1.msra.mxu0 0.0
    %2096 = vmatprep.subr.mxu0 0.0
    %2097 = vmatpush1.msra.mxu0 0.0
    %2098 = vmatprep.subr.mxu0 0.0
    %2099 = vmatpush1.msra.mxu0 0.0
    %2100 = vmatprep.subr.mxu0 0.0
    %2101 = vmatpush1.msra.mxu0 0.0
    %2102 = vmatprep.subr.mxu0 0.0
    %2103 = vmatpush1.msra.mxu0 0.0
    %2104 = vmatprep.subr.mxu0 0.0
    %2105 = vmatpush1.msra.mxu0 0.0
    %2106 = vmatprep.mubr.f32.mxu0 0.0
    %2107 = vmatmul.mubr.f32.gmra.mrb[0].mxu0 %v2038
    %v2108 = vpop.f32.mrb[0].mxu0
    %v2109 = vadd.f32 0.0, %v2108
    %v2110 = vpop.f32.mrb[0].mxu0
    %2111 = vdwg.mxu0
    %2112 = vrot.lane.b32.xlu0 %v1947, 120
    %v2113 = vpop.permute.xlu0 %2112
    %2114 = vrot.lane.b32.xlu0 %v1947, 88
    %v2115 = vpop.permute.xlu0 %2114
    %v2116 = vsel %vm585, %v2113, 0
    %v2118 = vsel %vm585, %v2115, 0
    %2120 = vmatprep.subr.mxu0 0.0
    %2121 = vmatpush1.xpose.msra.mxu0 %v2118
    %2122 = vmatprep.subr.mxu0 0.0
    %2123 = vmatpush1.xpose.msra.mxu0 0.0
    %2124 = vmatprep.subr.mxu0 0.0
    %2125 = vmatpush1.xpose.msra.mxu0 0.0
    %2126 = vmatprep.subr.mxu0 0.0
    %2127 = vmatpush1.xpose.msra.mxu0 0.0
    %2128 = vmatprep.subr.mxu0 0.0
    %2129 = vmatpush1.xpose.msra.mxu0 0.0
    %2130 = vmatprep.subr.mxu0 0.0
    %2131 = vmatpush1.xpose.msra.mxu0 0.0
    %2132 = vmatprep.subr.mxu0 0.0
    %2133 = vmatpush1.xpose.msra.mxu0 0.0
    %2134 = vmatprep.subr.mxu0 0.0
    %2135 = vmatpush1.xpose.msra.mxu0 0.0
    %2136 = vmatprep.subr.mxu0 0.0
    %2137 = vmatpush1.xpose.msra.mxu0 0.0
    %2138 = vmatprep.subr.mxu0 0.0
    %2139 = vmatpush1.xpose.msra.mxu0 0.0
    %2140 = vmatprep.subr.mxu0 0.0
    %2141 = vmatpush1.xpose.msra.mxu0 0.0
    %2142 = vmatprep.subr.mxu0 0.0
    %2143 = vmatpush1.xpose.msra.mxu0 0.0
    %2144 = vmatprep.subr.mxu0 0.0
    %2145 = vmatpush1.xpose.msra.mxu0 0.0
    %2146 = vmatprep.subr.mxu0 0.0
    %2147 = vmatpush1.xpose.msra.mxu0 0.0
    %2148 = vmatprep.subr.mxu0 0.0
    %2149 = vmatpush1.xpose.msra.mxu0 0.0
    %2150 = vmatprep.subr.mxu0 0.0
    %2151 = vmatpush1.xpose.msra.mxu0 0.0
    %2152 = vmatprep.subr.mxu0 0.0
    %2153 = vmatpush1.xpose.msra.mxu0 0.0
    %2154 = vmatprep.subr.mxu0 0.0
    %2155 = vmatpush1.xpose.msra.mxu0 0.0
    %2156 = vmatprep.subr.mxu0 0.0
    %2157 = vmatpush1.xpose.msra.mxu0 0.0
    %2158 = vmatprep.subr.mxu0 0.0
    %2159 = vmatpush1.xpose.msra.mxu0 0.0
    %2160 = vmatprep.subr.mxu0 0.0
    %2161 = vmatpush1.xpose.msra.mxu0 0.0
    %2162 = vmatprep.subr.mxu0 0.0
    %2163 = vmatpush1.xpose.msra.mxu0 0.0
    %2164 = vmatprep.subr.mxu0 0.0
    %2165 = vmatpush1.xpose.msra.mxu0 0.0
    %2166 = vmatprep.subr.mxu0 0.0
    %2167 = vmatpush1.xpose.msra.mxu0 0.0
    %2168 = vmatprep.subr.mxu0 0.0
    %2169 = vmatpush1.xpose.msra.mxu0 0.0
    %2170 = vmatprep.subr.mxu0 0.0
    %2171 = vmatpush1.xpose.msra.mxu0 0.0
    %2172 = vmatprep.subr.mxu0 0.0
    %2173 = vmatpush1.xpose.msra.mxu0 0.0
    %2174 = vmatprep.subr.mxu0 0.0
    %2175 = vmatpush1.xpose.msra.mxu0 0.0
    %2176 = vmatprep.subr.mxu0 0.0
    %2177 = vmatpush1.xpose.msra.mxu0 0.0
    %2178 = vmatprep.subr.mxu0 0.0
    %2179 = vmatpush1.xpose.msra.mxu0 0.0
    %2180 = vmatprep.subr.mxu0 0.0
    %2181 = vmatpush1.xpose.msra.mxu0 0.0
    %2182 = vmatprep.subr.mxu0 0.0
    %2183 = vmatpush1.xpose.msra.mxu0 0.0
    %2184 = vmatprep.mubr.f32.mxu0 0.0
    %2185 = vmatmul.mubr.f32.gmra.mrb[0].mxu0 %v2116
    %v2186 = vpop.f32.mrb[0].mxu0
    %v2187 = vadd.f32 0.0, %v2186
    %v2188 = vpop.f32.mrb[0].mxu0
    %2189 = vdwg.mxu0
    %v2190 = vsel %vm660, %v2187, -inf
    %2191 = vmax.xlane.f32.xlu0 %v2190
    %v2192 = vpop.xlane.xlu0 %2191
    %v2193 = vsub.f32 %v2187, %v2192
    %v2194 = vmul.f32 %v2193, 1.442695
    %v2195 = vpow.pop %v2194
    %v2196 = vsel %vm660, %v2195, 0.0
    %2197 = vadd.xlane.f32.xlu0 %v2196
    %v2198 = vpop.xlane.xlu0 %2197
    %v2199 = vrcp.pop %v2198
    %v2200 = vmul.f32 %v2195, %v2199
    %2201 = vrot.lane.b32.xlu0 %v1947, 56
    %v2202 = vpop.permute.xlu0 %2201
    %v2204 = vsel %vm674, %v2200, 0
    %v2206 = vsel %vm364, %v2202, 0
    %2208 = vmatprep.subr.mxu0 0.0
    %2209 = vmatpush1.msra.mxu0 %v2206
    %2210 = vmatprep.subr.mxu0 0.0
    %2211 = vmatpush1.msra.mxu0 0.0
    %2212 = vmatprep.subr.mxu0 0.0
    %2213 = vmatpush1.msra.mxu0 0.0
    %2214 = vmatprep.subr.mxu0 0.0
    %2215 = vmatpush1.msra.mxu0 0.0
    %2216 = vmatprep.subr.mxu0 0.0
    %2217 = vmatpush1.msra.mxu0 0.0
    %2218 = vmatprep.subr.mxu0 0.0
    %2219 = vmatpush1.msra.mxu0 0.0
    %2220 = vmatprep.subr.mxu0 0.0
    %2221 = vmatpush1.msra.mxu0 0.0
    %2222 = vmatprep.subr.mxu0 0.0
    %2223 = vmatpush1.msra.mxu0 0.0
    %2224 = vmatprep.subr.mxu0 0.0
    %2225 = vmatpush1.msra.mxu0 0.0
    %2226 = vmatprep.subr.mxu0 0.0
    %2227 = vmatpush1.msra.mxu0 0.0
    %2228 = vmatprep.subr.mxu0 0.0
    %2229 = vmatpush1.msra.mxu0 0.0
    %2230 = vmatprep.subr.mxu0 0.0
    %2231 = vmatpush1.msra.mxu0 0.0
    %2232 = vmatprep.subr.mxu0 0.0
    %2233 = vmatpush1.msra.mxu0 0.0
    %2234 = vmatprep.subr.mxu0 0.0
    %2235 = vmatpush1.msra.mxu0 0.0
    %2236 = vmatprep.subr.mxu0 0.0
    %2237 = vmatpush1.msra.mxu0 0.0
    %2238 = vmatprep.subr.mxu0 0.0
    %2239 = vmatpush1.msra.mxu0 0.0
    %2240 = vmatprep.subr.mxu0 0.0
    %2241 = vmatpush1.msra.mxu0 0.0
    %2242 = vmatprep.subr.mxu0 0.0
    %2243 = vmatpush1.msra.mxu0 0.0
    %2244 = vmatprep.subr.mxu0 0.0
    %2245 = vmatpush1.msra.mxu0 0.0
    %2246 = vmatprep.subr.mxu0 0.0
    %2247 = vmatpush1.msra.mxu0 0.0
    %2248 = vmatprep.subr.mxu0 0.0
    %2249 = vmatpush1.msra.mxu0 0.0
    %2250 = vmatprep.subr.mxu0 0.0
    %2251 = vmatpush1.msra.mxu0 0.0
    %2252 = vmatprep.subr.mxu0 0.0
    %2253 = vmatpush1.msra.mxu0 0.0
    %2254 = vmatprep.subr.mxu0 0.0
    %2255 = vmatpush1.msra.mxu0 0.0
    %2256 = vmatprep.subr.mxu0 0.0
    %2257 = vmatpush1.msra.mxu0 0.0
    %2258 = vmatprep.subr.mxu0 0.0
    %2259 = vmatpush1.msra.mxu0 0.0
    %2260 = vmatprep.subr.mxu0 0.0
    %2261 = vmatpush1.msra.mxu0 0.0
    %2262 = vmatprep.subr.mxu0 0.0
    %2263 = vmatpush1.msra.mxu0 0.0
    %2264 = vmatprep.subr.mxu0 0.0
    %2265 = vmatpush1.msra.mxu0 0.0
    %2266 = vmatprep.subr.mxu0 0.0
    %2267 = vmatpush1.msra.mxu0 0.0
    %2268 = vmatprep.subr.mxu0 0.0
    %2269 = vmatpush1.msra.mxu0 0.0
    %2270 = vmatprep.subr.mxu0 0.0
    %2271 = vmatpush1.msra.mxu0 0.0
    %2272 = vmatprep.mubr.f32.mxu0 0.0
    %2273 = vmatmul.mubr.f32.gmra.mrb[0].mxu0 %v2204
    %v2274 = vpop.f32.mrb[0].mxu0
    %v2275 = vadd.f32 0.0, %v2274
    %v2276 = vpop.f32.mrb[0].mxu0
    %2277 = vdwg.mxu0
    %2278 = vrot.lane.b32.xlu0 %v1947, 112
    %v2279 = vpop.permute.xlu0 %2278
    %2280 = vrot.lane.b32.xlu0 %v1947, 80
    %v2281 = vpop.permute.xlu0 %2280
    %v2282 = vsel %vm585, %v2279, 0
    %v2284 = vsel %vm585, %v2281, 0
    %2286 = vmatprep.subr.mxu0 0.0
    %2287 = vmatpush1.xpose.msra.mxu0 %v2284
    %2288 = vmatprep.subr.mxu0 0.0
    %2289 = vmatpush1.xpose.msra.mxu0 0.0
    %2290 = vmatprep.subr.mxu0 0.0
    %2291 = vmatpush1.xpose.msra.mxu0 0.0
    %2292 = vmatprep.subr.mxu0 0.0
    %2293 = vmatpush1.xpose.msra.mxu0 0.0
    %2294 = vmatprep.subr.mxu0 0.0
    %2295 = vmatpush1.xpose.msra.mxu0 0.0
    %2296 = vmatprep.subr.mxu0 0.0
    %2297 = vmatpush1.xpose.msra.mxu0 0.0
    %2298 = vmatprep.subr.mxu0 0.0
    %2299 = vmatpush1.xpose.msra.mxu0 0.0
    %2300 = vmatprep.subr.mxu0 0.0
    %2301 = vmatpush1.xpose.msra.mxu0 0.0
    %2302 = vmatprep.subr.mxu0 0.0
    %2303 = vmatpush1.xpose.msra.mxu0 0.0
    %2304 = vmatprep.subr.mxu0 0.0
    %2305 = vmatpush1.xpose.msra.mxu0 0.0
    %2306 = vmatprep.subr.mxu0 0.0
    %2307 = vmatpush1.xpose.msra.mxu0 0.0
    %2308 = vmatprep.subr.mxu0 0.0
    %2309 = vmatpush1.xpose.msra.mxu0 0.0
    %2310 = vmatprep.subr.mxu0 0.0
    %2311 = vmatpush1.xpose.msra.mxu0 0.0
    %2312 = vmatprep.subr.mxu0 0.0
    %2313 = vmatpush1.xpose.msra.mxu0 0.0
    %2314 = vmatprep.subr.mxu0 0.0
    %2315 = vmatpush1.xpose.msra.mxu0 0.0
    %2316 = vmatprep.subr.mxu0 0.0
    %2317 = vmatpush1.xpose.msra.mxu0 0.0
    %2318 = vmatprep.subr.mxu0 0.0
    %2319 = vmatpush1.xpose.msra.mxu0 0.0
    %2320 = vmatprep.subr.mxu0 0.0
    %2321 = vmatpush1.xpose.msra.mxu0 0.0
    %2322 = vmatprep.subr.mxu0 0.0
    %2323 = vmatpush1.xpose.msra.mxu0 0.0
    %2324 = vmatprep.subr.mxu0 0.0
    %2325 = vmatpush1.xpose.msra.mxu0 0.0
    %2326 = vmatprep.subr.mxu0 0.0
    %2327 = vmatpush1.xpose.msra.mxu0 0.0
    %2328 = vmatprep.subr.mxu0 0.0
    %2329 = vmatpush1.xpose.msra.mxu0 0.0
    %2330 = vmatprep.subr.mxu0 0.0
    %2331 = vmatpush1.xpose.msra.mxu0 0.0
    %2332 = vmatprep.subr.mxu0 0.0
    %2333 = vmatpush1.xpose.msra.mxu0 0.0
    %2334 = vmatprep.subr.mxu0 0.0
    %2335 = vmatpush1.xpose.msra.mxu0 0.0
    %2336 = vmatprep.subr.mxu0 0.0
    %2337 = vmatpush1.xpose.msra.mxu0 0.0
    %2338 = vmatprep.subr.mxu0 0.0
    %2339 = vmatpush1.xpose.msra.mxu0 0.0
    %2340 = vmatprep.subr.mxu0 0.0
    %2341 = vmatpush1.xpose.msra.mxu0 0.0
    %2342 = vmatprep.subr.mxu0 0.0
    %2343 = vmatpush1.xpose.msra.mxu0 0.0
    %2344 = vmatprep.subr.mxu0 0.0
    %2345 = vmatpush1.xpose.msra.mxu0 0.0
    %2346 = vmatprep.subr.mxu0 0.0
    %2347 = vmatpush1.xpose.msra.mxu0 0.0
    %2348 = vmatprep.subr.mxu0 0.0
    %2349 = vmatpush1.xpose.msra.mxu0 0.0
    %2350 = vmatprep.mubr.f32.mxu0 0.0
    %2351 = vmatmul.mubr.f32.gmra.mrb[0].mxu0 %v2282
    %v2352 = vpop.f32.mrb[0].mxu0
    %v2353 = vadd.f32 0.0, %v2352
    %v2354 = vpop.f32.mrb[0].mxu0
    %2355 = vdwg.mxu0
    %v2356 = vsel %vm660, %v2353, -inf
    %2357 = vmax.xlane.f32.xlu0 %v2356
    %v2358 = vpop.xlane.xlu0 %2357
    %v2359 = vsub.f32 %v2353, %v2358
    %v2360 = vmul.f32 %v2359, 1.442695
    %v2361 = vpow.pop %v2360
    %v2362 = vsel %vm660, %v2361, 0.0
    %2363 = vadd.xlane.f32.xlu0 %v2362
    %v2364 = vpop.xlane.xlu0 %2363
    %v2365 = vrcp.pop %v2364
    %v2366 = vmul.f32 %v2361, %v2365
    %2367 = vrot.lane.b32.xlu0 %v1947, 48
    %v2368 = vpop.permute.xlu0 %2367
    %v2370 = vsel %vm674, %v2366, 0
    %v2372 = vsel %vm364, %v2368, 0
    %2374 = vmatprep.subr.mxu0 0.0
    %2375 = vmatpush1.msra.mxu0 %v2372
    %2376 = vmatprep.subr.mxu0 0.0
    %2377 = vmatpush1.msra.mxu0 0.0
    %2378 = vmatprep.subr.mxu0 0.0
    %2379 = vmatpush1.msra.mxu0 0.0
    %2380 = vmatprep.subr.mxu0 0.0
    %2381 = vmatpush1.msra.mxu0 0.0
    %2382 = vmatprep.subr.mxu0 0.0
    %2383 = vmatpush1.msra.mxu0 0.0
    %2384 = vmatprep.subr.mxu0 0.0
    %2385 = vmatpush1.msra.mxu0 0.0
    %2386 = vmatprep.subr.mxu0 0.0
    %2387 = vmatpush1.msra.mxu0 0.0
    %2388 = vmatprep.subr.mxu0 0.0
    %2389 = vmatpush1.msra.mxu0 0.0
    %2390 = vmatprep.subr.mxu0 0.0
    %2391 = vmatpush1.msra.mxu0 0.0
    %2392 = vmatprep.subr.mxu0 0.0
    %2393 = vmatpush1.msra.mxu0 0.0
    %2394 = vmatprep.subr.mxu0 0.0
    %2395 = vmatpush1.msra.mxu0 0.0
    %2396 = vmatprep.subr.mxu0 0.0
    %2397 = vmatpush1.msra.mxu0 0.0
    %2398 = vmatprep.subr.mxu0 0.0
    %2399 = vmatpush1.msra.mxu0 0.0
    %2400 = vmatprep.subr.mxu0 0.0
    %2401 = vmatpush1.msra.mxu0 0.0
    %2402 = vmatprep.subr.mxu0 0.0
    %2403 = vmatpush1.msra.mxu0 0.0
    %2404 = vmatprep.subr.mxu0 0.0
    %2405 = vmatpush1.msra.mxu0 0.0
    %2406 = vmatprep.subr.mxu0 0.0
    %2407 = vmatpush1.msra.mxu0 0.0
    %2408 = vmatprep.subr.mxu0 0.0
    %2409 = vmatpush1.msra.mxu0 0.0
    %2410 = vmatprep.subr.mxu0 0.0
    %2411 = vmatpush1.msra.mxu0 0.0
    %2412 = vmatprep.subr.mxu0 0.0
    %2413 = vmatpush1.msra.mxu0 0.0
    %2414 = vmatprep.subr.mxu0 0.0
    %2415 = vmatpush1.msra.mxu0 0.0
    %2416 = vmatprep.subr.mxu0 0.0
    %2417 = vmatpush1.msra.mxu0 0.0
    %2418 = vmatprep.subr.mxu0 0.0
    %2419 = vmatpush1.msra.mxu0 0.0
    %2420 = vmatprep.subr.mxu0 0.0
    %2421 = vmatpush1.msra.mxu0 0.0
    %2422 = vmatprep.subr.mxu0 0.0
    %2423 = vmatpush1.msra.mxu0 0.0
    %2424 = vmatprep.subr.mxu0 0.0
    %2425 = vmatpush1.msra.mxu0 0.0
    %2426 = vmatprep.subr.mxu0 0.0
    %2427 = vmatpush1.msra.mxu0 0.0
    %2428 = vmatprep.subr.mxu0 0.0
    %2429 = vmatpush1.msra.mxu0 0.0
    %2430 = vmatprep.subr.mxu0 0.0
    %2431 = vmatpush1.msra.mxu0 0.0
    %2432 = vmatprep.subr.mxu0 0.0
    %2433 = vmatpush1.msra.mxu0 0.0
    %2434 = vmatprep.subr.mxu0 0.0
    %2435 = vmatpush1.msra.mxu0 0.0
    %2436 = vmatprep.subr.mxu0 0.0
    %2437 = vmatpush1.msra.mxu0 0.0
    %2438 = vmatprep.mubr.f32.mxu0 0.0
    %2439 = vmatmul.mubr.f32.gmra.mrb[0].mxu0 %v2370
    %v2440 = vpop.f32.mrb[0].mxu0
    %v2441 = vadd.f32 0.0, %v2440
    %v2442 = vpop.f32.mrb[0].mxu0
    %2443 = vdwg.mxu0
    %2444 = vrot.lane.b32.xlu0 %v1947, 104
    %v2445 = vpop.permute.xlu0 %2444
    %2446 = vrot.lane.b32.xlu0 %v1947, 72
    %v2447 = vpop.permute.xlu0 %2446
    %v2448 = vsel %vm585, %v2445, 0
    %v2450 = vsel %vm585, %v2447, 0
    %2452 = vmatprep.subr.mxu0 0.0
    %2453 = vmatpush1.xpose.msra.mxu0 %v2450
    %2454 = vmatprep.subr.mxu0 0.0
    %2455 = vmatpush1.xpose.msra.mxu0 0.0
    %2456 = vmatprep.subr.mxu0 0.0
    %2457 = vmatpush1.xpose.msra.mxu0 0.0
    %2458 = vmatprep.subr.mxu0 0.0
    %2459 = vmatpush1.xpose.msra.mxu0 0.0
    %2460 = vmatprep.subr.mxu0 0.0
    %2461 = vmatpush1.xpose.msra.mxu0 0.0
    %2462 = vmatprep.subr.mxu0 0.0
    %2463 = vmatpush1.xpose.msra.mxu0 0.0
    %2464 = vmatprep.subr.mxu0 0.0
    %2465 = vmatpush1.xpose.msra.mxu0 0.0
    %2466 = vmatprep.subr.mxu0 0.0
    %2467 = vmatpush1.xpose.msra.mxu0 0.0
    %2468 = vmatprep.subr.mxu0 0.0
    %2469 = vmatpush1.xpose.msra.mxu0 0.0
    %2470 = vmatprep.subr.mxu0 0.0
    %2471 = vmatpush1.xpose.msra.mxu0 0.0
    %2472 = vmatprep.subr.mxu0 0.0
    %2473 = vmatpush1.xpose.msra.mxu0 0.0
    %2474 = vmatprep.subr.mxu0 0.0
    %2475 = vmatpush1.xpose.msra.mxu0 0.0
    %2476 = vmatprep.subr.mxu0 0.0
    %2477 = vmatpush1.xpose.msra.mxu0 0.0
    %2478 = vmatprep.subr.mxu0 0.0
    %2479 = vmatpush1.xpose.msra.mxu0 0.0
    %2480 = vmatprep.subr.mxu0 0.0
    %2481 = vmatpush1.xpose.msra.mxu0 0.0
    %2482 = vmatprep.subr.mxu0 0.0
    %2483 = vmatpush1.xpose.msra.mxu0 0.0
    %2484 = vmatprep.subr.mxu0 0.0
    %2485 = vmatpush1.xpose.msra.mxu0 0.0
    %2486 = vmatprep.subr.mxu0 0.0
    %2487 = vmatpush1.xpose.msra.mxu0 0.0
    %2488 = vmatprep.subr.mxu0 0.0
    %2489 = vmatpush1.xpose.msra.mxu0 0.0
    %2490 = vmatprep.subr.mxu0 0.0
    %2491 = vmatpush1.xpose.msra.mxu0 0.0
    %2492 = vmatprep.subr.mxu0 0.0
    %2493 = vmatpush1.xpose.msra.mxu0 0.0
    %2494 = vmatprep.subr.mxu0 0.0
    %2495 = vmatpush1.xpose.msra.mxu0 0.0
    %2496 = vmatprep.subr.mxu0 0.0
    %2497 = vmatpush1.xpose.msra.mxu0 0.0
    %2498 = vmatprep.subr.mxu0 0.0
    %2499 = vmatpush1.xpose.msra.mxu0 0.0
    %2500 = vmatprep.subr.mxu0 0.0
    %2501 = vmatpush1.xpose.msra.mxu0 0.0
    %2502 = vmatprep.subr.mxu0 0.0
    %2503 = vmatpush1.xpose.msra.mxu0 0.0
    %2504 = vmatprep.subr.mxu0 0.0
    %2505 = vmatpush1.xpose.msra.mxu0 0.0
    %2506 = vmatprep.subr.mxu0 0.0
    %2507 = vmatpush1.xpose.msra.mxu0 0.0
    %2508 = vmatprep.subr.mxu0 0.0
    %2509 = vmatpush1.xpose.msra.mxu0 0.0
    %2510 = vmatprep.subr.mxu0 0.0
    %2511 = vmatpush1.xpose.msra.mxu0 0.0
    %2512 = vmatprep.subr.mxu0 0.0
    %2513 = vmatpush1.xpose.msra.mxu0 0.0
    %2514 = vmatprep.subr.mxu0 0.0
    %2515 = vmatpush1.xpose.msra.mxu0 0.0
    %2516 = vmatprep.mubr.f32.mxu0 0.0
    %2517 = vmatmul.mubr.f32.gmra.mrb[0].mxu0 %v2448
    %v2518 = vpop.f32.mrb[0].mxu0
    %v2519 = vadd.f32 0.0, %v2518
    %v2520 = vpop.f32.mrb[0].mxu0
    %2521 = vdwg.mxu0
    %v2522 = vsel %vm660, %v2519, -inf
    %2523 = vmax.xlane.f32.xlu0 %v2522
    %v2524 = vpop.xlane.xlu0 %2523
    %v2525 = vsub.f32 %v2519, %v2524
    %v2526 = vmul.f32 %v2525, 1.442695
    %v2527 = vpow.pop %v2526
    %v2528 = vsel %vm660, %v2527, 0.0
    %2529 = vadd.xlane.f32.xlu0 %v2528
    %v2530 = vpop.xlane.xlu0 %2529
    %v2531 = vrcp.pop %v2530
    %v2532 = vmul.f32 %v2527, %v2531
    %2533 = vrot.lane.b32.xlu0 %v1947, 40
    %v2534 = vpop.permute.xlu0 %2533
    %v2536 = vsel %vm674, %v2532, 0
    %v2538 = vsel %vm364, %v2534, 0
    %2540 = vmatprep.subr.mxu0 0.0
    %2541 = vmatpush1.msra.mxu0 %v2538
    %2542 = vmatprep.subr.mxu0 0.0
    %2543 = vmatpush1.msra.mxu0 0.0
    %2544 = vmatprep.subr.mxu0 0.0
    %2545 = vmatpush1.msra.mxu0 0.0
    %2546 = vmatprep.subr.mxu0 0.0
    %2547 = vmatpush1.msra.mxu0 0.0
    %2548 = vmatprep.subr.mxu0 0.0
    %2549 = vmatpush1.msra.mxu0 0.0
    %2550 = vmatprep.subr.mxu0 0.0
    %2551 = vmatpush1.msra.mxu0 0.0
    %2552 = vmatprep.subr.mxu0 0.0
    %2553 = vmatpush1.msra.mxu0 0.0
    %2554 = vmatprep.subr.mxu0 0.0
    %2555 = vmatpush1.msra.mxu0 0.0
    %2556 = vmatprep.subr.mxu0 0.0
    %2557 = vmatpush1.msra.mxu0 0.0
    %2558 = vmatprep.subr.mxu0 0.0
    %2559 = vmatpush1.msra.mxu0 0.0
    %2560 = vmatprep.subr.mxu0 0.0
    %2561 = vmatpush1.msra.mxu0 0.0
    %2562 = vmatprep.subr.mxu0 0.0
    %2563 = vmatpush1.msra.mxu0 0.0
    %2564 = vmatprep.subr.mxu0 0.0
    %2565 = vmatpush1.msra.mxu0 0.0
    %2566 = vmatprep.subr.mxu0 0.0
    %2567 = vmatpush1.msra.mxu0 0.0
    %2568 = vmatprep.subr.mxu0 0.0
    %2569 = vmatpush1.msra.mxu0 0.0
    %2570 = vmatprep.subr.mxu0 0.0
    %2571 = vmatpush1.msra.mxu0 0.0
    %2572 = vmatprep.subr.mxu0 0.0
    %2573 = vmatpush1.msra.mxu0 0.0
    %2574 = vmatprep.subr.mxu0 0.0
    %2575 = vmatpush1.msra.mxu0 0.0
    %2576 = vmatprep.subr.mxu0 0.0
    %2577 = vmatpush1.msra.mxu0 0.0
    %2578 = vmatprep.subr.mxu0 0.0
    %2579 = vmatpush1.msra.mxu0 0.0
    %2580 = vmatprep.subr.mxu0 0.0
    %2581 = vmatpush1.msra.mxu0 0.0
    %2582 = vmatprep.subr.mxu0 0.0
    %2583 = vmatpush1.msra.mxu0 0.0
    %2584 = vmatprep.subr.mxu0 0.0
    %2585 = vmatpush1.msra.mxu0 0.0
    %2586 = vmatprep.subr.mxu0 0.0
    %2587 = vmatpush1.msra.mxu0 0.0
    %2588 = vmatprep.subr.mxu0 0.0
    %2589 = vmatpush1.msra.mxu0 0.0
    %2590 = vmatprep.subr.mxu0 0.0
    %2591 = vmatpush1.msra.mxu0 0.0
    %2592 = vmatprep.subr.mxu0 0.0
    %2593 = vmatpush1.msra.mxu0 0.0
    %2594 = vmatprep.subr.mxu0 0.0
    %2595 = vmatpush1.msra.mxu0 0.0
    %2596 = vmatprep.subr.mxu0 0.0
    %2597 = vmatpush1.msra.mxu0 0.0
    %2598 = vmatprep.subr.mxu0 0.0
    %2599 = vmatpush1.msra.mxu0 0.0
    %2600 = vmatprep.subr.mxu0 0.0
    %2601 = vmatpush1.msra.mxu0 0.0
    %2602 = vmatprep.subr.mxu0 0.0
    %2603 = vmatpush1.msra.mxu0 0.0
    %2604 = vmatprep.mubr.f32.mxu0 0.0
    %2605 = vmatmul.mubr.f32.gmra.mrb[0].mxu0 %v2536
    %v2606 = vpop.f32.mrb[0].mxu0
    %v2607 = vadd.f32 0.0, %v2606
    %v2608 = vpop.f32.mrb[0].mxu0
    %2609 = vdwg.mxu0
    %2611 = vrot.lane.b32.xlu0 %v2275, 8
    %v2612 = vpop.permute.xlu0 %2611
    %2615 = vrot.lane.b32.xlu0 %v2441, 16
    %v2616 = vpop.permute.xlu0 %2615
    %2619 = vrot.lane.b32.xlu0 %v2607, 24
    %v2620 = vpop.permute.xlu0 %2619
    %v2622 = vsel %vm585, %v2109, %v2612
    %v2623 = vsel %vm1261, %v2622, %v2616
    %v2624 = vsel %vm1263, %v2623, %v2620
    %v2626 = vrot.slane %v574, 7
    %v2627 = vrot.slane %v579, 7
    %v2628 = vsel %vm339, %v2626, %v2627
    %2629 = vrot.lane.b32.xlu0 %v2628, 96
    %v2630 = vpop.permute.xlu0 %2629
    %v2631 = vsel %vm585, %v2628, 0
    %v2633 = vsel %vm585, %v2630, 0
    %2635 = vmatprep.subr.mxu0 0.0
    %2636 = vmatpush1.xpose.msra.mxu0 %v2633
    %2637 = vmatprep.subr.mxu0 0.0
    %2638 = vmatpush1.xpose.msra.mxu0 0.0
    %2639 = vmatprep.subr.mxu0 0.0
    %2640 = vmatpush1.xpose.msra.mxu0 0.0
    %2641 = vmatprep.subr.mxu0 0.0
    %2642 = vmatpush1.xpose.msra.mxu0 0.0
    %2643 = vmatprep.subr.mxu0 0.0
    %2644 = vmatpush1.xpose.msra.mxu0 0.0
    %2645 = vmatprep.subr.mxu0 0.0
    %2646 = vmatpush1.xpose.msra.mxu0 0.0
    %2647 = vmatprep.subr.mxu0 0.0
    %2648 = vmatpush1.xpose.msra.mxu0 0.0
    %2649 = vmatprep.subr.mxu0 0.0
    %2650 = vmatpush1.xpose.msra.mxu0 0.0
    %2651 = vmatprep.subr.mxu0 0.0
    %2652 = vmatpush1.xpose.msra.mxu0 0.0
    %2653 = vmatprep.subr.mxu0 0.0
    %2654 = vmatpush1.xpose.msra.mxu0 0.0
    %2655 = vmatprep.subr.mxu0 0.0
    %2656 = vmatpush1.xpose.msra.mxu0 0.0
    %2657 = vmatprep.subr.mxu0 0.0
    %2658 = vmatpush1.xpose.msra.mxu0 0.0
    %2659 = vmatprep.subr.mxu0 0.0
    %2660 = vmatpush1.xpose.msra.mxu0 0.0
    %2661 = vmatprep.subr.mxu0 0.0
    %2662 = vmatpush1.xpose.msra.mxu0 0.0
    %2663 = vmatprep.subr.mxu0 0.0
    %2664 = vmatpush1.xpose.msra.mxu0 0.0
    %2665 = vmatprep.subr.mxu0 0.0
    %2666 = vmatpush1.xpose.msra.mxu0 0.0
    %2667 = vmatprep.subr.mxu0 0.0
    %2668 = vmatpush1.xpose.msra.mxu0 0.0
    %2669 = vmatprep.subr.mxu0 0.0
    %2670 = vmatpush1.xpose.msra.mxu0 0.0
    %2671 = vmatprep.subr.mxu0 0.0
    %2672 = vmatpush1.xpose.msra.mxu0 0.0
    %2673 = vmatprep.subr.mxu0 0.0
    %2674 = vmatpush1.xpose.msra.mxu0 0.0
    %2675 = vmatprep.subr.mxu0 0.0
    %2676 = vmatpush1.xpose.msra.mxu0 0.0
    %2677 = vmatprep.subr.mxu0 0.0
    %2678 = vmatpush1.xpose.msra.mxu0 0.0
    %2679 = vmatprep.subr.mxu0 0.0
    %2680 = vmatpush1.xpose.msra.mxu0 0.0
    %2681 = vmatprep.subr.mxu0 0.0
    %2682 = vmatpush1.xpose.msra.mxu0 0.0
    %2683 = vmatprep.subr.mxu0 0.0
    %2684 = vmatpush1.xpose.msra.mxu0 0.0
    %2685 = vmatprep.subr.mxu0 0.0
    %2686 = vmatpush1.xpose.msra.mxu0 0.0
    %2687 = vmatprep.subr.mxu0 0.0
    %2688 = vmatpush1.xpose.msra.mxu0 0.0
    %2689 = vmatprep.subr.mxu0 0.0
    %2690 = vmatpush1.xpose.msra.mxu0 0.0
    %2691 = vmatprep.subr.mxu0 0.0
    %2692 = vmatpush1.xpose.msra.mxu0 0.0
    %2693 = vmatprep.subr.mxu0 0.0
    %2694 = vmatpush1.xpose.msra.mxu0 0.0
    %2695 = vmatprep.subr.mxu0 0.0
    %2696 = vmatpush1.xpose.msra.mxu0 0.0
    %2697 = vmatprep.subr.mxu0 0.0
    %2698 = vmatpush1.xpose.msra.mxu0 0.0
    %2699 = vmatprep.mubr.f32.mxu0 0.0
    %2700 = vmatmul.mubr.f32.gmra.mrb[0].mxu0 %v2631
    %v2701 = vpop.f32.mrb[0].mxu0
    %v2702 = vadd.f32 0.0, %v2701
    %v2703 = vpop.f32.mrb[0].mxu0
    %2704 = vdwg.mxu0
    %v2705 = vsel %vm660, %v2702, -inf
    %2706 = vmax.xlane.f32.xlu0 %v2705
    %v2707 = vpop.xlane.xlu0 %2706
    %v2708 = vsub.f32 %v2702, %v2707
    %v2709 = vmul.f32 %v2708, 1.442695
    %v2710 = vpow.pop %v2709
    %v2711 = vsel %vm660, %v2710, 0.0
    %2712 = vadd.xlane.f32.xlu0 %v2711
    %v2713 = vpop.xlane.xlu0 %2712
    %v2714 = vrcp.pop %v2713
    %v2715 = vmul.f32 %v2710, %v2714
    %2716 = vrot.lane.b32.xlu0 %v2628, 64
    %v2717 = vpop.permute.xlu0 %2716
    %v2719 = vsel %vm674, %v2715, 0
    %v2721 = vsel %vm364, %v2717, 0
    %2723 = vmatprep.subr.mxu0 0.0
    %2724 = vmatpush1.msra.mxu0 %v2721
    %2725 = vmatprep.subr.mxu0 0.0
    %2726 = vmatpush1.msra.mxu0 0.0
    %2727 = vmatprep.subr.mxu0 0.0
    %2728 = vmatpush1.msra.mxu0 0.0
    %2729 = vmatprep.subr.mxu0 0.0
    %2730 = vmatpush1.msra.mxu0 0.0
    %2731 = vmatprep.subr.mxu0 0.0
    %2732 = vmatpush1.msra.mxu0 0.0
    %2733 = vmatprep.subr.mxu0 0.0
    %2734 = vmatpush1.msra.mxu0 0.0
    %2735 = vmatprep.subr.mxu0 0.0
    %2736 = vmatpush1.msra.mxu0 0.0
    %2737 = vmatprep.subr.mxu0 0.0
    %2738 = vmatpush1.msra.mxu0 0.0
    %2739 = vmatprep.subr.mxu0 0.0
    %2740 = vmatpush1.msra.mxu0 0.0
    %2741 = vmatprep.subr.mxu0 0.0
    %2742 = vmatpush1.msra.mxu0 0.0
    %2743 = vmatprep.subr.mxu0 0.0
    %2744 = vmatpush1.msra.mxu0 0.0
    %2745 = vmatprep.subr.mxu0 0.0
    %2746 = vmatpush1.msra.mxu0 0.0
    %2747 = vmatprep.subr.mxu0 0.0
    %2748 = vmatpush1.msra.mxu0 0.0
    %2749 = vmatprep.subr.mxu0 0.0
    %2750 = vmatpush1.msra.mxu0 0.0
    %2751 = vmatprep.subr.mxu0 0.0
    %2752 = vmatpush1.msra.mxu0 0.0
    %2753 = vmatprep.subr.mxu0 0.0
    %2754 = vmatpush1.msra.mxu0 0.0
    %2755 = vmatprep.subr.mxu0 0.0
    %2756 = vmatpush1.msra.mxu0 0.0
    %2757 = vmatprep.subr.mxu0 0.0
    %2758 = vmatpush1.msra.mxu0 0.0
    %2759 = vmatprep.subr.mxu0 0.0
    %2760 = vmatpush1.msra.mxu0 0.0
    %2761 = vmatprep.subr.mxu0 0.0
    %2762 = vmatpush1.msra.mxu0 0.0
    %2763 = vmatprep.subr.mxu0 0.0
    %2764 = vmatpush1.msra.mxu0 0.0
    %2765 = vmatprep.subr.mxu0 0.0
    %2766 = vmatpush1.msra.mxu0 0.0
    %2767 = vmatprep.subr.mxu0 0.0
    %2768 = vmatpush1.msra.mxu0 0.0
    %2769 = vmatprep.subr.mxu0 0.0
    %2770 = vmatpush1.msra.mxu0 0.0
    %2771 = vmatprep.subr.mxu0 0.0
    %2772 = vmatpush1.msra.mxu0 0.0
    %2773 = vmatprep.subr.mxu0 0.0
    %2774 = vmatpush1.msra.mxu0 0.0
    %2775 = vmatprep.subr.mxu0 0.0
    %2776 = vmatpush1.msra.mxu0 0.0
    %2777 = vmatprep.subr.mxu0 0.0
    %2778 = vmatpush1.msra.mxu0 0.0
    %2779 = vmatprep.subr.mxu0 0.0
    %2780 = vmatpush1.msra.mxu0 0.0
    %2781 = vmatprep.subr.mxu0 0.0
    %2782 = vmatpush1.msra.mxu0 0.0
    %2783 = vmatprep.subr.mxu0 0.0
    %2784 = vmatpush1.msra.mxu0 0.0
    %2785 = vmatprep.subr.mxu0 0.0
    %2786 = vmatpush1.msra.mxu0 0.0
    %2787 = vmatprep.mubr.f32.mxu0 0.0
    %2788 = vmatmul.mubr.f32.gmra.mrb[0].mxu0 %v2719
    %v2789 = vpop.f32.mrb[0].mxu0
    %v2790 = vadd.f32 0.0, %v2789
    %v2791 = vpop.f32.mrb[0].mxu0
    %2792 = vdwg.mxu0
    %2793 = vrot.lane.b32.xlu0 %v2628, 120
    %v2794 = vpop.permute.xlu0 %2793
    %2795 = vrot.lane.b32.xlu0 %v2628, 88
    %v2796 = vpop.permute.xlu0 %2795
    %v2797 = vsel %vm585, %v2794, 0
    %v2799 = vsel %vm585, %v2796, 0
    %2801 = vmatprep.subr.mxu0 0.0
    %2802 = vmatpush1.xpose.msra.mxu0 %v2799
    %2803 = vmatprep.subr.mxu0 0.0
    %2804 = vmatpush1.xpose.msra.mxu0 0.0
    %2805 = vmatprep.subr.mxu0 0.0
    %2806 = vmatpush1.xpose.msra.mxu0 0.0
    %2807 = vmatprep.subr.mxu0 0.0
    %2808 = vmatpush1.xpose.msra.mxu0 0.0
    %2809 = vmatprep.subr.mxu0 0.0
    %2810 = vmatpush1.xpose.msra.mxu0 0.0
    %2811 = vmatprep.subr.mxu0 0.0
    %2812 = vmatpush1.xpose.msra.mxu0 0.0
    %2813 = vmatprep.subr.mxu0 0.0
    %2814 = vmatpush1.xpose.msra.mxu0 0.0
    %2815 = vmatprep.subr.mxu0 0.0
    %2816 = vmatpush1.xpose.msra.mxu0 0.0
    %2817 = vmatprep.subr.mxu0 0.0
    %2818 = vmatpush1.xpose.msra.mxu0 0.0
    %2819 = vmatprep.subr.mxu0 0.0
    %2820 = vmatpush1.xpose.msra.mxu0 0.0
    %2821 = vmatprep.subr.mxu0 0.0
    %2822 = vmatpush1.xpose.msra.mxu0 0.0
    %2823 = vmatprep.subr.mxu0 0.0
    %2824 = vmatpush1.xpose.msra.mxu0 0.0
    %2825 = vmatprep.subr.mxu0 0.0
    %2826 = vmatpush1.xpose.msra.mxu0 0.0
    %2827 = vmatprep.subr.mxu0 0.0
    %2828 = vmatpush1.xpose.msra.mxu0 0.0
    %2829 = vmatprep.subr.mxu0 0.0
    %2830 = vmatpush1.xpose.msra.mxu0 0.0
    %2831 = vmatprep.subr.mxu0 0.0
    %2832 = vmatpush1.xpose.msra.mxu0 0.0
    %2833 = vmatprep.subr.mxu0 0.0
    %2834 = vmatpush1.xpose.msra.mxu0 0.0
    %2835 = vmatprep.subr.mxu0 0.0
    %2836 = vmatpush1.xpose.msra.mxu0 0.0
    %2837 = vmatprep.subr.mxu0 0.0
    %2838 = vmatpush1.xpose.msra.mxu0 0.0
    %2839 = vmatprep.subr.mxu0 0.0
    %2840 = vmatpush1.xpose.msra.mxu0 0.0
    %2841 = vmatprep.subr.mxu0 0.0
    %2842 = vmatpush1.xpose.msra.mxu0 0.0
    %2843 = vmatprep.subr.mxu0 0.0
    %2844 = vmatpush1.xpose.msra.mxu0 0.0
    %2845 = vmatprep.subr.mxu0 0.0
    %2846 = vmatpush1.xpose.msra.mxu0 0.0
    %2847 = vmatprep.subr.mxu0 0.0
    %2848 = vmatpush1.xpose.msra.mxu0 0.0
    %2849 = vmatprep.subr.mxu0 0.0
    %2850 = vmatpush1.xpose.msra.mxu0 0.0
    %2851 = vmatprep.subr.mxu0 0.0
    %2852 = vmatpush1.xpose.msra.mxu0 0.0
    %2853 = vmatprep.subr.mxu0 0.0
    %2854 = vmatpush1.xpose.msra.mxu0 0.0
    %2855 = vmatprep.subr.mxu0 0.0
    %2856 = vmatpush1.xpose.msra.mxu0 0.0
    %2857 = vmatprep.subr.mxu0 0.0
    %2858 = vmatpush1.xpose.msra.mxu0 0.0
    %2859 = vmatprep.subr.mxu0 0.0
    %2860 = vmatpush1.xpose.msra.mxu0 0.0
    %2861 = vmatprep.subr.mxu0 0.0
    %2862 = vmatpush1.xpose.msra.mxu0 0.0
    %2863 = vmatprep.subr.mxu0 0.0
    %2864 = vmatpush1.xpose.msra.mxu0 0.0
    %2865 = vmatprep.mubr.f32.mxu0 0.0
    %2866 = vmatmul.mubr.f32.gmra.mrb[0].mxu0 %v2797
    %v2867 = vpop.f32.mrb[0].mxu0
    %v2868 = vadd.f32 0.0, %v2867
    %v2869 = vpop.f32.mrb[0].mxu0
    %2870 = vdwg.mxu0
    %v2871 = vsel %vm660, %v2868, -inf
    %2872 = vmax.xlane.f32.xlu0 %v2871
    %v2873 = vpop.xlane.xlu0 %2872
    %v2874 = vsub.f32 %v2868, %v2873
    %v2875 = vmul.f32 %v2874, 1.442695
    %v2876 = vpow.pop %v2875
    %v2877 = vsel %vm660, %v2876, 0.0
    %2878 = vadd.xlane.f32.xlu0 %v2877
    %v2879 = vpop.xlane.xlu0 %2878
    %v2880 = vrcp.pop %v2879
    %v2881 = vmul.f32 %v2876, %v2880
    %2882 = vrot.lane.b32.xlu0 %v2628, 56
    %v2883 = vpop.permute.xlu0 %2882
    %v2885 = vsel %vm674, %v2881, 0
    %v2887 = vsel %vm364, %v2883, 0
    %2889 = vmatprep.subr.mxu0 0.0
    %2890 = vmatpush1.msra.mxu0 %v2887
    %2891 = vmatprep.subr.mxu0 0.0
    %2892 = vmatpush1.msra.mxu0 0.0
    %2893 = vmatprep.subr.mxu0 0.0
    %2894 = vmatpush1.msra.mxu0 0.0
    %2895 = vmatprep.subr.mxu0 0.0
    %2896 = vmatpush1.msra.mxu0 0.0
    %2897 = vmatprep.subr.mxu0 0.0
    %2898 = vmatpush1.msra.mxu0 0.0
    %2899 = vmatprep.subr.mxu0 0.0
    %2900 = vmatpush1.msra.mxu0 0.0
    %2901 = vmatprep.subr.mxu0 0.0
    %2902 = vmatpush1.msra.mxu0 0.0
    %2903 = vmatprep.subr.mxu0 0.0
    %2904 = vmatpush1.msra.mxu0 0.0
    %2905 = vmatprep.subr.mxu0 0.0
    %2906 = vmatpush1.msra.mxu0 0.0
    %2907 = vmatprep.subr.mxu0 0.0
    %2908 = vmatpush1.msra.mxu0 0.0
    %2909 = vmatprep.subr.mxu0 0.0
    %2910 = vmatpush1.msra.mxu0 0.0
    %2911 = vmatprep.subr.mxu0 0.0
    %2912 = vmatpush1.msra.mxu0 0.0
    %2913 = vmatprep.subr.mxu0 0.0
    %2914 = vmatpush1.msra.mxu0 0.0
    %2915 = vmatprep.subr.mxu0 0.0
    %2916 = vmatpush1.msra.mxu0 0.0
    %2917 = vmatprep.subr.mxu0 0.0
    %2918 = vmatpush1.msra.mxu0 0.0
    %2919 = vmatprep.subr.mxu0 0.0
    %2920 = vmatpush1.msra.mxu0 0.0
    %2921 = vmatprep.subr.mxu0 0.0
    %2922 = vmatpush1.msra.mxu0 0.0
    %2923 = vmatprep.subr.mxu0 0.0
    %2924 = vmatpush1.msra.mxu0 0.0
    %2925 = vmatprep.subr.mxu0 0.0
    %2926 = vmatpush1.msra.mxu0 0.0
    %2927 = vmatprep.subr.mxu0 0.0
    %2928 = vmatpush1.msra.mxu0 0.0
    %2929 = vmatprep.subr.mxu0 0.0
    %2930 = vmatpush1.msra.mxu0 0.0
    %2931 = vmatprep.subr.mxu0 0.0
    %2932 = vmatpush1.msra.mxu0 0.0
    %2933 = vmatprep.subr.mxu0 0.0
    %2934 = vmatpush1.msra.mxu0 0.0
    %2935 = vmatprep.subr.mxu0 0.0
    %2936 = vmatpush1.msra.mxu0 0.0
    %2937 = vmatprep.subr.mxu0 0.0
    %2938 = vmatpush1.msra.mxu0 0.0
    %2939 = vmatprep.subr.mxu0 0.0
    %2940 = vmatpush1.msra.mxu0 0.0
    %2941 = vmatprep.subr.mxu0 0.0
    %2942 = vmatpush1.msra.mxu0 0.0
    %2943 = vmatprep.subr.mxu0 0.0
    %2944 = vmatpush1.msra.mxu0 0.0
    %2945 = vmatprep.subr.mxu0 0.0
    %2946 = vmatpush1.msra.mxu0 0.0
    %2947 = vmatprep.subr.mxu0 0.0
    %2948 = vmatpush1.msra.mxu0 0.0
    %2949 = vmatprep.subr.mxu0 0.0
    %2950 = vmatpush1.msra.mxu0 0.0
    %2951 = vmatprep.subr.mxu0 0.0
    %2952 = vmatpush1.msra.mxu0 0.0
    %2953 = vmatprep.mubr.f32.mxu0 0.0
    %2954 = vmatmul.mubr.f32.gmra.mrb[0].mxu0 %v2885
    %v2955 = vpop.f32.mrb[0].mxu0
    %v2956 = vadd.f32 0.0, %v2955
    %v2957 = vpop.f32.mrb[0].mxu0
    %2958 = vdwg.mxu0
    %2959 = vrot.lane.b32.xlu0 %v2628, 112
    %v2960 = vpop.permute.xlu0 %2959
    %2961 = vrot.lane.b32.xlu0 %v2628, 80
    %v2962 = vpop.permute.xlu0 %2961
    %v2963 = vsel %vm585, %v2960, 0
    %v2965 = vsel %vm585, %v2962, 0
    %2967 = vmatprep.subr.mxu0 0.0
    %2968 = vmatpush1.xpose.msra.mxu0 %v2965
    %2969 = vmatprep.subr.mxu0 0.0
    %2970 = vmatpush1.xpose.msra.mxu0 0.0
    %2971 = vmatprep.subr.mxu0 0.0
    %2972 = vmatpush1.xpose.msra.mxu0 0.0
    %2973 = vmatprep.subr.mxu0 0.0
    %2974 = vmatpush1.xpose.msra.mxu0 0.0
    %2975 = vmatprep.subr.mxu0 0.0
    %2976 = vmatpush1.xpose.msra.mxu0 0.0
    %2977 = vmatprep.subr.mxu0 0.0
    %2978 = vmatpush1.xpose.msra.mxu0 0.0
    %2979 = vmatprep.subr.mxu0 0.0
    %2980 = vmatpush1.xpose.msra.mxu0 0.0
    %2981 = vmatprep.subr.mxu0 0.0
    %2982 = vmatpush1.xpose.msra.mxu0 0.0
    %2983 = vmatprep.subr.mxu0 0.0
    %2984 = vmatpush1.xpose.msra.mxu0 0.0
    %2985 = vmatprep.subr.mxu0 0.0
    %2986 = vmatpush1.xpose.msra.mxu0 0.0
    %2987 = vmatprep.subr.mxu0 0.0
    %2988 = vmatpush1.xpose.msra.mxu0 0.0
    %2989 = vmatprep.subr.mxu0 0.0
    %2990 = vmatpush1.xpose.msra.mxu0 0.0
    %2991 = vmatprep.subr.mxu0 0.0
    %2992 = vmatpush1.xpose.msra.mxu0 0.0
    %2993 = vmatprep.subr.mxu0 0.0
    %2994 = vmatpush1.xpose.msra.mxu0 0.0
    %2995 = vmatprep.subr.mxu0 0.0
    %2996 = vmatpush1.xpose.msra.mxu0 0.0
    %2997 = vmatprep.subr.mxu0 0.0
    %2998 = vmatpush1.xpose.msra.mxu0 0.0
    %2999 = vmatprep.subr.mxu0 0.0
    %3000 = vmatpush1.xpose.msra.mxu0 0.0
    %3001 = vmatprep.subr.mxu0 0.0
    %3002 = vmatpush1.xpose.msra.mxu0 0.0
    %3003 = vmatprep.subr.mxu0 0.0
    %3004 = vmatpush1.xpose.msra.mxu0 0.0
    %3005 = vmatprep.subr.mxu0 0.0
    %3006 = vmatpush1.xpose.msra.mxu0 0.0
    %3007 = vmatprep.subr.mxu0 0.0
    %3008 = vmatpush1.xpose.msra.mxu0 0.0
    %3009 = vmatprep.subr.mxu0 0.0
    %3010 = vmatpush1.xpose.msra.mxu0 0.0
    %3011 = vmatprep.subr.mxu0 0.0
    %3012 = vmatpush1.xpose.msra.mxu0 0.0
    %3013 = vmatprep.subr.mxu0 0.0
    %3014 = vmatpush1.xpose.msra.mxu0 0.0
    %3015 = vmatprep.subr.mxu0 0.0
    %3016 = vmatpush1.xpose.msra.mxu0 0.0
    %3017 = vmatprep.subr.mxu0 0.0
    %3018 = vmatpush1.xpose.msra.mxu0 0.0
    %3019 = vmatprep.subr.mxu0 0.0
    %3020 = vmatpush1.xpose.msra.mxu0 0.0
    %3021 = vmatprep.subr.mxu0 0.0
    %3022 = vmatpush1.xpose.msra.mxu0 0.0
    %3023 = vmatprep.subr.mxu0 0.0
    %3024 = vmatpush1.xpose.msra.mxu0 0.0
    %3025 = vmatprep.subr.mxu0 0.0
    %3026 = vmatpush1.xpose.msra.mxu0 0.0
    %3027 = vmatprep.subr.mxu0 0.0
    %3028 = vmatpush1.xpose.msra.mxu0 0.0
    %3029 = vmatprep.subr.mxu0 0.0
    %3030 = vmatpush1.xpose.msra.mxu0 0.0
    %3031 = vmatprep.mubr.f32.mxu0 0.0
    %3032 = vmatmul.mubr.f32.gmra.mrb[0].mxu0 %v2963
    %v3033 = vpop.f32.mrb[0].mxu0
    %v3034 = vadd.f32 0.0, %v3033
    %v3035 = vpop.f32.mrb[0].mxu0
    %3036 = vdwg.mxu0
    %v3037 = vsel %vm660, %v3034, -inf
    %3038 = vmax.xlane.f32.xlu0 %v3037
    %v3039 = vpop.xlane.xlu0 %3038
    %v3040 = vsub.f32 %v3034, %v3039
    %v3041 = vmul.f32 %v3040, 1.442695
    %v3042 = vpow.pop %v3041
    %v3043 = vsel %vm660, %v3042, 0.0
    %3044 = vadd.xlane.f32.xlu0 %v3043
    %v3045 = vpop.xlane.xlu0 %3044
    %v3046 = vrcp.pop %v3045
    %v3047 = vmul.f32 %v3042, %v3046
    %3048 = vrot.lane.b32.xlu0 %v2628, 48
    %v3049 = vpop.permute.xlu0 %3048
    %v3051 = vsel %vm674, %v3047, 0
    %v3053 = vsel %vm364, %v3049, 0
    %3055 = vmatprep.subr.mxu0 0.0
    %3056 = vmatpush1.msra.mxu0 %v3053
    %3057 = vmatprep.subr.mxu0 0.0
    %3058 = vmatpush1.msra.mxu0 0.0
    %3059 = vmatprep.subr.mxu0 0.0
    %3060 = vmatpush1.msra.mxu0 0.0
    %3061 = vmatprep.subr.mxu0 0.0
    %3062 = vmatpush1.msra.mxu0 0.0
    %3063 = vmatprep.subr.mxu0 0.0
    %3064 = vmatpush1.msra.mxu0 0.0
    %3065 = vmatprep.subr.mxu0 0.0
    %3066 = vmatpush1.msra.mxu0 0.0
    %3067 = vmatprep.subr.mxu0 0.0
    %3068 = vmatpush1.msra.mxu0 0.0
    %3069 = vmatprep.subr.mxu0 0.0
    %3070 = vmatpush1.msra.mxu0 0.0
    %3071 = vmatprep.subr.mxu0 0.0
    %3072 = vmatpush1.msra.mxu0 0.0
    %3073 = vmatprep.subr.mxu0 0.0
    %3074 = vmatpush1.msra.mxu0 0.0
    %3075 = vmatprep.subr.mxu0 0.0
    %3076 = vmatpush1.msra.mxu0 0.0
    %3077 = vmatprep.subr.mxu0 0.0
    %3078 = vmatpush1.msra.mxu0 0.0
    %3079 = vmatprep.subr.mxu0 0.0
    %3080 = vmatpush1.msra.mxu0 0.0
    %3081 = vmatprep.subr.mxu0 0.0
    %3082 = vmatpush1.msra.mxu0 0.0
    %3083 = vmatprep.subr.mxu0 0.0
    %3084 = vmatpush1.msra.mxu0 0.0
    %3085 = vmatprep.subr.mxu0 0.0
    %3086 = vmatpush1.msra.mxu0 0.0
    %3087 = vmatprep.subr.mxu0 0.0
    %3088 = vmatpush1.msra.mxu0 0.0
    %3089 = vmatprep.subr.mxu0 0.0
    %3090 = vmatpush1.msra.mxu0 0.0
    %3091 = vmatprep.subr.mxu0 0.0
    %3092 = vmatpush1.msra.mxu0 0.0
    %3093 = vmatprep.subr.mxu0 0.0
    %3094 = vmatpush1.msra.mxu0 0.0
    %3095 = vmatprep.subr.mxu0 0.0
    %3096 = vmatpush1.msra.mxu0 0.0
    %3097 = vmatprep.subr.mxu0 0.0
    %3098 = vmatpush1.msra.mxu0 0.0
    %3099 = vmatprep.subr.mxu0 0.0
    %3100 = vmatpush1.msra.mxu0 0.0
    %3101 = vmatprep.subr.mxu0 0.0
    %3102 = vmatpush1.msra.mxu0 0.0
    %3103 = vmatprep.subr.mxu0 0.0
    %3104 = vmatpush1.msra.mxu0 0.0
    %3105 = vmatprep.subr.mxu0 0.0
    %3106 = vmatpush1.msra.mxu0 0.0
    %3107 = vmatprep.subr.mxu0 0.0
    %3108 = vmatpush1.msra.mxu0 0.0
    %3109 = vmatprep.subr.mxu0 0.0
    %3110 = vmatpush1.msra.mxu0 0.0
    %3111 = vmatprep.subr.mxu0 0.0
    %3112 = vmatpush1.msra.mxu0 0.0
    %3113 = vmatprep.subr.mxu0 0.0
    %3114 = vmatpush1.msra.mxu0 0.0
    %3115 = vmatprep.subr.mxu0 0.0
    %3116 = vmatpush1.msra.mxu0 0.0
    %3117 = vmatprep.subr.mxu0 0.0
    %3118 = vmatpush1.msra.mxu0 0.0
    %3119 = vmatprep.mubr.f32.mxu0 0.0
    %3120 = vmatmul.mubr.f32.gmra.mrb[0].mxu0 %v3051
    %v3121 = vpop.f32.mrb[0].mxu0
    %v3122 = vadd.f32 0.0, %v3121
    %v3123 = vpop.f32.mrb[0].mxu0
    %3124 = vdwg.mxu0
    %3125 = vrot.lane.b32.xlu0 %v2628, 104
    %v3126 = vpop.permute.xlu0 %3125
    %3127 = vrot.lane.b32.xlu0 %v2628, 72
    %v3128 = vpop.permute.xlu0 %3127
    %v3129 = vsel %vm585, %v3126, 0
    %v3131 = vsel %vm585, %v3128, 0
    %3133 = vmatprep.subr.mxu0 0.0
    %3134 = vmatpush1.xpose.msra.mxu0 %v3131
    %3135 = vmatprep.subr.mxu0 0.0
    %3136 = vmatpush1.xpose.msra.mxu0 0.0
    %3137 = vmatprep.subr.mxu0 0.0
    %3138 = vmatpush1.xpose.msra.mxu0 0.0
    %3139 = vmatprep.subr.mxu0 0.0
    %3140 = vmatpush1.xpose.msra.mxu0 0.0
    %3141 = vmatprep.subr.mxu0 0.0
    %3142 = vmatpush1.xpose.msra.mxu0 0.0
    %3143 = vmatprep.subr.mxu0 0.0
    %3144 = vmatpush1.xpose.msra.mxu0 0.0
    %3145 = vmatprep.subr.mxu0 0.0
    %3146 = vmatpush1.xpose.msra.mxu0 0.0
    %3147 = vmatprep.subr.mxu0 0.0
    %3148 = vmatpush1.xpose.msra.mxu0 0.0
    %3149 = vmatprep.subr.mxu0 0.0
    %3150 = vmatpush1.xpose.msra.mxu0 0.0
    %3151 = vmatprep.subr.mxu0 0.0
    %3152 = vmatpush1.xpose.msra.mxu0 0.0
    %3153 = vmatprep.subr.mxu0 0.0
    %3154 = vmatpush1.xpose.msra.mxu0 0.0
    %3155 = vmatprep.subr.mxu0 0.0
    %3156 = vmatpush1.xpose.msra.mxu0 0.0
    %3157 = vmatprep.subr.mxu0 0.0
    %3158 = vmatpush1.xpose.msra.mxu0 0.0
    %3159 = vmatprep.subr.mxu0 0.0
    %3160 = vmatpush1.xpose.msra.mxu0 0.0
    %3161 = vmatprep.subr.mxu0 0.0
    %3162 = vmatpush1.xpose.msra.mxu0 0.0
    %3163 = vmatprep.subr.mxu0 0.0
    %3164 = vmatpush1.xpose.msra.mxu0 0.0
    %3165 = vmatprep.subr.mxu0 0.0
    %3166 = vmatpush1.xpose.msra.mxu0 0.0
    %3167 = vmatprep.subr.mxu0 0.0
    %3168 = vmatpush1.xpose.msra.mxu0 0.0
    %3169 = vmatprep.subr.mxu0 0.0
    %3170 = vmatpush1.xpose.msra.mxu0 0.0
    %3171 = vmatprep.subr.mxu0 0.0
    %3172 = vmatpush1.xpose.msra.mxu0 0.0
    %3173 = vmatprep.subr.mxu0 0.0
    %3174 = vmatpush1.xpose.msra.mxu0 0.0
    %3175 = vmatprep.subr.mxu0 0.0
    %3176 = vmatpush1.xpose.msra.mxu0 0.0
    %3177 = vmatprep.subr.mxu0 0.0
    %3178 = vmatpush1.xpose.msra.mxu0 0.0
    %3179 = vmatprep.subr.mxu0 0.0
    %3180 = vmatpush1.xpose.msra.mxu0 0.0
    %3181 = vmatprep.subr.mxu0 0.0
    %3182 = vmatpush1.xpose.msra.mxu0 0.0
    %3183 = vmatprep.subr.mxu0 0.0
    %3184 = vmatpush1.xpose.msra.mxu0 0.0
    %3185 = vmatprep.subr.mxu0 0.0
    %3186 = vmatpush1.xpose.msra.mxu0 0.0
    %3187 = vmatprep.subr.mxu0 0.0
    %3188 = vmatpush1.xpose.msra.mxu0 0.0
    %3189 = vmatprep.subr.mxu0 0.0
    %3190 = vmatpush1.xpose.msra.mxu0 0.0
    %3191 = vmatprep.subr.mxu0 0.0
    %3192 = vmatpush1.xpose.msra.mxu0 0.0
    %3193 = vmatprep.subr.mxu0 0.0
    %3194 = vmatpush1.xpose.msra.mxu0 0.0
    %3195 = vmatprep.subr.mxu0 0.0
    %3196 = vmatpush1.xpose.msra.mxu0 0.0
    %3197 = vmatprep.mubr.f32.mxu0 0.0
    %3198 = vmatmul.mubr.f32.gmra.mrb[0].mxu0 %v3129
    %v3199 = vpop.f32.mrb[0].mxu0
    %v3200 = vadd.f32 0.0, %v3199
    %v3201 = vpop.f32.mrb[0].mxu0
    %3202 = vdwg.mxu0
    %v3203 = vsel %vm660, %v3200, -inf
    %3204 = vmax.xlane.f32.xlu0 %v3203
    %v3205 = vpop.xlane.xlu0 %3204
    %v3206 = vsub.f32 %v3200, %v3205
    %v3207 = vmul.f32 %v3206, 1.442695
    %v3208 = vpow.pop %v3207
    %v3209 = vsel %vm660, %v3208, 0.0
    %3210 = vadd.xlane.f32.xlu0 %v3209
    %v3211 = vpop.xlane.xlu0 %3210
    %v3212 = vrcp.pop %v3211
    %v3213 = vmul.f32 %v3208, %v3212
    %3214 = vrot.lane.b32.xlu0 %v2628, 40
    %v3215 = vpop.permute.xlu0 %3214
    %v3217 = vsel %vm674, %v3213, 0
    %v3219 = vsel %vm364, %v3215, 0
    %3221 = vmatprep.subr.mxu0 0.0
    %3222 = vmatpush1.msra.mxu0 %v3219
    %3223 = vmatprep.subr.mxu0 0.0
    %3224 = vmatpush1.msra.mxu0 0.0
    %3225 = vmatprep.subr.mxu0 0.0
    %3226 = vmatpush1.msra.mxu0 0.0
    %3227 = vmatprep.subr.mxu0 0.0
    %3228 = vmatpush1.msra.mxu0 0.0
    %3229 = vmatprep.subr.mxu0 0.0
    %3230 = vmatpush1.msra.mxu0 0.0
    %3231 = vmatprep.subr.mxu0 0.0
    %3232 = vmatpush1.msra.mxu0 0.0
    %3233 = vmatprep.subr.mxu0 0.0
    %3234 = vmatpush1.msra.mxu0 0.0
    %3235 = vmatprep.subr.mxu0 0.0
    %3236 = vmatpush1.msra.mxu0 0.0
    %3237 = vmatprep.subr.mxu0 0.0
    %3238 = vmatpush1.msra.mxu0 0.0
    %3239 = vmatprep.subr.mxu0 0.0
    %3240 = vmatpush1.msra.mxu0 0.0
    %3241 = vmatprep.subr.mxu0 0.0
    %3242 = vmatpush1.msra.mxu0 0.0
    %3243 = vmatprep.subr.mxu0 0.0
    %3244 = vmatpush1.msra.mxu0 0.0
    %3245 = vmatprep.subr.mxu0 0.0
    %3246 = vmatpush1.msra.mxu0 0.0
    %3247 = vmatprep.subr.mxu0 0.0
    %3248 = vmatpush1.msra.mxu0 0.0
    %3249 = vmatprep.subr.mxu0 0.0
    %3250 = vmatpush1.msra.mxu0 0.0
    %3251 = vmatprep.subr.mxu0 0.0
    %3252 = vmatpush1.msra.mxu0 0.0
    %3253 = vmatprep.subr.mxu0 0.0
    %3254 = vmatpush1.msra.mxu0 0.0
    %3255 = vmatprep.subr.mxu0 0.0
    %3256 = vmatpush1.msra.mxu0 0.0
    %3257 = vmatprep.subr.mxu0 0.0
    %3258 = vmatpush1.msra.mxu0 0.0
    %3259 = vmatprep.subr.mxu0 0.0
    %3260 = vmatpush1.msra.mxu0 0.0
    %3261 = vmatprep.subr.mxu0 0.0
    %3262 = vmatpush1.msra.mxu0 0.0
    %3263 = vmatprep.subr.mxu0 0.0
    %3264 = vmatpush1.msra.mxu0 0.0
    %3265 = vmatprep.subr.mxu0 0.0
    %3266 = vmatpush1.msra.mxu0 0.0
    %3267 = vmatprep.subr.mxu0 0.0
    %3268 = vmatpush1.msra.mxu0 0.0
    %3269 = vmatprep.subr.mxu0 0.0
    %3270 = vmatpush1.msra.mxu0 0.0
    %3271 = vmatprep.subr.mxu0 0.0
    %3272 = vmatpush1.msra.mxu0 0.0
    %3273 = vmatprep.subr.mxu0 0.0
    %3274 = vmatpush1.msra.mxu0 0.0
    %3275 = vmatprep.subr.mxu0 0.0
    %3276 = vmatpush1.msra.mxu0 0.0
    %3277 = vmatprep.subr.mxu0 0.0
    %3278 = vmatpush1.msra.mxu0 0.0
    %3279 = vmatprep.subr.mxu0 0.0
    %3280 = vmatpush1.msra.mxu0 0.0
    %3281 = vmatprep.subr.mxu0 0.0
    %3282 = vmatpush1.msra.mxu0 0.0
    %3283 = vmatprep.subr.mxu0 0.0
    %3284 = vmatpush1.msra.mxu0 0.0
    %3285 = vmatprep.mubr.f32.mxu0 0.0
    %3286 = vmatmul.mubr.f32.gmra.mrb[0].mxu0 %v3217
    %v3287 = vpop.f32.mrb[0].mxu0
    %v3288 = vadd.f32 0.0, %v3287
    %v3289 = vpop.f32.mrb[0].mxu0
    %3290 = vdwg.mxu0
    %3292 = vrot.lane.b32.xlu0 %v2956, 8
    %v3293 = vpop.permute.xlu0 %3292
    %3296 = vrot.lane.b32.xlu0 %v3122, 16
    %v3297 = vpop.permute.xlu0 %3296
    %3300 = vrot.lane.b32.xlu0 %v3288, 24
    %v3301 = vpop.permute.xlu0 %3300
    %v3303 = vsel %vm585, %v2790, %v3293
    %v3304 = vsel %vm1261, %v3303, %v3297
    %v3305 = vsel %vm1263, %v3304, %v3301
    %v3307 = vrot.slane %v1946, 3
    %v3310 = vrot.slane %v2624, 6
    %v3313 = vrot.slane %v3305, 1
    %v3315 = vsel %vm364, %v1264, %v3307
    %v3316 = vsel %vm366, %v3307, %v3310
    %v3317 = vsel %vm368, %v3316, %v3313
    %v3319 = vlaneseq
    %v3320 = vshrl.u32 %v3319, 7
    %v3321 = vsub.s32 0, %v3320
    %v3322 = vrot.slane %v186, %v3321
    %v3325 = vsel %vm370, %v3315, 0
    %v3328 = vsel %vm370, %v3317, 0
    %v3330 = vsel %vm370, %v3313, 0
    %3332 = vmatprep.subr.mxu0 0.0
    %3333 = vmatpush1.msra.mxu0 %v182
    %3334 = vmatprep.subr.mxu0 0.0
    %3335 = vmatpush1.msra.mxu0 %v183
    %3336 = vmatprep.subr.mxu0 0.0
    %3337 = vmatpush1.msra.mxu0 %v184
    %3338 = vmatprep.subr.mxu0 0.0
    %3339 = vmatpush1.msra.mxu0 %v185
    %3340 = vmatprep.subr.mxu0 0.0
    %3341 = vmatpush1.msra.mxu0 0.0
    %3342 = vmatprep.subr.mxu0 0.0
    %3343 = vmatpush1.msra.mxu0 0.0
    %3344 = vmatprep.subr.mxu0 0.0
    %3345 = vmatpush1.msra.mxu0 0.0
    %3346 = vmatprep.subr.mxu0 0.0
    %3347 = vmatpush1.msra.mxu0 0.0
    %3348 = vmatprep.subr.mxu0 0.0
    %3349 = vmatpush1.msra.mxu0 0.0
    %3350 = vmatprep.subr.mxu0 0.0
    %3351 = vmatpush1.msra.mxu0 0.0
    %3352 = vmatprep.subr.mxu0 0.0
    %3353 = vmatpush1.msra.mxu0 0.0
    %3354 = vmatprep.subr.mxu0 0.0
    %3355 = vmatpush1.msra.mxu0 0.0
    %3356 = vmatprep.subr.mxu0 0.0
    %3357 = vmatpush1.msra.mxu0 0.0
    %3358 = vmatprep.subr.mxu0 0.0
    %3359 = vmatpush1.msra.mxu0 0.0
    %3360 = vmatprep.subr.mxu0 0.0
    %3361 = vmatpush1.msra.mxu0 0.0
    %3362 = vmatprep.subr.mxu0 0.0
    %3363 = vmatpush1.msra.mxu0 0.0
    %3364 = vmatprep.subr.mxu0 0.0
    %3365 = vmatpush1.msra.mxu0 0.0
    %3366 = vmatprep.subr.mxu0 0.0
    %3367 = vmatpush1.msra.mxu0 0.0
    %3368 = vmatprep.subr.mxu0 0.0
    %3369 = vmatpush1.msra.mxu0 0.0
    %3370 = vmatprep.subr.mxu0 0.0
    %3371 = vmatpush1.msra.mxu0 0.0
    %3372 = vmatprep.subr.mxu0 0.0
    %3373 = vmatpush1.msra.mxu0 0.0
    %3374 = vmatprep.subr.mxu0 0.0
    %3375 = vmatpush1.msra.mxu0 0.0
    %3376 = vmatprep.subr.mxu0 0.0
    %3377 = vmatpush1.msra.mxu0 0.0
    %3378 = vmatprep.subr.mxu0 0.0
    %3379 = vmatpush1.msra.mxu0 0.0
    %3380 = vmatprep.subr.mxu0 0.0
    %3381 = vmatpush1.msra.mxu0 0.0
    %3382 = vmatprep.subr.mxu0 0.0
    %3383 = vmatpush1.msra.mxu0 0.0
    %3384 = vmatprep.subr.mxu0 0.0
    %3385 = vmatpush1.msra.mxu0 0.0
    %3386 = vmatprep.subr.mxu0 0.0
    %3387 = vmatpush1.msra.mxu0 0.0
    %3388 = vmatprep.subr.mxu0 0.0
    %3389 = vmatpush1.msra.mxu0 0.0
    %3390 = vmatprep.subr.mxu0 0.0
    %3391 = vmatpush1.msra.mxu0 0.0
    %3392 = vmatprep.subr.mxu0 0.0
    %3393 = vmatpush1.msra.mxu0 0.0
    %3394 = vmatprep.subr.mxu0 0.0
    %3395 = vmatpush1.msra.mxu0 0.0
    %3396 = vmatprep.mubr.f32.mxu0 0.0
    %3397 = vmatmul.mubr.f32.gmra.mrb[0].mxu0 %v3325
    %v3398 = vpop.f32.mrb[0].mxu0
    %v3399 = vadd.f32 %v3322, %v3398
    %v3400 = vpop.f32.mrb[0].mxu0
    %3401 = vmatprep.mubr.f32.mxu0 0.0
    %3402 = vmatmul.mubr.f32.gmra.mrb[0].mxu0 %v3328
    %v3403 = vpop.f32.mrb[0].mxu0
    %v3404 = vadd.f32 %v3322, %v3403
    %v3405 = vpop.f32.mrb[0].mxu0
    %3406 = vmatprep.mubr.f32.mxu0 0.0
    %3407 = vmatmul.mubr.f32.gmra.mrb[0].mxu0 %v3330
    %v3408 = vpop.f32.mrb[0].mxu0
    %v3409 = vadd.f32 %v3322, %v3408
    %v3410 = vpop.f32.mrb[0].mxu0
    %3411 = vdwg.mxu0
    %v3412 = vadd.f32 %v427, %v3399
    %v3413 = vadd.f32 %v428, %v3404
    %v3414 = vadd.f32 %v429, %v3409
    %v3415 = vsel %vm370, %v3412, 0.0
    %3416 = vadd.xlane.f32.xlu0 %v3415
    %v3417 = vpop.xlane.xlu0 %3416
    %v3418 = vsel %vm370, %v3413, 0.0
    %3419 = vadd.xlane.f32.xlu0 %v3418
    %v3420 = vpop.xlane.xlu0 %3419
    %v3421 = vsel %vm377, %v3414, 0.0
    %3422 = vadd.xlane.f32.xlu0 %v3421
    %v3423 = vpop.xlane.xlu0 %3422
    %v3424 = vmul.f32 %v3417, %v381
    %v3425 = vmul.f32 %v3420, %v381
    %v3426 = vmul.f32 %v3423, %v381
    %v3427 = vsub.f32 %v3412, %v3424
    %v3428 = vsub.f32 %v3413, %v3425
    %v3429 = vsub.f32 %v3414, %v3426
    %v3430 = vmul.f32 %v3427, %v3427
    %v3431 = vmul.f32 %v3428, %v3428
    %v3432 = vmul.f32 %v3429, %v3429
    %v3433 = vsel %vm370, %v3430, 0.0
    %3434 = vadd.xlane.f32.xlu0 %v3433
    %v3435 = vpop.xlane.xlu0 %3434
    %v3436 = vsel %vm370, %v3431, 0.0
    %3437 = vadd.xlane.f32.xlu0 %v3436
    %v3438 = vpop.xlane.xlu0 %3437
    %v3439 = vsel %vm377, %v3432, 0.0
    %3440 = vadd.xlane.f32.xlu0 %v3439
    %v3441 = vpop.xlane.xlu0 %3440
    %v3442 = vmul.f32 %v3435, %v381
    %v3443 = vmul.f32 %v3438, %v381
    %v3444 = vmul.f32 %v3441, %v381
    %v3445 = vadd.f32 %v3442, 1e-05
    %v3446 = vadd.f32 %v3443, 1e-05
    %v3447 = vadd.f32 %v3444, 1e-05
    %v3448 = vrsqrt.pop %v3445
    %v3449 = vrsqrt.pop %v3446
    %v3450 = vrsqrt.pop %v3447
    %v3451 = vmul.f32 %v3427, %v3448
    %v3452 = vmul.f32 %v3428, %v3449
    %v3453 = vmul.f32 %v3429, %v3450
    %v3455 = vlaneseq
    %v3456 = vshrl.u32 %v3455, 7
    %v3457 = vsub.s32 0, %v3456
    %v3458 = vrot.slane %v187, %v3457
    %v3460 = vmul.f32 %v3451, %v3458
    %v3461 = vmul.f32 %v3452, %v3458
    %v3462 = vmul.f32 %v3453, %v3458
    %v3464 = vlaneseq
    %v3465 = vshrl.u32 %v3464, 7
    %v3466 = vsub.s32 0, %v3465
    %v3467 = vrot.slane %v188, %v3466
    %v3469 = vadd.f32 %v3460, %v3467
    %v3470 = vadd.f32 %v3461, %v3467
    %v3471 = vadd.f32 %v3462, %v3467
    %v3473 = vlaneseq
    %v3474 = vshrl.u32 %v3473, 7
    %v3475 = vsub.s32 0, %v3474
    %v3476 = vrot.slane %v193, %v3475
    %v3479 = vsel %vm370, %v3469, 0
    %v3482 = vsel %vm370, %v3470, 0
    %v3485 = vsel %vm370, %v3471, 0
    %3487 = vmatprep.subr.mxu0 0.0
    %3488 = vmatpush1.msra.mxu0 %v189
    %3489 = vmatprep.subr.mxu0 0.0
    %3490 = vmatpush1.msra.mxu0 %v190
    %3491 = vmatprep.subr.mxu0 0.0
    %3492 = vmatpush1.msra.mxu0 %v191
    %3493 = vmatprep.subr.mxu0 0.0
    %3494 = vmatpush1.msra.mxu0 %v192
    %3495 = vmatprep.subr.mxu0 0.0
    %3496 = vmatpush1.msra.mxu0 0.0
    %3497 = vmatprep.subr.mxu0 0.0
    %3498 = vmatpush1.msra.mxu0 0.0
    %3499 = vmatprep.subr.mxu0 0.0
    %3500 = vmatpush1.msra.mxu0 0.0
    %3501 = vmatprep.subr.mxu0 0.0
    %3502 = vmatpush1.msra.mxu0 0.0
    %3503 = vmatprep.subr.mxu0 0.0
    %3504 = vmatpush1.msra.mxu0 0.0
    %3505 = vmatprep.subr.mxu0 0.0
    %3506 = vmatpush1.msra.mxu0 0.0
    %3507 = vmatprep.subr.mxu0 0.0
    %3508 = vmatpush1.msra.mxu0 0.0
    %3509 = vmatprep.subr.mxu0 0.0
    %3510 = vmatpush1.msra.mxu0 0.0
    %3511 = vmatprep.subr.mxu0 0.0
    %3512 = vmatpush1.msra.mxu0 0.0
    %3513 = vmatprep.subr.mxu0 0.0
    %3514 = vmatpush1.msra.mxu0 0.0
    %3515 = vmatprep.subr.mxu0 0.0
    %3516 = vmatpush1.msra.mxu0 0.0
    %3517 = vmatprep.subr.mxu0 0.0
    %3518 = vmatpush1.msra.mxu0 0.0
    %3519 = vmatprep.subr.mxu0 0.0
    %3520 = vmatpush1.msra.mxu0 0.0
    %3521 = vmatprep.subr.mxu0 0.0
    %3522 = vmatpush1.msra.mxu0 0.0
    %3523 = vmatprep.subr.mxu0 0.0
    %3524 = vmatpush1.msra.mxu0 0.0
    %3525 = vmatprep.subr.mxu0 0.0
    %3526 = vmatpush1.msra.mxu0 0.0
    %3527 = vmatprep.subr.mxu0 0.0
    %3528 = vmatpush1.msra.mxu0 0.0
    %3529 = vmatprep.subr.mxu0 0.0
    %3530 = vmatpush1.msra.mxu0 0.0
    %3531 = vmatprep.subr.mxu0 0.0
    %3532 = vmatpush1.msra.mxu0 0.0
    %3533 = vmatprep.subr.mxu0 0.0
    %3534 = vmatpush1.msra.mxu0 0.0
    %3535 = vmatprep.subr.mxu0 0.0
    %3536 = vmatpush1.msra.mxu0 0.0
    %3537 = vmatprep.subr.mxu0 0.0
    %3538 = vmatpush1.msra.mxu0 0.0
    %3539 = vmatprep.subr.mxu0 0.0
    %3540 = vmatpush1.msra.mxu0 0.0
    %3541 = vmatprep.subr.mxu0 0.0
    %3542 = vmatpush1.msra.mxu0 0.0
    %3543 = vmatprep.subr.mxu0 0.0
    %3544 = vmatpush1.msra.mxu0 0.0
    %3545 = vmatprep.subr.mxu0 0.0
    %3546 = vmatpush1.msra.mxu0 0.0
    %3547 = vmatprep.subr.mxu0 0.0
    %3548 = vmatpush1.msra.mxu0 0.0
    %3549 = vmatprep.subr.mxu0 0.0
    %3550 = vmatpush1.msra.mxu0 0.0
    %3551 = vmatprep.mubr.f32.mxu0 0.0
    %3552 = vmatmul.mubr.f32.gmra.mrb[0].mxu0 %v3479
    %v3553 = vpop.f32.mrb[0].mxu0
    %v3554 = vadd.f32 %v3476, %v3553
    %v3555 = vpop.f32.mrb[0].mxu0
    %3556 = vmatprep.mubr.f32.mxu0 0.0
    %3557 = vmatmul.mubr.f32.gmra.mrb[0].mxu0 %v3482
    %v3558 = vpop.f32.mrb[0].mxu0
    %v3559 = vadd.f32 %v3476, %v3558
    %v3560 = vpop.f32.mrb[0].mxu0
    %3561 = vmatprep.mubr.f32.mxu0 0.0
    %3562 = vmatmul.mubr.f32.gmra.mrb[0].mxu0 %v3485
    %v3563 = vpop.f32.mrb[0].mxu0
    %v3564 = vadd.f32 %v3476, %v3563
    %v3565 = vpop.f32.mrb[0].mxu0
    %3566 = vdwg.mxu0
    %v3567 = vmul.f32 %v3554, 1.702
    %v3568 = vmul.f32 %v3559, 1.702
    %v3569 = vmul.f32 %v3564, 1.702
    %v3570 = vxor.u32 %v3567, 2147483648
    %v3571 = vxor.u32 %v3568, 2147483648
    %v3572 = vxor.u32 %v3569, 2147483648
    %v3573 = vmul.f32 %v3570, 1.442695
    %v3574 = vpow.pop %v3573
    %v3575 = vmul.f32 %v3571, 1.442695
    %v3576 = vpow.pop %v3575
    %v3577 = vmul.f32 %v3572, 1.442695
    %v3578 = vpow.pop %v3577
    %v3579 = vadd.f32 %v3574, 1.0
    %v3580 = vadd.f32 %v3576, 1.0
    %v3581 = vadd.f32 %v3578, 1.0
    %v3582 = vrcp.pop %v3579
    %v3583 = vmul.f32 1.0, %v3582
    %v3584 = vrcp.pop %v3580
    %v3585 = vmul.f32 1.0, %v3584
    %v3586 = vrcp.pop %v3581
    %v3587 = vmul.f32 1.0, %v3586
    %v3588 = vmul.f32 %v3554, %v3583
    %v3589 = vmul.f32 %v3559, %v3585
    %v3590 = vmul.f32 %v3564, %v3587
    %v3592 = vlaneseq
    %v3593 = vshrl.u32 %v3592, 7
    %v3594 = vsub.s32 0, %v3593
    %v3595 = vrot.slane %v210, %v3594
    %3597 = vmatprep.subr.mxu0 0.0
    %3598 = vmatpush1.msra.mxu0 %v194
    %3599 = vmatprep.subr.mxu0 0.0
    %3600 = vmatpush1.msra.mxu0 %v195
    %3601 = vmatprep.subr.mxu0 0.0
    %3602 = vmatpush1.msra.mxu0 %v196
    %3603 = vmatprep.subr.mxu0 0.0
    %3604 = vmatpush1.msra.mxu0 %v197
    %3605 = vmatprep.subr.mxu0 0.0
    %3606 = vmatpush1.msra.mxu0 %v198
    %3607 = vmatprep.subr.mxu0 0.0
    %3608 = vmatpush1.msra.mxu0 %v199
    %3609 = vmatprep.subr.mxu0 0.0
    %3610 = vmatpush1.msra.mxu0 %v200
    %3611 = vmatprep.subr.mxu0 0.0
    %3612 = vmatpush1.msra.mxu0 %v201
    %3613 = vmatprep.subr.mxu0 0.0
    %3614 = vmatpush1.msra.mxu0 %v202
    %3615 = vmatprep.subr.mxu0 0.0
    %3616 = vmatpush1.msra.mxu0 %v203
    %3617 = vmatprep.subr.mxu0 0.0
    %3618 = vmatpush1.msra.mxu0 %v204
    %3619 = vmatprep.subr.mxu0 0.0
    %3620 = vmatpush1.msra.mxu0 %v205
    %3621 = vmatprep.subr.mxu0 0.0
    %3622 = vmatpush1.msra.mxu0 %v206
    %3623 = vmatprep.subr.mxu0 0.0
    %3624 = vmatpush1.msra.mxu0 %v207
    %3625 = vmatprep.subr.mxu0 0.0
    %3626 = vmatpush1.msra.mxu0 %v208
    %3627 = vmatprep.subr.mxu0 0.0
    %3628 = vmatpush1.msra.mxu0 %v209
    %3629 = vmatprep.subr.mxu0 0.0
    %3630 = vmatpush1.msra.mxu0 0.0
    %3631 = vmatprep.subr.mxu0 0.0
    %3632 = vmatpush1.msra.mxu0 0.0
    %3633 = vmatprep.subr.mxu0 0.0
    %3634 = vmatpush1.msra.mxu0 0.0
    %3635 = vmatprep.subr.mxu0 0.0
    %3636 = vmatpush1.msra.mxu0 0.0
    %3637 = vmatprep.subr.mxu0 0.0
    %3638 = vmatpush1.msra.mxu0 0.0
    %3639 = vmatprep.subr.mxu0 0.0
    %3640 = vmatpush1.msra.mxu0 0.0
    %3641 = vmatprep.subr.mxu0 0.0
    %3642 = vmatpush1.msra.mxu0 0.0
    %3643 = vmatprep.subr.mxu0 0.0
    %3644 = vmatpush1.msra.mxu0 0.0
    %3645 = vmatprep.subr.mxu0 0.0
    %3646 = vmatpush1.msra.mxu0 0.0
    %3647 = vmatprep.subr.mxu0 0.0
    %3648 = vmatpush1.msra.mxu0 0.0
    %3649 = vmatprep.subr.mxu0 0.0
    %3650 = vmatpush1.msra.mxu0 0.0
    %3651 = vmatprep.subr.mxu0 0.0
    %3652 = vmatpush1.msra.mxu0 0.0
    %3653 = vmatprep.subr.mxu0 0.0
    %3654 = vmatpush1.msra.mxu0 0.0
    %3655 = vmatprep.subr.mxu0 0.0
    %3656 = vmatpush1.msra.mxu0 0.0
    %3657 = vmatprep.subr.mxu0 0.0
    %3658 = vmatpush1.msra.mxu0 0.0
    %3659 = vmatprep.subr.mxu0 0.0
    %3660 = vmatpush1.msra.mxu0 0.0
    %3661 = vmatprep.mubr.f32.mxu0 0.0
    %3662 = vmatmul.mubr.f32.gmra.mrb[0].mxu0 %v3588
    %v3663 = vpop.f32.mrb[0].mxu0
    %v3664 = vadd.f32 %v3595, %v3663
    %v3665 = vpop.f32.mrb[0].mxu0
    %3666 = vmatprep.mubr.f32.mxu0 0.0
    %3667 = vmatmul.mubr.f32.gmra.mrb[0].mxu0 %v3589
    %v3668 = vpop.f32.mrb[0].mxu0
    %v3669 = vadd.f32 %v3595, %v3668
    %v3670 = vpop.f32.mrb[0].mxu0
    %3671 = vmatprep.mubr.f32.mxu0 0.0
    %3672 = vmatmul.mubr.f32.gmra.mrb[0].mxu0 %v3590
    %v3673 = vpop.f32.mrb[0].mxu0
    %v3674 = vadd.f32 %v3595, %v3673
    %v3675 = vpop.f32.mrb[0].mxu0
    %3676 = vdwg.mxu0
    %v3677 = vadd.f32 %v3412, %v3664
    %v3678 = vadd.f32 %v3413, %v3669
    %v3679 = vadd.f32 %v3414, %v3674
    %v3680 = vsel %vm370, %v3677, 0.0
    %3681 = vadd.xlane.f32.xlu0 %v3680
    %v3682 = vpop.xlane.xlu0 %3681
    %v3683 = vsel %vm370, %v3678, 0.0
    %3684 = vadd.xlane.f32.xlu0 %v3683
    %v3685 = vpop.xlane.xlu0 %3684
    %v3686 = vsel %vm377, %v3679, 0.0
    %3687 = vadd.xlane.f32.xlu0 %v3686
    %v3688 = vpop.xlane.xlu0 %3687
    %v3689 = vmul.f32 %v3682, %v381
    %v3690 = vmul.f32 %v3685, %v381
    %v3691 = vmul.f32 %v3688, %v381
    %v3692 = vsub.f32 %v3677, %v3689
    %v3693 = vsub.f32 %v3678, %v3690
    %v3694 = vsub.f32 %v3679, %v3691
    %v3695 = vmul.f32 %v3692, %v3692
    %v3696 = vmul.f32 %v3693, %v3693
    %v3697 = vmul.f32 %v3694, %v3694
    %v3698 = vsel %vm370, %v3695, 0.0
    %3699 = vadd.xlane.f32.xlu0 %v3698
    %v3700 = vpop.xlane.xlu0 %3699
    %v3701 = vsel %vm370, %v3696, 0.0
    %3702 = vadd.xlane.f32.xlu0 %v3701
    %v3703 = vpop.xlane.xlu0 %3702
    %v3704 = vsel %vm377, %v3697, 0.0
    %3705 = vadd.xlane.f32.xlu0 %v3704
    %v3706 = vpop.xlane.xlu0 %3705
    %v3707 = vmul.f32 %v3700, %v381
    %v3708 = vmul.f32 %v3703, %v381
    %v3709 = vmul.f32 %v3706, %v381
    %v3710 = vadd.f32 %v3707, 1e-05
    %v3711 = vadd.f32 %v3708, 1e-05
    %v3712 = vadd.f32 %v3709, 1e-05
    %v3713 = vrsqrt.pop %v3710
    %v3714 = vrsqrt.pop %v3711
    %v3715 = vrsqrt.pop %v3712
    %v3716 = vmul.f32 %v3692, %v3713
    %v3717 = vmul.f32 %v3693, %v3714
    %v3718 = vmul.f32 %v3694, %v3715
    %v3720 = vlaneseq
    %v3721 = vshrl.u32 %v3720, 7
    %v3722 = vsub.s32 0, %v3721
    %v3723 = vrot.slane %v211, %v3722
    %v3725 = vmul.f32 %v3716, %v3723
    %v3726 = vmul.f32 %v3717, %v3723
    %v3727 = vmul.f32 %v3718, %v3723
    %v3729 = vlaneseq
    %v3730 = vshrl.u32 %v3729, 7
    %v3731 = vsub.s32 0, %v3730
    %v3732 = vrot.slane %v212, %v3731
    %v3734 = vadd.f32 %v3725, %v3732
    %v3735 = vadd.f32 %v3726, %v3732
    %v3736 = vadd.f32 %v3727, %v3732
    %v3738 = vlaneseq
    %v3739 = vshrl.u32 %v3738, 7
    %v3740 = vsub.s32 0, %v3739
    %v3741 = vrot.slane %v217, %v3740
    %v3744 = vsel %vm370, %v3734, 0
    %v3747 = vsel %vm370, %v3735, 0
    %v3750 = vsel %vm370, %v3736, 0
    %3752 = vmatprep.subr.mxu0 0.0
    %3753 = vmatpush1.msra.mxu0 %v213
    %3754 = vmatprep.subr.mxu0 0.0
    %3755 = vmatpush1.msra.mxu0 %v214
    %3756 = vmatprep.subr.mxu0 0.0
    %3757 = vmatpush1.msra.mxu0 %v215
    %3758 = vmatprep.subr.mxu0 0.0
    %3759 = vmatpush1.msra.mxu0 %v216
    %3760 = vmatprep.subr.mxu0 0.0
    %3761 = vmatpush1.msra.mxu0 0.0
    %3762 = vmatprep.subr.mxu0 0.0
    %3763 = vmatpush1.msra.mxu0 0.0
    %3764 = vmatprep.subr.mxu0 0.0
    %3765 = vmatpush1.msra.mxu0 0.0
    %3766 = vmatprep.subr.mxu0 0.0
    %3767 = vmatpush1.msra.mxu0 0.0
    %3768 = vmatprep.subr.mxu0 0.0
    %3769 = vmatpush1.msra.mxu0 0.0
    %3770 = vmatprep.subr.mxu0 0.0
    %3771 = vmatpush1.msra.mxu0 0.0
    %3772 = vmatprep.subr.mxu0 0.0
    %3773 = vmatpush1.msra.mxu0 0.0
    %3774 = vmatprep.subr.mxu0 0.0
    %3775 = vmatpush1.msra.mxu0 0.0
    %3776 = vmatprep.subr.mxu0 0.0
    %3777 = vmatpush1.msra.mxu0 0.0
    %3778 = vmatprep.subr.mxu0 0.0
    %3779 = vmatpush1.msra.mxu0 0.0
    %3780 = vmatprep.subr.mxu0 0.0
    %3781 = vmatpush1.msra.mxu0 0.0
    %3782 = vmatprep.subr.mxu0 0.0
    %3783 = vmatpush1.msra.mxu0 0.0
    %3784 = vmatprep.subr.mxu0 0.0
    %3785 = vmatpush1.msra.mxu0 0.0
    %3786 = vmatprep.subr.mxu0 0.0
    %3787 = vmatpush1.msra.mxu0 0.0
    %3788 = vmatprep.subr.mxu0 0.0
    %3789 = vmatpush1.msra.mxu0 0.0
    %3790 = vmatprep.subr.mxu0 0.0
    %3791 = vmatpush1.msra.mxu0 0.0
    %3792 = vmatprep.subr.mxu0 0.0
    %3793 = vmatpush1.msra.mxu0 0.0
    %3794 = vmatprep.subr.mxu0 0.0
    %3795 = vmatpush1.msra.mxu0 0.0
    %3796 = vmatprep.subr.mxu0 0.0
    %3797 = vmatpush1.msra.mxu0 0.0
    %3798 = vmatprep.subr.mxu0 0.0
    %3799 = vmatpush1.msra.mxu0 0.0
    %3800 = vmatprep.subr.mxu0 0.0
    %3801 = vmatpush1.msra.mxu0 0.0
    %3802 = vmatprep.subr.mxu0 0.0
    %3803 = vmatpush1.msra.mxu0 0.0
    %3804 = vmatprep.subr.mxu0 0.0
    %3805 = vmatpush1.msra.mxu0 0.0
    %3806 = vmatprep.subr.mxu0 0.0
    %3807 = vmatpush1.msra.mxu0 0.0
    %3808 = vmatprep.subr.mxu0 0.0
    %3809 = vmatpush1.msra.mxu0 0.0
    %3810 = vmatprep.subr.mxu0 0.0
    %3811 = vmatpush1.msra.mxu0 0.0
    %3812 = vmatprep.subr.mxu0 0.0
    %3813 = vmatpush1.msra.mxu0 0.0
    %3814 = vmatprep.subr.mxu0 0.0
    %3815 = vmatpush1.msra.mxu0 0.0
    %3816 = vmatprep.mubr.f32.mxu0 0.0
    %3817 = vmatmul.mubr.f32.gmra.mrb[0].mxu0 %v3744
    %v3818 = vpop.f32.mrb[0].mxu0
    %v3819 = vadd.f32 %v3741, %v3818
    %v3820 = vpop.f32.mrb[0].mxu0
    %3821 = vmatprep.mubr.f32.mxu0 0.0
    %3822 = vmatmul.mubr.f32.gmra.mrb[0].mxu0 %v3747
    %v3823 = vpop.f32.mrb[0].mxu0
    %v3824 = vadd.f32 %v3741, %v3823
    %v3825 = vpop.f32.mrb[0].mxu0
    %3826 = vmatprep.mubr.f32.mxu0 0.0
    %3827 = vmatmul.mubr.f32.gmra.mrb[0].mxu0 %v3750
    %v3828 = vpop.f32.mrb[0].mxu0
    %v3829 = vadd.f32 %v3741, %v3828
    %v3830 = vpop.f32.mrb[0].mxu0
    %3831 = vdwg.mxu0
    %3833 = vrot.lane.b32.xlu0 %v3819, 96
    %v3834 = vpop.permute.xlu0 %3833
    %v3835 = vsel %vm585, %v3819, 0
    %v3837 = vsel %vm585, %v3834, 0
    %3839 = vmatprep.subr.mxu0 0.0
    %3840 = vmatpush1.xpose.msra.mxu0 %v3837
    %3841 = vmatprep.subr.mxu0 0.0
    %3842 = vmatpush1.xpose.msra.mxu0 0.0
    %3843 = vmatprep.subr.mxu0 0.0
    %3844 = vmatpush1.xpose.msra.mxu0 0.0
    %3845 = vmatprep.subr.mxu0 0.0
    %3846 = vmatpush1.xpose.msra.mxu0 0.0
    %3847 = vmatprep.subr.mxu0 0.0
    %3848 = vmatpush1.xpose.msra.mxu0 0.0
    %3849 = vmatprep.subr.mxu0 0.0
    %3850 = vmatpush1.xpose.msra.mxu0 0.0
    %3851 = vmatprep.subr.mxu0 0.0
    %3852 = vmatpush1.xpose.msra.mxu0 0.0
    %3853 = vmatprep.subr.mxu0 0.0
    %3854 = vmatpush1.xpose.msra.mxu0 0.0
    %3855 = vmatprep.subr.mxu0 0.0
    %3856 = vmatpush1.xpose.msra.mxu0 0.0
    %3857 = vmatprep.subr.mxu0 0.0
    %3858 = vmatpush1.xpose.msra.mxu0 0.0
    %3859 = vmatprep.subr.mxu0 0.0
    %3860 = vmatpush1.xpose.msra.mxu0 0.0
    %3861 = vmatprep.subr.mxu0 0.0
    %3862 = vmatpush1.xpose.msra.mxu0 0.0
    %3863 = vmatprep.subr.mxu0 0.0
    %3864 = vmatpush1.xpose.msra.mxu0 0.0
    %3865 = vmatprep.subr.mxu0 0.0
    %3866 = vmatpush1.xpose.msra.mxu0 0.0
    %3867 = vmatprep.subr.mxu0 0.0
    %3868 = vmatpush1.xpose.msra.mxu0 0.0
    %3869 = vmatprep.subr.mxu0 0.0
    %3870 = vmatpush1.xpose.msra.mxu0 0.0
    %3871 = vmatprep.subr.mxu0 0.0
    %3872 = vmatpush1.xpose.msra.mxu0 0.0
    %3873 = vmatprep.subr.mxu0 0.0
    %3874 = vmatpush1.xpose.msra.mxu0 0.0
    %3875 = vmatprep.subr.mxu0 0.0
    %3876 = vmatpush1.xpose.msra.mxu0 0.0
    %3877 = vmatprep.subr.mxu0 0.0
    %3878 = vmatpush1.xpose.msra.mxu0 0.0
    %3879 = vmatprep.subr.mxu0 0.0
    %3880 = vmatpush1.xpose.msra.mxu0 0.0
    %3881 = vmatprep.subr.mxu0 0.0
    %3882 = vmatpush1.xpose.msra.mxu0 0.0
    %3883 = vmatprep.subr.mxu0 0.0
    %3884 = vmatpush1.xpose.msra.mxu0 0.0
    %3885 = vmatprep.subr.mxu0 0.0
    %3886 = vmatpush1.xpose.msra.mxu0 0.0
    %3887 = vmatprep.subr.mxu0 0.0
    %3888 = vmatpush1.xpose.msra.mxu0 0.0
    %3889 = vmatprep.subr.mxu0 0.0
    %3890 = vmatpush1.xpose.msra.mxu0 0.0
    %3891 = vmatprep.subr.mxu0 0.0
    %3892 = vmatpush1.xpose.msra.mxu0 0.0
    %3893 = vmatprep.subr.mxu0 0.0
    %3894 = vmatpush1.xpose.msra.mxu0 0.0
    %3895 = vmatprep.subr.mxu0 0.0
    %3896 = vmatpush1.xpose.msra.mxu0 0.0
    %3897 = vmatprep.subr.mxu0 0.0
    %3898 = vmatpush1.xpose.msra.mxu0 0.0
    %3899 = vmatprep.subr.mxu0 0.0
    %3900 = vmatpush1.xpose.msra.mxu0 0.0
    %3901 = vmatprep.subr.mxu0 0.0
    %3902 = vmatpush1.xpose.msra.mxu0 0.0
    %3903 = vmatprep.mubr.f32.mxu0 0.0
    %3904 = vmatmul.mubr.f32.gmra.mrb[0].mxu0 %v3835
    %v3905 = vpop.f32.mrb[0].mxu0
    %v3906 = vadd.f32 0.0, %v3905
    %v3907 = vpop.f32.mrb[0].mxu0
    %3908 = vdwg.mxu0
    %v3909 = vsel %vm660, %v3906, -inf
    %3910 = vmax.xlane.f32.xlu0 %v3909
    %v3911 = vpop.xlane.xlu0 %3910
    %v3912 = vsub.f32 %v3906, %v3911
    %v3913 = vmul.f32 %v3912, 1.442695
    %v3914 = vpow.pop %v3913
    %v3915 = vsel %vm660, %v3914, 0.0
    %3916 = vadd.xlane.f32.xlu0 %v3915
    %v3917 = vpop.xlane.xlu0 %3916
    %v3918 = vrcp.pop %v3917
    %v3919 = vmul.f32 %v3914, %v3918
    %3920 = vrot.lane.b32.xlu0 %v3819, 64
    %v3921 = vpop.permute.xlu0 %3920
    %v3923 = vsel %vm674, %v3919, 0
    %v3925 = vsel %vm364, %v3921, 0
    %3927 = vmatprep.subr.mxu0 0.0
    %3928 = vmatpush1.msra.mxu0 %v3925
    %3929 = vmatprep.subr.mxu0 0.0
    %3930 = vmatpush1.msra.mxu0 0.0
    %3931 = vmatprep.subr.mxu0 0.0
    %3932 = vmatpush1.msra.mxu0 0.0
    %3933 = vmatprep.subr.mxu0 0.0
    %3934 = vmatpush1.msra.mxu0 0.0
    %3935 = vmatprep.subr.mxu0 0.0
    %3936 = vmatpush1.msra.mxu0 0.0
    %3937 = vmatprep.subr.mxu0 0.0
    %3938 = vmatpush1.msra.mxu0 0.0
    %3939 = vmatprep.subr.mxu0 0.0
    %3940 = vmatpush1.msra.mxu0 0.0
    %3941 = vmatprep.subr.mxu0 0.0
    %3942 = vmatpush1.msra.mxu0 0.0
    %3943 = vmatprep.subr.mxu0 0.0
    %3944 = vmatpush1.msra.mxu0 0.0
    %3945 = vmatprep.subr.mxu0 0.0
    %3946 = vmatpush1.msra.mxu0 0.0
    %3947 = vmatprep.subr.mxu0 0.0
    %3948 = vmatpush1.msra.mxu0 0.0
    %3949 = vmatprep.subr.mxu0 0.0
    %3950 = vmatpush1.msra.mxu0 0.0
    %3951 = vmatprep.subr.mxu0 0.0
    %3952 = vmatpush1.msra.mxu0 0.0
    %3953 = vmatprep.subr.mxu0 0.0
    %3954 = vmatpush1.msra.mxu0 0.0
    %3955 = vmatprep.subr.mxu0 0.0
    %3956 = vmatpush1.msra.mxu0 0.0
    %3957 = vmatprep.subr.mxu0 0.0
    %3958 = vmatpush1.msra.mxu0 0.0
    %3959 = vmatprep.subr.mxu0 0.0
    %3960 = vmatpush1.msra.mxu0 0.0
    %3961 = vmatprep.subr.mxu0 0.0
    %3962 = vmatpush1.msra.mxu0 0.0
    %3963 = vmatprep.subr.mxu0 0.0
    %3964 = vmatpush1.msra.mxu0 0.0
    %3965 = vmatprep.subr.mxu0 0.0
    %3966 = vmatpush1.msra.mxu0 0.0
    %3967 = vmatprep.subr.mxu0 0.0
    %3968 = vmatpush1.msra.mxu0 0.0
    %3969 = vmatprep.subr.mxu0 0.0
    %3970 = vmatpush1.msra.mxu0 0.0
    %3971 = vmatprep.subr.mxu0 0.0
    %3972 = vmatpush1.msra.mxu0 0.0
    %3973 = vmatprep.subr.mxu0 0.0
    %3974 = vmatpush1.msra.mxu0 0.0
    %3975 = vmatprep.subr.mxu0 0.0
    %3976 = vmatpush1.msra.mxu0 0.0
    %3977 = vmatprep.subr.mxu0 0.0
    %3978 = vmatpush1.msra.mxu0 0.0
    %3979 = vmatprep.subr.mxu0 0.0
    %3980 = vmatpush1.msra.mxu0 0.0
    %3981 = vmatprep.subr.mxu0 0.0
    %3982 = vmatpush1.msra.mxu0 0.0
    %3983 = vmatprep.subr.mxu0 0.0
    %3984 = vmatpush1.msra.mxu0 0.0
    %3985 = vmatprep.subr.mxu0 0.0
    %3986 = vmatpush1.msra.mxu0 0.0
    %3987 = vmatprep.subr.mxu0 0.0
    %3988 = vmatpush1.msra.mxu0 0.0
    %3989 = vmatprep.subr.mxu0 0.0
    %3990 = vmatpush1.msra.mxu0 0.0
    %3991 = vmatprep.mubr.f32.mxu0 0.0
    %3992 = vmatmul.mubr.f32.gmra.mrb[0].mxu0 %v3923
    %v3993 = vpop.f32.mrb[0].mxu0
    %v3994 = vadd.f32 0.0, %v3993
    %v3995 = vpop.f32.mrb[0].mxu0
    %3996 = vdwg.mxu0
    %3997 = vrot.lane.b32.xlu0 %v3819, 120
    %v3998 = vpop.permute.xlu0 %3997
    %3999 = vrot.lane.b32.xlu0 %v3819, 88
    %v4000 = vpop.permute.xlu0 %3999
    %v4001 = vsel %vm585, %v3998, 0
    %v4003 = vsel %vm585, %v4000, 0
    %4005 = vmatprep.subr.mxu0 0.0
    %4006 = vmatpush1.xpose.msra.mxu0 %v4003
    %4007 = vmatprep.subr.mxu0 0.0
    %4008 = vmatpush1.xpose.msra.mxu0 0.0
    %4009 = vmatprep.subr.mxu0 0.0
    %4010 = vmatpush1.xpose.msra.mxu0 0.0
    %4011 = vmatprep.subr.mxu0 0.0
    %4012 = vmatpush1.xpose.msra.mxu0 0.0
    %4013 = vmatprep.subr.mxu0 0.0
    %4014 = vmatpush1.xpose.msra.mxu0 0.0
    %4015 = vmatprep.subr.mxu0 0.0
    %4016 = vmatpush1.xpose.msra.mxu0 0.0
    %4017 = vmatprep.subr.mxu0 0.0
    %4018 = vmatpush1.xpose.msra.mxu0 0.0
    %4019 = vmatprep.subr.mxu0 0.0
    %4020 = vmatpush1.xpose.msra.mxu0 0.0
    %4021 = vmatprep.subr.mxu0 0.0
    %4022 = vmatpush1.xpose.msra.mxu0 0.0
    %4023 = vmatprep.subr.mxu0 0.0
    %4024 = vmatpush1.xpose.msra.mxu0 0.0
    %4025 = vmatprep.subr.mxu0 0.0
    %4026 = vmatpush1.xpose.msra.mxu0 0.0
    %4027 = vmatprep.subr.mxu0 0.0
    %4028 = vmatpush1.xpose.msra.mxu0 0.0
    %4029 = vmatprep.subr.mxu0 0.0
    %4030 = vmatpush1.xpose.msra.mxu0 0.0
    %4031 = vmatprep.subr.mxu0 0.0
    %4032 = vmatpush1.xpose.msra.mxu0 0.0
    %4033 = vmatprep.subr.mxu0 0.0
    %4034 = vmatpush1.xpose.msra.mxu0 0.0
    %4035 = vmatprep.subr.mxu0 0.0
    %4036 = vmatpush1.xpose.msra.mxu0 0.0
    %4037 = vmatprep.subr.mxu0 0.0
    %4038 = vmatpush1.xpose.msra.mxu0 0.0
    %4039 = vmatprep.subr.mxu0 0.0
    %4040 = vmatpush1.xpose.msra.mxu0 0.0
    %4041 = vmatprep.subr.mxu0 0.0
    %4042 = vmatpush1.xpose.msra.mxu0 0.0
    %4043 = vmatprep.subr.mxu0 0.0
    %4044 = vmatpush1.xpose.msra.mxu0 0.0
    %4045 = vmatprep.subr.mxu0 0.0
    %4046 = vmatpush1.xpose.msra.mxu0 0.0
    %4047 = vmatprep.subr.mxu0 0.0
    %4048 = vmatpush1.xpose.msra.mxu0 0.0
    %4049 = vmatprep.subr.mxu0 0.0
    %4050 = vmatpush1.xpose.msra.mxu0 0.0
    %4051 = vmatprep.subr.mxu0 0.0
    %4052 = vmatpush1.xpose.msra.mxu0 0.0
    %4053 = vmatprep.subr.mxu0 0.0
    %4054 = vmatpush1.xpose.msra.mxu0 0.0
    %4055 = vmatprep.subr.mxu0 0.0
    %4056 = vmatpush1.xpose.msra.mxu0 0.0
    %4057 = vmatprep.subr.mxu0 0.0
    %4058 = vmatpush1.xpose.msra.mxu0 0.0
    %4059 = vmatprep.subr.mxu0 0.0
    %4060 = vmatpush1.xpose.msra.mxu0 0.0
    %4061 = vmatprep.subr.mxu0 0.0
    %4062 = vmatpush1.xpose.msra.mxu0 0.0
    %4063 = vmatprep.subr.mxu0 0.0
    %4064 = vmatpush1.xpose.msra.mxu0 0.0
    %4065 = vmatprep.subr.mxu0 0.0
    %4066 = vmatpush1.xpose.msra.mxu0 0.0
    %4067 = vmatprep.subr.mxu0 0.0
    %4068 = vmatpush1.xpose.msra.mxu0 0.0
    %4069 = vmatprep.mubr.f32.mxu0 0.0
    %4070 = vmatmul.mubr.f32.gmra.mrb[0].mxu0 %v4001
    %v4071 = vpop.f32.mrb[0].mxu0
    %v4072 = vadd.f32 0.0, %v4071
    %v4073 = vpop.f32.mrb[0].mxu0
    %4074 = vdwg.mxu0
    %v4075 = vsel %vm660, %v4072, -inf
    %4076 = vmax.xlane.f32.xlu0 %v4075
    %v4077 = vpop.xlane.xlu0 %4076
    %v4078 = vsub.f32 %v4072, %v4077
    %v4079 = vmul.f32 %v4078, 1.442695
    %v4080 = vpow.pop %v4079
    %v4081 = vsel %vm660, %v4080, 0.0
    %4082 = vadd.xlane.f32.xlu0 %v4081
    %v4083 = vpop.xlane.xlu0 %4082
    %v4084 = vrcp.pop %v4083
    %v4085 = vmul.f32 %v4080, %v4084
    %4086 = vrot.lane.b32.xlu0 %v3819, 56
    %v4087 = vpop.permute.xlu0 %4086
    %v4089 = vsel %vm674, %v4085, 0
    %v4091 = vsel %vm364, %v4087, 0
    %4093 = vmatprep.subr.mxu0 0.0
    %4094 = vmatpush1.msra.mxu0 %v4091
    %4095 = vmatprep.subr.mxu0 0.0
    %4096 = vmatpush1.msra.mxu0 0.0
    %4097 = vmatprep.subr.mxu0 0.0
    %4098 = vmatpush1.msra.mxu0 0.0
    %4099 = vmatprep.subr.mxu0 0.0
    %4100 = vmatpush1.msra.mxu0 0.0
    %4101 = vmatprep.subr.mxu0 0.0
    %4102 = vmatpush1.msra.mxu0 0.0
    %4103 = vmatprep.subr.mxu0 0.0
    %4104 = vmatpush1.msra.mxu0 0.0
    %4105 = vmatprep.subr.mxu0 0.0
    %4106 = vmatpush1.msra.mxu0 0.0
    %4107 = vmatprep.subr.mxu0 0.0
    %4108 = vmatpush1.msra.mxu0 0.0
    %4109 = vmatprep.subr.mxu0 0.0
    %4110 = vmatpush1.msra.mxu0 0.0
    %4111 = vmatprep.subr.mxu0 0.0
    %4112 = vmatpush1.msra.mxu0 0.0
    %4113 = vmatprep.subr.mxu0 0.0
    %4114 = vmatpush1.msra.mxu0 0.0
    %4115 = vmatprep.subr.mxu0 0.0
    %4116 = vmatpush1.msra.mxu0 0.0
    %4117 = vmatprep.subr.mxu0 0.0
    %4118 = vmatpush1.msra.mxu0 0.0
    %4119 = vmatprep.subr.mxu0 0.0
    %4120 = vmatpush1.msra.mxu0 0.0
    %4121 = vmatprep.subr.mxu0 0.0
    %4122 = vmatpush1.msra.mxu0 0.0
    %4123 = vmatprep.subr.mxu0 0.0
    %4124 = vmatpush1.msra.mxu0 0.0
    %4125 = vmatprep.subr.mxu0 0.0
    %4126 = vmatpush1.msra.mxu0 0.0
    %4127 = vmatprep.subr.mxu0 0.0
    %4128 = vmatpush1.msra.mxu0 0.0
    %4129 = vmatprep.subr.mxu0 0.0
    %4130 = vmatpush1.msra.mxu0 0.0
    %4131 = vmatprep.subr.mxu0 0.0
    %4132 = vmatpush1.msra.mxu0 0.0
    %4133 = vmatprep.subr.mxu0 0.0
    %4134 = vmatpush1.msra.mxu0 0.0
    %4135 = vmatprep.subr.mxu0 0.0
    %4136 = vmatpush1.msra.mxu0 0.0
    %4137 = vmatprep.subr.mxu0 0.0
    %4138 = vmatpush1.msra.mxu0 0.0
    %4139 = vmatprep.subr.mxu0 0.0
    %4140 = vmatpush1.msra.mxu0 0.0
    %4141 = vmatprep.subr.mxu0 0.0
    %4142 = vmatpush1.msra.mxu0 0.0
    %4143 = vmatprep.subr.mxu0 0.0
    %4144 = vmatpush1.msra.mxu0 0.0
    %4145 = vmatprep.subr.mxu0 0.0
    %4146 = vmatpush1.msra.mxu0 0.0
    %4147 = vmatprep.subr.mxu0 0.0
    %4148 = vmatpush1.msra.mxu0 0.0
    %4149 = vmatprep.subr.mxu0 0.0
    %4150 = vmatpush1.msra.mxu0 0.0
    %4151 = vmatprep.subr.mxu0 0.0
    %4152 = vmatpush1.msra.mxu0 0.0
    %4153 = vmatprep.subr.mxu0 0.0
    %4154 = vmatpush1.msra.mxu0 0.0
    %4155 = vmatprep.subr.mxu0 0.0
    %4156 = vmatpush1.msra.mxu0 0.0
    %4157 = vmatprep.mubr.f32.mxu0 0.0
    %4158 = vmatmul.mubr.f32.gmra.mrb[0].mxu0 %v4089
    %v4159 = vpop.f32.mrb[0].mxu0
    %v4160 = vadd.f32 0.0, %v4159
    %v4161 = vpop.f32.mrb[0].mxu0
    %4162 = vdwg.mxu0
    %4163 = vrot.lane.b32.xlu0 %v3819, 112
    %v4164 = vpop.permute.xlu0 %4163
    %4165 = vrot.lane.b32.xlu0 %v3819, 80
    %v4166 = vpop.permute.xlu0 %4165
    %v4167 = vsel %vm585, %v4164, 0
    %v4169 = vsel %vm585, %v4166, 0
    %4171 = vmatprep.subr.mxu0 0.0
    %4172 = vmatpush1.xpose.msra.mxu0 %v4169
    %4173 = vmatprep.subr.mxu0 0.0
    %4174 = vmatpush1.xpose.msra.mxu0 0.0
    %4175 = vmatprep.subr.mxu0 0.0
    %4176 = vmatpush1.xpose.msra.mxu0 0.0
    %4177 = vmatprep.subr.mxu0 0.0
    %4178 = vmatpush1.xpose.msra.mxu0 0.0
    %4179 = vmatprep.subr.mxu0 0.0
    %4180 = vmatpush1.xpose.msra.mxu0 0.0
    %4181 = vmatprep.subr.mxu0 0.0
    %4182 = vmatpush1.xpose.msra.mxu0 0.0
    %4183 = vmatprep.subr.mxu0 0.0
    %4184 = vmatpush1.xpose.msra.mxu0 0.0
    %4185 = vmatprep.subr.mxu0 0.0
    %4186 = vmatpush1.xpose.msra.mxu0 0.0
    %4187 = vmatprep.subr.mxu0 0.0
    %4188 = vmatpush1.xpose.msra.mxu0 0.0
    %4189 = vmatprep.subr.mxu0 0.0
    %4190 = vmatpush1.xpose.msra.mxu0 0.0
    %4191 = vmatprep.subr.mxu0 0.0
    %4192 = vmatpush1.xpose.msra.mxu0 0.0
    %4193 = vmatprep.subr.mxu0 0.0
    %4194 = vmatpush1.xpose.msra.mxu0 0.0
    %4195 = vmatprep.subr.mxu0 0.0
    %4196 = vmatpush1.xpose.msra.mxu0 0.0
    %4197 = vmatprep.subr.mxu0 0.0
    %4198 = vmatpush1.xpose.msra.mxu0 0.0
    %4199 = vmatprep.subr.mxu0 0.0
    %4200 = vmatpush1.xpose.msra.mxu0 0.0
    %4201 = vmatprep.subr.mxu0 0.0
    %4202 = vmatpush1.xpose.msra.mxu0 0.0
    %4203 = vmatprep.subr.mxu0 0.0
    %4204 = vmatpush1.xpose.msra.mxu0 0.0
    %4205 = vmatprep.subr.mxu0 0.0
    %4206 = vmatpush1.xpose.msra.mxu0 0.0
    %4207 = vmatprep.subr.mxu0 0.0
    %4208 = vmatpush1.xpose.msra.mxu0 0.0
    %4209 = vmatprep.subr.mxu0 0.0
    %4210 = vmatpush1.xpose.msra.mxu0 0.0
    %4211 = vmatprep.subr.mxu0 0.0
    %4212 = vmatpush1.xpose.msra.mxu0 0.0
    %4213 = vmatprep.subr.mxu0 0.0
    %4214 = vmatpush1.xpose.msra.mxu0 0.0
    %4215 = vmatprep.subr.mxu0 0.0
    %4216 = vmatpush1.xpose.msra.mxu0 0.0
    %4217 = vmatprep.subr.mxu0 0.0
    %4218 = vmatpush1.xpose.msra.mxu0 0.0
    %4219 = vmatprep.subr.mxu0 0.0
    %4220 = vmatpush1.xpose.msra.mxu0 0.0
    %4221 = vmatprep.subr.mxu0 0.0
    %4222 = vmatpush1.xpose.msra.mxu0 0.0
    %4223 = vmatprep.subr.mxu0 0.0
    %4224 = vmatpush1.xpose.msra.mxu0 0.0
    %4225 = vmatprep.subr.mxu0 0.0
    %4226 = vmatpush1.xpose.msra.mxu0 0.0
    %4227 = vmatprep.subr.mxu0 0.0
    %4228 = vmatpush1.xpose.msra.mxu0 0.0
    %4229 = vmatprep.subr.mxu0 0.0
    %4230 = vmatpush1.xpose.msra.mxu0 0.0
    %4231 = vmatprep.subr.mxu0 0.0
    %4232 = vmatpush1.xpose.msra.mxu0 0.0
    %4233 = vmatprep.subr.mxu0 0.0
    %4234 = vmatpush1.xpose.msra.mxu0 0.0
    %4235 = vmatprep.mubr.f32.mxu0 0.0
    %4236 = vmatmul.mubr.f32.gmra.mrb[0].mxu0 %v4167
    %v4237 = vpop.f32.mrb[0].mxu0
    %v4238 = vadd.f32 0.0, %v4237
    %v4239 = vpop.f32.mrb[0].mxu0
    %4240 = vdwg.mxu0
    %v4241 = vsel %vm660, %v4238, -inf
    %4242 = vmax.xlane.f32.xlu0 %v4241
    %v4243 = vpop.xlane.xlu0 %4242
    %v4244 = vsub.f32 %v4238, %v4243
    %v4245 = vmul.f32 %v4244, 1.442695
    %v4246 = vpow.pop %v4245
    %v4247 = vsel %vm660, %v4246, 0.0
    %4248 = vadd.xlane.f32.xlu0 %v4247
    %v4249 = vpop.xlane.xlu0 %4248
    %v4250 = vrcp.pop %v4249
    %v4251 = vmul.f32 %v4246, %v4250
    %4252 = vrot.lane.b32.xlu0 %v3819, 48
    %v4253 = vpop.permute.xlu0 %4252
    %v4255 = vsel %vm674, %v4251, 0
    %v4257 = vsel %vm364, %v4253, 0
    %4259 = vmatprep.subr.mxu0 0.0
    %4260 = vmatpush1.msra.mxu0 %v4257
    %4261 = vmatprep.subr.mxu0 0.0
    %4262 = vmatpush1.msra.mxu0 0.0
    %4263 = vmatprep.subr.mxu0 0.0
    %4264 = vmatpush1.msra.mxu0 0.0
    %4265 = vmatprep.subr.mxu0 0.0
    %4266 = vmatpush1.msra.mxu0 0.0
    %4267 = vmatprep.subr.mxu0 0.0
    %4268 = vmatpush1.msra.mxu0 0.0
    %4269 = vmatprep.subr.mxu0 0.0
    %4270 = vmatpush1.msra.mxu0 0.0
    %4271 = vmatprep.subr.mxu0 0.0
    %4272 = vmatpush1.msra.mxu0 0.0
    %4273 = vmatprep.subr.mxu0 0.0
    %4274 = vmatpush1.msra.mxu0 0.0
    %4275 = vmatprep.subr.mxu0 0.0
    %4276 = vmatpush1.msra.mxu0 0.0
    %4277 = vmatprep.subr.mxu0 0.0
    %4278 = vmatpush1.msra.mxu0 0.0
    %4279 = vmatprep.subr.mxu0 0.0
    %4280 = vmatpush1.msra.mxu0 0.0
    %4281 = vmatprep.subr.mxu0 0.0
    %4282 = vmatpush1.msra.mxu0 0.0
    %4283 = vmatprep.subr.mxu0 0.0
    %4284 = vmatpush1.msra.mxu0 0.0
    %4285 = vmatprep.subr.mxu0 0.0
    %4286 = vmatpush1.msra.mxu0 0.0
    %4287 = vmatprep.subr.mxu0 0.0
    %4288 = vmatpush1.msra.mxu0 0.0
    %4289 = vmatprep.subr.mxu0 0.0
    %4290 = vmatpush1.msra.mxu0 0.0
    %4291 = vmatprep.subr.mxu0 0.0
    %4292 = vmatpush1.msra.mxu0 0.0
    %4293 = vmatprep.subr.mxu0 0.0
    %4294 = vmatpush1.msra.mxu0 0.0
    %4295 = vmatprep.subr.mxu0 0.0
    %4296 = vmatpush1.msra.mxu0 0.0
    %4297 = vmatprep.subr.mxu0 0.0
    %4298 = vmatpush1.msra.mxu0 0.0
    %4299 = vmatprep.subr.mxu0 0.0
    %4300 = vmatpush1.msra.mxu0 0.0
    %4301 = vmatprep.subr.mxu0 0.0
    %4302 = vmatpush1.msra.mxu0 0.0
    %4303 = vmatprep.subr.mxu0 0.0
    %4304 = vmatpush1.msra.mxu0 0.0
    %4305 = vmatprep.subr.mxu0 0.0
    %4306 = vmatpush1.msra.mxu0 0.0
    %4307 = vmatprep.subr.mxu0 0.0
    %4308 = vmatpush1.msra.mxu0 0.0
    %4309 = vmatprep.subr.mxu0 0.0
    %4310 = vmatpush1.msra.mxu0 0.0
    %4311 = vmatprep.subr.mxu0 0.0
    %4312 = vmatpush1.msra.mxu0 0.0
    %4313 = vmatprep.subr.mxu0 0.0
    %4314 = vmatpush1.msra.mxu0 0.0
    %4315 = vmatprep.subr.mxu0 0.0
    %4316 = vmatpush1.msra.mxu0 0.0
    %4317 = vmatprep.subr.mxu0 0.0
    %4318 = vmatpush1.msra.mxu0 0.0
    %4319 = vmatprep.subr.mxu0 0.0
    %4320 = vmatpush1.msra.mxu0 0.0
    %4321 = vmatprep.subr.mxu0 0.0
    %4322 = vmatpush1.msra.mxu0 0.0
    %4323 = vmatprep.mubr.f32.mxu0 0.0
    %4324 = vmatmul.mubr.f32.gmra.mrb[0].mxu0 %v4255
    %v4325 = vpop.f32.mrb[0].mxu0
    %v4326 = vadd.f32 0.0, %v4325
    %v4327 = vpop.f32.mrb[0].mxu0
    %4328 = vdwg.mxu0
    %4329 = vrot.lane.b32.xlu0 %v3819, 104
    %v4330 = vpop.permute.xlu0 %4329
    %4331 = vrot.lane.b32.xlu0 %v3819, 72
    %v4332 = vpop.permute.xlu0 %4331
    %v4333 = vsel %vm585, %v4330, 0
    %v4335 = vsel %vm585, %v4332, 0
    %4337 = vmatprep.subr.mxu0 0.0
    %4338 = vmatpush1.xpose.msra.mxu0 %v4335
    %4339 = vmatprep.subr.mxu0 0.0
    %4340 = vmatpush1.xpose.msra.mxu0 0.0
    %4341 = vmatprep.subr.mxu0 0.0
    %4342 = vmatpush1.xpose.msra.mxu0 0.0
    %4343 = vmatprep.subr.mxu0 0.0
    %4344 = vmatpush1.xpose.msra.mxu0 0.0
    %4345 = vmatprep.subr.mxu0 0.0
    %4346 = vmatpush1.xpose.msra.mxu0 0.0
    %4347 = vmatprep.subr.mxu0 0.0
    %4348 = vmatpush1.xpose.msra.mxu0 0.0
    %4349 = vmatprep.subr.mxu0 0.0
    %4350 = vmatpush1.xpose.msra.mxu0 0.0
    %4351 = vmatprep.subr.mxu0 0.0
    %4352 = vmatpush1.xpose.msra.mxu0 0.0
    %4353 = vmatprep.subr.mxu0 0.0
    %4354 = vmatpush1.xpose.msra.mxu0 0.0
    %4355 = vmatprep.subr.mxu0 0.0
    %4356 = vmatpush1.xpose.msra.mxu0 0.0
    %4357 = vmatprep.subr.mxu0 0.0
    %4358 = vmatpush1.xpose.msra.mxu0 0.0
    %4359 = vmatprep.subr.mxu0 0.0
    %4360 = vmatpush1.xpose.msra.mxu0 0.0
    %4361 = vmatprep.subr.mxu0 0.0
    %4362 = vmatpush1.xpose.msra.mxu0 0.0
    %4363 = vmatprep.subr.mxu0 0.0
    %4364 = vmatpush1.xpose.msra.mxu0 0.0
    %4365 = vmatprep.subr.mxu0 0.0
    %4366 = vmatpush1.xpose.msra.mxu0 0.0
    %4367 = vmatprep.subr.mxu0 0.0
    %4368 = vmatpush1.xpose.msra.mxu0 0.0
    %4369 = vmatprep.subr.mxu0 0.0
    %4370 = vmatpush1.xpose.msra.mxu0 0.0
    %4371 = vmatprep.subr.mxu0 0.0
    %4372 = vmatpush1.xpose.msra.mxu0 0.0
    %4373 = vmatprep.subr.mxu0 0.0
    %4374 = vmatpush1.xpose.msra.mxu0 0.0
    %4375 = vmatprep.subr.mxu0 0.0
    %4376 = vmatpush1.xpose.msra.mxu0 0.0
    %4377 = vmatprep.subr.mxu0 0.0
    %4378 = vmatpush1.xpose.msra.mxu0 0.0
    %4379 = vmatprep.subr.mxu0 0.0
    %4380 = vmatpush1.xpose.msra.mxu0 0.0
    %4381 = vmatprep.subr.mxu0 0.0
    %4382 = vmatpush1.xpose.msra.mxu0 0.0
    %4383 = vmatprep.subr.mxu0 0.0
    %4384 = vmatpush1.xpose.msra.mxu0 0.0
    %4385 = vmatprep.subr.mxu0 0.0
    %4386 = vmatpush1.xpose.msra.mxu0 0.0
    %4387 = vmatprep.subr.mxu0 0.0
    %4388 = vmatpush1.xpose.msra.mxu0 0.0
    %4389 = vmatprep.subr.mxu0 0.0
    %4390 = vmatpush1.xpose.msra.mxu0 0.0
    %4391 = vmatprep.subr.mxu0 0.0
    %4392 = vmatpush1.xpose.msra.mxu0 0.0
    %4393 = vmatprep.subr.mxu0 0.0
    %4394 = vmatpush1.xpose.msra.mxu0 0.0
    %4395 = vmatprep.subr.mxu0 0.0
    %4396 = vmatpush1.xpose.msra.mxu0 0.0
    %4397 = vmatprep.subr.mxu0 0.0
    %4398 = vmatpush1.xpose.msra.mxu0 0.0
    %4399 = vmatprep.subr.mxu0 0.0
    %4400 = vmatpush1.xpose.msra.mxu0 0.0
    %4401 = vmatprep.mubr.f32.mxu0 0.0
    %4402 = vmatmul.mubr.f32.gmra.mrb[0].mxu0 %v4333
    %v4403 = vpop.f32.mrb[0].mxu0
    %v4404 = vadd.f32 0.0, %v4403
    %v4405 = vpop.f32.mrb[0].mxu0
    %4406 = vdwg.mxu0
    %v4407 = vsel %vm660, %v4404, -inf
    %4408 = vmax.xlane.f32.xlu0 %v4407
    %v4409 = vpop.xlane.xlu0 %4408
    %v4410 = vsub.f32 %v4404, %v4409
    %v4411 = vmul.f32 %v4410, 1.442695
    %v4412 = vpow.pop %v4411
    %v4413 = vsel %vm660, %v4412, 0.0
    %4414 = vadd.xlane.f32.xlu0 %v4413
    %v4415 = vpop.xlane.xlu0 %4414
    %v4416 = vrcp.pop %v4415
    %v4417 = vmul.f32 %v4412, %v4416
    %4418 = vrot.lane.b32.xlu0 %v3819, 40
    %v4419 = vpop.permute.xlu0 %4418
    %v4421 = vsel %vm674, %v4417, 0
    %v4423 = vsel %vm364, %v4419, 0
    %4425 = vmatprep.subr.mxu0 0.0
    %4426 = vmatpush1.msra.mxu0 %v4423
    %4427 = vmatprep.subr.mxu0 0.0
    %4428 = vmatpush1.msra.mxu0 0.0
    %4429 = vmatprep.subr.mxu0 0.0
    %4430 = vmatpush1.msra.mxu0 0.0
    %4431 = vmatprep.subr.mxu0 0.0
    %4432 = vmatpush1.msra.mxu0 0.0
    %4433 = vmatprep.subr.mxu0 0.0
    %4434 = vmatpush1.msra.mxu0 0.0
    %4435 = vmatprep.subr.mxu0 0.0
    %4436 = vmatpush1.msra.mxu0 0.0
    %4437 = vmatprep.subr.mxu0 0.0
    %4438 = vmatpush1.msra.mxu0 0.0
    %4439 = vmatprep.subr.mxu0 0.0
    %4440 = vmatpush1.msra.mxu0 0.0
    %4441 = vmatprep.subr.mxu0 0.0
    %4442 = vmatpush1.msra.mxu0 0.0
    %4443 = vmatprep.subr.mxu0 0.0
    %4444 = vmatpush1.msra.mxu0 0.0
    %4445 = vmatprep.subr.mxu0 0.0
    %4446 = vmatpush1.msra.mxu0 0.0
    %4447 = vmatprep.subr.mxu0 0.0
    %4448 = vmatpush1.msra.mxu0 0.0
    %4449 = vmatprep.subr.mxu0 0.0
    %4450 = vmatpush1.msra.mxu0 0.0
    %4451 = vmatprep.subr.mxu0 0.0
    %4452 = vmatpush1.msra.mxu0 0.0
    %4453 = vmatprep.subr.mxu0 0.0
    %4454 = vmatpush1.msra.mxu0 0.0
    %4455 = vmatprep.subr.mxu0 0.0
    %4456 = vmatpush1.msra.mxu0 0.0
    %4457 = vmatprep.subr.mxu0 0.0
    %4458 = vmatpush1.msra.mxu0 0.0
    %4459 = vmatprep.subr.mxu0 0.0
    %4460 = vmatpush1.msra.mxu0 0.0
    %4461 = vmatprep.subr.mxu0 0.0
    %4462 = vmatpush1.msra.mxu0 0.0
    %4463 = vmatprep.subr.mxu0 0.0
    %4464 = vmatpush1.msra.mxu0 0.0
    %4465 = vmatprep.subr.mxu0 0.0
    %4466 = vmatpush1.msra.mxu0 0.0
    %4467 = vmatprep.subr.mxu0 0.0
    %4468 = vmatpush1.msra.mxu0 0.0
    %4469 = vmatprep.subr.mxu0 0.0
    %4470 = vmatpush1.msra.mxu0 0.0
    %4471 = vmatprep.subr.mxu0 0.0
    %4472 = vmatpush1.msra.mxu0 0.0
    %4473 = vmatprep.subr.mxu0 0.0
    %4474 = vmatpush1.msra.mxu0 0.0
    %4475 = vmatprep.subr.mxu0 0.0
    %4476 = vmatpush1.msra.mxu0 0.0
    %4477 = vmatprep.subr.mxu0 0.0
    %4478 = vmatpush1.msra.mxu0 0.0
    %4479 = vmatprep.subr.mxu0 0.0
    %4480 = vmatpush1.msra.mxu0 0.0
    %4481 = vmatprep.subr.mxu0 0.0
    %4482 = vmatpush1.msra.mxu0 0.0
    %4483 = vmatprep.subr.mxu0 0.0
    %4484 = vmatpush1.msra.mxu0 0.0
    %4485 = vmatprep.subr.mxu0 0.0
    %4486 = vmatpush1.msra.mxu0 0.0
    %4487 = vmatprep.subr.mxu0 0.0
    %4488 = vmatpush1.msra.mxu0 0.0
    %4489 = vmatprep.mubr.f32.mxu0 0.0
    %4490 = vmatmul.mubr.f32.gmra.mrb[0].mxu0 %v4421
    %v4491 = vpop.f32.mrb[0].mxu0
    %v4492 = vadd.f32 0.0, %v4491
    %v4493 = vpop.f32.mrb[0].mxu0
    %4494 = vdwg.mxu0
    %4496 = vrot.lane.b32.xlu0 %v4160, 8
    %v4497 = vpop.permute.xlu0 %4496
    %4500 = vrot.lane.b32.xlu0 %v4326, 16
    %v4501 = vpop.permute.xlu0 %4500
    %4504 = vrot.lane.b32.xlu0 %v4492, 24
    %v4505 = vpop.permute.xlu0 %4504
    %v4507 = vsel %vm585, %v3994, %v4497
    %v4508 = vsel %vm1261, %v4507, %v4501
    %v4509 = vsel %vm1263, %v4508, %v4505
    %v4511 = vrot.slane %v3819, 5
    %v4512 = vrot.slane %v3824, 5
    %v4513 = vsel %vm1266, %v4511, %v4512
    %4514 = vrot.lane.b32.xlu0 %v4513, 96
    %v4515 = vpop.permute.xlu0 %4514
    %v4516 = vsel %vm585, %v4513, 0
    %v4518 = vsel %vm585, %v4515, 0
    %4520 = vmatprep.subr.mxu0 0.0
    %4521 = vmatpush1.xpose.msra.mxu0 %v4518
    %4522 = vmatprep.subr.mxu0 0.0
    %4523 = vmatpush1.xpose.msra.mxu0 0.0
    %4524 = vmatprep.subr.mxu0 0.0
    %4525 = vmatpush1.xpose.msra.mxu0 0.0
    %4526 = vmatprep.subr.mxu0 0.0
    %4527 = vmatpush1.xpose.msra.mxu0 0.0
    %4528 = vmatprep.subr.mxu0 0.0
    %4529 = vmatpush1.xpose.msra.mxu0 0.0
    %4530 = vmatprep.subr.mxu0 0.0
    %4531 = vmatpush1.xpose.msra.mxu0 0.0
    %4532 = vmatprep.subr.mxu0 0.0
    %4533 = vmatpush1.xpose.msra.mxu0 0.0
    %4534 = vmatprep.subr.mxu0 0.0
    %4535 = vmatpush1.xpose.msra.mxu0 0.0
    %4536 = vmatprep.subr.mxu0 0.0
    %4537 = vmatpush1.xpose.msra.mxu0 0.0
    %4538 = vmatprep.subr.mxu0 0.0
    %4539 = vmatpush1.xpose.msra.mxu0 0.0
    %4540 = vmatprep.subr.mxu0 0.0
    %4541 = vmatpush1.xpose.msra.mxu0 0.0
    %4542 = vmatprep.subr.mxu0 0.0
    %4543 = vmatpush1.xpose.msra.mxu0 0.0
    %4544 = vmatprep.subr.mxu0 0.0
    %4545 = vmatpush1.xpose.msra.mxu0 0.0
    %4546 = vmatprep.subr.mxu0 0.0
    %4547 = vmatpush1.xpose.msra.mxu0 0.0
    %4548 = vmatprep.subr.mxu0 0.0
    %4549 = vmatpush1.xpose.msra.mxu0 0.0
    %4550 = vmatprep.subr.mxu0 0.0
    %4551 = vmatpush1.xpose.msra.mxu0 0.0
    %4552 = vmatprep.subr.mxu0 0.0
    %4553 = vmatpush1.xpose.msra.mxu0 0.0
    %4554 = vmatprep.subr.mxu0 0.0
    %4555 = vmatpush1.xpose.msra.mxu0 0.0
    %4556 = vmatprep.subr.mxu0 0.0
    %4557 = vmatpush1.xpose.msra.mxu0 0.0
    %4558 = vmatprep.subr.mxu0 0.0
    %4559 = vmatpush1.xpose.msra.mxu0 0.0
    %4560 = vmatprep.subr.mxu0 0.0
    %4561 = vmatpush1.xpose.msra.mxu0 0.0
    %4562 = vmatprep.subr.mxu0 0.0
    %4563 = vmatpush1.xpose.msra.mxu0 0.0
    %4564 = vmatprep.subr.mxu0 0.0
    %4565 = vmatpush1.xpose.msra.mxu0 0.0
    %4566 = vmatprep.subr.mxu0 0.0
    %4567 = vmatpush1.xpose.msra.mxu0 0.0
    %4568 = vmatprep.subr.mxu0 0.0
    %4569 = vmatpush1.xpose.msra.mxu0 0.0
    %4570 = vmatprep.subr.mxu0 0.0
    %4571 = vmatpush1.xpose.msra.mxu0 0.0
    %4572 = vmatprep.subr.mxu0 0.0
    %4573 = vmatpush1.xpose.msra.mxu0 0.0
    %4574 = vmatprep.subr.mxu0 0.0
    %4575 = vmatpush1.xpose.msra.mxu0 0.0
    %4576 = vmatprep.subr.mxu0 0.0
    %4577 = vmatpush1.xpose.msra.mxu0 0.0
    %4578 = vmatprep.subr.mxu0 0.0
    %4579 = vmatpush1.xpose.msra.mxu0 0.0
    %4580 = vmatprep.subr.mxu0 0.0
    %4581 = vmatpush1.xpose.msra.mxu0 0.0
    %4582 = vmatprep.subr.mxu0 0.0
    %4583 = vmatpush1.xpose.msra.mxu0 0.0
    %4584 = vmatprep.mubr.f32.mxu0 0.0
    %4585 = vmatmul.mubr.f32.gmra.mrb[0].mxu0 %v4516
    %v4586 = vpop.f32.mrb[0].mxu0
    %v4587 = vadd.f32 0.0, %v4586
    %v4588 = vpop.f32.mrb[0].mxu0
    %4589 = vdwg.mxu0
    %v4590 = vsel %vm660, %v4587, -inf
    %4591 = vmax.xlane.f32.xlu0 %v4590
    %v4592 = vpop.xlane.xlu0 %4591
    %v4593 = vsub.f32 %v4587, %v4592
    %v4594 = vmul.f32 %v4593, 1.442695
    %v4595 = vpow.pop %v4594
    %v4596 = vsel %vm660, %v4595, 0.0
    %4597 = vadd.xlane.f32.xlu0 %v4596
    %v4598 = vpop.xlane.xlu0 %4597
    %v4599 = vrcp.pop %v4598
    %v4600 = vmul.f32 %v4595, %v4599
    %4601 = vrot.lane.b32.xlu0 %v4513, 64
    %v4602 = vpop.permute.xlu0 %4601
    %v4604 = vsel %vm674, %v4600, 0
    %v4606 = vsel %vm364, %v4602, 0
    %4608 = vmatprep.subr.mxu0 0.0
    %4609 = vmatpush1.msra.mxu0 %v4606
    %4610 = vmatprep.subr.mxu0 0.0
    %4611 = vmatpush1.msra.mxu0 0.0
    %4612 = vmatprep.subr.mxu0 0.0
    %4613 = vmatpush1.msra.mxu0 0.0
    %4614 = vmatprep.subr.mxu0 0.0
    %4615 = vmatpush1.msra.mxu0 0.0
    %4616 = vmatprep.subr.mxu0 0.0
    %4617 = vmatpush1.msra.mxu0 0.0
    %4618 = vmatprep.subr.mxu0 0.0
    %4619 = vmatpush1.msra.mxu0 0.0
    %4620 = vmatprep.subr.mxu0 0.0
    %4621 = vmatpush1.msra.mxu0 0.0
    %4622 = vmatprep.subr.mxu0 0.0
    %4623 = vmatpush1.msra.mxu0 0.0
    %4624 = vmatprep.subr.mxu0 0.0
    %4625 = vmatpush1.msra.mxu0 0.0
    %4626 = vmatprep.subr.mxu0 0.0
    %4627 = vmatpush1.msra.mxu0 0.0
    %4628 = vmatprep.subr.mxu0 0.0
    %4629 = vmatpush1.msra.mxu0 0.0
    %4630 = vmatprep.subr.mxu0 0.0
    %4631 = vmatpush1.msra.mxu0 0.0
    %4632 = vmatprep.subr.mxu0 0.0
    %4633 = vmatpush1.msra.mxu0 0.0
    %4634 = vmatprep.subr.mxu0 0.0
    %4635 = vmatpush1.msra.mxu0 0.0
    %4636 = vmatprep.subr.mxu0 0.0
    %4637 = vmatpush1.msra.mxu0 0.0
    %4638 = vmatprep.subr.mxu0 0.0
    %4639 = vmatpush1.msra.mxu0 0.0
    %4640 = vmatprep.subr.mxu0 0.0
    %4641 = vmatpush1.msra.mxu0 0.0
    %4642 = vmatprep.subr.mxu0 0.0
    %4643 = vmatpush1.msra.mxu0 0.0
    %4644 = vmatprep.subr.mxu0 0.0
    %4645 = vmatpush1.msra.mxu0 0.0
    %4646 = vmatprep.subr.mxu0 0.0
    %4647 = vmatpush1.msra.mxu0 0.0
    %4648 = vmatprep.subr.mxu0 0.0
    %4649 = vmatpush1.msra.mxu0 0.0
    %4650 = vmatprep.subr.mxu0 0.0
    %4651 = vmatpush1.msra.mxu0 0.0
    %4652 = vmatprep.subr.mxu0 0.0
    %4653 = vmatpush1.msra.mxu0 0.0
    %4654 = vmatprep.subr.mxu0 0.0
    %4655 = vmatpush1.msra.mxu0 0.0
    %4656 = vmatprep.subr.mxu0 0.0
    %4657 = vmatpush1.msra.mxu0 0.0
    %4658 = vmatprep.subr.mxu0 0.0
    %4659 = vmatpush1.msra.mxu0 0.0
    %4660 = vmatprep.subr.mxu0 0.0
    %4661 = vmatpush1.msra.mxu0 0.0
    %4662 = vmatprep.subr.mxu0 0.0
    %4663 = vmatpush1.msra.mxu0 0.0
    %4664 = vmatprep.subr.mxu0 0.0
    %4665 = vmatpush1.msra.mxu0 0.0
    %4666 = vmatprep.subr.mxu0 0.0
    %4667 = vmatpush1.msra.mxu0 0.0
    %4668 = vmatprep.subr.mxu0 0.0
    %4669 = vmatpush1.msra.mxu0 0.0
    %4670 = vmatprep.subr.mxu0 0.0
    %4671 = vmatpush1.msra.mxu0 0.0
    %4672 = vmatprep.mubr.f32.mxu0 0.0
    %4673 = vmatmul.mubr.f32.gmra.mrb[0].mxu0 %v4604
    %v4674 = vpop.f32.mrb[0].mxu0
    %v4675 = vadd.f32 0.0, %v4674
    %v4676 = vpop.f32.mrb[0].mxu0
    %4677 = vdwg.mxu0
    %4678 = vrot.lane.b32.xlu0 %v4513, 120
    %v4679 = vpop.permute.xlu0 %4678
    %4680 = vrot.lane.b32.xlu0 %v4513, 88
    %v4681 = vpop.permute.xlu0 %4680
    %v4682 = vsel %vm585, %v4679, 0
    %v4684 = vsel %vm585, %v4681, 0
    %4686 = vmatprep.subr.mxu0 0.0
    %4687 = vmatpush1.xpose.msra.mxu0 %v4684
    %4688 = vmatprep.subr.mxu0 0.0
    %4689 = vmatpush1.xpose.msra.mxu0 0.0
    %4690 = vmatprep.subr.mxu0 0.0
    %4691 = vmatpush1.xpose.msra.mxu0 0.0
    %4692 = vmatprep.subr.mxu0 0.0
    %4693 = vmatpush1.xpose.msra.mxu0 0.0
    %4694 = vmatprep.subr.mxu0 0.0
    %4695 = vmatpush1.xpose.msra.mxu0 0.0
    %4696 = vmatprep.subr.mxu0 0.0
    %4697 = vmatpush1.xpose.msra.mxu0 0.0
    %4698 = vmatprep.subr.mxu0 0.0
    %4699 = vmatpush1.xpose.msra.mxu0 0.0
    %4700 = vmatprep.subr.mxu0 0.0
    %4701 = vmatpush1.xpose.msra.mxu0 0.0
    %4702 = vmatprep.subr.mxu0 0.0
    %4703 = vmatpush1.xpose.msra.mxu0 0.0
    %4704 = vmatprep.subr.mxu0 0.0
    %4705 = vmatpush1.xpose.msra.mxu0 0.0
    %4706 = vmatprep.subr.mxu0 0.0
    %4707 = vmatpush1.xpose.msra.mxu0 0.0
    %4708 = vmatprep.subr.mxu0 0.0
    %4709 = vmatpush1.xpose.msra.mxu0 0.0
    %4710 = vmatprep.subr.mxu0 0.0
    %4711 = vmatpush1.xpose.msra.mxu0 0.0
    %4712 = vmatprep.subr.mxu0 0.0
    %4713 = vmatpush1.xpose.msra.mxu0 0.0
    %4714 = vmatprep.subr.mxu0 0.0
    %4715 = vmatpush1.xpose.msra.mxu0 0.0
    %4716 = vmatprep.subr.mxu0 0.0
    %4717 = vmatpush1.xpose.msra.mxu0 0.0
    %4718 = vmatprep.subr.mxu0 0.0
    %4719 = vmatpush1.xpose.msra.mxu0 0.0
    %4720 = vmatprep.subr.mxu0 0.0
    %4721 = vmatpush1.xpose.msra.mxu0 0.0
    %4722 = vmatprep.subr.mxu0 0.0
    %4723 = vmatpush1.xpose.msra.mxu0 0.0
    %4724 = vmatprep.subr.mxu0 0.0
    %4725 = vmatpush1.xpose.msra.mxu0 0.0
    %4726 = vmatprep.subr.mxu0 0.0
    %4727 = vmatpush1.xpose.msra.mxu0 0.0
    %4728 = vmatprep.subr.mxu0 0.0
    %4729 = vmatpush1.xpose.msra.mxu0 0.0
    %4730 = vmatprep.subr.mxu0 0.0
    %4731 = vmatpush1.xpose.msra.mxu0 0.0
    %4732 = vmatprep.subr.mxu0 0.0
    %4733 = vmatpush1.xpose.msra.mxu0 0.0
    %4734 = vmatprep.subr.mxu0 0.0
    %4735 = vmatpush1.xpose.msra.mxu0 0.0
    %4736 = vmatprep.subr.mxu0 0.0
    %4737 = vmatpush1.xpose.msra.mxu0 0.0
    %4738 = vmatprep.subr.mxu0 0.0
    %4739 = vmatpush1.xpose.msra.mxu0 0.0
    %4740 = vmatprep.subr.mxu0 0.0
    %4741 = vmatpush1.xpose.msra.mxu0 0.0
    %4742 = vmatprep.subr.mxu0 0.0
    %4743 = vmatpush1.xpose.msra.mxu0 0.0
    %4744 = vmatprep.subr.mxu0 0.0
    %4745 = vmatpush1.xpose.msra.mxu0 0.0
    %4746 = vmatprep.subr.mxu0 0.0
    %4747 = vmatpush1.xpose.msra.mxu0 0.0
    %4748 = vmatprep.subr.mxu0 0.0
    %4749 = vmatpush1.xpose.msra.mxu0 0.0
    %4750 = vmatprep.mubr.f32.mxu0 0.0
    %4751 = vmatmul.mubr.f32.gmra.mrb[0].mxu0 %v4682
    %v4752 = vpop.f32.mrb[0].mxu0
    %v4753 = vadd.f32 0.0, %v4752
    %v4754 = vpop.f32.mrb[0].mxu0
    %4755 = vdwg.mxu0
    %v4756 = vsel %vm660, %v4753, -inf
    %4757 = vmax.xlane.f32.xlu0 %v4756
    %v4758 = vpop.xlane.xlu0 %4757
    %v4759 = vsub.f32 %v4753, %v4758
    %v4760 = vmul.f32 %v4759, 1.442695
    %v4761 = vpow.pop %v4760
    %v4762 = vsel %vm660, %v4761, 0.0
    %4763 = vadd.xlane.f32.xlu0 %v4762
    %v4764 = vpop.xlane.xlu0 %4763
    %v4765 = vrcp.pop %v4764
    %v4766 = vmul.f32 %v4761, %v4765
    %4767 = vrot.lane.b32.xlu0 %v4513, 56
    %v4768 = vpop.permute.xlu0 %4767
    %v4770 = vsel %vm674, %v4766, 0
    %v4772 = vsel %vm364, %v4768, 0
    %4774 = vmatprep.subr.mxu0 0.0
    %4775 = vmatpush1.msra.mxu0 %v4772
    %4776 = vmatprep.subr.mxu0 0.0
    %4777 = vmatpush1.msra.mxu0 0.0
    %4778 = vmatprep.subr.mxu0 0.0
    %4779 = vmatpush1.msra.mxu0 0.0
    %4780 = vmatprep.subr.mxu0 0.0
    %4781 = vmatpush1.msra.mxu0 0.0
    %4782 = vmatprep.subr.mxu0 0.0
    %4783 = vmatpush1.msra.mxu0 0.0
    %4784 = vmatprep.subr.mxu0 0.0
    %4785 = vmatpush1.msra.mxu0 0.0
    %4786 = vmatprep.subr.mxu0 0.0
    %4787 = vmatpush1.msra.mxu0 0.0
    %4788 = vmatprep.subr.mxu0 0.0
    %4789 = vmatpush1.msra.mxu0 0.0
    %4790 = vmatprep.subr.mxu0 0.0
    %4791 = vmatpush1.msra.mxu0 0.0
    %4792 = vmatprep.subr.mxu0 0.0
    %4793 = vmatpush1.msra.mxu0 0.0
    %4794 = vmatprep.subr.mxu0 0.0
    %4795 = vmatpush1.msra.mxu0 0.0
    %4796 = vmatprep.subr.mxu0 0.0
    %4797 = vmatpush1.msra.mxu0 0.0
    %4798 = vmatprep.subr.mxu0 0.0
    %4799 = vmatpush1.msra.mxu0 0.0
    %4800 = vmatprep.subr.mxu0 0.0
    %4801 = vmatpush1.msra.mxu0 0.0
    %4802 = vmatprep.subr.mxu0 0.0
    %4803 = vmatpush1.msra.mxu0 0.0
    %4804 = vmatprep.subr.mxu0 0.0
    %4805 = vmatpush1.msra.mxu0 0.0
    %4806 = vmatprep.subr.mxu0 0.0
    %4807 = vmatpush1.msra.mxu0 0.0
    %4808 = vmatprep.subr.mxu0 0.0
    %4809 = vmatpush1.msra.mxu0 0.0
    %4810 = vmatprep.subr.mxu0 0.0
    %4811 = vmatpush1.msra.mxu0 0.0
    %4812 = vmatprep.subr.mxu0 0.0
    %4813 = vmatpush1.msra.mxu0 0.0
    %4814 = vmatprep.subr.mxu0 0.0
    %4815 = vmatpush1.msra.mxu0 0.0
    %4816 = vmatprep.subr.mxu0 0.0
    %4817 = vmatpush1.msra.mxu0 0.0
    %4818 = vmatprep.subr.mxu0 0.0
    %4819 = vmatpush1.msra.mxu0 0.0
    %4820 = vmatprep.subr.mxu0 0.0
    %4821 = vmatpush1.msra.mxu0 0.0
    %4822 = vmatprep.subr.mxu0 0.0
    %4823 = vmatpush1.msra.mxu0 0.0
    %4824 = vmatprep.subr.mxu0 0.0
    %4825 = vmatpush1.msra.mxu0 0.0
    %4826 = vmatprep.subr.mxu0 0.0
    %4827 = vmatpush1.msra.mxu0 0.0
    %4828 = vmatprep.subr.mxu0 0.0
    %4829 = vmatpush1.msra.mxu0 0.0
    %4830 = vmatprep.subr.mxu0 0.0
    %4831 = vmatpush1.msra.mxu0 0.0
    %4832 = vmatprep.subr.mxu0 0.0
    %4833 = vmatpush1.msra.mxu0 0.0
    %4834 = vmatprep.subr.mxu0 0.0
    %4835 = vmatpush1.msra.mxu0 0.0
    %4836 = vmatprep.subr.mxu0 0.0
    %4837 = vmatpush1.msra.mxu0 0.0
    %4838 = vmatprep.mubr.f32.mxu0 0.0
    %4839 = vmatmul.mubr.f32.gmra.mrb[0].mxu0 %v4770
    %v4840 = vpop.f32.mrb[0].mxu0
    %v4841 = vadd.f32 0.0, %v4840
    %v4842 = vpop.f32.mrb[0].mxu0
    %4843 = vdwg.mxu0
    %4844 = vrot.lane.b32.xlu0 %v4513, 112
    %v4845 = vpop.permute.xlu0 %4844
    %4846 = vrot.lane.b32.xlu0 %v4513, 80
    %v4847 = vpop.permute.xlu0 %4846
    %v4848 = vsel %vm585, %v4845, 0
    %v4850 = vsel %vm585, %v4847, 0
    %4852 = vmatprep.subr.mxu0 0.0
    %4853 = vmatpush1.xpose.msra.mxu0 %v4850
    %4854 = vmatprep.subr.mxu0 0.0
    %4855 = vmatpush1.xpose.msra.mxu0 0.0
    %4856 = vmatprep.subr.mxu0 0.0
    %4857 = vmatpush1.xpose.msra.mxu0 0.0
    %4858 = vmatprep.subr.mxu0 0.0
    %4859 = vmatpush1.xpose.msra.mxu0 0.0
    %4860 = vmatprep.subr.mxu0 0.0
    %4861 = vmatpush1.xpose.msra.mxu0 0.0
    %4862 = vmatprep.subr.mxu0 0.0
    %4863 = vmatpush1.xpose.msra.mxu0 0.0
    %4864 = vmatprep.subr.mxu0 0.0
    %4865 = vmatpush1.xpose.msra.mxu0 0.0
    %4866 = vmatprep.subr.mxu0 0.0
    %4867 = vmatpush1.xpose.msra.mxu0 0.0
    %4868 = vmatprep.subr.mxu0 0.0
    %4869 = vmatpush1.xpose.msra.mxu0 0.0
    %4870 = vmatprep.subr.mxu0 0.0
    %4871 = vmatpush1.xpose.msra.mxu0 0.0
    %4872 = vmatprep.subr.mxu0 0.0
    %4873 = vmatpush1.xpose.msra.mxu0 0.0
    %4874 = vmatprep.subr.mxu0 0.0
    %4875 = vmatpush1.xpose.msra.mxu0 0.0
    %4876 = vmatprep.subr.mxu0 0.0
    %4877 = vmatpush1.xpose.msra.mxu0 0.0
    %4878 = vmatprep.subr.mxu0 0.0
    %4879 = vmatpush1.xpose.msra.mxu0 0.0
    %4880 = vmatprep.subr.mxu0 0.0
    %4881 = vmatpush1.xpose.msra.mxu0 0.0
    %4882 = vmatprep.subr.mxu0 0.0
    %4883 = vmatpush1.xpose.msra.mxu0 0.0
    %4884 = vmatprep.subr.mxu0 0.0
    %4885 = vmatpush1.xpose.msra.mxu0 0.0
    %4886 = vmatprep.subr.mxu0 0.0
    %4887 = vmatpush1.xpose.msra.mxu0 0.0
    %4888 = vmatprep.subr.mxu0 0.0
    %4889 = vmatpush1.xpose.msra.mxu0 0.0
    %4890 = vmatprep.subr.mxu0 0.0
    %4891 = vmatpush1.xpose.msra.mxu0 0.0
    %4892 = vmatprep.subr.mxu0 0.0
    %4893 = vmatpush1.xpose.msra.mxu0 0.0
    %4894 = vmatprep.subr.mxu0 0.0
    %4895 = vmatpush1.xpose.msra.mxu0 0.0
    %4896 = vmatprep.subr.mxu0 0.0
    %4897 = vmatpush1.xpose.msra.mxu0 0.0
    %4898 = vmatprep.subr.mxu0 0.0
    %4899 = vmatpush1.xpose.msra.mxu0 0.0
    %4900 = vmatprep.subr.mxu0 0.0
    %4901 = vmatpush1.xpose.msra.mxu0 0.0
    %4902 = vmatprep.subr.mxu0 0.0
    %4903 = vmatpush1.xpose.msra.mxu0 0.0
    %4904 = vmatprep.subr.mxu0 0.0
    %4905 = vmatpush1.xpose.msra.mxu0 0.0
    %4906 = vmatprep.subr.mxu0 0.0
    %4907 = vmatpush1.xpose.msra.mxu0 0.0
    %4908 = vmatprep.subr.mxu0 0.0
    %4909 = vmatpush1.xpose.msra.mxu0 0.0
    %4910 = vmatprep.subr.mxu0 0.0
    %4911 = vmatpush1.xpose.msra.mxu0 0.0
    %4912 = vmatprep.subr.mxu0 0.0
    %4913 = vmatpush1.xpose.msra.mxu0 0.0
    %4914 = vmatprep.subr.mxu0 0.0
    %4915 = vmatpush1.xpose.msra.mxu0 0.0
    %4916 = vmatprep.mubr.f32.mxu0 0.0
    %4917 = vmatmul.mubr.f32.gmra.mrb[0].mxu0 %v4848
    %v4918 = vpop.f32.mrb[0].mxu0
    %v4919 = vadd.f32 0.0, %v4918
    %v4920 = vpop.f32.mrb[0].mxu0
    %4921 = vdwg.mxu0
    %v4922 = vsel %vm660, %v4919, -inf
    %4923 = vmax.xlane.f32.xlu0 %v4922
    %v4924 = vpop.xlane.xlu0 %4923
    %v4925 = vsub.f32 %v4919, %v4924
    %v4926 = vmul.f32 %v4925, 1.442695
    %v4927 = vpow.pop %v4926
    %v4928 = vsel %vm660, %v4927, 0.0
    %4929 = vadd.xlane.f32.xlu0 %v4928
    %v4930 = vpop.xlane.xlu0 %4929
    %v4931 = vrcp.pop %v4930
    %v4932 = vmul.f32 %v4927, %v4931
    %4933 = vrot.lane.b32.xlu0 %v4513, 48
    %v4934 = vpop.permute.xlu0 %4933
    %v4936 = vsel %vm674, %v4932, 0
    %v4938 = vsel %vm364, %v4934, 0
    %4940 = vmatprep.subr.mxu0 0.0
    %4941 = vmatpush1.msra.mxu0 %v4938
    %4942 = vmatprep.subr.mxu0 0.0
    %4943 = vmatpush1.msra.mxu0 0.0
    %4944 = vmatprep.subr.mxu0 0.0
    %4945 = vmatpush1.msra.mxu0 0.0
    %4946 = vmatprep.subr.mxu0 0.0
    %4947 = vmatpush1.msra.mxu0 0.0
    %4948 = vmatprep.subr.mxu0 0.0
    %4949 = vmatpush1.msra.mxu0 0.0
    %4950 = vmatprep.subr.mxu0 0.0
    %4951 = vmatpush1.msra.mxu0 0.0
    %4952 = vmatprep.subr.mxu0 0.0
    %4953 = vmatpush1.msra.mxu0 0.0
    %4954 = vmatprep.subr.mxu0 0.0
    %4955 = vmatpush1.msra.mxu0 0.0
    %4956 = vmatprep.subr.mxu0 0.0
    %4957 = vmatpush1.msra.mxu0 0.0
    %4958 = vmatprep.subr.mxu0 0.0
    %4959 = vmatpush1.msra.mxu0 0.0
    %4960 = vmatprep.subr.mxu0 0.0
    %4961 = vmatpush1.msra.mxu0 0.0
    %4962 = vmatprep.subr.mxu0 0.0
    %4963 = vmatpush1.msra.mxu0 0.0
    %4964 = vmatprep.subr.mxu0 0.0
    %4965 = vmatpush1.msra.mxu0 0.0
    %4966 = vmatprep.subr.mxu0 0.0
    %4967 = vmatpush1.msra.mxu0 0.0
    %4968 = vmatprep.subr.mxu0 0.0
    %4969 = vmatpush1.msra.mxu0 0.0
    %4970 = vmatprep.subr.mxu0 0.0
    %4971 = vmatpush1.msra.mxu0 0.0
    %4972 = vmatprep.subr.mxu0 0.0
    %4973 = vmatpush1.msra.mxu0 0.0
    %4974 = vmatprep.subr.mxu0 0.0
    %4975 = vmatpush1.msra.mxu0 0.0
    %4976 = vmatprep.subr.mxu0 0.0
    %4977 = vmatpush1.msra.mxu0 0.0
    %4978 = vmatprep.subr.mxu0 0.0
    %4979 = vmatpush1.msra.mxu0 0.0
    %4980 = vmatprep.subr.mxu0 0.0
    %4981 = vmatpush1.msra.mxu0 0.0
    %4982 = vmatprep.subr.mxu0 0.0
    %4983 = vmatpush1.msra.mxu0 0.0
    %4984 = vmatprep.subr.mxu0 0.0
    %4985 = vmatpush1.msra.mxu0 0.0
    %4986 = vmatprep.subr.mxu0 0.0
    %4987 = vmatpush1.msra.mxu0 0.0
    %4988 = vmatprep.subr.mxu0 0.0
    %4989 = vmatpush1.msra.mxu0 0.0
    %4990 = vmatprep.subr.mxu0 0.0
    %4991 = vmatpush1.msra.mxu0 0.0
    %4992 = vmatprep.subr.mxu0 0.0
    %4993 = vmatpush1.msra.mxu0 0.0
    %4994 = vmatprep.subr.mxu0 0.0
    %4995 = vmatpush1.msra.mxu0 0.0
    %4996 = vmatprep.subr.mxu0 0.0
    %4997 = vmatpush1.msra.mxu0 0.0
    %4998 = vmatprep.subr.mxu0 0.0
    %4999 = vmatpush1.msra.mxu0 0.0
    %5000 = vmatprep.subr.mxu0 0.0
    %5001 = vmatpush1.msra.mxu0 0.0
    %5002 = vmatprep.subr.mxu0 0.0
    %5003 = vmatpush1.msra.mxu0 0.0
    %5004 = vmatprep.mubr.f32.mxu0 0.0
    %5005 = vmatmul.mubr.f32.gmra.mrb[0].mxu0 %v4936
    %v5006 = vpop.f32.mrb[0].mxu0
    %v5007 = vadd.f32 0.0, %v5006
    %v5008 = vpop.f32.mrb[0].mxu0
    %5009 = vdwg.mxu0
    %5010 = vrot.lane.b32.xlu0 %v4513, 104
    %v5011 = vpop.permute.xlu0 %5010
    %5012 = vrot.lane.b32.xlu0 %v4513, 72
    %v5013 = vpop.permute.xlu0 %5012
    %v5014 = vsel %vm585, %v5011, 0
    %v5016 = vsel %vm585, %v5013, 0
    %5018 = vmatprep.subr.mxu0 0.0
    %5019 = vmatpush1.xpose.msra.mxu0 %v5016
    %5020 = vmatprep.subr.mxu0 0.0
    %5021 = vmatpush1.xpose.msra.mxu0 0.0
    %5022 = vmatprep.subr.mxu0 0.0
    %5023 = vmatpush1.xpose.msra.mxu0 0.0
    %5024 = vmatprep.subr.mxu0 0.0
    %5025 = vmatpush1.xpose.msra.mxu0 0.0
    %5026 = vmatprep.subr.mxu0 0.0
    %5027 = vmatpush1.xpose.msra.mxu0 0.0
    %5028 = vmatprep.subr.mxu0 0.0
    %5029 = vmatpush1.xpose.msra.mxu0 0.0
    %5030 = vmatprep.subr.mxu0 0.0
    %5031 = vmatpush1.xpose.msra.mxu0 0.0
    %5032 = vmatprep.subr.mxu0 0.0
    %5033 = vmatpush1.xpose.msra.mxu0 0.0
    %5034 = vmatprep.subr.mxu0 0.0
    %5035 = vmatpush1.xpose.msra.mxu0 0.0
    %5036 = vmatprep.subr.mxu0 0.0
    %5037 = vmatpush1.xpose.msra.mxu0 0.0
    %5038 = vmatprep.subr.mxu0 0.0
    %5039 = vmatpush1.xpose.msra.mxu0 0.0
    %5040 = vmatprep.subr.mxu0 0.0
    %5041 = vmatpush1.xpose.msra.mxu0 0.0
    %5042 = vmatprep.subr.mxu0 0.0
    %5043 = vmatpush1.xpose.msra.mxu0 0.0
    %5044 = vmatprep.subr.mxu0 0.0
    %5045 = vmatpush1.xpose.msra.mxu0 0.0
    %5046 = vmatprep.subr.mxu0 0.0
    %5047 = vmatpush1.xpose.msra.mxu0 0.0
    %5048 = vmatprep.subr.mxu0 0.0
    %5049 = vmatpush1.xpose.msra.mxu0 0.0
    %5050 = vmatprep.subr.mxu0 0.0
    %5051 = vmatpush1.xpose.msra.mxu0 0.0
    %5052 = vmatprep.subr.mxu0 0.0
    %5053 = vmatpush1.xpose.msra.mxu0 0.0
    %5054 = vmatprep.subr.mxu0 0.0
    %5055 = vmatpush1.xpose.msra.mxu0 0.0
    %5056 = vmatprep.subr.mxu0 0.0
    %5057 = vmatpush1.xpose.msra.mxu0 0.0
    %5058 = vmatprep.subr.mxu0 0.0
    %5059 = vmatpush1.xpose.msra.mxu0 0.0
    %5060 = vmatprep.subr.mxu0 0.0
    %5061 = vmatpush1.xpose.msra.mxu0 0.0
    %5062 = vmatprep.subr.mxu0 0.0
    %5063 = vmatpush1.xpose.msra.mxu0 0.0
    %5064 = vmatprep.subr.mxu0 0.0
    %5065 = vmatpush1.xpose.msra.mxu0 0.0
    %5066 = vmatprep.subr.mxu0 0.0
    %5067 = vmatpush1.xpose.msra.mxu0 0.0
    %5068 = vmatprep.subr.mxu0 0.0
    %5069 = vmatpush1.xpose.msra.mxu0 0.0
    %5070 = vmatprep.subr.mxu0 0.0
    %5071 = vmatpush1.xpose.msra.mxu0 0.0
    %5072 = vmatprep.subr.mxu0 0.0
    %5073 = vmatpush1.xpose.msra.mxu0 0.0
    %5074 = vmatprep.subr.mxu0 0.0
    %5075 = vmatpush1.xpose.msra.mxu0 0.0
    %5076 = vmatprep.subr.mxu0 0.0
    %5077 = vmatpush1.xpose.msra.mxu0 0.0
    %5078 = vmatprep.subr.mxu0 0.0
    %5079 = vmatpush1.xpose.msra.mxu0 0.0
    %5080 = vmatprep.subr.mxu0 0.0
    %5081 = vmatpush1.xpose.msra.mxu0 0.0
    %5082 = vmatprep.mubr.f32.mxu0 0.0
    %5083 = vmatmul.mubr.f32.gmra.mrb[0].mxu0 %v5014
    %v5084 = vpop.f32.mrb[0].mxu0
    %v5085 = vadd.f32 0.0, %v5084
    %v5086 = vpop.f32.mrb[0].mxu0
    %5087 = vdwg.mxu0
    %v5088 = vsel %vm660, %v5085, -inf
    %5089 = vmax.xlane.f32.xlu0 %v5088
    %v5090 = vpop.xlane.xlu0 %5089
    %v5091 = vsub.f32 %v5085, %v5090
    %v5092 = vmul.f32 %v5091, 1.442695
    %v5093 = vpow.pop %v5092
    %v5094 = vsel %vm660, %v5093, 0.0
    %5095 = vadd.xlane.f32.xlu0 %v5094
    %v5096 = vpop.xlane.xlu0 %5095
    %v5097 = vrcp.pop %v5096
    %v5098 = vmul.f32 %v5093, %v5097
    %5099 = vrot.lane.b32.xlu0 %v4513, 40
    %v5100 = vpop.permute.xlu0 %5099
    %v5102 = vsel %vm674, %v5098, 0
    %v5104 = vsel %vm364, %v5100, 0
    %5106 = vmatprep.subr.mxu0 0.0
    %5107 = vmatpush1.msra.mxu0 %v5104
    %5108 = vmatprep.subr.mxu0 0.0
    %5109 = vmatpush1.msra.mxu0 0.0
    %5110 = vmatprep.subr.mxu0 0.0
    %5111 = vmatpush1.msra.mxu0 0.0
    %5112 = vmatprep.subr.mxu0 0.0
    %5113 = vmatpush1.msra.mxu0 0.0
    %5114 = vmatprep.subr.mxu0 0.0
    %5115 = vmatpush1.msra.mxu0 0.0
    %5116 = vmatprep.subr.mxu0 0.0
    %5117 = vmatpush1.msra.mxu0 0.0
    %5118 = vmatprep.subr.mxu0 0.0
    %5119 = vmatpush1.msra.mxu0 0.0
    %5120 = vmatprep.subr.mxu0 0.0
    %5121 = vmatpush1.msra.mxu0 0.0
    %5122 = vmatprep.subr.mxu0 0.0
    %5123 = vmatpush1.msra.mxu0 0.0
    %5124 = vmatprep.subr.mxu0 0.0
    %5125 = vmatpush1.msra.mxu0 0.0
    %5126 = vmatprep.subr.mxu0 0.0
    %5127 = vmatpush1.msra.mxu0 0.0
    %5128 = vmatprep.subr.mxu0 0.0
    %5129 = vmatpush1.msra.mxu0 0.0
    %5130 = vmatprep.subr.mxu0 0.0
    %5131 = vmatpush1.msra.mxu0 0.0
    %5132 = vmatprep.subr.mxu0 0.0
    %5133 = vmatpush1.msra.mxu0 0.0
    %5134 = vmatprep.subr.mxu0 0.0
    %5135 = vmatpush1.msra.mxu0 0.0
    %5136 = vmatprep.subr.mxu0 0.0
    %5137 = vmatpush1.msra.mxu0 0.0
    %5138 = vmatprep.subr.mxu0 0.0
    %5139 = vmatpush1.msra.mxu0 0.0
    %5140 = vmatprep.subr.mxu0 0.0
    %5141 = vmatpush1.msra.mxu0 0.0
    %5142 = vmatprep.subr.mxu0 0.0
    %5143 = vmatpush1.msra.mxu0 0.0
    %5144 = vmatprep.subr.mxu0 0.0
    %5145 = vmatpush1.msra.mxu0 0.0
    %5146 = vmatprep.subr.mxu0 0.0
    %5147 = vmatpush1.msra.mxu0 0.0
    %5148 = vmatprep.subr.mxu0 0.0
    %5149 = vmatpush1.msra.mxu0 0.0
    %5150 = vmatprep.subr.mxu0 0.0
    %5151 = vmatpush1.msra.mxu0 0.0
    %5152 = vmatprep.subr.mxu0 0.0
    %5153 = vmatpush1.msra.mxu0 0.0
    %5154 = vmatprep.subr.mxu0 0.0
    %5155 = vmatpush1.msra.mxu0 0.0
    %5156 = vmatprep.subr.mxu0 0.0
    %5157 = vmatpush1.msra.mxu0 0.0
    %5158 = vmatprep.subr.mxu0 0.0
    %5159 = vmatpush1.msra.mxu0 0.0
    %5160 = vmatprep.subr.mxu0 0.0
    %5161 = vmatpush1.msra.mxu0 0.0
    %5162 = vmatprep.subr.mxu0 0.0
    %5163 = vmatpush1.msra.mxu0 0.0
    %5164 = vmatprep.subr.mxu0 0.0
    %5165 = vmatpush1.msra.mxu0 0.0
    %5166 = vmatprep.subr.mxu0 0.0
    %5167 = vmatpush1.msra.mxu0 0.0
    %5168 = vmatprep.subr.mxu0 0.0
    %5169 = vmatpush1.msra.mxu0 0.0
    %5170 = vmatprep.mubr.f32.mxu0 0.0
    %5171 = vmatmul.mubr.f32.gmra.mrb[0].mxu0 %v5102
    %v5172 = vpop.f32.mrb[0].mxu0
    %v5173 = vadd.f32 0.0, %v5172
    %v5174 = vpop.f32.mrb[0].mxu0
    %5175 = vdwg.mxu0
    %5177 = vrot.lane.b32.xlu0 %v4841, 8
    %v5178 = vpop.permute.xlu0 %5177
    %5181 = vrot.lane.b32.xlu0 %v5007, 16
    %v5182 = vpop.permute.xlu0 %5181
    %5185 = vrot.lane.b32.xlu0 %v5173, 24
    %v5186 = vpop.permute.xlu0 %5185
    %v5188 = vsel %vm585, %v4675, %v5178
    %v5189 = vsel %vm1261, %v5188, %v5182
    %v5190 = vsel %vm1263, %v5189, %v5186
    %v5191 = vrot.slane %v3824, 2
    %5192 = vrot.lane.b32.xlu0 %v5191, 96
    %v5193 = vpop.permute.xlu0 %5192
    %v5194 = vsel %vm585, %v5191, 0
    %v5196 = vsel %vm585, %v5193, 0
    %5198 = vmatprep.subr.mxu0 0.0
    %5199 = vmatpush1.xpose.msra.mxu0 %v5196
    %5200 = vmatprep.subr.mxu0 0.0
    %5201 = vmatpush1.xpose.msra.mxu0 0.0
    %5202 = vmatprep.subr.mxu0 0.0
    %5203 = vmatpush1.xpose.msra.mxu0 0.0
    %5204 = vmatprep.subr.mxu0 0.0
    %5205 = vmatpush1.xpose.msra.mxu0 0.0
    %5206 = vmatprep.subr.mxu0 0.0
    %5207 = vmatpush1.xpose.msra.mxu0 0.0
    %5208 = vmatprep.subr.mxu0 0.0
    %5209 = vmatpush1.xpose.msra.mxu0 0.0
    %5210 = vmatprep.subr.mxu0 0.0
    %5211 = vmatpush1.xpose.msra.mxu0 0.0
    %5212 = vmatprep.subr.mxu0 0.0
    %5213 = vmatpush1.xpose.msra.mxu0 0.0
    %5214 = vmatprep.subr.mxu0 0.0
    %5215 = vmatpush1.xpose.msra.mxu0 0.0
    %5216 = vmatprep.subr.mxu0 0.0
    %5217 = vmatpush1.xpose.msra.mxu0 0.0
    %5218 = vmatprep.subr.mxu0 0.0
    %5219 = vmatpush1.xpose.msra.mxu0 0.0
    %5220 = vmatprep.subr.mxu0 0.0
    %5221 = vmatpush1.xpose.msra.mxu0 0.0
    %5222 = vmatprep.subr.mxu0 0.0
    %5223 = vmatpush1.xpose.msra.mxu0 0.0
    %5224 = vmatprep.subr.mxu0 0.0
    %5225 = vmatpush1.xpose.msra.mxu0 0.0
    %5226 = vmatprep.subr.mxu0 0.0
    %5227 = vmatpush1.xpose.msra.mxu0 0.0
    %5228 = vmatprep.subr.mxu0 0.0
    %5229 = vmatpush1.xpose.msra.mxu0 0.0
    %5230 = vmatprep.subr.mxu0 0.0
    %5231 = vmatpush1.xpose.msra.mxu0 0.0
    %5232 = vmatprep.subr.mxu0 0.0
    %5233 = vmatpush1.xpose.msra.mxu0 0.0
    %5234 = vmatprep.subr.mxu0 0.0
    %5235 = vmatpush1.xpose.msra.mxu0 0.0
    %5236 = vmatprep.subr.mxu0 0.0
    %5237 = vmatpush1.xpose.msra.mxu0 0.0
    %5238 = vmatprep.subr.mxu0 0.0
    %5239 = vmatpush1.xpose.msra.mxu0 0.0
    %5240 = vmatprep.subr.mxu0 0.0
    %5241 = vmatpush1.xpose.msra.mxu0 0.0
    %5242 = vmatprep.subr.mxu0 0.0
    %5243 = vmatpush1.xpose.msra.mxu0 0.0
    %5244 = vmatprep.subr.mxu0 0.0
    %5245 = vmatpush1.xpose.msra.mxu0 0.0
    %5246 = vmatprep.subr.mxu0 0.0
    %5247 = vmatpush1.xpose.msra.mxu0 0.0
    %5248 = vmatprep.subr.mxu0 0.0
    %5249 = vmatpush1.xpose.msra.mxu0 0.0
    %5250 = vmatprep.subr.mxu0 0.0
    %5251 = vmatpush1.xpose.msra.mxu0 0.0
    %5252 = vmatprep.subr.mxu0 0.0
    %5253 = vmatpush1.xpose.msra.mxu0 0.0
    %5254 = vmatprep.subr.mxu0 0.0
    %5255 = vmatpush1.xpose.msra.mxu0 0.0
    %5256 = vmatprep.subr.mxu0 0.0
    %5257 = vmatpush1.xpose.msra.mxu0 0.0
    %5258 = vmatprep.subr.mxu0 0.0
    %5259 = vmatpush1.xpose.msra.mxu0 0.0
    %5260 = vmatprep.subr.mxu0 0.0
    %5261 = vmatpush1.xpose.msra.mxu0 0.0
    %5262 = vmatprep.mubr.f32.mxu0 0.0
    %5263 = vmatmul.mubr.f32.gmra.mrb[0].mxu0 %v5194
    %v5264 = vpop.f32.mrb[0].mxu0
    %v5265 = vadd.f32 0.0, %v5264
    %v5266 = vpop.f32.mrb[0].mxu0
    %5267 = vdwg.mxu0
    %v5268 = vsel %vm660, %v5265, -inf
    %5269 = vmax.xlane.f32.xlu0 %v5268
    %v5270 = vpop.xlane.xlu0 %5269
    %v5271 = vsub.f32 %v5265, %v5270
    %v5272 = vmul.f32 %v5271, 1.442695
    %v5273 = vpow.pop %v5272
    %v5274 = vsel %vm660, %v5273, 0.0
    %5275 = vadd.xlane.f32.xlu0 %v5274
    %v5276 = vpop.xlane.xlu0 %5275
    %v5277 = vrcp.pop %v5276
    %v5278 = vmul.f32 %v5273, %v5277
    %5279 = vrot.lane.b32.xlu0 %v5191, 64
    %v5280 = vpop.permute.xlu0 %5279
    %v5282 = vsel %vm674, %v5278, 0
    %v5284 = vsel %vm364, %v5280, 0
    %5286 = vmatprep.subr.mxu0 0.0
    %5287 = vmatpush1.msra.mxu0 %v5284
    %5288 = vmatprep.subr.mxu0 0.0
    %5289 = vmatpush1.msra.mxu0 0.0
    %5290 = vmatprep.subr.mxu0 0.0
    %5291 = vmatpush1.msra.mxu0 0.0
    %5292 = vmatprep.subr.mxu0 0.0
    %5293 = vmatpush1.msra.mxu0 0.0
    %5294 = vmatprep.subr.mxu0 0.0
    %5295 = vmatpush1.msra.mxu0 0.0
    %5296 = vmatprep.subr.mxu0 0.0
    %5297 = vmatpush1.msra.mxu0 0.0
    %5298 = vmatprep.subr.mxu0 0.0
    %5299 = vmatpush1.msra.mxu0 0.0
    %5300 = vmatprep.subr.mxu0 0.0
    %5301 = vmatpush1.msra.mxu0 0.0
    %5302 = vmatprep.subr.mxu0 0.0
    %5303 = vmatpush1.msra.mxu0 0.0
    %5304 = vmatprep.subr.mxu0 0.0
    %5305 = vmatpush1.msra.mxu0 0.0
    %5306 = vmatprep.subr.mxu0 0.0
    %5307 = vmatpush1.msra.mxu0 0.0
    %5308 = vmatprep.subr.mxu0 0.0
    %5309 = vmatpush1.msra.mxu0 0.0
    %5310 = vmatprep.subr.mxu0 0.0
    %5311 = vmatpush1.msra.mxu0 0.0
    %5312 = vmatprep.subr.mxu0 0.0
    %5313 = vmatpush1.msra.mxu0 0.0
    %5314 = vmatprep.subr.mxu0 0.0
    %5315 = vmatpush1.msra.mxu0 0.0
    %5316 = vmatprep.subr.mxu0 0.0
    %5317 = vmatpush1.msra.mxu0 0.0
    %5318 = vmatprep.subr.mxu0 0.0
    %5319 = vmatpush1.msra.mxu0 0.0
    %5320 = vmatprep.subr.mxu0 0.0
    %5321 = vmatpush1.msra.mxu0 0.0
    %5322 = vmatprep.subr.mxu0 0.0
    %5323 = vmatpush1.msra.mxu0 0.0
    %5324 = vmatprep.subr.mxu0 0.0
    %5325 = vmatpush1.msra.mxu0 0.0
    %5326 = vmatprep.subr.mxu0 0.0
    %5327 = vmatpush1.msra.mxu0 0.0
    %5328 = vmatprep.subr.mxu0 0.0
    %5329 = vmatpush1.msra.mxu0 0.0
    %5330 = vmatprep.subr.mxu0 0.0
    %5331 = vmatpush1.msra.mxu0 0.0
    %5332 = vmatprep.subr.mxu0 0.0
    %5333 = vmatpush1.msra.mxu0 0.0
    %5334 = vmatprep.subr.mxu0 0.0
    %5335 = vmatpush1.msra.mxu0 0.0
    %5336 = vmatprep.subr.mxu0 0.0
    %5337 = vmatpush1.msra.mxu0 0.0
    %5338 = vmatprep.subr.mxu0 0.0
    %5339 = vmatpush1.msra.mxu0 0.0
    %5340 = vmatprep.subr.mxu0 0.0
    %5341 = vmatpush1.msra.mxu0 0.0
    %5342 = vmatprep.subr.mxu0 0.0
    %5343 = vmatpush1.msra.mxu0 0.0
    %5344 = vmatprep.subr.mxu0 0.0
    %5345 = vmatpush1.msra.mxu0 0.0
    %5346 = vmatprep.subr.mxu0 0.0
    %5347 = vmatpush1.msra.mxu0 0.0
    %5348 = vmatprep.subr.mxu0 0.0
    %5349 = vmatpush1.msra.mxu0 0.0
    %5350 = vmatprep.mubr.f32.mxu0 0.0
    %5351 = vmatmul.mubr.f32.gmra.mrb[0].mxu0 %v5282
    %v5352 = vpop.f32.mrb[0].mxu0
    %v5353 = vadd.f32 0.0, %v5352
    %v5354 = vpop.f32.mrb[0].mxu0
    %5355 = vdwg.mxu0
    %5356 = vrot.lane.b32.xlu0 %v5191, 120
    %v5357 = vpop.permute.xlu0 %5356
    %5358 = vrot.lane.b32.xlu0 %v5191, 88
    %v5359 = vpop.permute.xlu0 %5358
    %v5360 = vsel %vm585, %v5357, 0
    %v5362 = vsel %vm585, %v5359, 0
    %5364 = vmatprep.subr.mxu0 0.0
    %5365 = vmatpush1.xpose.msra.mxu0 %v5362
    %5366 = vmatprep.subr.mxu0 0.0
    %5367 = vmatpush1.xpose.msra.mxu0 0.0
    %5368 = vmatprep.subr.mxu0 0.0
    %5369 = vmatpush1.xpose.msra.mxu0 0.0
    %5370 = vmatprep.subr.mxu0 0.0
    %5371 = vmatpush1.xpose.msra.mxu0 0.0
    %5372 = vmatprep.subr.mxu0 0.0
    %5373 = vmatpush1.xpose.msra.mxu0 0.0
    %5374 = vmatprep.subr.mxu0 0.0
    %5375 = vmatpush1.xpose.msra.mxu0 0.0
    %5376 = vmatprep.subr.mxu0 0.0
    %5377 = vmatpush1.xpose.msra.mxu0 0.0
    %5378 = vmatprep.subr.mxu0 0.0
    %5379 = vmatpush1.xpose.msra.mxu0 0.0
    %5380 = vmatprep.subr.mxu0 0.0
    %5381 = vmatpush1.xpose.msra.mxu0 0.0
    %5382 = vmatprep.subr.mxu0 0.0
    %5383 = vmatpush1.xpose.msra.mxu0 0.0
    %5384 = vmatprep.subr.mxu0 0.0
    %5385 = vmatpush1.xpose.msra.mxu0 0.0
    %5386 = vmatprep.subr.mxu0 0.0
    %5387 = vmatpush1.xpose.msra.mxu0 0.0
    %5388 = vmatprep.subr.mxu0 0.0
    %5389 = vmatpush1.xpose.msra.mxu0 0.0
    %5390 = vmatprep.subr.mxu0 0.0
    %5391 = vmatpush1.xpose.msra.mxu0 0.0
    %5392 = vmatprep.subr.mxu0 0.0
    %5393 = vmatpush1.xpose.msra.mxu0 0.0
    %5394 = vmatprep.subr.mxu0 0.0
    %5395 = vmatpush1.xpose.msra.mxu0 0.0
    %5396 = vmatprep.subr.mxu0 0.0
    %5397 = vmatpush1.xpose.msra.mxu0 0.0
    %5398 = vmatprep.subr.mxu0 0.0
    %5399 = vmatpush1.xpose.msra.mxu0 0.0
    %5400 = vmatprep.subr.mxu0 0.0
    %5401 = vmatpush1.xpose.msra.mxu0 0.0
    %5402 = vmatprep.subr.mxu0 0.0
    %5403 = vmatpush1.xpose.msra.mxu0 0.0
    %5404 = vmatprep.subr.mxu0 0.0
    %5405 = vmatpush1.xpose.msra.mxu0 0.0
    %5406 = vmatprep.subr.mxu0 0.0
    %5407 = vmatpush1.xpose.msra.mxu0 0.0
    %5408 = vmatprep.subr.mxu0 0.0
    %5409 = vmatpush1.xpose.msra.mxu0 0.0
    %5410 = vmatprep.subr.mxu0 0.0
    %5411 = vmatpush1.xpose.msra.mxu0 0.0
    %5412 = vmatprep.subr.mxu0 0.0
    %5413 = vmatpush1.xpose.msra.mxu0 0.0
    %5414 = vmatprep.subr.mxu0 0.0
    %5415 = vmatpush1.xpose.msra.mxu0 0.0
    %5416 = vmatprep.subr.mxu0 0.0
    %5417 = vmatpush1.xpose.msra.mxu0 0.0
    %5418 = vmatprep.subr.mxu0 0.0
    %5419 = vmatpush1.xpose.msra.mxu0 0.0
    %5420 = vmatprep.subr.mxu0 0.0
    %5421 = vmatpush1.xpose.msra.mxu0 0.0
    %5422 = vmatprep.subr.mxu0 0.0
    %5423 = vmatpush1.xpose.msra.mxu0 0.0
    %5424 = vmatprep.subr.mxu0 0.0
    %5425 = vmatpush1.xpose.msra.mxu0 0.0
    %5426 = vmatprep.subr.mxu0 0.0
    %5427 = vmatpush1.xpose.msra.mxu0 0.0
    %5428 = vmatprep.mubr.f32.mxu0 0.0
    %5429 = vmatmul.mubr.f32.gmra.mrb[0].mxu0 %v5360
    %v5430 = vpop.f32.mrb[0].mxu0
    %v5431 = vadd.f32 0.0, %v5430
    %v5432 = vpop.f32.mrb[0].mxu0
    %5433 = vdwg.mxu0
    %v5434 = vsel %vm660, %v5431, -inf
    %5435 = vmax.xlane.f32.xlu0 %v5434
    %v5436 = vpop.xlane.xlu0 %5435
    %v5437 = vsub.f32 %v5431, %v5436
    %v5438 = vmul.f32 %v5437, 1.442695
    %v5439 = vpow.pop %v5438
    %v5440 = vsel %vm660, %v5439, 0.0
    %5441 = vadd.xlane.f32.xlu0 %v5440
    %v5442 = vpop.xlane.xlu0 %5441
    %v5443 = vrcp.pop %v5442
    %v5444 = vmul.f32 %v5439, %v5443
    %5445 = vrot.lane.b32.xlu0 %v5191, 56
    %v5446 = vpop.permute.xlu0 %5445
    %v5448 = vsel %vm674, %v5444, 0
    %v5450 = vsel %vm364, %v5446, 0
    %5452 = vmatprep.subr.mxu0 0.0
    %5453 = vmatpush1.msra.mxu0 %v5450
    %5454 = vmatprep.subr.mxu0 0.0
    %5455 = vmatpush1.msra.mxu0 0.0
    %5456 = vmatprep.subr.mxu0 0.0
    %5457 = vmatpush1.msra.mxu0 0.0
    %5458 = vmatprep.subr.mxu0 0.0
    %5459 = vmatpush1.msra.mxu0 0.0
    %5460 = vmatprep.subr.mxu0 0.0
    %5461 = vmatpush1.msra.mxu0 0.0
    %5462 = vmatprep.subr.mxu0 0.0
    %5463 = vmatpush1.msra.mxu0 0.0
    %5464 = vmatprep.subr.mxu0 0.0
    %5465 = vmatpush1.msra.mxu0 0.0
    %5466 = vmatprep.subr.mxu0 0.0
    %5467 = vmatpush1.msra.mxu0 0.0
    %5468 = vmatprep.subr.mxu0 0.0
    %5469 = vmatpush1.msra.mxu0 0.0
    %5470 = vmatprep.subr.mxu0 0.0
    %5471 = vmatpush1.msra.mxu0 0.0
    %5472 = vmatprep.subr.mxu0 0.0
    %5473 = vmatpush1.msra.mxu0 0.0
    %5474 = vmatprep.subr.mxu0 0.0
    %5475 = vmatpush1.msra.mxu0 0.0
    %5476 = vmatprep.subr.mxu0 0.0
    %5477 = vmatpush1.msra.mxu0 0.0
    %5478 = vmatprep.subr.mxu0 0.0
    %5479 = vmatpush1.msra.mxu0 0.0
    %5480 = vmatprep.subr.mxu0 0.0
    %5481 = vmatpush1.msra.mxu0 0.0
    %5482 = vmatprep.subr.mxu0 0.0
    %5483 = vmatpush1.msra.mxu0 0.0
    %5484 = vmatprep.subr.mxu0 0.0
    %5485 = vmatpush1.msra.mxu0 0.0
    %5486 = vmatprep.subr.mxu0 0.0
    %5487 = vmatpush1.msra.mxu0 0.0
    %5488 = vmatprep.subr.mxu0 0.0
    %5489 = vmatpush1.msra.mxu0 0.0
    %5490 = vmatprep.subr.mxu0 0.0
    %5491 = vmatpush1.msra.mxu0 0.0
    %5492 = vmatprep.subr.mxu0 0.0
    %5493 = vmatpush1.msra.mxu0 0.0
    %5494 = vmatprep.subr.mxu0 0.0
    %5495 = vmatpush1.msra.mxu0 0.0
    %5496 = vmatprep.subr.mxu0 0.0
    %5497 = vmatpush1.msra.mxu0 0.0
    %5498 = vmatprep.subr.mxu0 0.0
    %5499 = vmatpush1.msra.mxu0 0.0
    %5500 = vmatprep.subr.mxu0 0.0
    %5501 = vmatpush1.msra.mxu0 0.0
    %5502 = vmatprep.subr.mxu0 0.0
    %5503 = vmatpush1.msra.mxu0 0.0
    %5504 = vmatprep.subr.mxu0 0.0
    %5505 = vmatpush1.msra.mxu0 0.0
    %5506 = vmatprep.subr.mxu0 0.0
    %5507 = vmatpush1.msra.mxu0 0.0
    %5508 = vmatprep.subr.mxu0 0.0
    %5509 = vmatpush1.msra.mxu0 0.0
    %5510 = vmatprep.subr.mxu0 0.0
    %5511 = vmatpush1.msra.mxu0 0.0
    %5512 = vmatprep.subr.mxu0 0.0
    %5513 = vmatpush1.msra.mxu0 0.0
    %5514 = vmatprep.subr.mxu0 0.0
    %5515 = vmatpush1.msra.mxu0 0.0
    %5516 = vmatprep.mubr.f32.mxu0 0.0
    %5517 = vmatmul.mubr.f32.gmra.mrb[0].mxu0 %v5448
    %v5518 = vpop.f32.mrb[0].mxu0
    %v5519 = vadd.f32 0.0, %v5518
    %v5520 = vpop.f32.mrb[0].mxu0
    %5521 = vdwg.mxu0
    %5522 = vrot.lane.b32.xlu0 %v5191, 112
    %v5523 = vpop.permute.xlu0 %5522
    %5524 = vrot.lane.b32.xlu0 %v5191, 80
    %v5525 = vpop.permute.xlu0 %5524
    %v5526 = vsel %vm585, %v5523, 0
    %v5528 = vsel %vm585, %v5525, 0
    %5530 = vmatprep.subr.mxu0 0.0
    %5531 = vmatpush1.xpose.msra.mxu0 %v5528
    %5532 = vmatprep.subr.mxu0 0.0
    %5533 = vmatpush1.xpose.msra.mxu0 0.0
    %5534 = vmatprep.subr.mxu0 0.0
    %5535 = vmatpush1.xpose.msra.mxu0 0.0
    %5536 = vmatprep.subr.mxu0 0.0
    %5537 = vmatpush1.xpose.msra.mxu0 0.0
    %5538 = vmatprep.subr.mxu0 0.0
    %5539 = vmatpush1.xpose.msra.mxu0 0.0
    %5540 = vmatprep.subr.mxu0 0.0
    %5541 = vmatpush1.xpose.msra.mxu0 0.0
    %5542 = vmatprep.subr.mxu0 0.0
    %5543 = vmatpush1.xpose.msra.mxu0 0.0
    %5544 = vmatprep.subr.mxu0 0.0
    %5545 = vmatpush1.xpose.msra.mxu0 0.0
    %5546 = vmatprep.subr.mxu0 0.0
    %5547 = vmatpush1.xpose.msra.mxu0 0.0
    %5548 = vmatprep.subr.mxu0 0.0
    %5549 = vmatpush1.xpose.msra.mxu0 0.0
    %5550 = vmatprep.subr.mxu0 0.0
    %5551 = vmatpush1.xpose.msra.mxu0 0.0
    %5552 = vmatprep.subr.mxu0 0.0
    %5553 = vmatpush1.xpose.msra.mxu0 0.0
    %5554 = vmatprep.subr.mxu0 0.0
    %5555 = vmatpush1.xpose.msra.mxu0 0.0
    %5556 = vmatprep.subr.mxu0 0.0
    %5557 = vmatpush1.xpose.msra.mxu0 0.0
    %5558 = vmatprep.subr.mxu0 0.0
    %5559 = vmatpush1.xpose.msra.mxu0 0.0
    %5560 = vmatprep.subr.mxu0 0.0
    %5561 = vmatpush1.xpose.msra.mxu0 0.0
    %5562 = vmatprep.subr.mxu0 0.0
    %5563 = vmatpush1.xpose.msra.mxu0 0.0
    %5564 = vmatprep.subr.mxu0 0.0
    %5565 = vmatpush1.xpose.msra.mxu0 0.0
    %5566 = vmatprep.subr.mxu0 0.0
    %5567 = vmatpush1.xpose.msra.mxu0 0.0
    %5568 = vmatprep.subr.mxu0 0.0
    %5569 = vmatpush1.xpose.msra.mxu0 0.0
    %5570 = vmatprep.subr.mxu0 0.0
    %5571 = vmatpush1.xpose.msra.mxu0 0.0
    %5572 = vmatprep.subr.mxu0 0.0
    %5573 = vmatpush1.xpose.msra.mxu0 0.0
    %5574 = vmatprep.subr.mxu0 0.0
    %5575 = vmatpush1.xpose.msra.mxu0 0.0
    %5576 = vmatprep.subr.mxu0 0.0
    %5577 = vmatpush1.xpose.msra.mxu0 0.0
    %5578 = vmatprep.subr.mxu0 0.0
    %5579 = vmatpush1.xpose.msra.mxu0 0.0
    %5580 = vmatprep.subr.mxu0 0.0
    %5581 = vmatpush1.xpose.msra.mxu0 0.0
    %5582 = vmatprep.subr.mxu0 0.0
    %5583 = vmatpush1.xpose.msra.mxu0 0.0
    %5584 = vmatprep.subr.mxu0 0.0
    %5585 = vmatpush1.xpose.msra.mxu0 0.0
    %5586 = vmatprep.subr.mxu0 0.0
    %5587 = vmatpush1.xpose.msra.mxu0 0.0
    %5588 = vmatprep.subr.mxu0 0.0
    %5589 = vmatpush1.xpose.msra.mxu0 0.0
    %5590 = vmatprep.subr.mxu0 0.0
    %5591 = vmatpush1.xpose.msra.mxu0 0.0
    %5592 = vmatprep.subr.mxu0 0.0
    %5593 = vmatpush1.xpose.msra.mxu0 0.0
    %5594 = vmatprep.mubr.f32.mxu0 0.0
    %5595 = vmatmul.mubr.f32.gmra.mrb[0].mxu0 %v5526
    %v5596 = vpop.f32.mrb[0].mxu0
    %v5597 = vadd.f32 0.0, %v5596
    %v5598 = vpop.f32.mrb[0].mxu0
    %5599 = vdwg.mxu0
    %v5600 = vsel %vm660, %v5597, -inf
    %5601 = vmax.xlane.f32.xlu0 %v5600
    %v5602 = vpop.xlane.xlu0 %5601
    %v5603 = vsub.f32 %v5597, %v5602
    %v5604 = vmul.f32 %v5603, 1.442695
    %v5605 = vpow.pop %v5604
    %v5606 = vsel %vm660, %v5605, 0.0
    %5607 = vadd.xlane.f32.xlu0 %v5606
    %v5608 = vpop.xlane.xlu0 %5607
    %v5609 = vrcp.pop %v5608
    %v5610 = vmul.f32 %v5605, %v5609
    %5611 = vrot.lane.b32.xlu0 %v5191, 48
    %v5612 = vpop.permute.xlu0 %5611
    %v5614 = vsel %vm674, %v5610, 0
    %v5616 = vsel %vm364, %v5612, 0
    %5618 = vmatprep.subr.mxu0 0.0
    %5619 = vmatpush1.msra.mxu0 %v5616
    %5620 = vmatprep.subr.mxu0 0.0
    %5621 = vmatpush1.msra.mxu0 0.0
    %5622 = vmatprep.subr.mxu0 0.0
    %5623 = vmatpush1.msra.mxu0 0.0
    %5624 = vmatprep.subr.mxu0 0.0
    %5625 = vmatpush1.msra.mxu0 0.0
    %5626 = vmatprep.subr.mxu0 0.0
    %5627 = vmatpush1.msra.mxu0 0.0
    %5628 = vmatprep.subr.mxu0 0.0
    %5629 = vmatpush1.msra.mxu0 0.0
    %5630 = vmatprep.subr.mxu0 0.0
    %5631 = vmatpush1.msra.mxu0 0.0
    %5632 = vmatprep.subr.mxu0 0.0
    %5633 = vmatpush1.msra.mxu0 0.0
    %5634 = vmatprep.subr.mxu0 0.0
    %5635 = vmatpush1.msra.mxu0 0.0
    %5636 = vmatprep.subr.mxu0 0.0
    %5637 = vmatpush1.msra.mxu0 0.0
    %5638 = vmatprep.subr.mxu0 0.0
    %5639 = vmatpush1.msra.mxu0 0.0
    %5640 = vmatprep.subr.mxu0 0.0
    %5641 = vmatpush1.msra.mxu0 0.0
    %5642 = vmatprep.subr.mxu0 0.0
    %5643 = vmatpush1.msra.mxu0 0.0
    %5644 = vmatprep.subr.mxu0 0.0
    %5645 = vmatpush1.msra.mxu0 0.0
    %5646 = vmatprep.subr.mxu0 0.0
    %5647 = vmatpush1.msra.mxu0 0.0
    %5648 = vmatprep.subr.mxu0 0.0
    %5649 = vmatpush1.msra.mxu0 0.0
    %5650 = vmatprep.subr.mxu0 0.0
    %5651 = vmatpush1.msra.mxu0 0.0
    %5652 = vmatprep.subr.mxu0 0.0
    %5653 = vmatpush1.msra.mxu0 0.0
    %5654 = vmatprep.subr.mxu0 0.0
    %5655 = vmatpush1.msra.mxu0 0.0
    %5656 = vmatprep.subr.mxu0 0.0
    %5657 = vmatpush1.msra.mxu0 0.0
    %5658 = vmatprep.subr.mxu0 0.0
    %5659 = vmatpush1.msra.mxu0 0.0
    %5660 = vmatprep.subr.mxu0 0.0
    %5661 = vmatpush1.msra.mxu0 0.0
    %5662 = vmatprep.subr.mxu0 0.0
    %5663 = vmatpush1.msra.mxu0 0.0
    %5664 = vmatprep.subr.mxu0 0.0
    %5665 = vmatpush1.msra.mxu0 0.0
    %5666 = vmatprep.subr.mxu0 0.0
    %5667 = vmatpush1.msra.mxu0 0.0
    %5668 = vmatprep.subr.mxu0 0.0
    %5669 = vmatpush1.msra.mxu0 0.0
    %5670 = vmatprep.subr.mxu0 0.0
    %5671 = vmatpush1.msra.mxu0 0.0
    %5672 = vmatprep.subr.mxu0 0.0
    %5673 = vmatpush1.msra.mxu0 0.0
    %5674 = vmatprep.subr.mxu0 0.0
    %5675 = vmatpush1.msra.mxu0 0.0
    %5676 = vmatprep.subr.mxu0 0.0
    %5677 = vmatpush1.msra.mxu0 0.0
    %5678 = vmatprep.subr.mxu0 0.0
    %5679 = vmatpush1.msra.mxu0 0.0
    %5680 = vmatprep.subr.mxu0 0.0
    %5681 = vmatpush1.msra.mxu0 0.0
    %5682 = vmatprep.mubr.f32.mxu0 0.0
    %5683 = vmatmul.mubr.f32.gmra.mrb[0].mxu0 %v5614
    %v5684 = vpop.f32.mrb[0].mxu0
    %v5685 = vadd.f32 0.0, %v5684
    %v5686 = vpop.f32.mrb[0].mxu0
    %5687 = vdwg.mxu0
    %5688 = vrot.lane.b32.xlu0 %v5191, 104
    %v5689 = vpop.permute.xlu0 %5688
    %5690 = vrot.lane.b32.xlu0 %v5191, 72
    %v5691 = vpop.permute.xlu0 %5690
    %v5692 = vsel %vm585, %v5689, 0
    %v5694 = vsel %vm585, %v5691, 0
    %5696 = vmatprep.subr.mxu0 0.0
    %5697 = vmatpush1.xpose.msra.mxu0 %v5694
    %5698 = vmatprep.subr.mxu0 0.0
    %5699 = vmatpush1.xpose.msra.mxu0 0.0
    %5700 = vmatprep.subr.mxu0 0.0
    %5701 = vmatpush1.xpose.msra.mxu0 0.0
    %5702 = vmatprep.subr.mxu0 0.0
    %5703 = vmatpush1.xpose.msra.mxu0 0.0
    %5704 = vmatprep.subr.mxu0 0.0
    %5705 = vmatpush1.xpose.msra.mxu0 0.0
    %5706 = vmatprep.subr.mxu0 0.0
    %5707 = vmatpush1.xpose.msra.mxu0 0.0
    %5708 = vmatprep.subr.mxu0 0.0
    %5709 = vmatpush1.xpose.msra.mxu0 0.0
    %5710 = vmatprep.subr.mxu0 0.0
    %5711 = vmatpush1.xpose.msra.mxu0 0.0
    %5712 = vmatprep.subr.mxu0 0.0
    %5713 = vmatpush1.xpose.msra.mxu0 0.0
    %5714 = vmatprep.subr.mxu0 0.0
    %5715 = vmatpush1.xpose.msra.mxu0 0.0
    %5716 = vmatprep.subr.mxu0 0.0
    %5717 = vmatpush1.xpose.msra.mxu0 0.0
    %5718 = vmatprep.subr.mxu0 0.0
    %5719 = vmatpush1.xpose.msra.mxu0 0.0
    %5720 = vmatprep.subr.mxu0 0.0
    %5721 = vmatpush1.xpose.msra.mxu0 0.0
    %5722 = vmatprep.subr.mxu0 0.0
    %5723 = vmatpush1.xpose.msra.mxu0 0.0
    %5724 = vmatprep.subr.mxu0 0.0
    %5725 = vmatpush1.xpose.msra.mxu0 0.0
    %5726 = vmatprep.subr.mxu0 0.0
    %5727 = vmatpush1.xpose.msra.mxu0 0.0
    %5728 = vmatprep.subr.mxu0 0.0
    %5729 = vmatpush1.xpose.msra.mxu0 0.0
    %5730 = vmatprep.subr.mxu0 0.0
    %5731 = vmatpush1.xpose.msra.mxu0 0.0
    %5732 = vmatprep.subr.mxu0 0.0
    %5733 = vmatpush1.xpose.msra.mxu0 0.0
    %5734 = vmatprep.subr.mxu0 0.0
    %5735 = vmatpush1.xpose.msra.mxu0 0.0
    %5736 = vmatprep.subr.mxu0 0.0
    %5737 = vmatpush1.xpose.msra.mxu0 0.0
    %5738 = vmatprep.subr.mxu0 0.0
    %5739 = vmatpush1.xpose.msra.mxu0 0.0
    %5740 = vmatprep.subr.mxu0 0.0
    %5741 = vmatpush1.xpose.msra.mxu0 0.0
    %5742 = vmatprep.subr.mxu0 0.0
    %5743 = vmatpush1.xpose.msra.mxu0 0.0
    %5744 = vmatprep.subr.mxu0 0.0
    %5745 = vmatpush1.xpose.msra.mxu0 0.0
    %5746 = vmatprep.subr.mxu0 0.0
    %5747 = vmatpush1.xpose.msra.mxu0 0.0
    %5748 = vmatprep.subr.mxu0 0.0
    %5749 = vmatpush1.xpose.msra.mxu0 0.0
    %5750 = vmatprep.subr.mxu0 0.0
    %5751 = vmatpush1.xpose.msra.mxu0 0.0
    %5752 = vmatprep.subr.mxu0 0.0
    %5753 = vmatpush1.xpose.msra.mxu0 0.0
    %5754 = vmatprep.subr.mxu0 0.0
    %5755 = vmatpush1.xpose.msra.mxu0 0.0
    %5756 = vmatprep.subr.mxu0 0.0
    %5757 = vmatpush1.xpose.msra.mxu0 0.0
    %5758 = vmatprep.subr.mxu0 0.0
    %5759 = vmatpush1.xpose.msra.mxu0 0.0
    %5760 = vmatprep.mubr.f32.mxu0 0.0
    %5761 = vmatmul.mubr.f32.gmra.mrb[0].mxu0 %v5692
    %v5762 = vpop.f32.mrb[0].mxu0
    %v5763 = vadd.f32 0.0, %v5762
    %v5764 = vpop.f32.mrb[0].mxu0
    %5765 = vdwg.mxu0
    %v5766 = vsel %vm660, %v5763, -inf
    %5767 = vmax.xlane.f32.xlu0 %v5766
    %v5768 = vpop.xlane.xlu0 %5767
    %v5769 = vsub.f32 %v5763, %v5768
    %v5770 = vmul.f32 %v5769, 1.442695
    %v5771 = vpow.pop %v5770
    %v5772 = vsel %vm660, %v5771, 0.0
    %5773 = vadd.xlane.f32.xlu0 %v5772
    %v5774 = vpop.xlane.xlu0 %5773
    %v5775 = vrcp.pop %v5774
    %v5776 = vmul.f32 %v5771, %v5775
    %5777 = vrot.lane.b32.xlu0 %v5191, 40
    %v5778 = vpop.permute.xlu0 %5777
    %v5780 = vsel %vm674, %v5776, 0
    %v5782 = vsel %vm364, %v5778, 0
    %5784 = vmatprep.subr.mxu0 0.0
    %5785 = vmatpush1.msra.mxu0 %v5782
    %5786 = vmatprep.subr.mxu0 0.0
    %5787 = vmatpush1.msra.mxu0 0.0
    %5788 = vmatprep.subr.mxu0 0.0
    %5789 = vmatpush1.msra.mxu0 0.0
    %5790 = vmatprep.subr.mxu0 0.0
    %5791 = vmatpush1.msra.mxu0 0.0
    %5792 = vmatprep.subr.mxu0 0.0
    %5793 = vmatpush1.msra.mxu0 0.0
    %5794 = vmatprep.subr.mxu0 0.0
    %5795 = vmatpush1.msra.mxu0 0.0
    %5796 = vmatprep.subr.mxu0 0.0
    %5797 = vmatpush1.msra.mxu0 0.0
    %5798 = vmatprep.subr.mxu0 0.0
    %5799 = vmatpush1.msra.mxu0 0.0
    %5800 = vmatprep.subr.mxu0 0.0
    %5801 = vmatpush1.msra.mxu0 0.0
    %5802 = vmatprep.subr.mxu0 0.0
    %5803 = vmatpush1.msra.mxu0 0.0
    %5804 = vmatprep.subr.mxu0 0.0
    %5805 = vmatpush1.msra.mxu0 0.0
    %5806 = vmatprep.subr.mxu0 0.0
    %5807 = vmatpush1.msra.mxu0 0.0
    %5808 = vmatprep.subr.mxu0 0.0
    %5809 = vmatpush1.msra.mxu0 0.0
    %5810 = vmatprep.subr.mxu0 0.0
    %5811 = vmatpush1.msra.mxu0 0.0
    %5812 = vmatprep.subr.mxu0 0.0
    %5813 = vmatpush1.msra.mxu0 0.0
    %5814 = vmatprep.subr.mxu0 0.0
    %5815 = vmatpush1.msra.mxu0 0.0
    %5816 = vmatprep.subr.mxu0 0.0
    %5817 = vmatpush1.msra.mxu0 0.0
    %5818 = vmatprep.subr.mxu0 0.0
    %5819 = vmatpush1.msra.mxu0 0.0
    %5820 = vmatprep.subr.mxu0 0.0
    %5821 = vmatpush1.msra.mxu0 0.0
    %5822 = vmatprep.subr.mxu0 0.0
    %5823 = vmatpush1.msra.mxu0 0.0
    %5824 = vmatprep.subr.mxu0 0.0
    %5825 = vmatpush1.msra.mxu0 0.0
    %5826 = vmatprep.subr.mxu0 0.0
    %5827 = vmatpush1.msra.mxu0 0.0
    %5828 = vmatprep.subr.mxu0 0.0
    %5829 = vmatpush1.msra.mxu0 0.0
    %5830 = vmatprep.subr.mxu0 0.0
    %5831 = vmatpush1.msra.mxu0 0.0
    %5832 = vmatprep.subr.mxu0 0.0
    %5833 = vmatpush1.msra.mxu0 0.0
    %5834 = vmatprep.subr.mxu0 0.0
    %5835 = vmatpush1.msra.mxu0 0.0
    %5836 = vmatprep.subr.mxu0 0.0
    %5837 = vmatpush1.msra.mxu0 0.0
    %5838 = vmatprep.subr.mxu0 0.0
    %5839 = vmatpush1.msra.mxu0 0.0
    %5840 = vmatprep.subr.mxu0 0.0
    %5841 = vmatpush1.msra.mxu0 0.0
    %5842 = vmatprep.subr.mxu0 0.0
    %5843 = vmatpush1.msra.mxu0 0.0
    %5844 = vmatprep.subr.mxu0 0.0
    %5845 = vmatpush1.msra.mxu0 0.0
    %5846 = vmatprep.subr.mxu0 0.0
    %5847 = vmatpush1.msra.mxu0 0.0
    %5848 = vmatprep.mubr.f32.mxu0 0.0
    %5849 = vmatmul.mubr.f32.gmra.mrb[0].mxu0 %v5780
    %v5850 = vpop.f32.mrb[0].mxu0
    %v5851 = vadd.f32 0.0, %v5850
    %v5852 = vpop.f32.mrb[0].mxu0
    %5853 = vdwg.mxu0
    %5855 = vrot.lane.b32.xlu0 %v5519, 8
    %v5856 = vpop.permute.xlu0 %5855
    %5859 = vrot.lane.b32.xlu0 %v5685, 16
    %v5860 = vpop.permute.xlu0 %5859
    %5863 = vrot.lane.b32.xlu0 %v5851, 24
    %v5864 = vpop.permute.xlu0 %5863
    %v5866 = vsel %vm585, %v5353, %v5856
    %v5867 = vsel %vm1261, %v5866, %v5860
    %v5868 = vsel %vm1263, %v5867, %v5864
    %v5870 = vrot.slane %v3824, 7
    %v5871 = vrot.slane %v3829, 7
    %v5872 = vsel %vm339, %v5870, %v5871
    %5873 = vrot.lane.b32.xlu0 %v5872, 96
    %v5874 = vpop.permute.xlu0 %5873
    %v5875 = vsel %vm585, %v5872, 0
    %v5877 = vsel %vm585, %v5874, 0
    %5879 = vmatprep.subr.mxu0 0.0
    %5880 = vmatpush1.xpose.msra.mxu0 %v5877
    %5881 = vmatprep.subr.mxu0 0.0
    %5882 = vmatpush1.xpose.msra.mxu0 0.0
    %5883 = vmatprep.subr.mxu0 0.0
    %5884 = vmatpush1.xpose.msra.mxu0 0.0
    %5885 = vmatprep.subr.mxu0 0.0
    %5886 = vmatpush1.xpose.msra.mxu0 0.0
    %5887 = vmatprep.subr.mxu0 0.0
    %5888 = vmatpush1.xpose.msra.mxu0 0.0
    %5889 = vmatprep.subr.mxu0 0.0
    %5890 = vmatpush1.xpose.msra.mxu0 0.0
    %5891 = vmatprep.subr.mxu0 0.0
    %5892 = vmatpush1.xpose.msra.mxu0 0.0
    %5893 = vmatprep.subr.mxu0 0.0
    %5894 = vmatpush1.xpose.msra.mxu0 0.0
    %5895 = vmatprep.subr.mxu0 0.0
    %5896 = vmatpush1.xpose.msra.mxu0 0.0
    %5897 = vmatprep.subr.mxu0 0.0
    %5898 = vmatpush1.xpose.msra.mxu0 0.0
    %5899 = vmatprep.subr.mxu0 0.0
    %5900 = vmatpush1.xpose.msra.mxu0 0.0
    %5901 = vmatprep.subr.mxu0 0.0
    %5902 = vmatpush1.xpose.msra.mxu0 0.0
    %5903 = vmatprep.subr.mxu0 0.0
    %5904 = vmatpush1.xpose.msra.mxu0 0.0
    %5905 = vmatprep.subr.mxu0 0.0
    %5906 = vmatpush1.xpose.msra.mxu0 0.0
    %5907 = vmatprep.subr.mxu0 0.0
    %5908 = vmatpush1.xpose.msra.mxu0 0.0
    %5909 = vmatprep.subr.mxu0 0.0
    %5910 = vmatpush1.xpose.msra.mxu0 0.0
    %5911 = vmatprep.subr.mxu0 0.0
    %5912 = vmatpush1.xpose.msra.mxu0 0.0
    %5913 = vmatprep.subr.mxu0 0.0
    %5914 = vmatpush1.xpose.msra.mxu0 0.0
    %5915 = vmatprep.subr.mxu0 0.0
    %5916 = vmatpush1.xpose.msra.mxu0 0.0
    %5917 = vmatprep.subr.mxu0 0.0
    %5918 = vmatpush1.xpose.msra.mxu0 0.0
    %5919 = vmatprep.subr.mxu0 0.0
    %5920 = vmatpush1.xpose.msra.mxu0 0.0
    %5921 = vmatprep.subr.mxu0 0.0
    %5922 = vmatpush1.xpose.msra.mxu0 0.0
    %5923 = vmatprep.subr.mxu0 0.0
    %5924 = vmatpush1.xpose.msra.mxu0 0.0
    %5925 = vmatprep.subr.mxu0 0.0
    %5926 = vmatpush1.xpose.msra.mxu0 0.0
    %5927 = vmatprep.subr.mxu0 0.0
    %5928 = vmatpush1.xpose.msra.mxu0 0.0
    %5929 = vmatprep.subr.mxu0 0.0
    %5930 = vmatpush1.xpose.msra.mxu0 0.0
    %5931 = vmatprep.subr.mxu0 0.0
    %5932 = vmatpush1.xpose.msra.mxu0 0.0
    %5933 = vmatprep.subr.mxu0 0.0
    %5934 = vmatpush1.xpose.msra.mxu0 0.0
    %5935 = vmatprep.subr.mxu0 0.0
    %5936 = vmatpush1.xpose.msra.mxu0 0.0
    %5937 = vmatprep.subr.mxu0 0.0
    %5938 = vmatpush1.xpose.msra.mxu0 0.0
    %5939 = vmatprep.subr.mxu0 0.0
    %5940 = vmatpush1.xpose.msra.mxu0 0.0
    %5941 = vmatprep.subr.mxu0 0.0
    %5942 = vmatpush1.xpose.msra.mxu0 0.0
    %5943 = vmatprep.mubr.f32.mxu0 0.0
    %5944 = vmatmul.mubr.f32.gmra.mrb[0].mxu0 %v5875
    %v5945 = vpop.f32.mrb[0].mxu0
    %v5946 = vadd.f32 0.0, %v5945
    %v5947 = vpop.f32.mrb[0].mxu0
    %5948 = vdwg.mxu0
    %v5949 = vsel %vm660, %v5946, -inf
    %5950 = vmax.xlane.f32.xlu0 %v5949
    %v5951 = vpop.xlane.xlu0 %5950
    %v5952 = vsub.f32 %v5946, %v5951
    %v5953 = vmul.f32 %v5952, 1.442695
    %v5954 = vpow.pop %v5953
    %v5955 = vsel %vm660, %v5954, 0.0
    %5956 = vadd.xlane.f32.xlu0 %v5955
    %v5957 = vpop.xlane.xlu0 %5956
    %v5958 = vrcp.pop %v5957
    %v5959 = vmul.f32 %v5954, %v5958
    %5960 = vrot.lane.b32.xlu0 %v5872, 64
    %v5961 = vpop.permute.xlu0 %5960
    %v5963 = vsel %vm674, %v5959, 0
    %v5965 = vsel %vm364, %v5961, 0
    %5967 = vmatprep.subr.mxu0 0.0
    %5968 = vmatpush1.msra.mxu0 %v5965
    %5969 = vmatprep.subr.mxu0 0.0
    %5970 = vmatpush1.msra.mxu0 0.0
    %5971 = vmatprep.subr.mxu0 0.0
    %5972 = vmatpush1.msra.mxu0 0.0
    %5973 = vmatprep.subr.mxu0 0.0
    %5974 = vmatpush1.msra.mxu0 0.0
    %5975 = vmatprep.subr.mxu0 0.0
    %5976 = vmatpush1.msra.mxu0 0.0
    %5977 = vmatprep.subr.mxu0 0.0
    %5978 = vmatpush1.msra.mxu0 0.0
    %5979 = vmatprep.subr.mxu0 0.0
    %5980 = vmatpush1.msra.mxu0 0.0
    %5981 = vmatprep.subr.mxu0 0.0
    %5982 = vmatpush1.msra.mxu0 0.0
    %5983 = vmatprep.subr.mxu0 0.0
    %5984 = vmatpush1.msra.mxu0 0.0
    %5985 = vmatprep.subr.mxu0 0.0
    %5986 = vmatpush1.msra.mxu0 0.0
    %5987 = vmatprep.subr.mxu0 0.0
    %5988 = vmatpush1.msra.mxu0 0.0
    %5989 = vmatprep.subr.mxu0 0.0
    %5990 = vmatpush1.msra.mxu0 0.0
    %5991 = vmatprep.subr.mxu0 0.0
    %5992 = vmatpush1.msra.mxu0 0.0
    %5993 = vmatprep.subr.mxu0 0.0
    %5994 = vmatpush1.msra.mxu0 0.0
    %5995 = vmatprep.subr.mxu0 0.0
    %5996 = vmatpush1.msra.mxu0 0.0
    %5997 = vmatprep.subr.mxu0 0.0
    %5998 = vmatpush1.msra.mxu0 0.0
    %5999 = vmatprep.subr.mxu0 0.0
    %6000 = vmatpush1.msra.mxu0 0.0
    %6001 = vmatprep.subr.mxu0 0.0
    %6002 = vmatpush1.msra.mxu0 0.0
    %6003 = vmatprep.subr.mxu0 0.0
    %6004 = vmatpush1.msra.mxu0 0.0
    %6005 = vmatprep.subr.mxu0 0.0
    %6006 = vmatpush1.msra.mxu0 0.0
    %6007 = vmatprep.subr.mxu0 0.0
    %6008 = vmatpush1.msra.mxu0 0.0
    %6009 = vmatprep.subr.mxu0 0.0
    %6010 = vmatpush1.msra.mxu0 0.0
    %6011 = vmatprep.subr.mxu0 0.0
    %6012 = vmatpush1.msra.mxu0 0.0
    %6013 = vmatprep.subr.mxu0 0.0
    %6014 = vmatpush1.msra.mxu0 0.0
    %6015 = vmatprep.subr.mxu0 0.0
    %6016 = vmatpush1.msra.mxu0 0.0
    %6017 = vmatprep.subr.mxu0 0.0
    %6018 = vmatpush1.msra.mxu0 0.0
    %6019 = vmatprep.subr.mxu0 0.0
    %6020 = vmatpush1.msra.mxu0 0.0
    %6021 = vmatprep.subr.mxu0 0.0
    %6022 = vmatpush1.msra.mxu0 0.0
    %6023 = vmatprep.subr.mxu0 0.0
    %6024 = vmatpush1.msra.mxu0 0.0
    %6025 = vmatprep.subr.mxu0 0.0
    %6026 = vmatpush1.msra.mxu0 0.0
    %6027 = vmatprep.subr.mxu0 0.0
    %6028 = vmatpush1.msra.mxu0 0.0
    %6029 = vmatprep.subr.mxu0 0.0
    %6030 = vmatpush1.msra.mxu0 0.0
    %6031 = vmatprep.mubr.f32.mxu0 0.0
    %6032 = vmatmul.mubr.f32.gmra.mrb[0].mxu0 %v5963
    %v6033 = vpop.f32.mrb[0].mxu0
    %v6034 = vadd.f32 0.0, %v6033
    %v6035 = vpop.f32.mrb[0].mxu0
    %6036 = vdwg.mxu0
    %6037 = vrot.lane.b32.xlu0 %v5872, 120
    %v6038 = vpop.permute.xlu0 %6037
    %6039 = vrot.lane.b32.xlu0 %v5872, 88
    %v6040 = vpop.permute.xlu0 %6039
    %v6041 = vsel %vm585, %v6038, 0
    %v6043 = vsel %vm585, %v6040, 0
    %6045 = vmatprep.subr.mxu0 0.0
    %6046 = vmatpush1.xpose.msra.mxu0 %v6043
    %6047 = vmatprep.subr.mxu0 0.0
    %6048 = vmatpush1.xpose.msra.mxu0 0.0
    %6049 = vmatprep.subr.mxu0 0.0
    %6050 = vmatpush1.xpose.msra.mxu0 0.0
    %6051 = vmatprep.subr.mxu0 0.0
    %6052 = vmatpush1.xpose.msra.mxu0 0.0
    %6053 = vmatprep.subr.mxu0 0.0
    %6054 = vmatpush1.xpose.msra.mxu0 0.0
    %6055 = vmatprep.subr.mxu0 0.0
    %6056 = vmatpush1.xpose.msra.mxu0 0.0
    %6057 = vmatprep.subr.mxu0 0.0
    %6058 = vmatpush1.xpose.msra.mxu0 0.0
    %6059 = vmatprep.subr.mxu0 0.0
    %6060 = vmatpush1.xpose.msra.mxu0 0.0
    %6061 = vmatprep.subr.mxu0 0.0
    %6062 = vmatpush1.xpose.msra.mxu0 0.0
    %6063 = vmatprep.subr.mxu0 0.0
    %6064 = vmatpush1.xpose.msra.mxu0 0.0
    %6065 = vmatprep.subr.mxu0 0.0
    %6066 = vmatpush1.xpose.msra.mxu0 0.0
    %6067 = vmatprep.subr.mxu0 0.0
    %6068 = vmatpush1.xpose.msra.mxu0 0.0
    %6069 = vmatprep.subr.mxu0 0.0
    %6070 = vmatpush1.xpose.msra.mxu0 0.0
    %6071 = vmatprep.subr.mxu0 0.0
    %6072 = vmatpush1.xpose.msra.mxu0 0.0
    %6073 = vmatprep.subr.mxu0 0.0
    %6074 = vmatpush1.xpose.msra.mxu0 0.0
    %6075 = vmatprep.subr.mxu0 0.0
    %6076 = vmatpush1.xpose.msra.mxu0 0.0
    %6077 = vmatprep.subr.mxu0 0.0
    %6078 = vmatpush1.xpose.msra.mxu0 0.0
    %6079 = vmatprep.subr.mxu0 0.0
    %6080 = vmatpush1.xpose.msra.mxu0 0.0
    %6081 = vmatprep.subr.mxu0 0.0
    %6082 = vmatpush1.xpose.msra.mxu0 0.0
    %6083 = vmatprep.subr.mxu0 0.0
    %6084 = vmatpush1.xpose.msra.mxu0 0.0
    %6085 = vmatprep.subr.mxu0 0.0
    %6086 = vmatpush1.xpose.msra.mxu0 0.0
    %6087 = vmatprep.subr.mxu0 0.0
    %6088 = vmatpush1.xpose.msra.mxu0 0.0
    %6089 = vmatprep.subr.mxu0 0.0
    %6090 = vmatpush1.xpose.msra.mxu0 0.0
    %6091 = vmatprep.subr.mxu0 0.0
    %6092 = vmatpush1.xpose.msra.mxu0 0.0
    %6093 = vmatprep.subr.mxu0 0.0
    %6094 = vmatpush1.xpose.msra.mxu0 0.0
    %6095 = vmatprep.subr.mxu0 0.0
    %6096 = vmatpush1.xpose.msra.mxu0 0.0
    %6097 = vmatprep.subr.mxu0 0.0
    %6098 = vmatpush1.xpose.msra.mxu0 0.0
    %6099 = vmatprep.subr.mxu0 0.0
    %6100 = vmatpush1.xpose.msra.mxu0 0.0
    %6101 = vmatprep.subr.mxu0 0.0
    %6102 = vmatpush1.xpose.msra.mxu0 0.0
    %6103 = vmatprep.subr.mxu0 0.0
    %6104 = vmatpush1.xpose.msra.mxu0 0.0
    %6105 = vmatprep.subr.mxu0 0.0
    %6106 = vmatpush1.xpose.msra.mxu0 0.0
    %6107 = vmatprep.subr.mxu0 0.0
    %6108 = vmatpush1.xpose.msra.mxu0 0.0
    %6109 = vmatprep.mubr.f32.mxu0 0.0
    %6110 = vmatmul.mubr.f32.gmra.mrb[0].mxu0 %v6041
    %v6111 = vpop.f32.mrb[0].mxu0
    %v6112 = vadd.f32 0.0, %v6111
    %v6113 = vpop.f32.mrb[0].mxu0
    %6114 = vdwg.mxu0
    %v6115 = vsel %vm660, %v6112, -inf
    %6116 = vmax.xlane.f32.xlu0 %v6115
    %v6117 = vpop.xlane.xlu0 %6116
    %v6118 = vsub.f32 %v6112, %v6117
    %v6119 = vmul.f32 %v6118, 1.442695
    %v6120 = vpow.pop %v6119
    %v6121 = vsel %vm660, %v6120, 0.0
    %6122 = vadd.xlane.f32.xlu0 %v6121
    %v6123 = vpop.xlane.xlu0 %6122
    %v6124 = vrcp.pop %v6123
    %v6125 = vmul.f32 %v6120, %v6124
    %6126 = vrot.lane.b32.xlu0 %v5872, 56
    %v6127 = vpop.permute.xlu0 %6126
    %v6129 = vsel %vm674, %v6125, 0
    %v6131 = vsel %vm364, %v6127, 0
    %6133 = vmatprep.subr.mxu0 0.0
    %6134 = vmatpush1.msra.mxu0 %v6131
    %6135 = vmatprep.subr.mxu0 0.0
    %6136 = vmatpush1.msra.mxu0 0.0
    %6137 = vmatprep.subr.mxu0 0.0
    %6138 = vmatpush1.msra.mxu0 0.0
    %6139 = vmatprep.subr.mxu0 0.0
    %6140 = vmatpush1.msra.mxu0 0.0
    %6141 = vmatprep.subr.mxu0 0.0
    %6142 = vmatpush1.msra.mxu0 0.0
    %6143 = vmatprep.subr.mxu0 0.0
    %6144 = vmatpush1.msra.mxu0 0.0
    %6145 = vmatprep.subr.mxu0 0.0
    %6146 = vmatpush1.msra.mxu0 0.0
    %6147 = vmatprep.subr.mxu0 0.0
    %6148 = vmatpush1.msra.mxu0 0.0
    %6149 = vmatprep.subr.mxu0 0.0
    %6150 = vmatpush1.msra.mxu0 0.0
    %6151 = vmatprep.subr.mxu0 0.0
    %6152 = vmatpush1.msra.mxu0 0.0
    %6153 = vmatprep.subr.mxu0 0.0
    %6154 = vmatpush1.msra.mxu0 0.0
    %6155 = vmatprep.subr.mxu0 0.0
    %6156 = vmatpush1.msra.mxu0 0.0
    %6157 = vmatprep.subr.mxu0 0.0
    %6158 = vmatpush1.msra.mxu0 0.0
    %6159 = vmatprep.subr.mxu0 0.0
    %6160 = vmatpush1.msra.mxu0 0.0
    %6161 = vmatprep.subr.mxu0 0.0
    %6162 = vmatpush1.msra.mxu0 0.0
    %6163 = vmatprep.subr.mxu0 0.0
    %6164 = vmatpush1.msra.mxu0 0.0
    %6165 = vmatprep.subr.mxu0 0.0
    %6166 = vmatpush1.msra.mxu0 0.0
    %6167 = vmatprep.subr.mxu0 0.0
    %6168 = vmatpush1.msra.mxu0 0.0
    %6169 = vmatprep.subr.mxu0 0.0
    %6170 = vmatpush1.msra.mxu0 0.0
    %6171 = vmatprep.subr.mxu0 0.0
    %6172 = vmatpush1.msra.mxu0 0.0
    %6173 = vmatprep.subr.mxu0 0.0
    %6174 = vmatpush1.msra.mxu0 0.0
    %6175 = vmatprep.subr.mxu0 0.0
    %6176 = vmatpush1.msra.mxu0 0.0
    %6177 = vmatprep.subr.mxu0 0.0
    %6178 = vmatpush1.msra.mxu0 0.0
    %6179 = vmatprep.subr.mxu0 0.0
    %6180 = vmatpush1.msra.mxu0 0.0
    %6181 = vmatprep.subr.mxu0 0.0
    %6182 = vmatpush1.msra.mxu0 0.0
    %6183 = vmatprep.subr.mxu0 0.0
    %6184 = vmatpush1.msra.mxu0 0.0
    %6185 = vmatprep.subr.mxu0 0.0
    %6186 = vmatpush1.msra.mxu0 0.0
    %6187 = vmatprep.subr.mxu0 0.0
    %6188 = vmatpush1.msra.mxu0 0.0
    %6189 = vmatprep.subr.mxu0 0.0
    %6190 = vmatpush1.msra.mxu0 0.0
    %6191 = vmatprep.subr.mxu0 0.0
    %6192 = vmatpush1.msra.mxu0 0.0
    %6193 = vmatprep.subr.mxu0 0.0
    %6194 = vmatpush1.msra.mxu0 0.0
    %6195 = vmatprep.subr.mxu0 0.0
    %6196 = vmatpush1.msra.mxu0 0.0
    %6197 = vmatprep.mubr.f32.mxu0 0.0
    %6198 = vmatmul.mubr.f32.gmra.mrb[0].mxu0 %v6129
    %v6199 = vpop.f32.mrb[0].mxu0
    %v6200 = vadd.f32 0.0, %v6199
    %v6201 = vpop.f32.mrb[0].mxu0
    %6202 = vdwg.mxu0
    %6203 = vrot.lane.b32.xlu0 %v5872, 112
    %v6204 = vpop.permute.xlu0 %6203
    %6205 = vrot.lane.b32.xlu0 %v5872, 80
    %v6206 = vpop.permute.xlu0 %6205
    %v6207 = vsel %vm585, %v6204, 0
    %v6209 = vsel %vm585, %v6206, 0
    %6211 = vmatprep.subr.mxu0 0.0
    %6212 = vmatpush1.xpose.msra.mxu0 %v6209
    %6213 = vmatprep.subr.mxu0 0.0
    %6214 = vmatpush1.xpose.msra.mxu0 0.0
    %6215 = vmatprep.subr.mxu0 0.0
    %6216 = vmatpush1.xpose.msra.mxu0 0.0
    %6217 = vmatprep.subr.mxu0 0.0
    %6218 = vmatpush1.xpose.msra.mxu0 0.0
    %6219 = vmatprep.subr.mxu0 0.0
    %6220 = vmatpush1.xpose.msra.mxu0 0.0
    %6221 = vmatprep.subr.mxu0 0.0
    %6222 = vmatpush1.xpose.msra.mxu0 0.0
    %6223 = vmatprep.subr.mxu0 0.0
    %6224 = vmatpush1.xpose.msra.mxu0 0.0
    %6225 = vmatprep.subr.mxu0 0.0
    %6226 = vmatpush1.xpose.msra.mxu0 0.0
    %6227 = vmatprep.subr.mxu0 0.0
    %6228 = vmatpush1.xpose.msra.mxu0 0.0
    %6229 = vmatprep.subr.mxu0 0.0
    %6230 = vmatpush1.xpose.msra.mxu0 0.0
    %6231 = vmatprep.subr.mxu0 0.0
    %6232 = vmatpush1.xpose.msra.mxu0 0.0
    %6233 = vmatprep.subr.mxu0 0.0
    %6234 = vmatpush1.xpose.msra.mxu0 0.0
    %6235 = vmatprep.subr.mxu0 0.0
    %6236 = vmatpush1.xpose.msra.mxu0 0.0
    %6237 = vmatprep.subr.mxu0 0.0
    %6238 = vmatpush1.xpose.msra.mxu0 0.0
    %6239 = vmatprep.subr.mxu0 0.0
    %6240 = vmatpush1.xpose.msra.mxu0 0.0
    %6241 = vmatprep.subr.mxu0 0.0
    %6242 = vmatpush1.xpose.msra.mxu0 0.0
    %6243 = vmatprep.subr.mxu0 0.0
    %6244 = vmatpush1.xpose.msra.mxu0 0.0
    %6245 = vmatprep.subr.mxu0 0.0
    %6246 = vmatpush1.xpose.msra.mxu0 0.0
    %6247 = vmatprep.subr.mxu0 0.0
    %6248 = vmatpush1.xpose.msra.mxu0 0.0
    %6249 = vmatprep.subr.mxu0 0.0
    %6250 = vmatpush1.xpose.msra.mxu0 0.0
    %6251 = vmatprep.subr.mxu0 0.0
    %6252 = vmatpush1.xpose.msra.mxu0 0.0
    %6253 = vmatprep.subr.mxu0 0.0
    %6254 = vmatpush1.xpose.msra.mxu0 0.0
    %6255 = vmatprep.subr.mxu0 0.0
    %6256 = vmatpush1.xpose.msra.mxu0 0.0
    %6257 = vmatprep.subr.mxu0 0.0
    %6258 = vmatpush1.xpose.msra.mxu0 0.0
    %6259 = vmatprep.subr.mxu0 0.0
    %6260 = vmatpush1.xpose.msra.mxu0 0.0
    %6261 = vmatprep.subr.mxu0 0.0
    %6262 = vmatpush1.xpose.msra.mxu0 0.0
    %6263 = vmatprep.subr.mxu0 0.0
    %6264 = vmatpush1.xpose.msra.mxu0 0.0
    %6265 = vmatprep.subr.mxu0 0.0
    %6266 = vmatpush1.xpose.msra.mxu0 0.0
    %6267 = vmatprep.subr.mxu0 0.0
    %6268 = vmatpush1.xpose.msra.mxu0 0.0
    %6269 = vmatprep.subr.mxu0 0.0
    %6270 = vmatpush1.xpose.msra.mxu0 0.0
    %6271 = vmatprep.subr.mxu0 0.0
    %6272 = vmatpush1.xpose.msra.mxu0 0.0
    %6273 = vmatprep.subr.mxu0 0.0
    %6274 = vmatpush1.xpose.msra.mxu0 0.0
    %6275 = vmatprep.mubr.f32.mxu0 0.0
    %6276 = vmatmul.mubr.f32.gmra.mrb[0].mxu0 %v6207
    %v6277 = vpop.f32.mrb[0].mxu0
    %v6278 = vadd.f32 0.0, %v6277
    %v6279 = vpop.f32.mrb[0].mxu0
    %6280 = vdwg.mxu0
    %v6281 = vsel %vm660, %v6278, -inf
    %6282 = vmax.xlane.f32.xlu0 %v6281
    %v6283 = vpop.xlane.xlu0 %6282
    %v6284 = vsub.f32 %v6278, %v6283
    %v6285 = vmul.f32 %v6284, 1.442695
    %v6286 = vpow.pop %v6285
    %v6287 = vsel %vm660, %v6286, 0.0
    %6288 = vadd.xlane.f32.xlu0 %v6287
    %v6289 = vpop.xlane.xlu0 %6288
    %v6290 = vrcp.pop %v6289
    %v6291 = vmul.f32 %v6286, %v6290
    %6292 = vrot.lane.b32.xlu0 %v5872, 48
    %v6293 = vpop.permute.xlu0 %6292
    %v6295 = vsel %vm674, %v6291, 0
    %v6297 = vsel %vm364, %v6293, 0
    %6299 = vmatprep.subr.mxu0 0.0
    %6300 = vmatpush1.msra.mxu0 %v6297
    %6301 = vmatprep.subr.mxu0 0.0
    %6302 = vmatpush1.msra.mxu0 0.0
    %6303 = vmatprep.subr.mxu0 0.0
    %6304 = vmatpush1.msra.mxu0 0.0
    %6305 = vmatprep.subr.mxu0 0.0
    %6306 = vmatpush1.msra.mxu0 0.0
    %6307 = vmatprep.subr.mxu0 0.0
    %6308 = vmatpush1.msra.mxu0 0.0
    %6309 = vmatprep.subr.mxu0 0.0
    %6310 = vmatpush1.msra.mxu0 0.0
    %6311 = vmatprep.subr.mxu0 0.0
    %6312 = vmatpush1.msra.mxu0 0.0
    %6313 = vmatprep.subr.mxu0 0.0
    %6314 = vmatpush1.msra.mxu0 0.0
    %6315 = vmatprep.subr.mxu0 0.0
    %6316 = vmatpush1.msra.mxu0 0.0
    %6317 = vmatprep.subr.mxu0 0.0
    %6318 = vmatpush1.msra.mxu0 0.0
    %6319 = vmatprep.subr.mxu0 0.0
    %6320 = vmatpush1.msra.mxu0 0.0
    %6321 = vmatprep.subr.mxu0 0.0
    %6322 = vmatpush1.msra.mxu0 0.0
    %6323 = vmatprep.subr.mxu0 0.0
    %6324 = vmatpush1.msra.mxu0 0.0
    %6325 = vmatprep.subr.mxu0 0.0
    %6326 = vmatpush1.msra.mxu0 0.0
    %6327 = vmatprep.subr.mxu0 0.0
    %6328 = vmatpush1.msra.mxu0 0.0
    %6329 = vmatprep.subr.mxu0 0.0
    %6330 = vmatpush1.msra.mxu0 0.0
    %6331 = vmatprep.subr.mxu0 0.0
    %6332 = vmatpush1.msra.mxu0 0.0
    %6333 = vmatprep.subr.mxu0 0.0
    %6334 = vmatpush1.msra.mxu0 0.0
    %6335 = vmatprep.subr.mxu0 0.0
    %6336 = vmatpush1.msra.mxu0 0.0
    %6337 = vmatprep.subr.mxu0 0.0
    %6338 = vmatpush1.msra.mxu0 0.0
    %6339 = vmatprep.subr.mxu0 0.0
    %6340 = vmatpush1.msra.mxu0 0.0
    %6341 = vmatprep.subr.mxu0 0.0
    %6342 = vmatpush1.msra.mxu0 0.0
    %6343 = vmatprep.subr.mxu0 0.0
    %6344 = vmatpush1.msra.mxu0 0.0
    %6345 = vmatprep.subr.mxu0 0.0
    %6346 = vmatpush1.msra.mxu0 0.0
    %6347 = vmatprep.subr.mxu0 0.0
    %6348 = vmatpush1.msra.mxu0 0.0
    %6349 = vmatprep.subr.mxu0 0.0
    %6350 = vmatpush1.msra.mxu0 0.0
    %6351 = vmatprep.subr.mxu0 0.0
    %6352 = vmatpush1.msra.mxu0 0.0
    %6353 = vmatprep.subr.mxu0 0.0
    %6354 = vmatpush1.msra.mxu0 0.0
    %6355 = vmatprep.subr.mxu0 0.0
    %6356 = vmatpush1.msra.mxu0 0.0
    %6357 = vmatprep.subr.mxu0 0.0
    %6358 = vmatpush1.msra.mxu0 0.0
    %6359 = vmatprep.subr.mxu0 0.0
    %6360 = vmatpush1.msra.mxu0 0.0
    %6361 = vmatprep.subr.mxu0 0.0
    %6362 = vmatpush1.msra.mxu0 0.0
    %6363 = vmatprep.mubr.f32.mxu0 0.0
    %6364 = vmatmul.mubr.f32.gmra.mrb[0].mxu0 %v6295
    %v6365 = vpop.f32.mrb[0].mxu0
    %v6366 = vadd.f32 0.0, %v6365
    %v6367 = vpop.f32.mrb[0].mxu0
    %6368 = vdwg.mxu0
    %6369 = vrot.lane.b32.xlu0 %v5872, 104
    %v6370 = vpop.permute.xlu0 %6369
    %6371 = vrot.lane.b32.xlu0 %v5872, 72
    %v6372 = vpop.permute.xlu0 %6371
    %v6373 = vsel %vm585, %v6370, 0
    %v6375 = vsel %vm585, %v6372, 0
    %6377 = vmatprep.subr.mxu0 0.0
    %6378 = vmatpush1.xpose.msra.mxu0 %v6375
    %6379 = vmatprep.subr.mxu0 0.0
    %6380 = vmatpush1.xpose.msra.mxu0 0.0
    %6381 = vmatprep.subr.mxu0 0.0
    %6382 = vmatpush1.xpose.msra.mxu0 0.0
    %6383 = vmatprep.subr.mxu0 0.0
    %6384 = vmatpush1.xpose.msra.mxu0 0.0
    %6385 = vmatprep.subr.mxu0 0.0
    %6386 = vmatpush1.xpose.msra.mxu0 0.0
    %6387 = vmatprep.subr.mxu0 0.0
    %6388 = vmatpush1.xpose.msra.mxu0 0.0
    %6389 = vmatprep.subr.mxu0 0.0
    %6390 = vmatpush1.xpose.msra.mxu0 0.0
    %6391 = vmatprep.subr.mxu0 0.0
    %6392 = vmatpush1.xpose.msra.mxu0 0.0
    %6393 = vmatprep.subr.mxu0 0.0
    %6394 = vmatpush1.xpose.msra.mxu0 0.0
    %6395 = vmatprep.subr.mxu0 0.0
    %6396 = vmatpush1.xpose.msra.mxu0 0.0
    %6397 = vmatprep.subr.mxu0 0.0
    %6398 = vmatpush1.xpose.msra.mxu0 0.0
    %6399 = vmatprep.subr.mxu0 0.0
    %6400 = vmatpush1.xpose.msra.mxu0 0.0
    %6401 = vmatprep.subr.mxu0 0.0
    %6402 = vmatpush1.xpose.msra.mxu0 0.0
    %6403 = vmatprep.subr.mxu0 0.0
    %6404 = vmatpush1.xpose.msra.mxu0 0.0
    %6405 = vmatprep.subr.mxu0 0.0
    %6406 = vmatpush1.xpose.msra.mxu0 0.0
    %6407 = vmatprep.subr.mxu0 0.0
    %6408 = vmatpush1.xpose.msra.mxu0 0.0
    %6409 = vmatprep.subr.mxu0 0.0
    %6410 = vmatpush1.xpose.msra.mxu0 0.0
    %6411 = vmatprep.subr.mxu0 0.0
    %6412 = vmatpush1.xpose.msra.mxu0 0.0
    %6413 = vmatprep.subr.mxu0 0.0
    %6414 = vmatpush1.xpose.msra.mxu0 0.0
    %6415 = vmatprep.subr.mxu0 0.0
    %6416 = vmatpush1.xpose.msra.mxu0 0.0
    %6417 = vmatprep.subr.mxu0 0.0
    %6418 = vmatpush1.xpose.msra.mxu0 0.0
    %6419 = vmatprep.subr.mxu0 0.0
    %6420 = vmatpush1.xpose.msra.mxu0 0.0
    %6421 = vmatprep.subr.mxu0 0.0
    %6422 = vmatpush1.xpose.msra.mxu0 0.0
    %6423 = vmatprep.subr.mxu0 0.0
    %6424 = vmatpush1.xpose.msra.mxu0 0.0
    %6425 = vmatprep.subr.mxu0 0.0
    %6426 = vmatpush1.xpose.msra.mxu0 0.0
    %6427 = vmatprep.subr.mxu0 0.0
    %6428 = vmatpush1.xpose.msra.mxu0 0.0
    %6429 = vmatprep.subr.mxu0 0.0
    %6430 = vmatpush1.xpose.msra.mxu0 0.0
    %6431 = vmatprep.subr.mxu0 0.0
    %6432 = vmatpush1.xpose.msra.mxu0 0.0
    %6433 = vmatprep.subr.mxu0 0.0
    %6434 = vmatpush1.xpose.msra.mxu0 0.0
    %6435 = vmatprep.subr.mxu0 0.0
    %6436 = vmatpush1.xpose.msra.mxu0 0.0
    %6437 = vmatprep.subr.mxu0 0.0
    %6438 = vmatpush1.xpose.msra.mxu0 0.0
    %6439 = vmatprep.subr.mxu0 0.0
    %6440 = vmatpush1.xpose.msra.mxu0 0.0
    %6441 = vmatprep.mubr.f32.mxu0 0.0
    %6442 = vmatmul.mubr.f32.gmra.mrb[0].mxu0 %v6373
    %v6443 = vpop.f32.mrb[0].mxu0
    %v6444 = vadd.f32 0.0, %v6443
    %v6445 = vpop.f32.mrb[0].mxu0
    %6446 = vdwg.mxu0
    %v6447 = vsel %vm660, %v6444, -inf
    %6448 = vmax.xlane.f32.xlu0 %v6447
    %v6449 = vpop.xlane.xlu0 %6448
    %v6450 = vsub.f32 %v6444, %v6449
    %v6451 = vmul.f32 %v6450, 1.442695
    %v6452 = vpow.pop %v6451
    %v6453 = vsel %vm660, %v6452, 0.0
    %6454 = vadd.xlane.f32.xlu0 %v6453
    %v6455 = vpop.xlane.xlu0 %6454
    %v6456 = vrcp.pop %v6455
    %v6457 = vmul.f32 %v6452, %v6456
    %6458 = vrot.lane.b32.xlu0 %v5872, 40
    %v6459 = vpop.permute.xlu0 %6458
    %v6461 = vsel %vm674, %v6457, 0
    %v6463 = vsel %vm364, %v6459, 0
    %6465 = vmatprep.subr.mxu0 0.0
    %6466 = vmatpush1.msra.mxu0 %v6463
    %6467 = vmatprep.subr.mxu0 0.0
    %6468 = vmatpush1.msra.mxu0 0.0
    %6469 = vmatprep.subr.mxu0 0.0
    %6470 = vmatpush1.msra.mxu0 0.0
    %6471 = vmatprep.subr.mxu0 0.0
    %6472 = vmatpush1.msra.mxu0 0.0
    %6473 = vmatprep.subr.mxu0 0.0
    %6474 = vmatpush1.msra.mxu0 0.0
    %6475 = vmatprep.subr.mxu0 0.0
    %6476 = vmatpush1.msra.mxu0 0.0
    %6477 = vmatprep.subr.mxu0 0.0
    %6478 = vmatpush1.msra.mxu0 0.0
    %6479 = vmatprep.subr.mxu0 0.0
    %6480 = vmatpush1.msra.mxu0 0.0
    %6481 = vmatprep.subr.mxu0 0.0
    %6482 = vmatpush1.msra.mxu0 0.0
    %6483 = vmatprep.subr.mxu0 0.0
    %6484 = vmatpush1.msra.mxu0 0.0
    %6485 = vmatprep.subr.mxu0 0.0
    %6486 = vmatpush1.msra.mxu0 0.0
    %6487 = vmatprep.subr.mxu0 0.0
    %6488 = vmatpush1.msra.mxu0 0.0
    %6489 = vmatprep.subr.mxu0 0.0
    %6490 = vmatpush1.msra.mxu0 0.0
    %6491 = vmatprep.subr.mxu0 0.0
    %6492 = vmatpush1.msra.mxu0 0.0
    %6493 = vmatprep.subr.mxu0 0.0
    %6494 = vmatpush1.msra.mxu0 0.0
    %6495 = vmatprep.subr.mxu0 0.0
    %6496 = vmatpush1.msra.mxu0 0.0
    %6497 = vmatprep.subr.mxu0 0.0
    %6498 = vmatpush1.msra.mxu0 0.0
    %6499 = vmatprep.subr.mxu0 0.0
    %6500 = vmatpush1.msra.mxu0 0.0
    %6501 = vmatprep.subr.mxu0 0.0
    %6502 = vmatpush1.msra.mxu0 0.0
    %6503 = vmatprep.subr.mxu0 0.0
    %6504 = vmatpush1.msra.mxu0 0.0
    %6505 = vmatprep.subr.mxu0 0.0
    %6506 = vmatpush1.msra.mxu0 0.0
    %6507 = vmatprep.subr.mxu0 0.0
    %6508 = vmatpush1.msra.mxu0 0.0
    %6509 = vmatprep.subr.mxu0 0.0
    %6510 = vmatpush1.msra.mxu0 0.0
    %6511 = vmatprep.subr.mxu0 0.0
    %6512 = vmatpush1.msra.mxu0 0.0
    %6513 = vmatprep.subr.mxu0 0.0
    %6514 = vmatpush1.msra.mxu0 0.0
    %6515 = vmatprep.subr.mxu0 0.0
    %6516 = vmatpush1.msra.mxu0 0.0
    %6517 = vmatprep.subr.mxu0 0.0
    %6518 = vmatpush1.msra.mxu0 0.0
    %6519 = vmatprep.subr.mxu0 0.0
    %6520 = vmatpush1.msra.mxu0 0.0
    %6521 = vmatprep.subr.mxu0 0.0
    %6522 = vmatpush1.msra.mxu0 0.0
    %6523 = vmatprep.subr.mxu0 0.0
    %6524 = vmatpush1.msra.mxu0 0.0
    %6525 = vmatprep.subr.mxu0 0.0
    %6526 = vmatpush1.msra.mxu0 0.0
    %6527 = vmatprep.subr.mxu0 0.0
    %6528 = vmatpush1.msra.mxu0 0.0
    %6529 = vmatprep.mubr.f32.mxu0 0.0
    %6530 = vmatmul.mubr.f32.gmra.mrb[0].mxu0 %v6461
    %v6531 = vpop.f32.mrb[0].mxu0
    %v6532 = vadd.f32 0.0, %v6531
    %v6533 = vpop.f32.mrb[0].mxu0
    %6534 = vdwg.mxu0
    %6536 = vrot.lane.b32.xlu0 %v6200, 8
    %v6537 = vpop.permute.xlu0 %6536
    %6540 = vrot.lane.b32.xlu0 %v6366, 16
    %v6541 = vpop.permute.xlu0 %6540
    %6544 = vrot.lane.b32.xlu0 %v6532, 24
    %v6545 = vpop.permute.xlu0 %6544
    %v6547 = vsel %vm585, %v6034, %v6537
    %v6548 = vsel %vm1261, %v6547, %v6541
    %v6549 = vsel %vm1263, %v6548, %v6545
    %v6551 = vrot.slane %v5190, 3
    %v6554 = vrot.slane %v5868, 6
    %v6557 = vrot.slane %v6549, 1
    %v6559 = vsel %vm364, %v4509, %v6551
    %v6560 = vsel %vm366, %v6551, %v6554
    %v6561 = vsel %vm368, %v6560, %v6557
    %v6563 = vlaneseq
    %v6564 = vshrl.u32 %v6563, 7
    %v6565 = vsub.s32 0, %v6564
    %v6566 = vrot.slane %v222, %v6565
    %v6569 = vsel %vm370, %v6559, 0
    %v6572 = vsel %vm370, %v6561, 0
    %v6574 = vsel %vm370, %v6557, 0
    %6576 = vmatprep.subr.mxu0 0.0
    %6577 = vmatpush1.msra.mxu0 %v218
    %6578 = vmatprep.subr.mxu0 0.0
    %6579 = vmatpush1.msra.mxu0 %v219
    %6580 = vmatprep.subr.mxu0 0.0
    %6581 = vmatpush1.msra.mxu0 %v220
    %6582 = vmatprep.subr.mxu0 0.0
    %6583 = vmatpush1.msra.mxu0 %v221
    %6584 = vmatprep.subr.mxu0 0.0
    %6585 = vmatpush1.msra.mxu0 0.0
    %6586 = vmatprep.subr.mxu0 0.0
    %6587 = vmatpush1.msra.mxu0 0.0
    %6588 = vmatprep.subr.mxu0 0.0
    %6589 = vmatpush1.msra.mxu0 0.0
    %6590 = vmatprep.subr.mxu0 0.0
    %6591 = vmatpush1.msra.mxu0 0.0
    %6592 = vmatprep.subr.mxu0 0.0
    %6593 = vmatpush1.msra.mxu0 0.0
    %6594 = vmatprep.subr.mxu0 0.0
    %6595 = vmatpush1.msra.mxu0 0.0
    %6596 = vmatprep.subr.mxu0 0.0
    %6597 = vmatpush1.msra.mxu0 0.0
    %6598 = vmatprep.subr.mxu0 0.0
    %6599 = vmatpush1.msra.mxu0 0.0
    %6600 = vmatprep.subr.mxu0 0.0
    %6601 = vmatpush1.msra.mxu0 0.0
    %6602 = vmatprep.subr.mxu0 0.0
    %6603 = vmatpush1.msra.mxu0 0.0
    %6604 = vmatprep.subr.mxu0 0.0
    %6605 = vmatpush1.msra.mxu0 0.0
    %6606 = vmatprep.subr.mxu0 0.0
    %6607 = vmatpush1.msra.mxu0 0.0
    %6608 = vmatprep.subr.mxu0 0.0
    %6609 = vmatpush1.msra.mxu0 0.0
    %6610 = vmatprep.subr.mxu0 0.0
    %6611 = vmatpush1.msra.mxu0 0.0
    %6612 = vmatprep.subr.mxu0 0.0
    %6613 = vmatpush1.msra.mxu0 0.0
    %6614 = vmatprep.subr.mxu0 0.0
    %6615 = vmatpush1.msra.mxu0 0.0
    %6616 = vmatprep.subr.mxu0 0.0
    %6617 = vmatpush1.msra.mxu0 0.0
    %6618 = vmatprep.subr.mxu0 0.0
    %6619 = vmatpush1.msra.mxu0 0.0
    %6620 = vmatprep.subr.mxu0 0.0
    %6621 = vmatpush1.msra.mxu0 0.0
    %6622 = vmatprep.subr.mxu0 0.0
    %6623 = vmatpush1.msra.mxu0 0.0
    %6624 = vmatprep.subr.mxu0 0.0
    %6625 = vmatpush1.msra.mxu0 0.0
    %6626 = vmatprep.subr.mxu0 0.0
    %6627 = vmatpush1.msra.mxu0 0.0
    %6628 = vmatprep.subr.mxu0 0.0
    %6629 = vmatpush1.msra.mxu0 0.0
    %6630 = vmatprep.subr.mxu0 0.0
    %6631 = vmatpush1.msra.mxu0 0.0
    %6632 = vmatprep.subr.mxu0 0.0
    %6633 = vmatpush1.msra.mxu0 0.0
    %6634 = vmatprep.subr.mxu0 0.0
    %6635 = vmatpush1.msra.mxu0 0.0
    %6636 = vmatprep.subr.mxu0 0.0
    %6637 = vmatpush1.msra.mxu0 0.0
    %6638 = vmatprep.subr.mxu0 0.0
    %6639 = vmatpush1.msra.mxu0 0.0
    %6640 = vmatprep.mubr.f32.mxu0 0.0
    %6641 = vmatmul.mubr.f32.gmra.mrb[0].mxu0 %v6569
    %v6642 = vpop.f32.mrb[0].mxu0
    %v6643 = vadd.f32 %v6566, %v6642
    %v6644 = vpop.f32.mrb[0].mxu0
    %6645 = vmatprep.mubr.f32.mxu0 0.0
    %6646 = vmatmul.mubr.f32.gmra.mrb[0].mxu0 %v6572
    %v6647 = vpop.f32.mrb[0].mxu0
    %v6648 = vadd.f32 %v6566, %v6647
    %v6649 = vpop.f32.mrb[0].mxu0
    %6650 = vmatprep.mubr.f32.mxu0 0.0
    %6651 = vmatmul.mubr.f32.gmra.mrb[0].mxu0 %v6574
    %v6652 = vpop.f32.mrb[0].mxu0
    %v6653 = vadd.f32 %v6566, %v6652
    %v6654 = vpop.f32.mrb[0].mxu0
    %6655 = vdwg.mxu0
    %v6656 = vadd.f32 %v3677, %v6643
    %v6657 = vadd.f32 %v3678, %v6648
    %v6658 = vadd.f32 %v3679, %v6653
    %v6659 = vsel %vm370, %v6656, 0.0
    %6660 = vadd.xlane.f32.xlu0 %v6659
    %v6661 = vpop.xlane.xlu0 %6660
    %v6662 = vsel %vm370, %v6657, 0.0
    %6663 = vadd.xlane.f32.xlu0 %v6662
    %v6664 = vpop.xlane.xlu0 %6663
    %v6665 = vsel %vm377, %v6658, 0.0
    %6666 = vadd.xlane.f32.xlu0 %v6665
    %v6667 = vpop.xlane.xlu0 %6666
    %v6668 = vmul.f32 %v6661, %v381
    %v6669 = vmul.f32 %v6664, %v381
    %v6670 = vmul.f32 %v6667, %v381
    %v6671 = vsub.f32 %v6656, %v6668
    %v6672 = vsub.f32 %v6657, %v6669
    %v6673 = vsub.f32 %v6658, %v6670
    %v6674 = vmul.f32 %v6671, %v6671
    %v6675 = vmul.f32 %v6672, %v6672
    %v6676 = vmul.f32 %v6673, %v6673
    %v6677 = vsel %vm370, %v6674, 0.0
    %6678 = vadd.xlane.f32.xlu0 %v6677
    %v6679 = vpop.xlane.xlu0 %6678
    %v6680 = vsel %vm370, %v6675, 0.0
    %6681 = vadd.xlane.f32.xlu0 %v6680
    %v6682 = vpop.xlane.xlu0 %6681
    %v6683 = vsel %vm377, %v6676, 0.0
    %6684 = vadd.xlane.f32.xlu0 %v6683
    %v6685 = vpop.xlane.xlu0 %6684
    %v6686 = vmul.f32 %v6679, %v381
    %v6687 = vmul.f32 %v6682, %v381
    %v6688 = vmul.f32 %v6685, %v381
    %v6689 = vadd.f32 %v6686, 1e-05
    %v6690 = vadd.f32 %v6687, 1e-05
    %v6691 = vadd.f32 %v6688, 1e-05
    %v6692 = vrsqrt.pop %v6689
    %v6693 = vrsqrt.pop %v6690
    %v6694 = vrsqrt.pop %v6691
    %v6695 = vmul.f32 %v6671, %v6692
    %v6696 = vmul.f32 %v6672, %v6693
    %v6697 = vmul.f32 %v6673, %v6694
    %v6699 = vlaneseq
    %v6700 = vshrl.u32 %v6699, 7
    %v6701 = vsub.s32 0, %v6700
    %v6702 = vrot.slane %v223, %v6701
    %v6704 = vmul.f32 %v6695, %v6702
    %v6705 = vmul.f32 %v6696, %v6702
    %v6706 = vmul.f32 %v6697, %v6702
    %v6708 = vlaneseq
    %v6709 = vshrl.u32 %v6708, 7
    %v6710 = vsub.s32 0, %v6709
    %v6711 = vrot.slane %v224, %v6710
    %v6713 = vadd.f32 %v6704, %v6711
    %v6714 = vadd.f32 %v6705, %v6711
    %v6715 = vadd.f32 %v6706, %v6711
    %v6717 = vlaneseq
    %v6718 = vshrl.u32 %v6717, 7
    %v6719 = vsub.s32 0, %v6718
    %v6720 = vrot.slane %v229, %v6719
    %v6723 = vsel %vm370, %v6713, 0
    %v6726 = vsel %vm370, %v6714, 0
    %v6729 = vsel %vm370, %v6715, 0
    %6731 = vmatprep.subr.mxu0 0.0
    %6732 = vmatpush1.msra.mxu0 %v225
    %6733 = vmatprep.subr.mxu0 0.0
    %6734 = vmatpush1.msra.mxu0 %v226
    %6735 = vmatprep.subr.mxu0 0.0
    %6736 = vmatpush1.msra.mxu0 %v227
    %6737 = vmatprep.subr.mxu0 0.0
    %6738 = vmatpush1.msra.mxu0 %v228
    %6739 = vmatprep.subr.mxu0 0.0
    %6740 = vmatpush1.msra.mxu0 0.0
    %6741 = vmatprep.subr.mxu0 0.0
    %6742 = vmatpush1.msra.mxu0 0.0
    %6743 = vmatprep.subr.mxu0 0.0
    %6744 = vmatpush1.msra.mxu0 0.0
    %6745 = vmatprep.subr.mxu0 0.0
    %6746 = vmatpush1.msra.mxu0 0.0
    %6747 = vmatprep.subr.mxu0 0.0
    %6748 = vmatpush1.msra.mxu0 0.0
    %6749 = vmatprep.subr.mxu0 0.0
    %6750 = vmatpush1.msra.mxu0 0.0
    %6751 = vmatprep.subr.mxu0 0.0
    %6752 = vmatpush1.msra.mxu0 0.0
    %6753 = vmatprep.subr.mxu0 0.0
    %6754 = vmatpush1.msra.mxu0 0.0
    %6755 = vmatprep.subr.mxu0 0.0
    %6756 = vmatpush1.msra.mxu0 0.0
    %6757 = vmatprep.subr.mxu0 0.0
    %6758 = vmatpush1.msra.mxu0 0.0
    %6759 = vmatprep.subr.mxu0 0.0
    %6760 = vmatpush1.msra.mxu0 0.0
    %6761 = vmatprep.subr.mxu0 0.0
    %6762 = vmatpush1.msra.mxu0 0.0
    %6763 = vmatprep.subr.mxu0 0.0
    %6764 = vmatpush1.msra.mxu0 0.0
    %6765 = vmatprep.subr.mxu0 0.0
    %6766 = vmatpush1.msra.mxu0 0.0
    %6767 = vmatprep.subr.mxu0 0.0
    %6768 = vmatpush1.msra.mxu0 0.0
    %6769 = vmatprep.subr.mxu0 0.0
    %6770 = vmatpush1.msra.mxu0 0.0
    %6771 = vmatprep.subr.mxu0 0.0
    %6772 = vmatpush1.msra.mxu0 0.0
    %6773 = vmatprep.subr.mxu0 0.0
    %6774 = vmatpush1.msra.mxu0 0.0
    %6775 = vmatprep.subr.mxu0 0.0
    %6776 = vmatpush1.msra.mxu0 0.0
    %6777 = vmatprep.subr.mxu0 0.0
    %6778 = vmatpush1.msra.mxu0 0.0
    %6779 = vmatprep.subr.mxu0 0.0
    %6780 = vmatpush1.msra.mxu0 0.0
    %6781 = vmatprep.subr.mxu0 0.0
    %6782 = vmatpush1.msra.mxu0 0.0
    %6783 = vmatprep.subr.mxu0 0.0
    %6784 = vmatpush1.msra.mxu0 0.0
    %6785 = vmatprep.subr.mxu0 0.0
    %6786 = vmatpush1.msra.mxu0 0.0
    %6787 = vmatprep.subr.mxu0 0.0
    %6788 = vmatpush1.msra.mxu0 0.0
    %6789 = vmatprep.subr.mxu0 0.0
    %6790 = vmatpush1.msra.mxu0 0.0
    %6791 = vmatprep.subr.mxu0 0.0
    %6792 = vmatpush1.msra.mxu0 0.0
    %6793 = vmatprep.subr.mxu0 0.0
    %6794 = vmatpush1.msra.mxu0 0.0
    %6795 = vmatprep.mubr.f32.mxu0 0.0
    %6796 = vmatmul.mubr.f32.gmra.mrb[0].mxu0 %v6723
    %v6797 = vpop.f32.mrb[0].mxu0
    %v6798 = vadd.f32 %v6720, %v6797
    %v6799 = vpop.f32.mrb[0].mxu0
    %6800 = vmatprep.mubr.f32.mxu0 0.0
    %6801 = vmatmul.mubr.f32.gmra.mrb[0].mxu0 %v6726
    %v6802 = vpop.f32.mrb[0].mxu0
    %v6803 = vadd.f32 %v6720, %v6802
    %v6804 = vpop.f32.mrb[0].mxu0
    %6805 = vmatprep.mubr.f32.mxu0 0.0
    %6806 = vmatmul.mubr.f32.gmra.mrb[0].mxu0 %v6729
    %v6807 = vpop.f32.mrb[0].mxu0
    %v6808 = vadd.f32 %v6720, %v6807
    %v6809 = vpop.f32.mrb[0].mxu0
    %6810 = vdwg.mxu0
    %v6811 = vmul.f32 %v6798, 1.702
    %v6812 = vmul.f32 %v6803, 1.702
    %v6813 = vmul.f32 %v6808, 1.702
    %v6814 = vxor.u32 %v6811, 2147483648
    %v6815 = vxor.u32 %v6812, 2147483648
    %v6816 = vxor.u32 %v6813, 2147483648
    %v6817 = vmul.f32 %v6814, 1.442695
    %v6818 = vpow.pop %v6817
    %v6819 = vmul.f32 %v6815, 1.442695
    %v6820 = vpow.pop %v6819
    %v6821 = vmul.f32 %v6816, 1.442695
    %v6822 = vpow.pop %v6821
    %v6823 = vadd.f32 %v6818, 1.0
    %v6824 = vadd.f32 %v6820, 1.0
    %v6825 = vadd.f32 %v6822, 1.0
    %v6826 = vrcp.pop %v6823
    %v6827 = vmul.f32 1.0, %v6826
    %v6828 = vrcp.pop %v6824
    %v6829 = vmul.f32 1.0, %v6828
    %v6830 = vrcp.pop %v6825
    %v6831 = vmul.f32 1.0, %v6830
    %v6832 = vmul.f32 %v6798, %v6827
    %v6833 = vmul.f32 %v6803, %v6829
    %v6834 = vmul.f32 %v6808, %v6831
    %v6836 = vlaneseq
    %v6837 = vshrl.u32 %v6836, 7
    %v6838 = vsub.s32 0, %v6837
    %v6839 = vrot.slane %v246, %v6838
    %6841 = vmatprep.subr.mxu0 0.0
    %6842 = vmatpush1.msra.mxu0 %v230
    %6843 = vmatprep.subr.mxu0 0.0
    %6844 = vmatpush1.msra.mxu0 %v231
    %6845 = vmatprep.subr.mxu0 0.0
    %6846 = vmatpush1.msra.mxu0 %v232
    %6847 = vmatprep.subr.mxu0 0.0
    %6848 = vmatpush1.msra.mxu0 %v233
    %6849 = vmatprep.subr.mxu0 0.0
    %6850 = vmatpush1.msra.mxu0 %v234
    %6851 = vmatprep.subr.mxu0 0.0
    %6852 = vmatpush1.msra.mxu0 %v235
    %6853 = vmatprep.subr.mxu0 0.0
    %6854 = vmatpush1.msra.mxu0 %v236
    %6855 = vmatprep.subr.mxu0 0.0
    %6856 = vmatpush1.msra.mxu0 %v237
    %6857 = vmatprep.subr.mxu0 0.0
    %6858 = vmatpush1.msra.mxu0 %v238
    %6859 = vmatprep.subr.mxu0 0.0
    %6860 = vmatpush1.msra.mxu0 %v239
    %6861 = vmatprep.subr.mxu0 0.0
    %6862 = vmatpush1.msra.mxu0 %v240
    %6863 = vmatprep.subr.mxu0 0.0
    %6864 = vmatpush1.msra.mxu0 %v241
    %6865 = vmatprep.subr.mxu0 0.0
    %6866 = vmatpush1.msra.mxu0 %v242
    %6867 = vmatprep.subr.mxu0 0.0
    %6868 = vmatpush1.msra.mxu0 %v243
    %6869 = vmatprep.subr.mxu0 0.0
    %6870 = vmatpush1.msra.mxu0 %v244
    %6871 = vmatprep.subr.mxu0 0.0
    %6872 = vmatpush1.msra.mxu0 %v245
    %6873 = vmatprep.subr.mxu0 0.0
    %6874 = vmatpush1.msra.mxu0 0.0
    %6875 = vmatprep.subr.mxu0 0.0
    %6876 = vmatpush1.msra.mxu0 0.0
    %6877 = vmatprep.subr.mxu0 0.0
    %6878 = vmatpush1.msra.mxu0 0.0
    %6879 = vmatprep.subr.mxu0 0.0
    %6880 = vmatpush1.msra.mxu0 0.0
    %6881 = vmatprep.subr.mxu0 0.0
    %6882 = vmatpush1.msra.mxu0 0.0
    %6883 = vmatprep.subr.mxu0 0.0
    %6884 = vmatpush1.msra.mxu0 0.0
    %6885 = vmatprep.subr.mxu0 0.0
    %6886 = vmatpush1.msra.mxu0 0.0
    %6887 = vmatprep.subr.mxu0 0.0
    %6888 = vmatpush1.msra.mxu0 0.0
    %6889 = vmatprep.subr.mxu0 0.0
    %6890 = vmatpush1.msra.mxu0 0.0
    %6891 = vmatprep.subr.mxu0 0.0
    %6892 = vmatpush1.msra.mxu0 0.0
    %6893 = vmatprep.subr.mxu0 0.0
    %6894 = vmatpush1.msra.mxu0 0.0
    %6895 = vmatprep.subr.mxu0 0.0
    %6896 = vmatpush1.msra.mxu0 0.0
    %6897 = vmatprep.subr.mxu0 0.0
    %6898 = vmatpush1.msra.mxu0 0.0
    %6899 = vmatprep.subr.mxu0 0.0
    %6900 = vmatpush1.msra.mxu0 0.0
    %6901 = vmatprep.subr.mxu0 0.0
    %6902 = vmatpush1.msra.mxu0 0.0
    %6903 = vmatprep.subr.mxu0 0.0
    %6904 = vmatpush1.msra.mxu0 0.0
    %6905 = vmatprep.mubr.f32.mxu0 0.0
    %6906 = vmatmul.mubr.f32.gmra.mrb[0].mxu0 %v6832
    %v6907 = vpop.f32.mrb[0].mxu0
    %v6908 = vadd.f32 %v6839, %v6907
    %v6909 = vpop.f32.mrb[0].mxu0
    %6910 = vmatprep.mubr.f32.mxu0 0.0
    %6911 = vmatmul.mubr.f32.gmra.mrb[0].mxu0 %v6833
    %v6912 = vpop.f32.mrb[0].mxu0
    %v6913 = vadd.f32 %v6839, %v6912
    %v6914 = vpop.f32.mrb[0].mxu0
    %6915 = vmatprep.mubr.f32.mxu0 0.0
    %6916 = vmatmul.mubr.f32.gmra.mrb[0].mxu0 %v6834
    %v6917 = vpop.f32.mrb[0].mxu0
    %v6918 = vpop.f32.mrb[0].mxu0
    %6919 = vdwg.mxu0
    %v6920 = vadd.f32 %v6656, %v6908
    %v6921 = vadd.f32 %v6657, %v6913
    %v6923 = vrot.slane %v6920, 5
    %v6925 = vadd.f32 %v6920, %v6923
    %v6926 = vmul.f32 %v6925, 0.5
    %v6928 = vrot.slane %v6921, 5
    %v6930 = vadd.f32 %v6921, %v6928
    %v6931 = vmul.f32 %v6930, 0.5
    %v6933 = vrot.slane %v6931, 1
    %v6935 = vsel %vm339, %v6926, %v6933
    %vm6936 = vcmask 254976
    %v6937 = vsel %vm6936, %v6935, 0.0
    %6938 = vadd.xlane.f32.xlu0 %v6937
    %v6939 = vpop.xlane.xlu0 %6938
    %v6940 = vmul.f32 %v6939, %v381
    %v6941 = vsub.f32 %v6935, %v6940
    %v6942 = vmul.f32 %v6941, %v6941
    %v6943 = vsel %vm6936, %v6942, 0.0
    %6944 = vadd.xlane.f32.xlu0 %v6943
    %v6945 = vpop.xlane.xlu0 %6944
    %v6946 = vmul.f32 %v6945, %v381
    %v6947 = vadd.f32 %v6946, 1e-05
    %v6948 = vrsqrt.pop %v6947
    %v6949 = vmul.f32 %v6941, %v6948
    %v6951 = vlaneseq
    %v6952 = vshrl.u32 %v6951, 7
    %v6953 = vsub.s32 0, %v6952
    %v6954 = vrot.slane %v247, %v6953
    %v6956 = vmul.f32 %v6949, %v6954
    %v6958 = vlaneseq
    %v6959 = vshrl.u32 %v6958, 7
    %v6960 = vsub.s32 0, %v6959
    %v6961 = vrot.slane %v248, %v6960
    %v6963 = vadd.f32 %v6956, %v6961
    %v6965 = vlaneseq
    %v6966 = vshrl.u32 %v6965, 7
    %v6967 = vsub.s32 0, %v6966
    %v6968 = vrot.slane %v253, %v6967
    %v6971 = vsel %vm370, %v6963, 0
    %6973 = vmatprep.subr.mxu0 0.0
    %6974 = vmatpush1.msra.mxu0 %v249
    %6975 = vmatprep.subr.mxu0 0.0
    %6976 = vmatpush1.msra.mxu0 %v250
    %6977 = vmatprep.subr.mxu0 0.0
    %6978 = vmatpush1.msra.mxu0 %v251
    %6979 = vmatprep.subr.mxu0 0.0
    %6980 = vmatpush1.msra.mxu0 %v252
    %6981 = vmatprep.subr.mxu0 0.0
    %6982 = vmatpush1.msra.mxu0 0.0
    %6983 = vmatprep.subr.mxu0 0.0
    %6984 = vmatpush1.msra.mxu0 0.0
    %6985 = vmatprep.subr.mxu0 0.0
    %6986 = vmatpush1.msra.mxu0 0.0
    %6987 = vmatprep.subr.mxu0 0.0
    %6988 = vmatpush1.msra.mxu0 0.0
    %6989 = vmatprep.subr.mxu0 0.0
    %6990 = vmatpush1.msra.mxu0 0.0
    %6991 = vmatprep.subr.mxu0 0.0
    %6992 = vmatpush1.msra.mxu0 0.0
    %6993 = vmatprep.subr.mxu0 0.0
    %6994 = vmatpush1.msra.mxu0 0.0
    %6995 = vmatprep.subr.mxu0 0.0
    %6996 = vmatpush1.msra.mxu0 0.0
    %6997 = vmatprep.subr.mxu0 0.0
    %6998 = vmatpush1.msra.mxu0 0.0
    %6999 = vmatprep.subr.mxu0 0.0
    %7000 = vmatpush1.msra.mxu0 0.0
    %7001 = vmatprep.subr.mxu0 0.0
    %7002 = vmatpush1.msra.mxu0 0.0
    %7003 = vmatprep.subr.mxu0 0.0
    %7004 = vmatpush1.msra.mxu0 0.0
    %7005 = vmatprep.subr.mxu0 0.0
    %7006 = vmatpush1.msra.mxu0 0.0
    %7007 = vmatprep.subr.mxu0 0.0
    %7008 = vmatpush1.msra.mxu0 0.0
    %7009 = vmatprep.subr.mxu0 0.0
    %7010 = vmatpush1.msra.mxu0 0.0
    %7011 = vmatprep.subr.mxu0 0.0
    %7012 = vmatpush1.msra.mxu0 0.0
    %7013 = vmatprep.subr.mxu0 0.0
    %7014 = vmatpush1.msra.mxu0 0.0
    %7015 = vmatprep.subr.mxu0 0.0
    %7016 = vmatpush1.msra.mxu0 0.0
    %7017 = vmatprep.subr.mxu0 0.0
    %7018 = vmatpush1.msra.mxu0 0.0
    %7019 = vmatprep.subr.mxu0 0.0
    %7020 = vmatpush1.msra.mxu0 0.0
    %7021 = vmatprep.subr.mxu0 0.0
    %7022 = vmatpush1.msra.mxu0 0.0
    %7023 = vmatprep.subr.mxu0 0.0
    %7024 = vmatpush1.msra.mxu0 0.0
    %7025 = vmatprep.subr.mxu0 0.0
    %7026 = vmatpush1.msra.mxu0 0.0
    %7027 = vmatprep.subr.mxu0 0.0
    %7028 = vmatpush1.msra.mxu0 0.0
    %7029 = vmatprep.subr.mxu0 0.0
    %7030 = vmatpush1.msra.mxu0 0.0
    %7031 = vmatprep.subr.mxu0 0.0
    %7032 = vmatpush1.msra.mxu0 0.0
    %7033 = vmatprep.subr.mxu0 0.0
    %7034 = vmatpush1.msra.mxu0 0.0
    %7035 = vmatprep.subr.mxu0 0.0
    %7036 = vmatpush1.msra.mxu0 0.0
    %7037 = vmatprep.mubr.f32.mxu0 0.0
    %7038 = vmatmul.mubr.f32.gmra.mrb[0].mxu0 %v6971
    %v7039 = vpop.f32.mrb[0].mxu0
    %v7040 = vadd.f32 %v6968, %v7039
    %v7041 = vpop.f32.mrb[0].mxu0
    %7042 = vdwg.mxu0
    %vm7043 = vcmask 123904
    %7044 = vst.msk [vmem:[#allocation2] sm:$0x3] %vm7043, %v7040
    // Predicated region
    $region138: #{vision_transformer_forward.1} parent=1 // pred_check
      _
    $region139: #{vision_transformer_forward.1} parent=1 // pred_check_branch
      %7046 = sbr.rel (0) target = $region141
    $region140: #{vision_transformer_forward.1} parent=1 // pred_region
      %s7048 = ssub.s32 32, 32
      %7049 = vsyncadd [#allocation3], %s7048
      %s7051 = sshll.u32 [#allocation2], 4
      %s7052 = int_to_ptr.vmem [resolvable:$true] %s7051
      %7054 = dma.vmem_to_hbm [thread:$0]  %s7052, 32, %s69, [#allocation3]
    $region141: #{vision_transformer_forward.1} parent=1 // pred_fallthru
      _
    // Predicated region
    $region142: #{vision_transformer_forward.1} parent=1 // pred_check
      _
    $region143: #{vision_transformer_forward.1} parent=1 // pred_check_branch
      %7056 = sbr.rel (0) target = $region145
    $region144: #{vision_transformer_forward.1} parent=1 // pred_region
      %7057 = dma.done [#allocation3], 32
    $region145: #{vision_transformer_forward.1} parent=1 // pred_fallthru
      _
    %7058 = vsyncpa [#allocation3], 1

</llo_original>
